<compile_context>
chip_gen: v5e
topology: v5e:2x2
jax: 0.10.0
libtpu: 0.0.40
codegen_flags: <defaults>
</compile_context>

<pallas_src>
import numpy as np
import jax
import jax.numpy as jnp
from jax.experimental import pallas as pl
from jax.experimental.pallas import tpu as pltpu


# ----------------------------------------------------------------------------
# table construction (glue / parameter setup)
# ----------------------------------------------------------------------------
def _fft_freqs(n):
    k = np.arange(n)
    return np.where(k < (n + 1) // 2, k, k - n)


def build_tables(H, W, base_res, Wout, G):
    """Packed per-resolution DFT tables + scatter masks (grouped by G).

    tab1 (n_grp, 2W, G*2P) : stage-1 synthesis; per group the G resolutions'
                             [t1r | t1i] blocks are N-concatenated (one dot/step).
    tab2 (R, 2H, P)        : stage-2 row synthesis [t2r ; t2i].
    tab3 (R, P, 2H)        : stage-3 row analysis  [t3r | t3i] (one fused dot).
    tabw (R, 2P+H, Wout)   : stage-4 column analysis [t4a ; t4b] + scatter mask.
    R = n_grp*G >= n_res; padded tail entries are all-zero (zero mask => no-op).
    """
    assert H == W, "square spatial grids assumed (module resamples to [res, res])"
    assert base_res % 2 == 0 and W >= base_res
    P = W
    Wc = W // 2 + 1
    assert Wout >= 2 * Wc
    res_list = list(range(base_res, W + 1))
    n_res = len(res_list)
    n_grp = -(-n_res // G)
    R = n_grp * G
    fH = _fft_freqs(H)
    fW = _fft_freqs(W)
    p = np.arange(P)
    l = np.arange(Wc)

    tab1 = np.zeros((n_grp, 2 * W, G * 2 * P), np.float32)
    tab2 = np.zeros((R, 2 * H, P), np.float32)
    tab3 = np.zeros((R, P, 2 * H), np.float32)
    tabw = np.zeros((R, 2 * P + H, Wout), np.float32)

    for ri, res in enumerate(res_list):
        lo, hi = -(res // 2), (res - 1) // 2          # kept frequency band
        band_H = (fH >= lo) & (fH <= hi)
        band_W = (fW >= lo) & (fW <= hi)
        spatial = (p < res)

        # synthesis (band-limited inverse DFT at res x res, forward norm)
        ang = 2.0 * np.pi * np.outer(p, fH) / res
        Er = np.exp(1j * ang) * spatial[:, None] * band_H[None, :]          # (P, H)
        ang = 2.0 * np.pi * np.outer(fW, p) / res
        EcT = np.exp(1j * ang) * band_W[:, None] * spatial[None, :]         # (W, P)

        # analysis (rfft2, norm='forward', evaluated at output frequency labels)
        ang = -2.0 * np.pi * np.outer(fH, p) / res
        Ar = (np.exp(1j * ang) * spatial[None, :] * band_H[:, None]
              / float(res * res))                                           # (H, P)
        ang = -2.0 * np.pi * np.outer(p, l) / res
        Ac = np.exp(1j * ang) * spatial[:, None] * (l <= res // 2)[None, :]  # (P, Wc)

        # scatter mask — reproduces the torch indexing (sequential overwrite)
        m = np.zeros((H, Wc), np.float32)
        h = res // 2
        if res == base_res:
            m[:h, : h + 1] = 1.0
            m[H - h:, : h + 1] = 1.0
        elif res % 2 == 1:
            m[h, : h + 1] = 1.0
            m[H - h, : h + 1] = 1.0
            m[: h + 1, h] = 1.0
            m[H - h:, h] = 1.0
        else:
            m[H - h, : h + 1] = 1.0
            m[H - h:, h] = 1.0
            m[:h, h] = 1.0

        # ---- pack ----
        rg, g = divmod(ri, G)
        t1r = np.concatenate([EcT.real, -EcT.imag], axis=0)   # (2W, P)
        t1i = np.concatenate([EcT.imag, EcT.real], axis=0)    # (2W, P)
        tab1[rg, :, g * 2 * P: g * 2 * P + P] = t1r
        tab1[rg, :, g * 2 * P + P: (g + 1) * 2 * P] = t1i

        tab2[ri, :H, :] = Er.real.T
        tab2[ri, H:, :] = -Er.imag.T

        tab3[ri, :, :H] = Ar.real.T
        tab3[ri, :, H:] = Ar.imag.T

        tabw[ri, :P, :2 * Wc] = np.concatenate([Ac.real, Ac.imag], axis=1)
        tabw[ri, P:2 * P, :2 * Wc] = np.concatenate([-Ac.imag, Ac.real], axis=1)
        tabw[ri, 2 * P:2 * P + H, :Wc] = m
        tabw[ri, 2 * P:2 * P + H, Wc:2 * Wc] = m

    return tab1, tab2, tab3, tabw, n_res, n_grp


# ----------------------------------------------------------------------------
# Pallas kernel: one (channel-block, resolution-group) grid step
# ----------------------------------------------------------------------------
def _make_kernel(H, W, Wout, TB, G, batched_transpose):
    P = W

    def bT(x2, rows, cols):
        """Per-channel 2-D transpose: (TB*rows, cols) -> (TB*cols, rows)."""
        if batched_transpose:
            x3 = x2.reshape(TB, rows, cols)
            return jnp.transpose(x3, (0, 2, 1)).reshape(TB * cols, rows)
        # fallback: unrolled 2-D transposes + sublane concat (proven lowering)
        return jnp.concatenate(
            [x2[b * rows:(b + 1) * rows, :].T for b in range(TB)], axis=0)

    def kernel(x_ref, tab1_ref, tab2_ref, tab3_ref, tabw_ref, out_ref):
        rg = pl.program_id(1)

        @pl.when(rg == 0)
        def _init():
            out_ref[...] = jnp.zeros(out_ref.shape, out_ref.dtype)

        dot = lambda a, b: jnp.dot(a, b, preferred_element_type=jnp.float32)

        # stage 1: band-limited column synthesis for all G resolutions at once
        x = x_ref[...].reshape(TB * H, 2 * W)            # [Re | Im] along K
        u_all = dot(x, tab1_ref[0])                      # (TB*H, G*2P)

        for g in range(G):                               # resolutions, in order
            u_re = u_all[:, g * 2 * P: g * 2 * P + P]    # (TB*H, P)
            u_im = u_all[:, g * 2 * P + P: (g + 1) * 2 * P]

            u_reT = bT(u_re, H, P)                       # (TB*P, H)
            u_imT = bT(u_im, H, P)

            # stage 2: row synthesis -> real field (transposed layout), ReLU
            z = jnp.maximum(
                dot(u_reT, tab2_ref[g, :H, :]) + dot(u_imT, tab2_ref[g, H:, :]),
                0.0)                                     # (TB*P, P)

            # stage 3: row analysis, re/im fused along N
            tt = dot(z, tab3_ref[g])                     # (TB*P, 2H) = [re | im]
            t_re = bT(tt[:, :H], P, H)                   # (TB*H, P)
            t_im = bT(tt[:, H:], P, H)

            # stage 4: column analysis -> [y_re | y_im | pad] (lane-dense)
            y = (dot(t_re, tabw_ref[g, :P, :])
                 + dot(t_im, tabw_ref[g, P:2 * P, :]))   # (TB*H, Wout)

            # sequential-overwrite scatter of this resolution's frequency ring
            mask = tabw_ref[g, 2 * P:, :]                # (H, Wout), exact 0/1
            out_ref[...] = jnp.where(mask[None, :, :] != 0.0,
                                     y.reshape(TB, H, Wout),
                                     out_ref[...])

    return kernel


# ----------------------------------------------------------------------------
# wrapper
# ----------------------------------------------------------------------------
def _conj_mirror2d(a):
    """y[..., k1, k2] = conj(a[..., (-k1) % H, (-k2) % W])."""
    return jnp.conj(jnp.roll(jnp.flip(a, axis=(-2, -1)), shift=(1, 1),
                             axis=(-2, -1)))


def scale_eq_nonlin_forward(x_ft, base_res):
    B, C, H, W = x_ft.shape
    assert H == W, "square spatial grids assumed"
    assert H % 8 == 0, "H must be a multiple of 8 for TPU tiling"
    assert W >= base_res and base_res % 2 == 0
    P = W
    Wc = W // 2 + 1
    BC = B * C
    Wout = ((2 * Wc + 127) // 128) * 128          # lane-dense padded output width

    # channel-block size: target M = TB*H = 256 MXU rows (v6e/v7x) while keeping
    # >= 2 channel blocks so the 'parallel' axis feeds both v7x TensorCores.
    TB = min(BC, max(1, 256 // H))
    if BC >= 2 and BC // TB < 2:
        TB = max(1, BC // 2)
    nb = -(-BC // TB)
    BCpad = nb * TB

    # resolution-group size: fill >= 128 MXU lanes in the fused stage-1 dot.
    n_res_total = W - base_res + 1
    G = min(n_res_total, max(1, -(-128 // (2 * P))))

    tab1_np, tab2_np, tab3_np, tabw_np, n_res, n_grp = build_tables(
        H, W, base_res, Wout, G)
    tab1 = jnp.asarray(tab1_np)
    tab2 = jnp.asarray(tab2_np)
    tab3 = jnp.asarray(tab3_np)
    tabw = jnp.asarray(tabw_np)

    # glue: fft2(real(ifft2(x_ft))) == exact Hermitian symmetrization (no FFTs)
    Xf = 0.5 * (x_ft + _conj_mirror2d(x_ft))
    xr = jnp.real(Xf).astype(jnp.float32)
    xi = jnp.imag(Xf).astype(jnp.float32)
    xcat = jnp.concatenate([xr, xi], axis=-1).reshape(BC, H, 2 * W)
    if BCpad > BC:
        xcat = jnp.concatenate(
            [xcat, jnp.zeros((BCpad - BC, H, 2 * W), jnp.float32)], axis=0)

    grid_spec = pltpu.PrefetchScalarGridSpec(
        num_scalar_prefetch=0,
        grid=(nb, n_grp),
        in_specs=[
            pl.BlockSpec((TB, H, 2 * W), lambda b, r: (b, 0, 0)),          # spectrum
            pl.BlockSpec((1, 2 * W, G * 2 * P), lambda b, r: (r, 0, 0)),   # stage 1
            pl.BlockSpec((G, 2 * H, P), lambda b, r: (r, 0, 0)),           # stage 2
            pl.BlockSpec((G, P, 2 * H), lambda b, r: (r, 0, 0)),           # stage 3
            pl.BlockSpec((G, 2 * P + H, Wout), lambda b, r: (r, 0, 0)),    # stage 4
        ],
        out_specs=pl.BlockSpec((TB, H, Wout), lambda b, r: (b, 0, 0)),
    )

    blk_bytes = 4 * (TB * H * 2 * W
                     + 2 * W * G * 2 * P
                     + G * 2 * H * P
                     + G * P * 2 * H
                     + G * (2 * P + H) * Wout
                     + TB * H * Wout)
    vmem_limit = int(min(96 * 2 ** 20, max(32 * 2 ** 20, 3 * blk_bytes)))

    def run(batched_transpose):
        return pl.pallas_call(
            _make_kernel(H, W, Wout, TB, G, batched_transpose),
            out_shape=jax.ShapeDtypeStruct((BCpad, H, Wout), jnp.float32),
            grid_spec=grid_spec,
            compiler_params=pltpu.CompilerParams(
                dimension_semantics=("parallel", "arbitrary"),
                vmem_limit_bytes=vmem_limit),
        )(xcat, tab1, tab2, tab3, tabw)

    try:
        out = jax.block_until_ready(run(True))
    except Exception:
        # fallback for Mosaic versions without batched rank-3 transposes
        out = jax.block_until_ready(run(False))

    out = out[:BC].reshape(B, C, H, Wout)
    x_half = (out[..., :Wc] + 1j * out[..., Wc:2 * Wc]).astype(x_ft.dtype)

    # glue: convert the assembled half-spectrum back to a full fft2 spectrum
    full = jnp.fft.fft2(
        jnp.fft.irfft2(x_half, s=(H, W), norm='forward'), norm='forward')
    return full.astype(x_ft.dtype)


# ----------------------------------------------------------------------------
# pure-JAX reference (same assumed resample / down_sample_keepsize semantics)
# ----------------------------------------------------------------------------
def _band_indices(n, res):
    idx = []
    for kp in range(res):
        f = kp if kp <= (res - 1) // 2 else kp - res
        idx.append(f % n)
    return np.array(idx)


def reference_forward(x_ft, base_res):
    x = jnp.real(jnp.fft.ifft2(x_ft, norm='forward'))
    B, C, H, W = x.shape
    Wc = W // 2 + 1
    Xf = jnp.fft.fft2(x, norm='forward')
    x_out = jnp.zeros((B, C, H, Wc), dtype=x_ft.dtype)

    def downsample(res):
        ridx = _band_indices(H, res)
        cidx = _band_indices(W, res)
        Xc = Xf[..., ridx, :][..., :, cidx]
        return jnp.real(jnp.fft.ifft2(Xc, norm='forward'))

    b2 = base_res // 2
    xb = jax.nn.relu(downsample(base_res))
    xbr = jnp.fft.rfft2(xb, norm='forward')
    x_out = x_out.at[..., :b2, :b2 + 1].set(xbr[..., :b2, :b2 + 1])
    x_out = x_out.at[..., -b2:, :b2 + 1].set(xbr[..., -b2:, :b2 + 1])

    for res in range(base_res + 1, W + 1):
        xres = jax.nn.relu(downsample(res))
        xrr = jnp.fft.rfft2(xres, norm='forward')
        h = res // 2
        if res % 2 == 1:
            x_out = x_out.at[..., h, :h + 1].set(xrr[..., h, :h + 1])
            x_out = x_out.at[..., -h, :h + 1].set(xrr[..., -h, :h + 1])
            x_out = x_out.at[..., :h + 1, h].set(xrr[..., :h + 1, h])
            x_out = x_out.at[..., -h:, h].set(xrr[..., -h:, h])
        else:
            x_out = x_out.at[..., -h, :h + 1].set(xrr[..., -h, :h + 1])
            x_out = x_out.at[..., -h:, h].set(xrr[..., -h:, h])
            x_out = x_out.at[..., :h, h].set(xrr[..., :h, h])

    return jnp.fft.fft2(
        jnp.fft.irfft2(x_out, s=(H, W), norm='forward'), norm='forward')


# ----------------------------------------------------------------------------
if __name__ == "__main__":
    B, C, H, W = 2, 4, 16, 16
    base_res = 8

    key = jax.random.PRNGKey(0)
    kr, ki = jax.random.split(key)
    x_ft = (jax.random.normal(kr, (B, C, H, W), jnp.float32)
            + 1j * jax.random.normal(ki, (B, C, H, W), jnp.float32)
            ).astype(jnp.complex64)

    out = jax.block_until_ready(scale_eq_nonlin_forward(x_ft, base_res))
    assert out.shape == (B, C, H, W) and out.dtype == jnp.complex64

    # correctness check against the pure-JAX/FFT reference
    ref = jax.block_until_ready(reference_forward(x_ft, base_res))
    err = float(jnp.max(jnp.abs(out - ref)))
    scale = float(jnp.max(jnp.abs(ref))) + 1e-12
    assert err <= 5e-3 * scale, f"kernel mismatch: err={err}, scale={scale}"

    print("KERNEL_OK")
</pallas_src>

<mosaic_0001>
module attributes {stable_mosaic.version = 11 : i64} {
  func.func @kernel(%arg0: i32, %arg1: i32, %arg2: memref<4x16x32xf32, #tpu.memory_space<vmem>>, %arg3: memref<1x32x128xf32, #tpu.memory_space<vmem>>, %arg4: memref<4x32x16xf32, #tpu.memory_space<vmem>>, %arg5: memref<4x16x32xf32, #tpu.memory_space<vmem>>, %arg6: memref<4x48x128xf32, #tpu.memory_space<vmem>>, %arg7: memref<4x16x128xf32, #tpu.memory_space<vmem>>) attributes {dimension_semantics = [#tpu.dimension_semantics<parallel>, #tpu.dimension_semantics<arbitrary>], iteration_bounds = array<i64: 2, 3>, scalar_prefetch = 0 : i64, scratch_operands = 0 : i64, tpu.core_type = #tpu.core_type<tc>, window_params = [{transform_indices = @transform_0, window_bounds = array<i64: 4, 16, 32>}, {transform_indices = @transform_1, window_bounds = array<i64: 1, 32, 128>}, {transform_indices = @transform_2, window_bounds = array<i64: 4, 32, 16>}, {transform_indices = @transform_3, window_bounds = array<i64: 4, 16, 32>}, {transform_indices = @transform_4, window_bounds = array<i64: 4, 48, 128>}, {transform_indices = @transform_5, window_bounds = array<i64: 4, 16, 128>}]} {
    %c0_i32 = arith.constant 0 : i32
    %0 = arith.cmpi eq, %arg1, %c0_i32 : i32
    %1 = arith.extui %0 : i1 to i32
    %c0_i32_0 = arith.constant 0 : i32
    %2 = arith.cmpi ne, %1, %c0_i32_0 : i32
    scf.if %2 {
      %cst_125 = arith.constant 0.000000e+00 : f32
      %192 = vector.broadcast %cst_125 : f32 to vector<4x16x128xf32>
      %c0_126 = arith.constant 0 : index
      %c0_127 = arith.constant 0 : index
      %c0_128 = arith.constant 0 : index
      %193 = vector.load %arg7[%c0_126, %c0_127, %c0_128] : memref<4x16x128xf32, #tpu.memory_space<vmem>>, vector<4x16x128xf32>
      tpu.vector_store %arg7[%c0_126, %c0_127, %c0_128], %192 {strides = array<i32>} : memref<4x16x128xf32, #tpu.memory_space<vmem>>, vector<4x16x128xf32>,
    } else {
    }
    %c0 = arith.constant 0 : index
    %c0_1 = arith.constant 0 : index
    %c0_2 = arith.constant 0 : index
    %3 = vector.load %arg2[%c0, %c0_1, %c0_2] : memref<4x16x32xf32, #tpu.memory_space<vmem>>, vector<4x16x32xf32>
    %4 = vector.shape_cast %3 : vector<4x16x32xf32> to vector<64x32xf32>
    %c0_3 = arith.constant 0 : index
    %c0_4 = arith.constant 0 : index
    %c0_5 = arith.constant 0 : index
    %5 = vector.load %arg3[%c0_3, %c0_4, %c0_5] : memref<1x32x128xf32, #tpu.memory_space<vmem>>, vector<1x32x128xf32>
    %6 = vector.shape_cast %5 : vector<1x32x128xf32> to vector<32x128xf32>
    %cst = arith.constant dense<0.000000e+00> : vector<64x128xf32>
    %7 = tpu.matmul %4, %6, %cst {dimension_numbers = #tpu.dot_dimension_numbers<[1], [0], [0], [1], [0, 0, 1, 1], [], []>} : vector<64x32xf32>, vector<32x128xf32>, vector<64x128xf32> -> vector<64x128xf32>
    %8 = vector.extract_strided_slice %7 {offsets = [0, 0], sizes = [64, 16], strides = [1, 1]} : vector<64x128xf32> to vector<64x16xf32>
    %9 = vector.extract_strided_slice %7 {offsets = [0, 16], sizes = [64, 16], strides = [1, 1]} : vector<64x128xf32> to vector<64x16xf32>
    %10 = vector.shape_cast %8 : vector<64x16xf32> to vector<4x16x16xf32>
    %11 = tpu.transpose %10, [0, 2, 1] : vector<4x16x16xf32> -> vector<4x16x16xf32>
    %12 = vector.shape_cast %11 : vector<4x16x16xf32> to vector<64x16xf32>
    %13 = vector.shape_cast %9 : vector<64x16xf32> to vector<4x16x16xf32>
    %14 = tpu.transpose %13, [0, 2, 1] : vector<4x16x16xf32> -> vector<4x16x16xf32>
    %15 = vector.shape_cast %14 : vector<4x16x16xf32> to vector<64x16xf32>
    %c0_6 = arith.constant 0 : index
    %c0_7 = arith.constant 0 : index
    %c0_8 = arith.constant 0 : index
    %16 = vector.load %arg4[%c0_6, %c0_7, %c0_8] : memref<4x32x16xf32, #tpu.memory_space<vmem>>, vector<1x16x16xf32>
    %17 = vector.shape_cast %16 : vector<1x16x16xf32> to vector<16x16xf32>
    %cst_9 = arith.constant dense<0.000000e+00> : vector<64x16xf32>
    %18 = tpu.matmul %12, %17, %cst_9 {dimension_numbers = #tpu.dot_dimension_numbers<[1], [0], [0], [1], [0, 0, 1, 1], [], []>} : vector<64x16xf32>, vector<16x16xf32>, vector<64x16xf32> -> vector<64x16xf32>
    %c0_10 = arith.constant 0 : index
    %c16 = arith.constant 16 : index
    %c0_11 = arith.constant 0 : index
    %19 = vector.load %arg4[%c0_10, %c16, %c0_11] : memref<4x32x16xf32, #tpu.memory_space<vmem>>, vector<1x16x16xf32>
    %20 = vector.shape_cast %19 : vector<1x16x16xf32> to vector<16x16xf32>
    %cst_12 = arith.constant dense<0.000000e+00> : vector<64x16xf32>
    %21 = tpu.matmul %15, %20, %cst_12 {dimension_numbers = #tpu.dot_dimension_numbers<[1], [0], [0], [1], [0, 0, 1, 1], [], []>} : vector<64x16xf32>, vector<16x16xf32>, vector<64x16xf32> -> vector<64x16xf32>
    %22 = arith.addf %18, %21 : vector<64x16xf32>
    %cst_13 = arith.constant 0.000000e+00 : f32
    %23 = vector.broadcast %cst_13 : f32 to vector<64x16xf32>
    %24 = arith.maximumf %22, %23 : vector<64x16xf32>
    %c0_14 = arith.constant 0 : index
    %c0_15 = arith.constant 0 : index
    %c0_16 = arith.constant 0 : index
    %25 = vector.load %arg5[%c0_14, %c0_15, %c0_16] : memref<4x16x32xf32, #tpu.memory_space<vmem>>, vector<1x16x32xf32>
    %26 = vector.shape_cast %25 : vector<1x16x32xf32> to vector<16x32xf32>
    %cst_17 = arith.constant dense<0.000000e+00> : vector<64x32xf32>
    %27 = tpu.matmul %24, %26, %cst_17 {dimension_numbers = #tpu.dot_dimension_numbers<[1], [0], [0], [1], [0, 0, 1, 1], [], []>} : vector<64x16xf32>, vector<16x32xf32>, vector<64x32xf32> -> vector<64x32xf32>
    %28 = vector.extract_strided_slice %27 {offsets = [0, 0], sizes = [64, 16], strides = [1, 1]} : vector<64x32xf32> to vector<64x16xf32>
    %29 = vector.shape_cast %28 : vector<64x16xf32> to vector<4x16x16xf32>
    %30 = tpu.transpose %29, [0, 2, 1] : vector<4x16x16xf32> -> vector<4x16x16xf32>
    %31 = vector.shape_cast %30 : vector<4x16x16xf32> to vector<64x16xf32>
    %32 = vector.extract_strided_slice %27 {offsets = [0, 16], sizes = [64, 16], strides = [1, 1]} : vector<64x32xf32> to vector<64x16xf32>
    %33 = vector.shape_cast %32 : vector<64x16xf32> to vector<4x16x16xf32>
    %34 = tpu.transpose %33, [0, 2, 1] : vector<4x16x16xf32> -> vector<4x16x16xf32>
    %35 = vector.shape_cast %34 : vector<4x16x16xf32> to vector<64x16xf32>
    %c0_18 = arith.constant 0 : index
    %c0_19 = arith.constant 0 : index
    %c0_20 = arith.constant 0 : index
    %36 = vector.load %arg6[%c0_18, %c0_19, %c0_20] : memref<4x48x128xf32, #tpu.memory_space<vmem>>, vector<1x16x128xf32>
    %37 = vector.shape_cast %36 : vector<1x16x128xf32> to vector<16x128xf32>
    %cst_21 = arith.constant dense<0.000000e+00> : vector<64x128xf32>
    %38 = tpu.matmul %31, %37, %cst_21 {dimension_numbers = #tpu.dot_dimension_numbers<[1], [0], [0], [1], [0, 0, 1, 1], [], []>} : vector<64x16xf32>, vector<16x128xf32>, vector<64x128xf32> -> vector<64x128xf32>
    %c0_22 = arith.constant 0 : index
    %c16_23 = arith.constant 16 : index
    %c0_24 = arith.constant 0 : index
    %39 = vector.load %arg6[%c0_22, %c16_23, %c0_24] : memref<4x48x128xf32, #tpu.memory_space<vmem>>, vector<1x16x128xf32>
    %40 = vector.shape_cast %39 : vector<1x16x128xf32> to vector<16x128xf32>
    %cst_25 = arith.constant dense<0.000000e+00> : vector<64x128xf32>
    %41 = tpu.matmul %35, %40, %cst_25 {dimension_numbers = #tpu.dot_dimension_numbers<[1], [0], [0], [1], [0, 0, 1, 1], [], []>} : vector<64x16xf32>, vector<16x128xf32>, vector<64x128xf32> -> vector<64x128xf32>
    %42 = arith.addf %38, %41 : vector<64x128xf32>
    %c0_26 = arith.constant 0 : index
    %c32 = arith.constant 32 : index
    %c0_27 = arith.constant 0 : index
    %43 = vector.load %arg6[%c0_26, %c32, %c0_27] : memref<4x48x128xf32, #tpu.memory_space<vmem>>, vector<1x16x128xf32>
    %44 = vector.shape_cast %43 : vector<1x16x128xf32> to vector<16x128xf32>
    %45 = vector.shape_cast %44 : vector<16x128xf32> to vector<1x16x128xf32>
    %cst_28 = arith.constant 0.000000e+00 : f32
    %46 = vector.broadcast %cst_28 : f32 to vector<1x16x128xf32>
    %47 = arith.cmpf one, %45, %46 : vector<1x16x128xf32>
    %48 = vector.shape_cast %42 : vector<64x128xf32> to vector<4x16x128xf32>
    %c0_29 = arith.constant 0 : index
    %c0_30 = arith.constant 0 : index
    %c0_31 = arith.constant 0 : index
    %49 = vector.load %arg7[%c0_29, %c0_30, %c0_31] : memref<4x16x128xf32, #tpu.memory_space<vmem>>, vector<4x16x128xf32>
    %50 = vector.shape_cast %47 : vector<1x16x128xi1> to vector<1x16x128xi1>
    %51 = vector.broadcast %50 : vector<1x16x128xi1> to vector<4x16x128xi1>
    %52 = arith.select %51, %48, %49 : vector<4x16x128xi1>, vector<4x16x128xf32>
    %c0_32 = arith.constant 0 : index
    %c0_33 = arith.constant 0 : index
    %c0_34 = arith.constant 0 : index
    %53 = vector.load %arg7[%c0_32, %c0_33, %c0_34] : memref<4x16x128xf32, #tpu.memory_space<vmem>>, vector<4x16x128xf32>
    tpu.vector_store %arg7[%c0_32, %c0_33, %c0_34], %52 {strides = array<i32>} : memref<4x16x128xf32, #tpu.memory_space<vmem>>, vector<4x16x128xf32>,
    %54 = vector.extract_strided_slice %7 {offsets = [0, 32], sizes = [64, 16], strides = [1, 1]} : vector<64x128xf32> to vector<64x16xf32>
    %55 = vector.extract_strided_slice %7 {offsets = [0, 48], sizes = [64, 16], strides = [1, 1]} : vector<64x128xf32> to vector<64x16xf32>
    %56 = vector.shape_cast %54 : vector<64x16xf32> to vector<4x16x16xf32>
    %57 = tpu.transpose %56, [0, 2, 1] : vector<4x16x16xf32> -> vector<4x16x16xf32>
    %58 = vector.shape_cast %57 : vector<4x16x16xf32> to vector<64x16xf32>
    %59 = vector.shape_cast %55 : vector<64x16xf32> to vector<4x16x16xf32>
    %60 = tpu.transpose %59, [0, 2, 1] : vector<4x16x16xf32> -> vector<4x16x16xf32>
    %61 = vector.shape_cast %60 : vector<4x16x16xf32> to vector<64x16xf32>
    %c1 = arith.constant 1 : index
    %c0_35 = arith.constant 0 : index
    %c0_36 = arith.constant 0 : index
    %62 = vector.load %arg4[%c1, %c0_35, %c0_36] : memref<4x32x16xf32, #tpu.memory_space<vmem>>, vector<1x16x16xf32>
    %63 = vector.shape_cast %62 : vector<1x16x16xf32> to vector<16x16xf32>
    %cst_37 = arith.constant dense<0.000000e+00> : vector<64x16xf32>
    %64 = tpu.matmul %58, %63, %cst_37 {dimension_numbers = #tpu.dot_dimension_numbers<[1], [0], [0], [1], [0, 0, 1, 1], [], []>} : vector<64x16xf32>, vector<16x16xf32>, vector<64x16xf32> -> vector<64x16xf32>
    %c1_38 = arith.constant 1 : index
    %c16_39 = arith.constant 16 : index
    %c0_40 = arith.constant 0 : index
    %65 = vector.load %arg4[%c1_38, %c16_39, %c0_40] : memref<4x32x16xf32, #tpu.memory_space<vmem>>, vector<1x16x16xf32>
    %66 = vector.shape_cast %65 : vector<1x16x16xf32> to vector<16x16xf32>
    %cst_41 = arith.constant dense<0.000000e+00> : vector<64x16xf32>
    %67 = tpu.matmul %61, %66, %cst_41 {dimension_numbers = #tpu.dot_dimension_numbers<[1], [0], [0], [1], [0, 0, 1, 1], [], []>} : vector<64x16xf32>, vector<16x16xf32>, vector<64x16xf32> -> vector<64x16xf32>
    %68 = arith.addf %64, %67 : vector<64x16xf32>
    %cst_42 = arith.constant 0.000000e+00 : f32
    %69 = vector.broadcast %cst_42 : f32 to vector<64x16xf32>
    %70 = arith.maximumf %68, %69 : vector<64x16xf32>
    %c1_43 = arith.constant 1 : index
    %c0_44 = arith.constant 0 : index
    %c0_45 = arith.constant 0 : index
    %71 = vector.load %arg5[%c1_43, %c0_44, %c0_45] : memref<4x16x32xf32, #tpu.memory_space<vmem>>, vector<1x16x32xf32>
    %72 = vector.shape_cast %71 : vector<1x16x32xf32> to vector<16x32xf32>
    %cst_46 = arith.constant dense<0.000000e+00> : vector<64x32xf32>
    %73 = tpu.matmul %70, %72, %cst_46 {dimension_numbers = #tpu.dot_dimension_numbers<[1], [0], [0], [1], [0, 0, 1, 1], [], []>} : vector<64x16xf32>, vector<16x32xf32>, vector<64x32xf32> -> vector<64x32xf32>
    %74 = vector.extract_strided_slice %73 {offsets = [0, 0], sizes = [64, 16], strides = [1, 1]} : vector<64x32xf32> to vector<64x16xf32>
    %75 = vector.shape_cast %74 : vector<64x16xf32> to vector<4x16x16xf32>
    %76 = tpu.transpose %75, [0, 2, 1] : vector<4x16x16xf32> -> vector<4x16x16xf32>
    %77 = vector.shape_cast %76 : vector<4x16x16xf32> to vector<64x16xf32>
    %78 = vector.extract_strided_slice %73 {offsets = [0, 16], sizes = [64, 16], strides = [1, 1]} : vector<64x32xf32> to vector<64x16xf32>
    %79 = vector.shape_cast %78 : vector<64x16xf32> to vector<4x16x16xf32>
    %80 = tpu.transpose %79, [0, 2, 1] : vector<4x16x16xf32> -> vector<4x16x16xf32>
    %81 = vector.shape_cast %80 : vector<4x16x16xf32> to vector<64x16xf32>
    %c1_47 = arith.constant 1 : index
    %c0_48 = arith.constant 0 : index
    %c0_49 = arith.constant 0 : index
    %82 = vector.load %arg6[%c1_47, %c0_48, %c0_49] : memref<4x48x128xf32, #tpu.memory_space<vmem>>, vector<1x16x128xf32>
    %83 = vector.shape_cast %82 : vector<1x16x128xf32> to vector<16x128xf32>
    %cst_50 = arith.constant dense<0.000000e+00> : vector<64x128xf32>
    %84 = tpu.matmul %77, %83, %cst_50 {dimension_numbers = #tpu.dot_dimension_numbers<[1], [0], [0], [1], [0, 0, 1, 1], [], []>} : vector<64x16xf32>, vector<16x128xf32>, vector<64x128xf32> -> vector<64x128xf32>
    %c1_51 = arith.constant 1 : index
    %c16_52 = arith.constant 16 : index
    %c0_53 = arith.constant 0 : index
    %85 = vector.load %arg6[%c1_51, %c16_52, %c0_53] : memref<4x48x128xf32, #tpu.memory_space<vmem>>, vector<1x16x128xf32>
    %86 = vector.shape_cast %85 : vector<1x16x128xf32> to vector<16x128xf32>
    %cst_54 = arith.constant dense<0.000000e+00> : vector<64x128xf32>
    %87 = tpu.matmul %81, %86, %cst_54 {dimension_numbers = #tpu.dot_dimension_numbers<[1], [0], [0], [1], [0, 0, 1, 1], [], []>} : vector<64x16xf32>, vector<16x128xf32>, vector<64x128xf32> -> vector<64x128xf32>
    %88 = arith.addf %84, %87 : vector<64x128xf32>
    %c1_55 = arith.constant 1 : index
    %c32_56 = arith.constant 32 : index
    %c0_57 = arith.constant 0 : index
    %89 = vector.load %arg6[%c1_55, %c32_56, %c0_57] : memref<4x48x128xf32, #tpu.memory_space<vmem>>, vector<1x16x128xf32>
    %90 = vector.shape_cast %89 : vector<1x16x128xf32> to vector<16x128xf32>
    %91 = vector.shape_cast %90 : vector<16x128xf32> to vector<1x16x128xf32>
    %cst_58 = arith.constant 0.000000e+00 : f32
    %92 = vector.broadcast %cst_58 : f32 to vector<1x16x128xf32>
    %93 = arith.cmpf one, %91, %92 : vector<1x16x128xf32>
    %94 = vector.shape_cast %88 : vector<64x128xf32> to vector<4x16x128xf32>
    %c0_59 = arith.constant 0 : index
    %c0_60 = arith.constant 0 : index
    %c0_61 = arith.constant 0 : index
    %95 = vector.load %arg7[%c0_59, %c0_60, %c0_61] : memref<4x16x128xf32, #tpu.memory_space<vmem>>, vector<4x16x128xf32>
    %96 = vector.shape_cast %93 : vector<1x16x128xi1> to vector<1x16x128xi1>
    %97 = vector.broadcast %96 : vector<1x16x128xi1> to vector<4x16x128xi1>
    %98 = arith.select %97, %94, %95 : vector<4x16x128xi1>, vector<4x16x128xf32>
    %c0_62 = arith.constant 0 : index
    %c0_63 = arith.constant 0 : index
    %c0_64 = arith.constant 0 : index
    %99 = vector.load %arg7[%c0_62, %c0_63, %c0_64] : memref<4x16x128xf32, #tpu.memory_space<vmem>>, vector<4x16x128xf32>
    tpu.vector_store %arg7[%c0_62, %c0_63, %c0_64], %98 {strides = array<i32>} : memref<4x16x128xf32, #tpu.memory_space<vmem>>, vector<4x16x128xf32>,
    %100 = vector.extract_strided_slice %7 {offsets = [0, 64], sizes = [64, 16], strides = [1, 1]} : vector<64x128xf32> to vector<64x16xf32>
    %101 = vector.extract_strided_slice %7 {offsets = [0, 80], sizes = [64, 16], strides = [1, 1]} : vector<64x128xf32> to vector<64x16xf32>
    %102 = vector.shape_cast %100 : vector<64x16xf32> to vector<4x16x16xf32>
    %103 = tpu.transpose %102, [0, 2, 1] : vector<4x16x16xf32> -> vector<4x16x16xf32>
    %104 = vector.shape_cast %103 : vector<4x16x16xf32> to vector<64x16xf32>
    %105 = vector.shape_cast %101 : vector<64x16xf32> to vector<4x16x16xf32>
    %106 = tpu.transpose %105, [0, 2, 1] : vector<4x16x16xf32> -> vector<4x16x16xf32>
    %107 = vector.shape_cast %106 : vector<4x16x16xf32> to vector<64x16xf32>
    %c2 = arith.constant 2 : index
    %c0_65 = arith.constant 0 : index
    %c0_66 = arith.constant 0 : index
    %108 = vector.load %arg4[%c2, %c0_65, %c0_66] : memref<4x32x16xf32, #tpu.memory_space<vmem>>, vector<1x16x16xf32>
    %109 = vector.shape_cast %108 : vector<1x16x16xf32> to vector<16x16xf32>
    %cst_67 = arith.constant dense<0.000000e+00> : vector<64x16xf32>
    %110 = tpu.matmul %104, %109, %cst_67 {dimension_numbers = #tpu.dot_dimension_numbers<[1], [0], [0], [1], [0, 0, 1, 1], [], []>} : vector<64x16xf32>, vector<16x16xf32>, vector<64x16xf32> -> vector<64x16xf32>
    %c2_68 = arith.constant 2 : index
    %c16_69 = arith.constant 16 : index
    %c0_70 = arith.constant 0 : index
    %111 = vector.load %arg4[%c2_68, %c16_69, %c0_70] : memref<4x32x16xf32, #tpu.memory_space<vmem>>, vector<1x16x16xf32>
    %112 = vector.shape_cast %111 : vector<1x16x16xf32> to vector<16x16xf32>
    %cst_71 = arith.constant dense<0.000000e+00> : vector<64x16xf32>
    %113 = tpu.matmul %107, %112, %cst_71 {dimension_numbers = #tpu.dot_dimension_numbers<[1], [0], [0], [1], [0, 0, 1, 1], [], []>} : vector<64x16xf32>, vector<16x16xf32>, vector<64x16xf32> -> vector<64x16xf32>
    %114 = arith.addf %110, %113 : vector<64x16xf32>
    %cst_72 = arith.constant 0.000000e+00 : f32
    %115 = vector.broadcast %cst_72 : f32 to vector<64x16xf32>
    %116 = arith.maximumf %114, %115 : vector<64x16xf32>
    %c2_73 = arith.constant 2 : index
    %c0_74 = arith.constant 0 : index
    %c0_75 = arith.constant 0 : index
    %117 = vector.load %arg5[%c2_73, %c0_74, %c0_75] : memref<4x16x32xf32, #tpu.memory_space<vmem>>, vector<1x16x32xf32>
    %118 = vector.shape_cast %117 : vector<1x16x32xf32> to vector<16x32xf32>
    %cst_76 = arith.constant dense<0.000000e+00> : vector<64x32xf32>
    %119 = tpu.matmul %116, %118, %cst_76 {dimension_numbers = #tpu.dot_dimension_numbers<[1], [0], [0], [1], [0, 0, 1, 1], [], []>} : vector<64x16xf32>, vector<16x32xf32>, vector<64x32xf32> -> vector<64x32xf32>
    %120 = vector.extract_strided_slice %119 {offsets = [0, 0], sizes = [64, 16], strides = [1, 1]} : vector<64x32xf32> to vector<64x16xf32>
    %121 = vector.shape_cast %120 : vector<64x16xf32> to vector<4x16x16xf32>
    %122 = tpu.transpose %121, [0, 2, 1] : vector<4x16x16xf32> -> vector<4x16x16xf32>
    %123 = vector.shape_cast %122 : vector<4x16x16xf32> to vector<64x16xf32>
    %124 = vector.extract_strided_slice %119 {offsets = [0, 16], sizes = [64, 16], strides = [1, 1]} : vector<64x32xf32> to vector<64x16xf32>
    %125 = vector.shape_cast %124 : vector<64x16xf32> to vector<4x16x16xf32>
    %126 = tpu.transpose %125, [0, 2, 1] : vector<4x16x16xf32> -> vector<4x16x16xf32>
    %127 = vector.shape_cast %126 : vector<4x16x16xf32> to vector<64x16xf32>
    %c2_77 = arith.constant 2 : index
    %c0_78 = arith.constant 0 : index
    %c0_79 = arith.constant 0 : index
    %128 = vector.load %arg6[%c2_77, %c0_78, %c0_79] : memref<4x48x128xf32, #tpu.memory_space<vmem>>, vector<1x16x128xf32>
    %129 = vector.shape_cast %128 : vector<1x16x128xf32> to vector<16x128xf32>
    %cst_80 = arith.constant dense<0.000000e+00> : vector<64x128xf32>
    %130 = tpu.matmul %123, %129, %cst_80 {dimension_numbers = #tpu.dot_dimension_numbers<[1], [0], [0], [1], [0, 0, 1, 1], [], []>} : vector<64x16xf32>, vector<16x128xf32>, vector<64x128xf32> -> vector<64x128xf32>
    %c2_81 = arith.constant 2 : index
    %c16_82 = arith.constant 16 : index
    %c0_83 = arith.constant 0 : index
    %131 = vector.load %arg6[%c2_81, %c16_82, %c0_83] : memref<4x48x128xf32, #tpu.memory_space<vmem>>, vector<1x16x128xf32>
    %132 = vector.shape_cast %131 : vector<1x16x128xf32> to vector<16x128xf32>
    %cst_84 = arith.constant dense<0.000000e+00> : vector<64x128xf32>
    %133 = tpu.matmul %127, %132, %cst_84 {dimension_numbers = #tpu.dot_dimension_numbers<[1], [0], [0], [1], [0, 0, 1, 1], [], []>} : vector<64x16xf32>, vector<16x128xf32>, vector<64x128xf32> -> vector<64x128xf32>
    %134 = arith.addf %130, %133 : vector<64x128xf32>
    %c2_85 = arith.constant 2 : index
    %c32_86 = arith.constant 32 : index
    %c0_87 = arith.constant 0 : index
    %135 = vector.load %arg6[%c2_85, %c32_86, %c0_87] : memref<4x48x128xf32, #tpu.memory_space<vmem>>, vector<1x16x128xf32>
    %136 = vector.shape_cast %135 : vector<1x16x128xf32> to vector<16x128xf32>
    %137 = vector.shape_cast %136 : vector<16x128xf32> to vector<1x16x128xf32>
    %cst_88 = arith.constant 0.000000e+00 : f32
    %138 = vector.broadcast %cst_88 : f32 to vector<1x16x128xf32>
    %139 = arith.cmpf one, %137, %138 : vector<1x16x128xf32>
    %140 = vector.shape_cast %134 : vector<64x128xf32> to vector<4x16x128xf32>
    %c0_89 = arith.constant 0 : index
    %c0_90 = arith.constant 0 : index
    %c0_91 = arith.constant 0 : index
    %141 = vector.load %arg7[%c0_89, %c0_90, %c0_91] : memref<4x16x128xf32, #tpu.memory_space<vmem>>, vector<4x16x128xf32>
    %142 = vector.shape_cast %139 : vector<1x16x128xi1> to vector<1x16x128xi1>
    %143 = vector.broadcast %142 : vector<1x16x128xi1> to vector<4x16x128xi1>
    %144 = arith.select %143, %140, %141 : vector<4x16x128xi1>, vector<4x16x128xf32>
    %c0_92 = arith.constant 0 : index
    %c0_93 = arith.constant 0 : index
    %c0_94 = arith.constant 0 : index
    %145 = vector.load %arg7[%c0_92, %c0_93, %c0_94] : memref<4x16x128xf32, #tpu.memory_space<vmem>>, vector<4x16x128xf32>
    tpu.vector_store %arg7[%c0_92, %c0_93, %c0_94], %144 {strides = array<i32>} : memref<4x16x128xf32, #tpu.memory_space<vmem>>, vector<4x16x128xf32>,
    %146 = vector.extract_strided_slice %7 {offsets = [0, 96], sizes = [64, 16], strides = [1, 1]} : vector<64x128xf32> to vector<64x16xf32>
    %147 = vector.extract_strided_slice %7 {offsets = [0, 112], sizes = [64, 16], strides = [1, 1]} : vector<64x128xf32> to vector<64x16xf32>
    %148 = vector.shape_cast %146 : vector<64x16xf32> to vector<4x16x16xf32>
    %149 = tpu.transpose %148, [0, 2, 1] : vector<4x16x16xf32> -> vector<4x16x16xf32>
    %150 = vector.shape_cast %149 : vector<4x16x16xf32> to vector<64x16xf32>
    %151 = vector.shape_cast %147 : vector<64x16xf32> to vector<4x16x16xf32>
    %152 = tpu.transpose %151, [0, 2, 1] : vector<4x16x16xf32> -> vector<4x16x16xf32>
    %153 = vector.shape_cast %152 : vector<4x16x16xf32> to vector<64x16xf32>
    %c3 = arith.constant 3 : index
    %c0_95 = arith.constant 0 : index
    %c0_96 = arith.constant 0 : index
    %154 = vector.load %arg4[%c3, %c0_95, %c0_96] : memref<4x32x16xf32, #tpu.memory_space<vmem>>, vector<1x16x16xf32>
    %155 = vector.shape_cast %154 : vector<1x16x16xf32> to vector<16x16xf32>
    %cst_97 = arith.constant dense<0.000000e+00> : vector<64x16xf32>
    %156 = tpu.matmul %150, %155, %cst_97 {dimension_numbers = #tpu.dot_dimension_numbers<[1], [0], [0], [1], [0, 0, 1, 1], [], []>} : vector<64x16xf32>, vector<16x16xf32>, vector<64x16xf32> -> vector<64x16xf32>
    %c3_98 = arith.constant 3 : index
    %c16_99 = arith.constant 16 : index
    %c0_100 = arith.constant 0 : index
    %157 = vector.load %arg4[%c3_98, %c16_99, %c0_100] : memref<4x32x16xf32, #tpu.memory_space<vmem>>, vector<1x16x16xf32>
    %158 = vector.shape_cast %157 : vector<1x16x16xf32> to vector<16x16xf32>
    %cst_101 = arith.constant dense<0.000000e+00> : vector<64x16xf32>
    %159 = tpu.matmul %153, %158, %cst_101 {dimension_numbers = #tpu.dot_dimension_numbers<[1], [0], [0], [1], [0, 0, 1, 1], [], []>} : vector<64x16xf32>, vector<16x16xf32>, vector<64x16xf32> -> vector<64x16xf32>
    %160 = arith.addf %156, %159 : vector<64x16xf32>
    %cst_102 = arith.constant 0.000000e+00 : f32
    %161 = vector.broadcast %cst_102 : f32 to vector<64x16xf32>
    %162 = arith.maximumf %160, %161 : vector<64x16xf32>
    %c3_103 = arith.constant 3 : index
    %c0_104 = arith.constant 0 : index
    %c0_105 = arith.constant 0 : index
    %163 = vector.load %arg5[%c3_103, %c0_104, %c0_105] : memref<4x16x32xf32, #tpu.memory_space<vmem>>, vector<1x16x32xf32>
    %164 = vector.shape_cast %163 : vector<1x16x32xf32> to vector<16x32xf32>
    %cst_106 = arith.constant dense<0.000000e+00> : vector<64x32xf32>
    %165 = tpu.matmul %162, %164, %cst_106 {dimension_numbers = #tpu.dot_dimension_numbers<[1], [0], [0], [1], [0, 0, 1, 1], [], []>} : vector<64x16xf32>, vector<16x32xf32>, vector<64x32xf32> -> vector<64x32xf32>
    %166 = vector.extract_strided_slice %165 {offsets = [0, 0], sizes = [64, 16], strides = [1, 1]} : vector<64x32xf32> to vector<64x16xf32>
    %167 = vector.shape_cast %166 : vector<64x16xf32> to vector<4x16x16xf32>
    %168 = tpu.transpose %167, [0, 2, 1] : vector<4x16x16xf32> -> vector<4x16x16xf32>
    %169 = vector.shape_cast %168 : vector<4x16x16xf32> to vector<64x16xf32>
    %170 = vector.extract_strided_slice %165 {offsets = [0, 16], sizes = [64, 16], strides = [1, 1]} : vector<64x32xf32> to vector<64x16xf32>
    %171 = vector.shape_cast %170 : vector<64x16xf32> to vector<4x16x16xf32>
    %172 = tpu.transpose %171, [0, 2, 1] : vector<4x16x16xf32> -> vector<4x16x16xf32>
    %173 = vector.shape_cast %172 : vector<4x16x16xf32> to vector<64x16xf32>
    %c3_107 = arith.constant 3 : index
    %c0_108 = arith.constant 0 : index
    %c0_109 = arith.constant 0 : index
    %174 = vector.load %arg6[%c3_107, %c0_108, %c0_109] : memref<4x48x128xf32, #tpu.memory_space<vmem>>, vector<1x16x128xf32>
    %175 = vector.shape_cast %174 : vector<1x16x128xf32> to vector<16x128xf32>
    %cst_110 = arith.constant dense<0.000000e+00> : vector<64x128xf32>
    %176 = tpu.matmul %169, %175, %cst_110 {dimension_numbers = #tpu.dot_dimension_numbers<[1], [0], [0], [1], [0, 0, 1, 1], [], []>} : vector<64x16xf32>, vector<16x128xf32>, vector<64x128xf32> -> vector<64x128xf32>
    %c3_111 = arith.constant 3 : index
    %c16_112 = arith.constant 16 : index
    %c0_113 = arith.constant 0 : index
    %177 = vector.load %arg6[%c3_111, %c16_112, %c0_113] : memref<4x48x128xf32, #tpu.memory_space<vmem>>, vector<1x16x128xf32>
    %178 = vector.shape_cast %177 : vector<1x16x128xf32> to vector<16x128xf32>
    %cst_114 = arith.constant dense<0.000000e+00> : vector<64x128xf32>
    %179 = tpu.matmul %173, %178, %cst_114 {dimension_numbers = #tpu.dot_dimension_numbers<[1], [0], [0], [1], [0, 0, 1, 1], [], []>} : vector<64x16xf32>, vector<16x128xf32>, vector<64x128xf32> -> vector<64x128xf32>
    %180 = arith.addf %176, %179 : vector<64x128xf32>
    %c3_115 = arith.constant 3 : index
    %c32_116 = arith.constant 32 : index
    %c0_117 = arith.constant 0 : index
    %181 = vector.load %arg6[%c3_115, %c32_116, %c0_117] : memref<4x48x128xf32, #tpu.memory_space<vmem>>, vector<1x16x128xf32>
    %182 = vector.shape_cast %181 : vector<1x16x128xf32> to vector<16x128xf32>
    %183 = vector.shape_cast %182 : vector<16x128xf32> to vector<1x16x128xf32>
    %cst_118 = arith.constant 0.000000e+00 : f32
    %184 = vector.broadcast %cst_118 : f32 to vector<1x16x128xf32>
    %185 = arith.cmpf one, %183, %184 : vector<1x16x128xf32>
    %186 = vector.shape_cast %180 : vector<64x128xf32> to vector<4x16x128xf32>
    %c0_119 = arith.constant 0 : index
    %c0_120 = arith.constant 0 : index
    %c0_121 = arith.constant 0 : index
    %187 = vector.load %arg7[%c0_119, %c0_120, %c0_121] : memref<4x16x128xf32, #tpu.memory_space<vmem>>, vector<4x16x128xf32>
    %188 = vector.shape_cast %185 : vector<1x16x128xi1> to vector<1x16x128xi1>
    %189 = vector.broadcast %188 : vector<1x16x128xi1> to vector<4x16x128xi1>
    %190 = arith.select %189, %186, %187 : vector<4x16x128xi1>, vector<4x16x128xf32>
    %c0_122 = arith.constant 0 : index
    %c0_123 = arith.constant 0 : index
    %c0_124 = arith.constant 0 : index
    %191 = vector.load %arg7[%c0_122, %c0_123, %c0_124] : memref<4x16x128xf32, #tpu.memory_space<vmem>>, vector<4x16x128xf32>
    tpu.vector_store %arg7[%c0_122, %c0_123, %c0_124], %190 {strides = array<i32>} : memref<4x16x128xf32, #tpu.memory_space<vmem>>, vector<4x16x128xf32>,
    return
  }
  func.func @transform_0(%arg0: i32, %arg1: i32) -> (i32, i32, i32) {
    %c0_i32 = arith.constant 0 : i32
    %c0_i32_0 = arith.constant 0 : i32
    %c0_i32_1 = arith.constant 0 : i32
    return %arg0, %c0_i32, %c0_i32_0 : i32, i32, i32
  }
  func.func @transform_1(%arg0: i32, %arg1: i32) -> (i32, i32, i32) {
    %c0_i32 = arith.constant 0 : i32
    %c0_i32_0 = arith.constant 0 : i32
    %c0_i32_1 = arith.constant 0 : i32
    return %arg1, %c0_i32, %c0_i32_0 : i32, i32, i32
  }
  func.func @transform_2(%arg0: i32, %arg1: i32) -> (i32, i32, i32) {
    %c0_i32 = arith.constant 0 : i32
    %c0_i32_0 = arith.constant 0 : i32
    %c0_i32_1 = arith.constant 0 : i32
    return %arg1, %c0_i32, %c0_i32_0 : i32, i32, i32
  }
  func.func @transform_3(%arg0: i32, %arg1: i32) -> (i32, i32, i32) {
    %c0_i32 = arith.constant 0 : i32
    %c0_i32_0 = arith.constant 0 : i32
    %c0_i32_1 = arith.constant 0 : i32
    return %arg1, %c0_i32, %c0_i32_0 : i32, i32, i32
  }
  func.func @transform_4(%arg0: i32, %arg1: i32) -> (i32, i32, i32) {
    %c0_i32 = arith.constant 0 : i32
    %c0_i32_0 = arith.constant 0 : i32
    %c0_i32_1 = arith.constant 0 : i32
    return %arg1, %c0_i32, %c0_i32_0 : i32, i32, i32
  }
  func.func @transform_5(%arg0: i32, %arg1: i32) -> (i32, i32, i32) {
    %c0_i32 = arith.constant 0 : i32
    %c0_i32_0 = arith.constant 0 : i32
    %c0_i32_1 = arith.constant 0 : i32
    return %arg0, %c0_i32, %c0_i32_0 : i32, i32, i32
  }
}

module attributes {stable_mosaic.version = 11 : i64} {
  func.func @kernel(%arg0: i32, %arg1: i32, %arg2: memref<4x16x32xf32, #tpu.memory_space<vmem>>, %arg3: memref<1x32x128xf32, #tpu.memory_space<vmem>>, %arg4: memref<4x32x16xf32, #tpu.memory_space<vmem>>, %arg5: memref<4x16x32xf32, #tpu.memory_space<vmem>>, %arg6: memref<4x48x128xf32, #tpu.memory_space<vmem>>, %arg7: memref<4x16x128xf32, #tpu.memory_space<vmem>>) attributes {dimension_semantics = [#tpu.dimension_semantics<parallel>, #tpu.dimension_semantics<arbitrary>], iteration_bounds = array<i64: 2, 3>, scalar_prefetch = 0 : i64, scratch_operands = 0 : i64, tpu.core_type = #tpu.core_type<tc>, window_params = [{transform_indices = @transform_0, window_bounds = array<i64: 4, 16, 32>}, {transform_indices = @transform_1, window_bounds = array<i64: 1, 32, 128>}, {transform_indices = @transform_2, window_bounds = array<i64: 4, 32, 16>}, {transform_indices = @transform_3, window_bounds = array<i64: 4, 16, 32>}, {transform_indices = @transform_4, window_bounds = array<i64: 4, 48, 128>}, {transform_indices = @transform_5, window_bounds = array<i64: 4, 16, 128>}]} {
    %c0_i32 = arith.constant 0 : i32
    %0 = arith.cmpi eq, %arg1, %c0_i32 : i32
    %1 = arith.extui %0 : i1 to i32
    %c0_i32_0 = arith.constant 0 : i32
    %2 = arith.cmpi ne, %1, %c0_i32_0 : i32
    scf.if %2 {
      %cst_125 = arith.constant 0.000000e+00 : f32
      %288 = vector.broadcast %cst_125 : f32 to vector<4x16x128xf32>
      %c0_126 = arith.constant 0 : index
      %c0_127 = arith.constant 0 : index
      %c0_128 = arith.constant 0 : index
      %289 = vector.load %arg7[%c0_126, %c0_127, %c0_128] : memref<4x16x128xf32, #tpu.memory_space<vmem>>, vector<4x16x128xf32>
      tpu.vector_store %arg7[%c0_126, %c0_127, %c0_128], %288 {strides = array<i32>} : memref<4x16x128xf32, #tpu.memory_space<vmem>>, vector<4x16x128xf32>,
    } else {
    }
    %c0 = arith.constant 0 : index
    %c0_1 = arith.constant 0 : index
    %c0_2 = arith.constant 0 : index
    %3 = vector.load %arg2[%c0, %c0_1, %c0_2] : memref<4x16x32xf32, #tpu.memory_space<vmem>>, vector<4x16x32xf32>
    %4 = vector.shape_cast %3 : vector<4x16x32xf32> to vector<64x32xf32>
    %c0_3 = arith.constant 0 : index
    %c0_4 = arith.constant 0 : index
    %c0_5 = arith.constant 0 : index
    %5 = vector.load %arg3[%c0_3, %c0_4, %c0_5] : memref<1x32x128xf32, #tpu.memory_space<vmem>>, vector<1x32x128xf32>
    %6 = vector.shape_cast %5 : vector<1x32x128xf32> to vector<32x128xf32>
    %cst = arith.constant dense<0.000000e+00> : vector<64x128xf32>
    %7 = tpu.matmul %4, %6, %cst {dimension_numbers = #tpu.dot_dimension_numbers<[1], [0], [0], [1], [0, 0, 1, 1], [], []>} : vector<64x32xf32>, vector<32x128xf32>, vector<64x128xf32> -> vector<64x128xf32>
    %8 = vector.extract_strided_slice %7 {offsets = [0, 0], sizes = [64, 16], strides = [1, 1]} : vector<64x128xf32> to vector<64x16xf32>
    %9 = vector.extract_strided_slice %7 {offsets = [0, 16], sizes = [64, 16], strides = [1, 1]} : vector<64x128xf32> to vector<64x16xf32>
    %10 = vector.extract_strided_slice %8 {offsets = [0, 0], sizes = [16, 16], strides = [1, 1]} : vector<64x16xf32> to vector<16x16xf32>
    %11 = tpu.transpose %10, [1, 0] : vector<16x16xf32> -> vector<16x16xf32>
    %12 = vector.extract_strided_slice %8 {offsets = [16, 0], sizes = [16, 16], strides = [1, 1]} : vector<64x16xf32> to vector<16x16xf32>
    %13 = tpu.transpose %12, [1, 0] : vector<16x16xf32> -> vector<16x16xf32>
    %14 = vector.extract_strided_slice %8 {offsets = [32, 0], sizes = [16, 16], strides = [1, 1]} : vector<64x16xf32> to vector<16x16xf32>
    %15 = tpu.transpose %14, [1, 0] : vector<16x16xf32> -> vector<16x16xf32>
    %16 = vector.extract_strided_slice %8 {offsets = [48, 0], sizes = [16, 16], strides = [1, 1]} : vector<64x16xf32> to vector<16x16xf32>
    %17 = tpu.transpose %16, [1, 0] : vector<16x16xf32> -> vector<16x16xf32>
    %18 = tpu.concatenate %11, %13, %15, %17 in 0 : vector<16x16xf32>, vector<16x16xf32>, vector<16x16xf32>, vector<16x16xf32> -> vector<64x16xf32>
    %19 = vector.extract_strided_slice %9 {offsets = [0, 0], sizes = [16, 16], strides = [1, 1]} : vector<64x16xf32> to vector<16x16xf32>
    %20 = tpu.transpose %19, [1, 0] : vector<16x16xf32> -> vector<16x16xf32>
    %21 = vector.extract_strided_slice %9 {offsets = [16, 0], sizes = [16, 16], strides = [1, 1]} : vector<64x16xf32> to vector<16x16xf32>
    %22 = tpu.transpose %21, [1, 0] : vector<16x16xf32> -> vector<16x16xf32>
    %23 = vector.extract_strided_slice %9 {offsets = [32, 0], sizes = [16, 16], strides = [1, 1]} : vector<64x16xf32> to vector<16x16xf32>
    %24 = tpu.transpose %23, [1, 0] : vector<16x16xf32> -> vector<16x16xf32>
    %25 = vector.extract_strided_slice %9 {offsets = [48, 0], sizes = [16, 16], strides = [1, 1]} : vector<64x16xf32> to vector<16x16xf32>
    %26 = tpu.transpose %25, [1, 0] : vector<16x16xf32> -> vector<16x16xf32>
    %27 = tpu.concatenate %20, %22, %24, %26 in 0 : vector<16x16xf32>, vector<16x16xf32>, vector<16x16xf32>, vector<16x16xf32> -> vector<64x16xf32>
    %c0_6 = arith.constant 0 : index
    %c0_7 = arith.constant 0 : index
    %c0_8 = arith.constant 0 : index
    %28 = vector.load %arg4[%c0_6, %c0_7, %c0_8] : memref<4x32x16xf32, #tpu.memory_space<vmem>>, vector<1x16x16xf32>
    %29 = vector.shape_cast %28 : vector<1x16x16xf32> to vector<16x16xf32>
    %cst_9 = arith.constant dense<0.000000e+00> : vector<64x16xf32>
    %30 = tpu.matmul %18, %29, %cst_9 {dimension_numbers = #tpu.dot_dimension_numbers<[1], [0], [0], [1], [0, 0, 1, 1], [], []>} : vector<64x16xf32>, vector<16x16xf32>, vector<64x16xf32> -> vector<64x16xf32>
    %c0_10 = arith.constant 0 : index
    %c16 = arith.constant 16 : index
    %c0_11 = arith.constant 0 : index
    %31 = vector.load %arg4[%c0_10, %c16, %c0_11] : memref<4x32x16xf32, #tpu.memory_space<vmem>>, vector<1x16x16xf32>
    %32 = vector.shape_cast %31 : vector<1x16x16xf32> to vector<16x16xf32>
    %cst_12 = arith.constant dense<0.000000e+00> : vector<64x16xf32>
    %33 = tpu.matmul %27, %32, %cst_12 {dimension_numbers = #tpu.dot_dimension_numbers<[1], [0], [0], [1], [0, 0, 1, 1], [], []>} : vector<64x16xf32>, vector<16x16xf32>, vector<64x16xf32> -> vector<64x16xf32>
    %34 = arith.addf %30, %33 : vector<64x16xf32>
    %cst_13 = arith.constant 0.000000e+00 : f32
    %35 = vector.broadcast %cst_13 : f32 to vector<64x16xf32>
    %36 = arith.maximumf %34, %35 : vector<64x16xf32>
    %c0_14 = arith.constant 0 : index
    %c0_15 = arith.constant 0 : index
    %c0_16 = arith.constant 0 : index
    %37 = vector.load %arg5[%c0_14, %c0_15, %c0_16] : memref<4x16x32xf32, #tpu.memory_space<vmem>>, vector<1x16x32xf32>
    %38 = vector.shape_cast %37 : vector<1x16x32xf32> to vector<16x32xf32>
    %cst_17 = arith.constant dense<0.000000e+00> : vector<64x32xf32>
    %39 = tpu.matmul %36, %38, %cst_17 {dimension_numbers = #tpu.dot_dimension_numbers<[1], [0], [0], [1], [0, 0, 1, 1], [], []>} : vector<64x16xf32>, vector<16x32xf32>, vector<64x32xf32> -> vector<64x32xf32>
    %40 = vector.extract_strided_slice %39 {offsets = [0, 0], sizes = [64, 16], strides = [1, 1]} : vector<64x32xf32> to vector<64x16xf32>
    %41 = vector.extract_strided_slice %40 {offsets = [0, 0], sizes = [16, 16], strides = [1, 1]} : vector<64x16xf32> to vector<16x16xf32>
    %42 = tpu.transpose %41, [1, 0] : vector<16x16xf32> -> vector<16x16xf32>
    %43 = vector.extract_strided_slice %40 {offsets = [16, 0], sizes = [16, 16], strides = [1, 1]} : vector<64x16xf32> to vector<16x16xf32>
    %44 = tpu.transpose %43, [1, 0] : vector<16x16xf32> -> vector<16x16xf32>
    %45 = vector.extract_strided_slice %40 {offsets = [32, 0], sizes = [16, 16], strides = [1, 1]} : vector<64x16xf32> to vector<16x16xf32>
    %46 = tpu.transpose %45, [1, 0] : vector<16x16xf32> -> vector<16x16xf32>
    %47 = vector.extract_strided_slice %40 {offsets = [48, 0], sizes = [16, 16], strides = [1, 1]} : vector<64x16xf32> to vector<16x16xf32>
    %48 = tpu.transpose %47, [1, 0] : vector<16x16xf32> -> vector<16x16xf32>
    %49 = tpu.concatenate %42, %44, %46, %48 in 0 : vector<16x16xf32>, vector<16x16xf32>, vector<16x16xf32>, vector<16x16xf32> -> vector<64x16xf32>
    %50 = vector.extract_strided_slice %39 {offsets = [0, 16], sizes = [64, 16], strides = [1, 1]} : vector<64x32xf32> to vector<64x16xf32>
    %51 = vector.extract_strided_slice %50 {offsets = [0, 0], sizes = [16, 16], strides = [1, 1]} : vector<64x16xf32> to vector<16x16xf32>
    %52 = tpu.transpose %51, [1, 0] : vector<16x16xf32> -> vector<16x16xf32>
    %53 = vector.extract_strided_slice %50 {offsets = [16, 0], sizes = [16, 16], strides = [1, 1]} : vector<64x16xf32> to vector<16x16xf32>
    %54 = tpu.transpose %53, [1, 0] : vector<16x16xf32> -> vector<16x16xf32>
    %55 = vector.extract_strided_slice %50 {offsets = [32, 0], sizes = [16, 16], strides = [1, 1]} : vector<64x16xf32> to vector<16x16xf32>
    %56 = tpu.transpose %55, [1, 0] : vector<16x16xf32> -> vector<16x16xf32>
    %57 = vector.extract_strided_slice %50 {offsets = [48, 0], sizes = [16, 16], strides = [1, 1]} : vector<64x16xf32> to vector<16x16xf32>
    %58 = tpu.transpose %57, [1, 0] : vector<16x16xf32> -> vector<16x16xf32>
    %59 = tpu.concatenate %52, %54, %56, %58 in 0 : vector<16x16xf32>, vector<16x16xf32>, vector<16x16xf32>, vector<16x16xf32> -> vector<64x16xf32>
    %c0_18 = arith.constant 0 : index
    %c0_19 = arith.constant 0 : index
    %c0_20 = arith.constant 0 : index
    %60 = vector.load %arg6[%c0_18, %c0_19, %c0_20] : memref<4x48x128xf32, #tpu.memory_space<vmem>>, vector<1x16x128xf32>
    %61 = vector.shape_cast %60 : vector<1x16x128xf32> to vector<16x128xf32>
    %cst_21 = arith.constant dense<0.000000e+00> : vector<64x128xf32>
    %62 = tpu.matmul %49, %61, %cst_21 {dimension_numbers = #tpu.dot_dimension_numbers<[1], [0], [0], [1], [0, 0, 1, 1], [], []>} : vector<64x16xf32>, vector<16x128xf32>, vector<64x128xf32> -> vector<64x128xf32>
    %c0_22 = arith.constant 0 : index
    %c16_23 = arith.constant 16 : index
    %c0_24 = arith.constant 0 : index
    %63 = vector.load %arg6[%c0_22, %c16_23, %c0_24] : memref<4x48x128xf32, #tpu.memory_space<vmem>>, vector<1x16x128xf32>
    %64 = vector.shape_cast %63 : vector<1x16x128xf32> to vector<16x128xf32>
    %cst_25 = arith.constant dense<0.000000e+00> : vector<64x128xf32>
    %65 = tpu.matmul %59, %64, %cst_25 {dimension_numbers = #tpu.dot_dimension_numbers<[1], [0], [0], [1], [0, 0, 1, 1], [], []>} : vector<64x16xf32>, vector<16x128xf32>, vector<64x128xf32> -> vector<64x128xf32>
    %66 = arith.addf %62, %65 : vector<64x128xf32>
    %c0_26 = arith.constant 0 : index
    %c32 = arith.constant 32 : index
    %c0_27 = arith.constant 0 : index
    %67 = vector.load %arg6[%c0_26, %c32, %c0_27] : memref<4x48x128xf32, #tpu.memory_space<vmem>>, vector<1x16x128xf32>
    %68 = vector.shape_cast %67 : vector<1x16x128xf32> to vector<16x128xf32>
    %69 = vector.shape_cast %68 : vector<16x128xf32> to vector<1x16x128xf32>
    %cst_28 = arith.constant 0.000000e+00 : f32
    %70 = vector.broadcast %cst_28 : f32 to vector<1x16x128xf32>
    %71 = arith.cmpf one, %69, %70 : vector<1x16x128xf32>
    %72 = vector.shape_cast %66 : vector<64x128xf32> to vector<4x16x128xf32>
    %c0_29 = arith.constant 0 : index
    %c0_30 = arith.constant 0 : index
    %c0_31 = arith.constant 0 : index
    %73 = vector.load %arg7[%c0_29, %c0_30, %c0_31] : memref<4x16x128xf32, #tpu.memory_space<vmem>>, vector<4x16x128xf32>
    %74 = vector.shape_cast %71 : vector<1x16x128xi1> to vector<1x16x128xi1>
    %75 = vector.broadcast %74 : vector<1x16x128xi1> to vector<4x16x128xi1>
    %76 = arith.select %75, %72, %73 : vector<4x16x128xi1>, vector<4x16x128xf32>
    %c0_32 = arith.constant 0 : index
    %c0_33 = arith.constant 0 : index
    %c0_34 = arith.constant 0 : index
    %77 = vector.load %arg7[%c0_32, %c0_33, %c0_34] : memref<4x16x128xf32, #tpu.memory_space<vmem>>, vector<4x16x128xf32>
    tpu.vector_store %arg7[%c0_32, %c0_33, %c0_34], %76 {strides = array<i32>} : memref<4x16x128xf32, #tpu.memory_space<vmem>>, vector<4x16x128xf32>,
    %78 = vector.extract_strided_slice %7 {offsets = [0, 32], sizes = [64, 16], strides = [1, 1]} : vector<64x128xf32> to vector<64x16xf32>
    %79 = vector.extract_strided_slice %7 {offsets = [0, 48], sizes = [64, 16], strides = [1, 1]} : vector<64x128xf32> to vector<64x16xf32>
    %80 = vector.extract_strided_slice %78 {offsets = [0, 0], sizes = [16, 16], strides = [1, 1]} : vector<64x16xf32> to vector<16x16xf32>
    %81 = tpu.transpose %80, [1, 0] : vector<16x16xf32> -> vector<16x16xf32>
    %82 = vector.extract_strided_slice %78 {offsets = [16, 0], sizes = [16, 16], strides = [1, 1]} : vector<64x16xf32> to vector<16x16xf32>
    %83 = tpu.transpose %82, [1, 0] : vector<16x16xf32> -> vector<16x16xf32>
    %84 = vector.extract_strided_slice %78 {offsets = [32, 0], sizes = [16, 16], strides = [1, 1]} : vector<64x16xf32> to vector<16x16xf32>
    %85 = tpu.transpose %84, [1, 0] : vector<16x16xf32> -> vector<16x16xf32>
    %86 = vector.extract_strided_slice %78 {offsets = [48, 0], sizes = [16, 16], strides = [1, 1]} : vector<64x16xf32> to vector<16x16xf32>
    %87 = tpu.transpose %86, [1, 0] : vector<16x16xf32> -> vector<16x16xf32>
    %88 = tpu.concatenate %81, %83, %85, %87 in 0 : vector<16x16xf32>, vector<16x16xf32>, vector<16x16xf32>, vector<16x16xf32> -> vector<64x16xf32>
    %89 = vector.extract_strided_slice %79 {offsets = [0, 0], sizes = [16, 16], strides = [1, 1]} : vector<64x16xf32> to vector<16x16xf32>
    %90 = tpu.transpose %89, [1, 0] : vector<16x16xf32> -> vector<16x16xf32>
    %91 = vector.extract_strided_slice %79 {offsets = [16, 0], sizes = [16, 16], strides = [1, 1]} : vector<64x16xf32> to vector<16x16xf32>
    %92 = tpu.transpose %91, [1, 0] : vector<16x16xf32> -> vector<16x16xf32>
    %93 = vector.extract_strided_slice %79 {offsets = [32, 0], sizes = [16, 16], strides = [1, 1]} : vector<64x16xf32> to vector<16x16xf32>
    %94 = tpu.transpose %93, [1, 0] : vector<16x16xf32> -> vector<16x16xf32>
    %95 = vector.extract_strided_slice %79 {offsets = [48, 0], sizes = [16, 16], strides = [1, 1]} : vector<64x16xf32> to vector<16x16xf32>
    %96 = tpu.transpose %95, [1, 0] : vector<16x16xf32> -> vector<16x16xf32>
    %97 = tpu.concatenate %90, %92, %94, %96 in 0 : vector<16x16xf32>, vector<16x16xf32>, vector<16x16xf32>, vector<16x16xf32> -> vector<64x16xf32>
    %c1 = arith.constant 1 : index
    %c0_35 = arith.constant 0 : index
    %c0_36 = arith.constant 0 : index
    %98 = vector.load %arg4[%c1, %c0_35, %c0_36] : memref<4x32x16xf32, #tpu.memory_space<vmem>>, vector<1x16x16xf32>
    %99 = vector.shape_cast %98 : vector<1x16x16xf32> to vector<16x16xf32>
    %cst_37 = arith.constant dense<0.000000e+00> : vector<64x16xf32>
    %100 = tpu.matmul %88, %99, %cst_37 {dimension_numbers = #tpu.dot_dimension_numbers<[1], [0], [0], [1], [0, 0, 1, 1], [], []>} : vector<64x16xf32>, vector<16x16xf32>, vector<64x16xf32> -> vector<64x16xf32>
    %c1_38 = arith.constant 1 : index
    %c16_39 = arith.constant 16 : index
    %c0_40 = arith.constant 0 : index
    %101 = vector.load %arg4[%c1_38, %c16_39, %c0_40] : memref<4x32x16xf32, #tpu.memory_space<vmem>>, vector<1x16x16xf32>
    %102 = vector.shape_cast %101 : vector<1x16x16xf32> to vector<16x16xf32>
    %cst_41 = arith.constant dense<0.000000e+00> : vector<64x16xf32>
    %103 = tpu.matmul %97, %102, %cst_41 {dimension_numbers = #tpu.dot_dimension_numbers<[1], [0], [0], [1], [0, 0, 1, 1], [], []>} : vector<64x16xf32>, vector<16x16xf32>, vector<64x16xf32> -> vector<64x16xf32>
    %104 = arith.addf %100, %103 : vector<64x16xf32>
    %cst_42 = arith.constant 0.000000e+00 : f32
    %105 = vector.broadcast %cst_42 : f32 to vector<64x16xf32>
    %106 = arith.maximumf %104, %105 : vector<64x16xf32>
    %c1_43 = arith.constant 1 : index
    %c0_44 = arith.constant 0 : index
    %c0_45 = arith.constant 0 : index
    %107 = vector.load %arg5[%c1_43, %c0_44, %c0_45] : memref<4x16x32xf32, #tpu.memory_space<vmem>>, vector<1x16x32xf32>
    %108 = vector.shape_cast %107 : vector<1x16x32xf32> to vector<16x32xf32>
    %cst_46 = arith.constant dense<0.000000e+00> : vector<64x32xf32>
    %109 = tpu.matmul %106, %108, %cst_46 {dimension_numbers = #tpu.dot_dimension_numbers<[1], [0], [0], [1], [0, 0, 1, 1], [], []>} : vector<64x16xf32>, vector<16x32xf32>, vector<64x32xf32> -> vector<64x32xf32>
    %110 = vector.extract_strided_slice %109 {offsets = [0, 0], sizes = [64, 16], strides = [1, 1]} : vector<64x32xf32> to vector<64x16xf32>
    %111 = vector.extract_strided_slice %110 {offsets = [0, 0], sizes = [16, 16], strides = [1, 1]} : vector<64x16xf32> to vector<16x16xf32>
    %112 = tpu.transpose %111, [1, 0] : vector<16x16xf32> -> vector<16x16xf32>
    %113 = vector.extract_strided_slice %110 {offsets = [16, 0], sizes = [16, 16], strides = [1, 1]} : vector<64x16xf32> to vector<16x16xf32>
    %114 = tpu.transpose %113, [1, 0] : vector<16x16xf32> -> vector<16x16xf32>
    %115 = vector.extract_strided_slice %110 {offsets = [32, 0], sizes = [16, 16], strides = [1, 1]} : vector<64x16xf32> to vector<16x16xf32>
    %116 = tpu.transpose %115, [1, 0] : vector<16x16xf32> -> vector<16x16xf32>
    %117 = vector.extract_strided_slice %110 {offsets = [48, 0], sizes = [16, 16], strides = [1, 1]} : vector<64x16xf32> to vector<16x16xf32>
    %118 = tpu.transpose %117, [1, 0] : vector<16x16xf32> -> vector<16x16xf32>
    %119 = tpu.concatenate %112, %114, %116, %118 in 0 : vector<16x16xf32>, vector<16x16xf32>, vector<16x16xf32>, vector<16x16xf32> -> vector<64x16xf32>
    %120 = vector.extract_strided_slice %109 {offsets = [0, 16], sizes = [64, 16], strides = [1, 1]} : vector<64x32xf32> to vector<64x16xf32>
    %121 = vector.extract_strided_slice %120 {offsets = [0, 0], sizes = [16, 16], strides = [1, 1]} : vector<64x16xf32> to vector<16x16xf32>
    %122 = tpu.transpose %121, [1, 0] : vector<16x16xf32> -> vector<16x16xf32>
    %123 = vector.extract_strided_slice %120 {offsets = [16, 0], sizes = [16, 16], strides = [1, 1]} : vector<64x16xf32> to vector<16x16xf32>
    %124 = tpu.transpose %123, [1, 0] : vector<16x16xf32> -> vector<16x16xf32>
    %125 = vector.extract_strided_slice %120 {offsets = [32, 0], sizes = [16, 16], strides = [1, 1]} : vector<64x16xf32> to vector<16x16xf32>
    %126 = tpu.transpose %125, [1, 0] : vector<16x16xf32> -> vector<16x16xf32>
    %127 = vector.extract_strided_slice %120 {offsets = [48, 0], sizes = [16, 16], strides = [1, 1]} : vector<64x16xf32> to vector<16x16xf32>
    %128 = tpu.transpose %127, [1, 0] : vector<16x16xf32> -> vector<16x16xf32>
    %129 = tpu.concatenate %122, %124, %126, %128 in 0 : vector<16x16xf32>, vector<16x16xf32>, vector<16x16xf32>, vector<16x16xf32> -> vector<64x16xf32>
    %c1_47 = arith.constant 1 : index
    %c0_48 = arith.constant 0 : index
    %c0_49 = arith.constant 0 : index
    %130 = vector.load %arg6[%c1_47, %c0_48, %c0_49] : memref<4x48x128xf32, #tpu.memory_space<vmem>>, vector<1x16x128xf32>
    %131 = vector.shape_cast %130 : vector<1x16x128xf32> to vector<16x128xf32>
    %cst_50 = arith.constant dense<0.000000e+00> : vector<64x128xf32>
    %132 = tpu.matmul %119, %131, %cst_50 {dimension_numbers = #tpu.dot_dimension_numbers<[1], [0], [0], [1], [0, 0, 1, 1], [], []>} : vector<64x16xf32>, vector<16x128xf32>, vector<64x128xf32> -> vector<64x128xf32>
    %c1_51 = arith.constant 1 : index
    %c16_52 = arith.constant 16 : index
    %c0_53 = arith.constant 0 : index
    %133 = vector.load %arg6[%c1_51, %c16_52, %c0_53] : memref<4x48x128xf32, #tpu.memory_space<vmem>>, vector<1x16x128xf32>
    %134 = vector.shape_cast %133 : vector<1x16x128xf32> to vector<16x128xf32>
    %cst_54 = arith.constant dense<0.000000e+00> : vector<64x128xf32>
    %135 = tpu.matmul %129, %134, %cst_54 {dimension_numbers = #tpu.dot_dimension_numbers<[1], [0], [0], [1], [0, 0, 1, 1], [], []>} : vector<64x16xf32>, vector<16x128xf32>, vector<64x128xf32> -> vector<64x128xf32>
    %136 = arith.addf %132, %135 : vector<64x128xf32>
    %c1_55 = arith.constant 1 : index
    %c32_56 = arith.constant 32 : index
    %c0_57 = arith.constant 0 : index
    %137 = vector.load %arg6[%c1_55, %c32_56, %c0_57] : memref<4x48x128xf32, #tpu.memory_space<vmem>>, vector<1x16x128xf32>
    %138 = vector.shape_cast %137 : vector<1x16x128xf32> to vector<16x128xf32>
    %139 = vector.shape_cast %138 : vector<16x128xf32> to vector<1x16x128xf32>
    %cst_58 = arith.constant 0.000000e+00 : f32
    %140 = vector.broadcast %cst_58 : f32 to vector<1x16x128xf32>
    %141 = arith.cmpf one, %139, %140 : vector<1x16x128xf32>
    %142 = vector.shape_cast %136 : vector<64x128xf32> to vector<4x16x128xf32>
    %c0_59 = arith.constant 0 : index
    %c0_60 = arith.constant 0 : index
    %c0_61 = arith.constant 0 : index
    %143 = vector.load %arg7[%c0_59, %c0_60, %c0_61] : memref<4x16x128xf32, #tpu.memory_space<vmem>>, vector<4x16x128xf32>
    %144 = vector.shape_cast %141 : vector<1x16x128xi1> to vector<1x16x128xi1>
    %145 = vector.broadcast %144 : vector<1x16x128xi1> to vector<4x16x128xi1>
    %146 = arith.select %145, %142, %143 : vector<4x16x128xi1>, vector<4x16x128xf32>
    %c0_62 = arith.constant 0 : index
    %c0_63 = arith.constant 0 : index
    %c0_64 = arith.constant 0 : index
    %147 = vector.load %arg7[%c0_62, %c0_63, %c0_64] : memref<4x16x128xf32, #tpu.memory_space<vmem>>, vector<4x16x128xf32>
    tpu.vector_store %arg7[%c0_62, %c0_63, %c0_64], %146 {strides = array<i32>} : memref<4x16x128xf32, #tpu.memory_space<vmem>>, vector<4x16x128xf32>,
    %148 = vector.extract_strided_slice %7 {offsets = [0, 64], sizes = [64, 16], strides = [1, 1]} : vector<64x128xf32> to vector<64x16xf32>
    %149 = vector.extract_strided_slice %7 {offsets = [0, 80], sizes = [64, 16], strides = [1, 1]} : vector<64x128xf32> to vector<64x16xf32>
    %150 = vector.extract_strided_slice %148 {offsets = [0, 0], sizes = [16, 16], strides = [1, 1]} : vector<64x16xf32> to vector<16x16xf32>
    %151 = tpu.transpose %150, [1, 0] : vector<16x16xf32> -> vector<16x16xf32>
    %152 = vector.extract_strided_slice %148 {offsets = [16, 0], sizes = [16, 16], strides = [1, 1]} : vector<64x16xf32> to vector<16x16xf32>
    %153 = tpu.transpose %152, [1, 0] : vector<16x16xf32> -> vector<16x16xf32>
    %154 = vector.extract_strided_slice %148 {offsets = [32, 0], sizes = [16, 16], strides = [1, 1]} : vector<64x16xf32> to vector<16x16xf32>
    %155 = tpu.transpose %154, [1, 0] : vector<16x16xf32> -> vector<16x16xf32>
    %156 = vector.extract_strided_slice %148 {offsets = [48, 0], sizes = [16, 16], strides = [1, 1]} : vector<64x16xf32> to vector<16x16xf32>
    %157 = tpu.transpose %156, [1, 0] : vector<16x16xf32> -> vector<16x16xf32>
    %158 = tpu.concatenate %151, %153, %155, %157 in 0 : vector<16x16xf32>, vector<16x16xf32>, vector<16x16xf32>, vector<16x16xf32> -> vector<64x16xf32>
    %159 = vector.extract_strided_slice %149 {offsets = [0, 0], sizes = [16, 16], strides = [1, 1]} : vector<64x16xf32> to vector<16x16xf32>
    %160 = tpu.transpose %159, [1, 0] : vector<16x16xf32> -> vector<16x16xf32>
    %161 = vector.extract_strided_slice %149 {offsets = [16, 0], sizes = [16, 16], strides = [1, 1]} : vector<64x16xf32> to vector<16x16xf32>
    %162 = tpu.transpose %161, [1, 0] : vector<16x16xf32> -> vector<16x16xf32>
    %163 = vector.extract_strided_slice %149 {offsets = [32, 0], sizes = [16, 16], strides = [1, 1]} : vector<64x16xf32> to vector<16x16xf32>
    %164 = tpu.transpose %163, [1, 0] : vector<16x16xf32> -> vector<16x16xf32>
    %165 = vector.extract_strided_slice %149 {offsets = [48, 0], sizes = [16, 16], strides = [1, 1]} : vector<64x16xf32> to vector<16x16xf32>
    %166 = tpu.transpose %165, [1, 0] : vector<16x16xf32> -> vector<16x16xf32>
    %167 = tpu.concatenate %160, %162, %164, %166 in 0 : vector<16x16xf32>, vector<16x16xf32>, vector<16x16xf32>, vector<16x16xf32> -> vector<64x16xf32>
    %c2 = arith.constant 2 : index
    %c0_65 = arith.constant 0 : index
    %c0_66 = arith.constant 0 : index
    %168 = vector.load %arg4[%c2, %c0_65, %c0_66] : memref<4x32x16xf32, #tpu.memory_space<vmem>>, vector<1x16x16xf32>
    %169 = vector.shape_cast %168 : vector<1x16x16xf32> to vector<16x16xf32>
    %cst_67 = arith.constant dense<0.000000e+00> : vector<64x16xf32>
    %170 = tpu.matmul %158, %169, %cst_67 {dimension_numbers = #tpu.dot_dimension_numbers<[1], [0], [0], [1], [0, 0, 1, 1], [], []>} : vector<64x16xf32>, vector<16x16xf32>, vector<64x16xf32> -> vector<64x16xf32>
    %c2_68 = arith.constant 2 : index
    %c16_69 = arith.constant 16 : index
    %c0_70 = arith.constant 0 : index
    %171 = vector.load %arg4[%c2_68, %c16_69, %c0_70] : memref<4x32x16xf32, #tpu.memory_space<vmem>>, vector<1x16x16xf32>
    %172 = vector.shape_cast %171 : vector<1x16x16xf32> to vector<16x16xf32>
    %cst_71 = arith.constant dense<0.000000e+00> : vector<64x16xf32>
    %173 = tpu.matmul %167, %172, %cst_71 {dimension_numbers = #tpu.dot_dimension_numbers<[1], [0], [0], [1], [0, 0, 1, 1], [], []>} : vector<64x16xf32>, vector<16x16xf32>, vector<64x16xf32> -> vector<64x16xf32>
    %174 = arith.addf %170, %173 : vector<64x16xf32>
    %cst_72 = arith.constant 0.000000e+00 : f32
    %175 = vector.broadcast %cst_72 : f32 to vector<64x16xf32>
    %176 = arith.maximumf %174, %175 : vector<64x16xf32>
    %c2_73 = arith.constant 2 : index
    %c0_74 = arith.constant 0 : index
    %c0_75 = arith.constant 0 : index
    %177 = vector.load %arg5[%c2_73, %c0_74, %c0_75] : memref<4x16x32xf32, #tpu.memory_space<vmem>>, vector<1x16x32xf32>
    %178 = vector.shape_cast %177 : vector<1x16x32xf32> to vector<16x32xf32>
    %cst_76 = arith.constant dense<0.000000e+00> : vector<64x32xf32>
    %179 = tpu.matmul %176, %178, %cst_76 {dimension_numbers = #tpu.dot_dimension_numbers<[1], [0], [0], [1], [0, 0, 1, 1], [], []>} : vector<64x16xf32>, vector<16x32xf32>, vector<64x32xf32> -> vector<64x32xf32>
    %180 = vector.extract_strided_slice %179 {offsets = [0, 0], sizes = [64, 16], strides = [1, 1]} : vector<64x32xf32> to vector<64x16xf32>
    %181 = vector.extract_strided_slice %180 {offsets = [0, 0], sizes = [16, 16], strides = [1, 1]} : vector<64x16xf32> to vector<16x16xf32>
    %182 = tpu.transpose %181, [1, 0] : vector<16x16xf32> -> vector<16x16xf32>
    %183 = vector.extract_strided_slice %180 {offsets = [16, 0], sizes = [16, 16], strides = [1, 1]} : vector<64x16xf32> to vector<16x16xf32>
    %184 = tpu.transpose %183, [1, 0] : vector<16x16xf32> -> vector<16x16xf32>
    %185 = vector.extract_strided_slice %180 {offsets = [32, 0], sizes = [16, 16], strides = [1, 1]} : vector<64x16xf32> to vector<16x16xf32>
    %186 = tpu.transpose %185, [1, 0] : vector<16x16xf32> -> vector<16x16xf32>
    %187 = vector.extract_strided_slice %180 {offsets = [48, 0], sizes = [16, 16], strides = [1, 1]} : vector<64x16xf32> to vector<16x16xf32>
    %188 = tpu.transpose %187, [1, 0] : vector<16x16xf32> -> vector<16x16xf32>
    %189 = tpu.concatenate %182, %184, %186, %188 in 0 : vector<16x16xf32>, vector<16x16xf32>, vector<16x16xf32>, vector<16x16xf32> -> vector<64x16xf32>
    %190 = vector.extract_strided_slice %179 {offsets = [0, 16], sizes = [64, 16], strides = [1, 1]} : vector<64x32xf32> to vector<64x16xf32>
    %191 = vector.extract_strided_slice %190 {offsets = [0, 0], sizes = [16, 16], strides = [1, 1]} : vector<64x16xf32> to vector<16x16xf32>
    %192 = tpu.transpose %191, [1, 0] : vector<16x16xf32> -> vector<16x16xf32>
    %193 = vector.extract_strided_slice %190 {offsets = [16, 0], sizes = [16, 16], strides = [1, 1]} : vector<64x16xf32> to vector<16x16xf32>
    %194 = tpu.transpose %193, [1, 0] : vector<16x16xf32> -> vector<16x16xf32>
    %195 = vector.extract_strided_slice %190 {offsets = [32, 0], sizes = [16, 16], strides = [1, 1]} : vector<64x16xf32> to vector<16x16xf32>
    %196 = tpu.transpose %195, [1, 0] : vector<16x16xf32> -> vector<16x16xf32>
    %197 = vector.extract_strided_slice %190 {offsets = [48, 0], sizes = [16, 16], strides = [1, 1]} : vector<64x16xf32> to vector<16x16xf32>
    %198 = tpu.transpose %197, [1, 0] : vector<16x16xf32> -> vector<16x16xf32>
    %199 = tpu.concatenate %192, %194, %196, %198 in 0 : vector<16x16xf32>, vector<16x16xf32>, vector<16x16xf32>, vector<16x16xf32> -> vector<64x16xf32>
    %c2_77 = arith.constant 2 : index
    %c0_78 = arith.constant 0 : index
    %c0_79 = arith.constant 0 : index
    %200 = vector.load %arg6[%c2_77, %c0_78, %c0_79] : memref<4x48x128xf32, #tpu.memory_space<vmem>>, vector<1x16x128xf32>
    %201 = vector.shape_cast %200 : vector<1x16x128xf32> to vector<16x128xf32>
    %cst_80 = arith.constant dense<0.000000e+00> : vector<64x128xf32>
    %202 = tpu.matmul %189, %201, %cst_80 {dimension_numbers = #tpu.dot_dimension_numbers<[1], [0], [0], [1], [0, 0, 1, 1], [], []>} : vector<64x16xf32>, vector<16x128xf32>, vector<64x128xf32> -> vector<64x128xf32>
    %c2_81 = arith.constant 2 : index
    %c16_82 = arith.constant 16 : index
    %c0_83 = arith.constant 0 : index
    %203 = vector.load %arg6[%c2_81, %c16_82, %c0_83] : memref<4x48x128xf32, #tpu.memory_space<vmem>>, vector<1x16x128xf32>
    %204 = vector.shape_cast %203 : vector<1x16x128xf32> to vector<16x128xf32>
    %cst_84 = arith.constant dense<0.000000e+00> : vector<64x128xf32>
    %205 = tpu.matmul %199, %204, %cst_84 {dimension_numbers = #tpu.dot_dimension_numbers<[1], [0], [0], [1], [0, 0, 1, 1], [], []>} : vector<64x16xf32>, vector<16x128xf32>, vector<64x128xf32> -> vector<64x128xf32>
    %206 = arith.addf %202, %205 : vector<64x128xf32>
    %c2_85 = arith.constant 2 : index
    %c32_86 = arith.constant 32 : index
    %c0_87 = arith.constant 0 : index
    %207 = vector.load %arg6[%c2_85, %c32_86, %c0_87] : memref<4x48x128xf32, #tpu.memory_space<vmem>>, vector<1x16x128xf32>
    %208 = vector.shape_cast %207 : vector<1x16x128xf32> to vector<16x128xf32>
    %209 = vector.shape_cast %208 : vector<16x128xf32> to vector<1x16x128xf32>
    %cst_88 = arith.constant 0.000000e+00 : f32
    %210 = vector.broadcast %cst_88 : f32 to vector<1x16x128xf32>
    %211 = arith.cmpf one, %209, %210 : vector<1x16x128xf32>
    %212 = vector.shape_cast %206 : vector<64x128xf32> to vector<4x16x128xf32>
    %c0_89 = arith.constant 0 : index
    %c0_90 = arith.constant 0 : index
    %c0_91 = arith.constant 0 : index
    %213 = vector.load %arg7[%c0_89, %c0_90, %c0_91] : memref<4x16x128xf32, #tpu.memory_space<vmem>>, vector<4x16x128xf32>
    %214 = vector.shape_cast %211 : vector<1x16x128xi1> to vector<1x16x128xi1>
    %215 = vector.broadcast %214 : vector<1x16x128xi1> to vector<4x16x128xi1>
    %216 = arith.select %215, %212, %213 : vector<4x16x128xi1>, vector<4x16x128xf32>
    %c0_92 = arith.constant 0 : index
    %c0_93 = arith.constant 0 : index
    %c0_94 = arith.constant 0 : index
    %217 = vector.load %arg7[%c0_92, %c0_93, %c0_94] : memref<4x16x128xf32, #tpu.memory_space<vmem>>, vector<4x16x128xf32>
    tpu.vector_store %arg7[%c0_92, %c0_93, %c0_94], %216 {strides = array<i32>} : memref<4x16x128xf32, #tpu.memory_space<vmem>>, vector<4x16x128xf32>,
    %218 = vector.extract_strided_slice %7 {offsets = [0, 96], sizes = [64, 16], strides = [1, 1]} : vector<64x128xf32> to vector<64x16xf32>
    %219 = vector.extract_strided_slice %7 {offsets = [0, 112], sizes = [64, 16], strides = [1, 1]} : vector<64x128xf32> to vector<64x16xf32>
    %220 = vector.extract_strided_slice %218 {offsets = [0, 0], sizes = [16, 16], strides = [1, 1]} : vector<64x16xf32> to vector<16x16xf32>
    %221 = tpu.transpose %220, [1, 0] : vector<16x16xf32> -> vector<16x16xf32>
    %222 = vector.extract_strided_slice %218 {offsets = [16, 0], sizes = [16, 16], strides = [1, 1]} : vector<64x16xf32> to vector<16x16xf32>
    %223 = tpu.transpose %222, [1, 0] : vector<16x16xf32> -> vector<16x16xf32>
    %224 = vector.extract_strided_slice %218 {offsets = [32, 0], sizes = [16, 16], strides = [1, 1]} : vector<64x16xf32> to vector<16x16xf32>
    %225 = tpu.transpose %224, [1, 0] : vector<16x16xf32> -> vector<16x16xf32>
    %226 = vector.extract_strided_slice %218 {offsets = [48, 0], sizes = [16, 16], strides = [1, 1]} : vector<64x16xf32> to vector<16x16xf32>
    %227 = tpu.transpose %226, [1, 0] : vector<16x16xf32> -> vector<16x16xf32>
    %228 = tpu.concatenate %221, %223, %225, %227 in 0 : vector<16x16xf32>, vector<16x16xf32>, vector<16x16xf32>, vector<16x16xf32> -> vector<64x16xf32>
    %229 = vector.extract_strided_slice %219 {offsets = [0, 0], sizes = [16, 16], strides = [1, 1]} : vector<64x16xf32> to vector<16x16xf32>
    %230 = tpu.transpose %229, [1, 0] : vector<16x16xf32> -> vector<16x16xf32>
    %231 = vector.extract_strided_slice %219 {offsets = [16, 0], sizes = [16, 16], strides = [1, 1]} : vector<64x16xf32> to vector<16x16xf32>
    %232 = tpu.transpose %231, [1, 0] : vector<16x16xf32> -> vector<16x16xf32>
    %233 = vector.extract_strided_slice %219 {offsets = [32, 0], sizes = [16, 16], strides = [1, 1]} : vector<64x16xf32> to vector<16x16xf32>
    %234 = tpu.transpose %233, [1, 0] : vector<16x16xf32> -> vector<16x16xf32>
    %235 = vector.extract_strided_slice %219 {offsets = [48, 0], sizes = [16, 16], strides = [1, 1]} : vector<64x16xf32> to vector<16x16xf32>
    %236 = tpu.transpose %235, [1, 0] : vector<16x16xf32> -> vector<16x16xf32>
    %237 = tpu.concatenate %230, %232, %234, %236 in 0 : vector<16x16xf32>, vector<16x16xf32>, vector<16x16xf32>, vector<16x16xf32> -> vector<64x16xf32>
    %c3 = arith.constant 3 : index
    %c0_95 = arith.constant 0 : index
    %c0_96 = arith.constant 0 : index
    %238 = vector.load %arg4[%c3, %c0_95, %c0_96] : memref<4x32x16xf32, #tpu.memory_space<vmem>>, vector<1x16x16xf32>
    %239 = vector.shape_cast %238 : vector<1x16x16xf32> to vector<16x16xf32>
    %cst_97 = arith.constant dense<0.000000e+00> : vector<64x16xf32>
    %240 = tpu.matmul %228, %239, %cst_97 {dimension_numbers = #tpu.dot_dimension_numbers<[1], [0], [0], [1], [0, 0, 1, 1], [], []>} : vector<64x16xf32>, vector<16x16xf32>, vector<64x16xf32> -> vector<64x16xf32>
    %c3_98 = arith.constant 3 : index
    %c16_99 = arith.constant 16 : index
    %c0_100 = arith.constant 0 : index
    %241 = vector.load %arg4[%c3_98, %c16_99, %c0_100] : memref<4x32x16xf32, #tpu.memory_space<vmem>>, vector<1x16x16xf32>
    %242 = vector.shape_cast %241 : vector<1x16x16xf32> to vector<16x16xf32>
    %cst_101 = arith.constant dense<0.000000e+00> : vector<64x16xf32>
    %243 = tpu.matmul %237, %242, %cst_101 {dimension_numbers = #tpu.dot_dimension_numbers<[1], [0], [0], [1], [0, 0, 1, 1], [], []>} : vector<64x16xf32>, vector<16x16xf32>, vector<64x16xf32> -> vector<64x16xf32>
    %244 = arith.addf %240, %243 : vector<64x16xf32>
    %cst_102 = arith.constant 0.000000e+00 : f32
    %245 = vector.broadcast %cst_102 : f32 to vector<64x16xf32>
    %246 = arith.maximumf %244, %245 : vector<64x16xf32>
    %c3_103 = arith.constant 3 : index
    %c0_104 = arith.constant 0 : index
    %c0_105 = arith.constant 0 : index
    %247 = vector.load %arg5[%c3_103, %c0_104, %c0_105] : memref<4x16x32xf32, #tpu.memory_space<vmem>>, vector<1x16x32xf32>
    %248 = vector.shape_cast %247 : vector<1x16x32xf32> to vector<16x32xf32>
    %cst_106 = arith.constant dense<0.000000e+00> : vector<64x32xf32>
    %249 = tpu.matmul %246, %248, %cst_106 {dimension_numbers = #tpu.dot_dimension_numbers<[1], [0], [0], [1], [0, 0, 1, 1], [], []>} : vector<64x16xf32>, vector<16x32xf32>, vector<64x32xf32> -> vector<64x32xf32>
    %250 = vector.extract_strided_slice %249 {offsets = [0, 0], sizes = [64, 16], strides = [1, 1]} : vector<64x32xf32> to vector<64x16xf32>
    %251 = vector.extract_strided_slice %250 {offsets = [0, 0], sizes = [16, 16], strides = [1, 1]} : vector<64x16xf32> to vector<16x16xf32>
    %252 = tpu.transpose %251, [1, 0] : vector<16x16xf32> -> vector<16x16xf32>
    %253 = vector.extract_strided_slice %250 {offsets = [16, 0], sizes = [16, 16], strides = [1, 1]} : vector<64x16xf32> to vector<16x16xf32>
    %254 = tpu.transpose %253, [1, 0] : vector<16x16xf32> -> vector<16x16xf32>
    %255 = vector.extract_strided_slice %250 {offsets = [32, 0], sizes = [16, 16], strides = [1, 1]} : vector<64x16xf32> to vector<16x16xf32>
    %256 = tpu.transpose %255, [1, 0] : vector<16x16xf32> -> vector<16x16xf32>
    %257 = vector.extract_strided_slice %250 {offsets = [48, 0], sizes = [16, 16], strides = [1, 1]} : vector<64x16xf32> to vector<16x16xf32>
    %258 = tpu.transpose %257, [1, 0] : vector<16x16xf32> -> vector<16x16xf32>
    %259 = tpu.concatenate %252, %254, %256, %258 in 0 : vector<16x16xf32>, vector<16x16xf32>, vector<16x16xf32>, vector<16x16xf32> -> vector<64x16xf32>
    %260 = vector.extract_strided_slice %249 {offsets = [0, 16], sizes = [64, 16], strides = [1, 1]} : vector<64x32xf32> to vector<64x16xf32>
    %261 = vector.extract_strided_slice %260 {offsets = [0, 0], sizes = [16, 16], strides = [1, 1]} : vector<64x16xf32> to vector<16x16xf32>
    %262 = tpu.transpose %261, [1, 0] : vector<16x16xf32> -> vector<16x16xf32>
    %263 = vector.extract_strided_slice %260 {offsets = [16, 0], sizes = [16, 16], strides = [1, 1]} : vector<64x16xf32> to vector<16x16xf32>
    %264 = tpu.transpose %263, [1, 0] : vector<16x16xf32> -> vector<16x16xf32>
    %265 = vector.extract_strided_slice %260 {offsets = [32, 0], sizes = [16, 16], strides = [1, 1]} : vector<64x16xf32> to vector<16x16xf32>
    %266 = tpu.transpose %265, [1, 0] : vector<16x16xf32> -> vector<16x16xf32>
    %267 = vector.extract_strided_slice %260 {offsets = [48, 0], sizes = [16, 16], strides = [1, 1]} : vector<64x16xf32> to vector<16x16xf32>
    %268 = tpu.transpose %267, [1, 0] : vector<16x16xf32> -> vector<16x16xf32>
    %269 = tpu.concatenate %262, %264, %266, %268 in 0 : vector<16x16xf32>, vector<16x16xf32>, vector<16x16xf32>, vector<16x16xf32> -> vector<64x16xf32>
    %c3_107 = arith.constant 3 : index
    %c0_108 = arith.constant 0 : index
    %c0_109 = arith.constant 0 : index
    %270 = vector.load %arg6[%c3_107, %c0_108, %c0_109] : memref<4x48x128xf32, #tpu.memory_space<vmem>>, vector<1x16x128xf32>
    %271 = vector.shape_cast %270 : vector<1x16x128xf32> to vector<16x128xf32>
    %cst_110 = arith.constant dense<0.000000e+00> : vector<64x128xf32>
    %272 = tpu.matmul %259, %271, %cst_110 {dimension_numbers = #tpu.dot_dimension_numbers<[1], [0], [0], [1], [0, 0, 1, 1], [], []>} : vector<64x16xf32>, vector<16x128xf32>, vector<64x128xf32> -> vector<64x128xf32>
    %c3_111 = arith.constant 3 : index
    %c16_112 = arith.constant 16 : index
    %c0_113 = arith.constant 0 : index
    %273 = vector.load %arg6[%c3_111, %c16_112, %c0_113] : memref<4x48x128xf32, #tpu.memory_space<vmem>>, vector<1x16x128xf32>
    %274 = vector.shape_cast %273 : vector<1x16x128xf32> to vector<16x128xf32>
    %cst_114 = arith.constant dense<0.000000e+00> : vector<64x128xf32>
    %275 = tpu.matmul %269, %274, %cst_114 {dimension_numbers = #tpu.dot_dimension_numbers<[1], [0], [0], [1], [0, 0, 1, 1], [], []>} : vector<64x16xf32>, vector<16x128xf32>, vector<64x128xf32> -> vector<64x128xf32>
    %276 = arith.addf %272, %275 : vector<64x128xf32>
    %c3_115 = arith.constant 3 : index
    %c32_116 = arith.constant 32 : index
    %c0_117 = arith.constant 0 : index
    %277 = vector.load %arg6[%c3_115, %c32_116, %c0_117] : memref<4x48x128xf32, #tpu.memory_space<vmem>>, vector<1x16x128xf32>
    %278 = vector.shape_cast %277 : vector<1x16x128xf32> to vector<16x128xf32>
    %279 = vector.shape_cast %278 : vector<16x128xf32> to vector<1x16x128xf32>
    %cst_118 = arith.constant 0.000000e+00 : f32
    %280 = vector.broadcast %cst_118 : f32 to vector<1x16x128xf32>
    %281 = arith.cmpf one, %279, %280 : vector<1x16x128xf32>
    %282 = vector.shape_cast %276 : vector<64x128xf32> to vector<4x16x128xf32>
    %c0_119 = arith.constant 0 : index
    %c0_120 = arith.constant 0 : index
    %c0_121 = arith.constant 0 : index
    %283 = vector.load %arg7[%c0_119, %c0_120, %c0_121] : memref<4x16x128xf32, #tpu.memory_space<vmem>>, vector<4x16x128xf32>
    %284 = vector.shape_cast %281 : vector<1x16x128xi1> to vector<1x16x128xi1>
    %285 = vector.broadcast %284 : vector<1x16x128xi1> to vector<4x16x128xi1>
    %286 = arith.select %285, %282, %283 : vector<4x16x128xi1>, vector<4x16x128xf32>
    %c0_122 = arith.constant 0 : index
    %c0_123 = arith.constant 0 : index
    %c0_124 = arith.constant 0 : index
    %287 = vector.load %arg7[%c0_122, %c0_123, %c0_124] : memref<4x16x128xf32, #tpu.memory_space<vmem>>, vector<4x16x128xf32>
    tpu.vector_store %arg7[%c0_122, %c0_123, %c0_124], %286 {strides = array<i32>} : memref<4x16x128xf32, #tpu.memory_space<vmem>>, vector<4x16x128xf32>,
    return
  }
  func.func @transform_0(%arg0: i32, %arg1: i32) -> (i32, i32, i32) {
    %c0_i32 = arith.constant 0 : i32
    %c0_i32_0 = arith.constant 0 : i32
    %c0_i32_1 = arith.constant 0 : i32
    return %arg0, %c0_i32, %c0_i32_0 : i32, i32, i32
  }
  func.func @transform_1(%arg0: i32, %arg1: i32) -> (i32, i32, i32) {
    %c0_i32 = arith.constant 0 : i32
    %c0_i32_0 = arith.constant 0 : i32
    %c0_i32_1 = arith.constant 0 : i32
    return %arg1, %c0_i32, %c0_i32_0 : i32, i32, i32
  }
  func.func @transform_2(%arg0: i32, %arg1: i32) -> (i32, i32, i32) {
    %c0_i32 = arith.constant 0 : i32
    %c0_i32_0 = arith.constant 0 : i32
    %c0_i32_1 = arith.constant 0 : i32
    return %arg1, %c0_i32, %c0_i32_0 : i32, i32, i32
  }
  func.func @transform_3(%arg0: i32, %arg1: i32) -> (i32, i32, i32) {
    %c0_i32 = arith.constant 0 : i32
    %c0_i32_0 = arith.constant 0 : i32
    %c0_i32_1 = arith.constant 0 : i32
    return %arg1, %c0_i32, %c0_i32_0 : i32, i32, i32
  }
  func.func @transform_4(%arg0: i32, %arg1: i32) -> (i32, i32, i32) {
    %c0_i32 = arith.constant 0 : i32
    %c0_i32_0 = arith.constant 0 : i32
    %c0_i32_1 = arith.constant 0 : i32
    return %arg1, %c0_i32, %c0_i32_0 : i32, i32, i32
  }
  func.func @transform_5(%arg0: i32, %arg1: i32) -> (i32, i32, i32) {
    %c0_i32 = arith.constant 0 : i32
    %c0_i32_0 = arith.constant 0 : i32
    %c0_i32_1 = arith.constant 0 : i32
    return %arg0, %c0_i32, %c0_i32_0 : i32, i32, i32
  }
}

</mosaic_0001>

<llo_original>
// kernel: tpu_custom_call.1
$region0: #{tpu_custom_call.1}
  #allocation0 [shape = 'u32[]', space=smem, size = 0x4, offset = 0x4, fixed_abs, tag = 'smem constant byte address 0x4 - core index']
  #allocation1 [shape = 'u32[72,128]{1,0:T(1,128)}', space=vmem, size = 0x9000, scoped, tag = 'internal scratch']
  %s0 = inlined_call_operand.hbm [shape: f32[8,16,32], index: 0, kind: input, shape index: {}]
  %s1 = inlined_call_operand.hbm [shape: f32[3,32,128], index: 1, kind: input, shape index: {}]
  %s2 = inlined_call_operand.vmem [shape: f32[12,32,16], index: 2, kind: input, shape index: {}]
  %s3 = inlined_call_operand.hbm [shape: f32[12,16,32], index: 3, kind: input, shape index: {}]
  %s4 = inlined_call_operand.vmem [shape: f32[12,48,128], index: 4, kind: input, shape index: {}]
  %s5 = inlined_call_operand.hbm [shape: f32[8,16,128], index: 5, kind: output, shape index: {}]
  %s6 = sld [smem:[#allocation0]]
  $region69: #{tpu_custom_call.1} parent=0
    _
  %s8 = ssub.s32 1, %s6
  %s9 = scalar_select 0, %s8, %s6
  $region1: #{tpu_custom_call.1} parent=0
    #allocation2 [shape = 'u8[65536]{0}', space=vmem, size = 0x10000, scoped, tag = 'input window, operand 0']
    #allocation3 [shape = 's32[2]{0}', space=sflag, size = 0x8, scoped, tag = 'scoped memory for tpu_custom_call.1']
    #allocation4 [shape = 's32[2]{0}', space=sflag, size = 0x8, scoped, tag = 'scoped memory for tpu_custom_call.1']
    #allocation5 [shape = 'u8[32768]{0}', space=vmem, size = 0x8000, scoped, tag = 'input window, operand 1']
    #allocation6 [shape = 's32[2]{0}', space=sflag, size = 0x8, scoped, tag = 'scoped memory for tpu_custom_call.1']
    #allocation7 [shape = 'u8[65536]{0}', space=vmem, size = 0x10000, scoped, tag = 'input window, operand 3']
    #allocation8 [shape = 'u8[65536]{0}', space=vmem, size = 0x10000, scoped, tag = 'output window, operand 0']
    %10 = vsyncpa [#allocation3], 0
    %s11 = scalar_lea.sflag [#allocation3], 1
    %12 = vsyncpa %s11, 0
    %13 = vsyncpa [#allocation6], 0
    %s14 = scalar_lea.sflag [#allocation6], 1
    %15 = vsyncpa %s14, 0
    %16 = vsyncpa [#allocation4], 0
    %s17 = scalar_lea.sflag [#allocation4], 1
    %18 = vsyncpa %s17, 0
    loop: start=0, step=1, limit=8
    $region2: #{tpu_custom_call.1} parent=1 // loop_pre_header
      _
    $region3: #{tpu_custom_call.1} parent=1 // loop_header
      %s20 = sphi 0, %s24
      %p21 = scmp.ge.s32.totalorder %s20, 8
      %s27 = sphi 0, %s39
      %s28 = sphi 0, %s35
      %s29 = sphi 0, %s27
      %s30 = sphi 0, %s28
      %s31 = sphi 0, %s29
      %s32 = sphi 0, %s30
      %s42 = sphi 0, %s44
      %s45 = sphi 0, %s42
      %s46 = sphi 0, %s45
      %s62 = sphi 0, %s46
      %s68 = sphi 0, %s70
      %s71 = sphi 0, %s68
      %s72 = sphi 0, %s71
      %s88 = sphi 0, %s72
      %s94 = sphi 0, %s96
      %s97 = sphi 0, %s94
      %s98 = sphi 0, %s97
      %s114 = sphi 0, %s98
      %s120 = sphi 0, %s122
      %s123 = sphi 0, %s120
      %s124 = sphi 0, %s123
      %s140 = sphi 0, %s124
      %s146 = sphi 0, %s148
      %s149 = sphi 0, %s146
      %s150 = sphi 0, %s149
      %s166 = sphi 0, %s150
      %s172 = sphi 0, %s174
      %s175 = sphi 0, %s172
      %s176 = sphi 0, %s175
      %s192 = sphi 0, %s176
    $region4: #{tpu_custom_call.1} parent=1 // loop_header_branch
      %23 = sbr.rel (%p21) target = $region8
    $region5: #{tpu_custom_call.1} parent=1 // loop_body
      %s25 = ssub.s32 %s20, 1
      %s26 = ssub.s32 %s20, 2
      %s33 = sadd.s32 1, %s28
      %p34 = scmp.ge.s32.totalorder %s33, 3
      %s35 = scalar_select %p34, 0, %s33
      %s36 = sadd.s32 1, %s27
      %s37 = scalar_select %p34, %s36, %s27
      %p38 = scmp.ge.s32.totalorder %s37, 2
      %s39 = scalar_select %p38, 0, %s37
      %s40 = ssub.s32 %s27, %s39
      %p41 = scmp.eq.s32.totalorder %s40, 0
      %s43 = sadd.s32 %s42, 1
      %s44 = scalar_select %p41, %s42, %s43
      %p47 = pneg %p41
      %p48 = scmp.eq.s32.totalorder %s20, 5
      %p49 = por %p47, %p48
      %p50 = scmp.ne.s32.totalorder %s42, %s45
      %p51 = scmp.eq.s32.totalorder %s20, 0
      %p52 = por %p50, %p51
      %p53 = scmp.ne.s32.totalorder %s42, %s45
      %p54 = scmp.eq.s32.totalorder %s25, 5
      %p55 = por %p53, %p54
      %p56 = scmp.ne.s32.totalorder %s45, %s46
      %p57 = scmp.eq.s32.totalorder %s25, 0
      %p58 = por %p56, %p57
      %p59 = scmp.ne.s32.totalorder %s45, %s46
      %p60 = scmp.eq.s32.totalorder %s26, 5
      %p61 = por %p59, %p60
      %p63 = scmp.ne.s32.totalorder %s46, %s62
      %p64 = scmp.eq.s32.totalorder %s26, 0
      %p65 = por %p63, %p64
      %s66 = ssub.s32 %s28, %s35
      %p67 = scmp.eq.s32.totalorder %s66, 0
      %s69 = sadd.s32 %s68, 1
      %s70 = scalar_select %p67, %s68, %s69
      %p73 = pneg %p67
      %p74 = scmp.eq.s32.totalorder %s20, 5
      %p75 = por %p73, %p74
      %p76 = scmp.ne.s32.totalorder %s68, %s71
      %p77 = scmp.eq.s32.totalorder %s20, 0
      %p78 = por %p76, %p77
      %p79 = scmp.ne.s32.totalorder %s68, %s71
      %p80 = scmp.eq.s32.totalorder %s25, 5
      %p81 = por %p79, %p80
      %p82 = scmp.ne.s32.totalorder %s71, %s72
      %p83 = scmp.eq.s32.totalorder %s25, 0
      %p84 = por %p82, %p83
      %p85 = scmp.ne.s32.totalorder %s71, %s72
      %p86 = scmp.eq.s32.totalorder %s26, 5
      %p87 = por %p85, %p86
      %p89 = scmp.ne.s32.totalorder %s72, %s88
      %p90 = scmp.eq.s32.totalorder %s26, 0
      %p91 = por %p89, %p90
      %s92 = ssub.s32 %s28, %s35
      %p93 = scmp.eq.s32.totalorder %s92, 0
      %s95 = sadd.s32 %s94, 1
      %s96 = scalar_select %p93, %s94, %s95
      %p99 = pneg %p93
      %p100 = scmp.eq.s32.totalorder %s20, 5
      %p101 = por %p99, %p100
      %p102 = scmp.ne.s32.totalorder %s94, %s97
      %p103 = scmp.eq.s32.totalorder %s20, 0
      %p104 = por %p102, %p103
      %p105 = scmp.ne.s32.totalorder %s94, %s97
      %p106 = scmp.eq.s32.totalorder %s25, 5
      %p107 = por %p105, %p106
      %p108 = scmp.ne.s32.totalorder %s97, %s98
      %p109 = scmp.eq.s32.totalorder %s25, 0
      %p110 = por %p108, %p109
      %p111 = scmp.ne.s32.totalorder %s97, %s98
      %p112 = scmp.eq.s32.totalorder %s26, 5
      %p113 = por %p111, %p112
      %p115 = scmp.ne.s32.totalorder %s98, %s114
      %p116 = scmp.eq.s32.totalorder %s26, 0
      %p117 = por %p115, %p116
      %s118 = ssub.s32 %s28, %s35
      %p119 = scmp.eq.s32.totalorder %s118, 0
      %s121 = sadd.s32 %s120, 1
      %s122 = scalar_select %p119, %s120, %s121
      %p125 = pneg %p119
      %p126 = scmp.eq.s32.totalorder %s20, 5
      %p127 = por %p125, %p126
      %p128 = scmp.ne.s32.totalorder %s120, %s123
      %p129 = scmp.eq.s32.totalorder %s20, 0
      %p130 = por %p128, %p129
      %p131 = scmp.ne.s32.totalorder %s120, %s123
      %p132 = scmp.eq.s32.totalorder %s25, 5
      %p133 = por %p131, %p132
      %p134 = scmp.ne.s32.totalorder %s123, %s124
      %p135 = scmp.eq.s32.totalorder %s25, 0
      %p136 = por %p134, %p135
      %p137 = scmp.ne.s32.totalorder %s123, %s124
      %p138 = scmp.eq.s32.totalorder %s26, 5
      %p139 = por %p137, %p138
      %p141 = scmp.ne.s32.totalorder %s124, %s140
      %p142 = scmp.eq.s32.totalorder %s26, 0
      %p143 = por %p141, %p142
      %s144 = ssub.s32 %s28, %s35
      %p145 = scmp.eq.s32.totalorder %s144, 0
      %s147 = sadd.s32 %s146, 1
      %s148 = scalar_select %p145, %s146, %s147
      %p151 = pneg %p145
      %p152 = scmp.eq.s32.totalorder %s20, 5
      %p153 = por %p151, %p152
      %p154 = scmp.ne.s32.totalorder %s146, %s149
      %p155 = scmp.eq.s32.totalorder %s20, 0
      %p156 = por %p154, %p155
      %p157 = scmp.ne.s32.totalorder %s146, %s149
      %p158 = scmp.eq.s32.totalorder %s25, 5
      %p159 = por %p157, %p158
      %p160 = scmp.ne.s32.totalorder %s149, %s150
      %p161 = scmp.eq.s32.totalorder %s25, 0
      %p162 = por %p160, %p161
      %p163 = scmp.ne.s32.totalorder %s149, %s150
      %p164 = scmp.eq.s32.totalorder %s26, 5
      %p165 = por %p163, %p164
      %p167 = scmp.ne.s32.totalorder %s150, %s166
      %p168 = scmp.eq.s32.totalorder %s26, 0
      %p169 = por %p167, %p168
      %s170 = ssub.s32 %s27, %s39
      %p171 = scmp.eq.s32.totalorder %s170, 0
      %s173 = sadd.s32 %s172, 1
      %s174 = scalar_select %p171, %s172, %s173
      %p177 = pneg %p171
      %p178 = scmp.eq.s32.totalorder %s20, 5
      %p179 = por %p177, %p178
      %p180 = scmp.ne.s32.totalorder %s172, %s175
      %p181 = scmp.eq.s32.totalorder %s20, 0
      %p182 = por %p180, %p181
      %p183 = scmp.ne.s32.totalorder %s172, %s175
      %p184 = scmp.eq.s32.totalorder %s25, 5
      %p185 = por %p183, %p184
      %p186 = scmp.ne.s32.totalorder %s175, %s176
      %p187 = scmp.eq.s32.totalorder %s25, 0
      %p188 = por %p186, %p187
      %p189 = scmp.ne.s32.totalorder %s175, %s176
      %p190 = scmp.eq.s32.totalorder %s26, 5
      %p191 = por %p189, %p190
      %p193 = scmp.ne.s32.totalorder %s176, %s192
      %p194 = scmp.eq.s32.totalorder %s26, 0
      %p195 = por %p193, %p194
      %p196 = scmp.le.s32.totalorder 1, %s20
      %p197 = scmp.lt.s32.totalorder %s20, 7
      %p198 = pnand %p196, %p197
      %p199 = pneg %p198
      // Predicated region
      $region9: #{tpu_custom_call.1} parent=5 // pred_check
        _
      $region10: #{tpu_custom_call.1} parent=5 // pred_check_branch
        %201 = sbr.rel (%p198) target = $region12
      $region11: #{tpu_custom_call.1} parent=5 // pred_region
        %s202 = ssub.s32 %s20, 1
      $region12: #{tpu_custom_call.1} parent=5 // pred_fallthru
        _
      %p203 = scmp.lt.s32.totalorder %s20, 6
      // Predicated region
      $region13: #{tpu_custom_call.1} parent=5 // pred_check
        %p204 = pneg %p203
      $region14: #{tpu_custom_call.1} parent=5 // pred_check_branch
        %206 = sbr.rel (%p204) target = $region16
      $region15: #{tpu_custom_call.1} parent=5 // pred_region
        // Predicated region
        $region17: #{tpu_custom_call.1} parent=15 // pred_check
          %p207 = pneg %p52
        $region18: #{tpu_custom_call.1} parent=15 // pred_check_branch
          %209 = sbr.rel (%p207) target = $region20
        $region19: #{tpu_custom_call.1} parent=15 // pred_region
          %s210 = sand.u32 %s42, 1
          %s211 = scalar_lea.sflag [#allocation3], %s210
          %s212 = sand.u32 %s42, 1
          %s213 = smul.addr %s212, 64
          %s214 = scalar_lea.vmem [#allocation2], %s213
          %s215 = smul.u32 4, %s27
          %217 = vsyncadd %s211, 0
          %s218 = smul.addr %s215, 2
          %s219 = smul.addr %s218, 8
          %s220 = scalar_lea.hbm %s0, %s219
          %s221 = sshll.u32 %s220, 4
          %s222 = int_to_ptr.hbm [resolvable:$true] %s221
          %s223 = sshll.u32 %s214, 4
          %s224 = int_to_ptr.vmem [resolvable:$true] %s223
          %229 = dma.hbm_to_vmem [thread:$0]  %s222, 1024, %s224, %s211, 128, 128, 8
        $region20: #{tpu_custom_call.1} parent=15 // pred_fallthru
          _
        // Predicated region
        $region21: #{tpu_custom_call.1} parent=15 // pred_check
          %p230 = pneg %p78
        $region22: #{tpu_custom_call.1} parent=15 // pred_check_branch
          %232 = sbr.rel (%p230) target = $region24
        $region23: #{tpu_custom_call.1} parent=15 // pred_region
          %s233 = sand.u32 %s20, 1
          %s234 = scalar_lea.sflag [#allocation6], %s233
          %s235 = sand.u32 %s68, 1
          %s236 = smul.addr %s235, 32
          %s237 = scalar_lea.vmem [#allocation5], %s236
          %239 = vsyncadd %s234, 0
          %s240 = smul.addr %s28, 4
          %s241 = smul.addr %s240, 8
          %s242 = scalar_lea.hbm %s1, %s241
          %s243 = sshll.u32 %s242, 4
          %s244 = int_to_ptr.hbm [resolvable:$true] %s243
          %s245 = sshll.u32 %s237, 4
          %s246 = int_to_ptr.vmem [resolvable:$true] %s245
          %251 = dma.hbm_to_vmem [thread:$0]  %s244, 512, %s246, %s234, 128, 128, 8
        $region24: #{tpu_custom_call.1} parent=15 // pred_fallthru
          _
        // Predicated region
        $region25: #{tpu_custom_call.1} parent=15 // pred_check
          %p252 = pneg %p104
        $region26: #{tpu_custom_call.1} parent=15 // pred_check_branch
          %254 = sbr.rel (%p252) target = $region28
        $region27: #{tpu_custom_call.1} parent=15 // pred_region
          %s255 = smul.u32 4, %s28
          %p256 = scmp.lt.s32.totalorder %s255, 11
          %s257 = scalar_select %p256, %s255, 11
          %s258 = smul.addr %s257, 4
          %s259 = smul.addr %s258, 8
          %s260 = scalar_lea.vmem %s2, %s259
          %s261 = smul.u32 4, %s28
        $region28: #{tpu_custom_call.1} parent=15 // pred_fallthru
          _
        // Predicated region
        $region29: #{tpu_custom_call.1} parent=15 // pred_check
          %p262 = pneg %p130
        $region30: #{tpu_custom_call.1} parent=15 // pred_check_branch
          %264 = sbr.rel (%p262) target = $region32
        $region31: #{tpu_custom_call.1} parent=15 // pred_region
          %s265 = sand.u32 %s20, 1
          %s266 = scalar_lea.sflag [#allocation6], %s265
          %s267 = sand.u32 %s120, 1
          %s268 = smul.addr %s267, 64
          %s269 = scalar_lea.vmem [#allocation7], %s268
          %s270 = smul.u32 4, %s28
          %272 = vsyncadd %s266, 0
          %s273 = smul.addr %s270, 2
          %s274 = smul.addr %s273, 8
          %s275 = scalar_lea.hbm %s3, %s274
          %s276 = sshll.u32 %s275, 4
          %s277 = int_to_ptr.hbm [resolvable:$true] %s276
          %s278 = sshll.u32 %s269, 4
          %s279 = int_to_ptr.vmem [resolvable:$true] %s278
          %284 = dma.hbm_to_vmem [thread:$0]  %s277, 1024, %s279, %s266, 128, 128, 8
        $region32: #{tpu_custom_call.1} parent=15 // pred_fallthru
          _
        // Predicated region
        $region33: #{tpu_custom_call.1} parent=15 // pred_check
          %p285 = pneg %p156
        $region34: #{tpu_custom_call.1} parent=15 // pred_check_branch
          %287 = sbr.rel (%p285) target = $region36
        $region35: #{tpu_custom_call.1} parent=15 // pred_region
          %s288 = smul.u32 4, %s28
          %p289 = scmp.lt.s32.totalorder %s288, 11
          %s290 = scalar_select %p289, %s288, 11
          %s291 = smul.addr %s290, 6
          %s292 = smul.addr %s291, 8
          %s293 = scalar_lea.vmem %s4, %s292
          %s294 = smul.u32 4, %s28
        $region36: #{tpu_custom_call.1} parent=15 // pred_fallthru
          _
      $region16: #{tpu_custom_call.1} parent=5 // pred_fallthru
        _
      %p295 = scmp.le.s32.totalorder 1, %s20
      %p296 = scmp.lt.s32.totalorder %s20, 7
      %p297 = pnand %p295, %p296
      %p298 = pneg %p297
      // Predicated region
      $region37: #{tpu_custom_call.1} parent=5 // pred_check
        _
      $region38: #{tpu_custom_call.1} parent=5 // pred_check_branch
        %300 = sbr.rel (%p297) target = $region40
      $region39: #{tpu_custom_call.1} parent=5 // pred_region
        %s301 = ssub.s32 %s20, 1
        %s302 = sand.u32 %s45, 1
        %s303 = scalar_lea.sflag [#allocation3], %s302
        %s304 = sand.u32 %s45, 1
        %s305 = smul.addr %s304, 64
        %s306 = scalar_lea.vmem [#allocation2], %s305
        // Predicated region
        $region41: #{tpu_custom_call.1} parent=39 // pred_check
          %p307 = pneg %p58
        $region42: #{tpu_custom_call.1} parent=39 // pred_check_branch
          %309 = sbr.rel (%p307) target = $region44
        $region43: #{tpu_custom_call.1} parent=39 // pred_region
          %311 = dma.done %s303, 1024
        $region44: #{tpu_custom_call.1} parent=39 // pred_fallthru
          _
        %s312 = sand.u32 %s25, 1
        %s313 = scalar_lea.sflag [#allocation6], %s312
        %s314 = sand.u32 %s71, 1
        %s315 = smul.addr %s314, 32
        %s316 = scalar_lea.vmem [#allocation5], %s315
        // Predicated region
        $region45: #{tpu_custom_call.1} parent=39 // pred_check
          %p317 = pneg %p84
        $region46: #{tpu_custom_call.1} parent=39 // pred_check_branch
          %319 = sbr.rel (%p317) target = $region48
        $region47: #{tpu_custom_call.1} parent=39 // pred_region
          %321 = dma.done %s313, 512
        $region48: #{tpu_custom_call.1} parent=39 // pred_fallthru
          _
        %s322 = sand.u32 %s25, 1
        %s323 = scalar_lea.sflag [#allocation6], %s322
        %s324 = sand.u32 %s123, 1
        %s325 = smul.addr %s324, 64
        %s326 = scalar_lea.vmem [#allocation7], %s325
        // Predicated region
        $region49: #{tpu_custom_call.1} parent=39 // pred_check
          %p327 = pneg %p136
        $region50: #{tpu_custom_call.1} parent=39 // pred_check_branch
          %329 = sbr.rel (%p327) target = $region52
        $region51: #{tpu_custom_call.1} parent=39 // pred_region
          %331 = dma.done %s323, 1024
        $region52: #{tpu_custom_call.1} parent=39 // pred_fallthru
          _
        %s332 = sand.u32 %s45, 1
        %s333 = scalar_lea.sflag [#allocation3], %s332
        %s334 = sand.u32 %s45, 1
        %s335 = smul.addr %s334, 64
        %s336 = scalar_lea.vmem [#allocation2], %s335
        %p337 = pneg %p58
        %p338 = pneg %p55
        %s339 = sand.u32 %s25, 1
        %s340 = scalar_lea.sflag [#allocation6], %s339
        %s341 = sand.u32 %s71, 1
        %s342 = smul.addr %s341, 32
        %s343 = scalar_lea.vmem [#allocation5], %s342
        %p344 = pneg %p84
        %p345 = pneg %p81
        %s346 = smul.u32 4, %s30
        %p347 = scmp.lt.s32.totalorder %s346, 11
        %s348 = scalar_select %p347, %s346, 11
        %s349 = smul.addr %s348, 4
        %s350 = smul.addr %s349, 8
        %s351 = scalar_lea.vmem %s2, %s350
        %p352 = pneg %p110
        %p353 = pneg %p107
        %s354 = sand.u32 %s25, 1
        %s355 = scalar_lea.sflag [#allocation6], %s354
        %s356 = sand.u32 %s123, 1
        %s357 = smul.addr %s356, 64
        %s358 = scalar_lea.vmem [#allocation7], %s357
        %p359 = pneg %p136
        %p360 = pneg %p133
        %s361 = smul.u32 4, %s30
        %p362 = scmp.lt.s32.totalorder %s361, 11
        %s363 = scalar_select %p362, %s361, 11
        %s364 = smul.addr %s363, 6
        %s365 = smul.addr %s364, 8
        %s366 = scalar_lea.vmem %s4, %s365
        %p367 = pneg %p162
        %p368 = pneg %p159
        %p369 = pneg %p188
        %p370 = pneg %p185
        %s371 = sand.u32 %s175, 1
        %s372 = scalar_lea.sflag [#allocation4], %s371
        %s373 = sand.u32 %s175, 1
        %s374 = smul.addr %s373, 64
        %s375 = scalar_lea.vmem [#allocation8], %s374
        %s376 = smul.u32 4, %s29
        %s377 = smul.u32 4, %s30
        %p378 = scmp.lt.s32.totalorder %s377, 11
        %s379 = scalar_select %p378, %s377, 11
        %s380 = smul.addr %s379, 4
        %s381 = smul.addr %s380, 8
        %s382 = scalar_lea.vmem %s2, %s381
        %s383 = smul.u32 4, %s30
        %s384 = smul.u32 4, %s30
        %s385 = smul.u32 4, %s30
        %p386 = scmp.lt.s32.totalorder %s385, 11
        %s387 = scalar_select %p386, %s385, 11
        %s388 = smul.addr %s387, 6
        %s389 = smul.addr %s388, 8
        %s390 = scalar_lea.vmem %s4, %s389
        %s391 = smul.u32 4, %s30
        %s392 = smul.u32 4, %s29
        %p393 = scmp.eq.s32.totalorder %s30, 0
        // Predicated region
        $region53: #{tpu_custom_call.1} parent=39 // pred_check
          %p394 = pneg %p393
        $region54: #{tpu_custom_call.1} parent=39 // pred_check_branch
          %396 = sbr.rel (%p394) target = $region56
        $region55: #{tpu_custom_call.1} parent=39 // pred_region
          %397 = vst [vmem:[%s375] sm:$0xff] 0.0
          %398 = vst [vmem:[%s375 + $0x8] sm:$0xff] 0.0
          %399 = vst [vmem:[%s375 + $0x10] sm:$0xff] 0.0
          %400 = vst [vmem:[%s375 + $0x18] sm:$0xff] 0.0
          %401 = vst [vmem:[%s375 + $0x20] sm:$0xff] 0.0
          %402 = vst [vmem:[%s375 + $0x28] sm:$0xff] 0.0
          %403 = vst [vmem:[%s375 + $0x30] sm:$0xff] 0.0
          %404 = vst [vmem:[%s375 + $0x38] sm:$0xff] 0.0
        $region56: #{tpu_custom_call.1} parent=39 // pred_fallthru
          _
        %v405 = vld [vmem:[%s306] sm:$0xff]
        %v406 = vld [vmem:[%s306 + $0x8] sm:$0xff]
        %v407 = vld [vmem:[%s306 + $0x10] sm:$0xff]
        %v408 = vld [vmem:[%s306 + $0x18] sm:$0xff]
        %v409 = vld [vmem:[%s306 + $0x20] sm:$0xff]
        %v410 = vld [vmem:[%s306 + $0x28] sm:$0xff]
        %v411 = vld [vmem:[%s306 + $0x30] sm:$0xff]
        %v412 = vld [vmem:[%s306 + $0x38] sm:$0xff]
        %v413 = vld [vmem:[%s316] sm:$0xff]
        %v414 = vld [vmem:[%s316 + $0x8] sm:$0xff]
        %v415 = vld [vmem:[%s316 + $0x10] sm:$0xff]
        %v416 = vld [vmem:[%s316 + $0x18] sm:$0xff]
        %vm417 = vcmask 261120
        %v419 = vsel %vm417, %v405, 0
        %v422 = vsel %vm417, %v406, 0
        %v425 = vsel %vm417, %v407, 0
        %v428 = vsel %vm417, %v408, 0
        %v431 = vsel %vm417, %v409, 0
        %v434 = vsel %vm417, %v410, 0
        %v437 = vsel %vm417, %v411, 0
        %v440 = vsel %vm417, %v412, 0
        %442 = vmatpush.msra.mxu0 0.0
        %443 = vmatpush.msra.mxu0 0.0
        %444 = vmatpush.msra.mxu0 0.0
        %445 = vmatpush.msra.mxu0 0.0
        %446 = vmatpush.msra.mxu0 0.0
        %447 = vmatpush.msra.mxu0 0.0
        %448 = vmatpush.msra.mxu0 0.0
        %449 = vmatpush.msra.mxu0 0.0
        %450 = vmatpush.msra.mxu0 0.0
        %451 = vmatpush.msra.mxu0 0.0
        %452 = vmatpush.msra.mxu0 0.0
        %453 = vmatpush.msra.mxu0 0.0
        %454 = vmatpush.msra.mxu0 %v416
        %455 = vmatpush.msra.mxu0 %v415
        %456 = vmatpush.msra.mxu0 %v414
        %457 = vmatpush.msra.mxu0 %v413
        %458 = vmatmul.f32.gmra.mxu0 %v419
        %v459 = vpop.f32.mrf.mxu0
        %v460 = vadd.f32 0.0, %v459
        %461 = vmatmul.f32.gmra.mxu0 %v422
        %v462 = vpop.f32.mrf.mxu0
        %v463 = vadd.f32 0.0, %v462
        %464 = vmatmul.f32.gmra.mxu0 %v425
        %v465 = vpop.f32.mrf.mxu0
        %v466 = vadd.f32 0.0, %v465
        %467 = vmatmul.f32.gmra.mxu0 %v428
        %v468 = vpop.f32.mrf.mxu0
        %v469 = vadd.f32 0.0, %v468
        %470 = vmatmul.f32.gmra.mxu0 %v431
        %v471 = vpop.f32.mrf.mxu0
        %v472 = vadd.f32 0.0, %v471
        %473 = vmatmul.f32.gmra.mxu0 %v434
        %v474 = vpop.f32.mrf.mxu0
        %v475 = vadd.f32 0.0, %v474
        %476 = vmatmul.f32.gmra.mxu0 %v437
        %v477 = vpop.f32.mrf.mxu0
        %v478 = vadd.f32 0.0, %v477
        %479 = vmatmul.f32.gmra.mxu0 %v440
        %v480 = vpop.f32.mrf.mxu0
        %v481 = vadd.f32 0.0, %v480
        %482 = vdwg.mxu0
        %483 = vxpose.xlu0.b32.start [1/16] %v460, 128
        %484 = vxpose.xlu0.b32.cont [2/16] %v463, 128
        %485 = vxpose.xlu0.b32.cont [3/16] 0.0, 128
        %486 = vxpose.xlu0.b32.cont [4/16] 0.0, 128
        %487 = vxpose.xlu0.b32.cont [5/16] 0.0, 128
        %488 = vxpose.xlu0.b32.cont [6/16] 0.0, 128
        %489 = vxpose.xlu0.b32.cont [7/16] 0.0, 128
        %490 = vxpose.xlu0.b32.cont [8/16] 0.0, 128
        %491 = vxpose.xlu0.b32.cont [9/16] 0.0, 128
        %492 = vxpose.xlu0.b32.cont [10/16] 0.0, 128
        %493 = vxpose.xlu0.b32.cont [11/16] 0.0, 128
        %494 = vxpose.xlu0.b32.cont [12/16] 0.0, 128
        %495 = vxpose.xlu0.b32.cont [13/16] 0.0, 128
        %496 = vxpose.xlu0.b32.cont [14/16] 0.0, 128
        %497 = vxpose.xlu0.b32.cont [15/16] 0.0, 128
        %498 = vxpose.xlu0.b32.end [16/16] 0.0, 128
        %v499 = vpop.trf.xlu0
        %v500 = vpop.trf.xlu0
        %v501 = vpop.trf.xlu0
        %v502 = vpop.trf.xlu0
        %v503 = vpop.trf.xlu0
        %v504 = vpop.trf.xlu0
        %v505 = vpop.trf.xlu0
        %v506 = vpop.trf.xlu0
        %v507 = vpop.trf.xlu0
        %v508 = vpop.trf.xlu0
        %v509 = vpop.trf.xlu0
        %v510 = vpop.trf.xlu0
        %v511 = vpop.trf.xlu0
        %v512 = vpop.trf.xlu0
        %v513 = vpop.trf.xlu0
        %v514 = vpop.trf.xlu0
        %515 = vxpose.xlu0.b32.start [1/16] %v466, 128
        %516 = vxpose.xlu0.b32.cont [2/16] %v469, 128
        %517 = vxpose.xlu0.b32.cont [3/16] 0.0, 128
        %518 = vxpose.xlu0.b32.cont [4/16] 0.0, 128
        %519 = vxpose.xlu0.b32.cont [5/16] 0.0, 128
        %520 = vxpose.xlu0.b32.cont [6/16] 0.0, 128
        %521 = vxpose.xlu0.b32.cont [7/16] 0.0, 128
        %522 = vxpose.xlu0.b32.cont [8/16] 0.0, 128
        %523 = vxpose.xlu0.b32.cont [9/16] 0.0, 128
        %524 = vxpose.xlu0.b32.cont [10/16] 0.0, 128
        %525 = vxpose.xlu0.b32.cont [11/16] 0.0, 128
        %526 = vxpose.xlu0.b32.cont [12/16] 0.0, 128
        %527 = vxpose.xlu0.b32.cont [13/16] 0.0, 128
        %528 = vxpose.xlu0.b32.cont [14/16] 0.0, 128
        %529 = vxpose.xlu0.b32.cont [15/16] 0.0, 128
        %530 = vxpose.xlu0.b32.end [16/16] 0.0, 128
        %v531 = vpop.trf.xlu0
        %v532 = vpop.trf.xlu0
        %v533 = vpop.trf.xlu0
        %v534 = vpop.trf.xlu0
        %v535 = vpop.trf.xlu0
        %v536 = vpop.trf.xlu0
        %v537 = vpop.trf.xlu0
        %v538 = vpop.trf.xlu0
        %v539 = vpop.trf.xlu0
        %v540 = vpop.trf.xlu0
        %v541 = vpop.trf.xlu0
        %v542 = vpop.trf.xlu0
        %v543 = vpop.trf.xlu0
        %v544 = vpop.trf.xlu0
        %v545 = vpop.trf.xlu0
        %v546 = vpop.trf.xlu0
        %547 = vxpose.xlu0.b32.start [1/16] %v472, 128
        %548 = vxpose.xlu0.b32.cont [2/16] %v475, 128
        %549 = vxpose.xlu0.b32.cont [3/16] 0.0, 128
        %550 = vxpose.xlu0.b32.cont [4/16] 0.0, 128
        %551 = vxpose.xlu0.b32.cont [5/16] 0.0, 128
        %552 = vxpose.xlu0.b32.cont [6/16] 0.0, 128
        %553 = vxpose.xlu0.b32.cont [7/16] 0.0, 128
        %554 = vxpose.xlu0.b32.cont [8/16] 0.0, 128
        %555 = vxpose.xlu0.b32.cont [9/16] 0.0, 128
        %556 = vxpose.xlu0.b32.cont [10/16] 0.0, 128
        %557 = vxpose.xlu0.b32.cont [11/16] 0.0, 128
        %558 = vxpose.xlu0.b32.cont [12/16] 0.0, 128
        %559 = vxpose.xlu0.b32.cont [13/16] 0.0, 128
        %560 = vxpose.xlu0.b32.cont [14/16] 0.0, 128
        %561 = vxpose.xlu0.b32.cont [15/16] 0.0, 128
        %562 = vxpose.xlu0.b32.end [16/16] 0.0, 128
        %v563 = vpop.trf.xlu0
        %v564 = vpop.trf.xlu0
        %v565 = vpop.trf.xlu0
        %v566 = vpop.trf.xlu0
        %v567 = vpop.trf.xlu0
        %v568 = vpop.trf.xlu0
        %v569 = vpop.trf.xlu0
        %v570 = vpop.trf.xlu0
        %v571 = vpop.trf.xlu0
        %v572 = vpop.trf.xlu0
        %v573 = vpop.trf.xlu0
        %v574 = vpop.trf.xlu0
        %v575 = vpop.trf.xlu0
        %v576 = vpop.trf.xlu0
        %v577 = vpop.trf.xlu0
        %v578 = vpop.trf.xlu0
        %579 = vxpose.xlu0.b32.start [1/16] %v478, 128
        %580 = vxpose.xlu0.b32.cont [2/16] %v481, 128
        %581 = vxpose.xlu0.b32.cont [3/16] 0.0, 128
        %582 = vxpose.xlu0.b32.cont [4/16] 0.0, 128
        %583 = vxpose.xlu0.b32.cont [5/16] 0.0, 128
        %584 = vxpose.xlu0.b32.cont [6/16] 0.0, 128
        %585 = vxpose.xlu0.b32.cont [7/16] 0.0, 128
        %586 = vxpose.xlu0.b32.cont [8/16] 0.0, 128
        %587 = vxpose.xlu0.b32.cont [9/16] 0.0, 128
        %588 = vxpose.xlu0.b32.cont [10/16] 0.0, 128
        %589 = vxpose.xlu0.b32.cont [11/16] 0.0, 128
        %590 = vxpose.xlu0.b32.cont [12/16] 0.0, 128
        %591 = vxpose.xlu0.b32.cont [13/16] 0.0, 128
        %592 = vxpose.xlu0.b32.cont [14/16] 0.0, 128
        %593 = vxpose.xlu0.b32.cont [15/16] 0.0, 128
        %594 = vxpose.xlu0.b32.end [16/16] 0.0, 128
        %v595 = vpop.trf.xlu0
        %v596 = vpop.trf.xlu0
        %v597 = vpop.trf.xlu0
        %v598 = vpop.trf.xlu0
        %v599 = vpop.trf.xlu0
        %v600 = vpop.trf.xlu0
        %v601 = vpop.trf.xlu0
        %v602 = vpop.trf.xlu0
        %v603 = vpop.trf.xlu0
        %v604 = vpop.trf.xlu0
        %v605 = vpop.trf.xlu0
        %v606 = vpop.trf.xlu0
        %v607 = vpop.trf.xlu0
        %v608 = vpop.trf.xlu0
        %v609 = vpop.trf.xlu0
        %v610 = vpop.trf.xlu0
        %619 = vrot.lane.b32.xlu0 %v460, 112
        %v620 = vpop.permute.xlu0 %619
        %621 = vrot.lane.b32.xlu0 %v463, 112
        %v622 = vpop.permute.xlu0 %621
        %623 = vrot.lane.b32.xlu0 %v466, 112
        %v624 = vpop.permute.xlu0 %623
        %625 = vrot.lane.b32.xlu0 %v469, 112
        %v626 = vpop.permute.xlu0 %625
        %627 = vrot.lane.b32.xlu0 %v472, 112
        %v628 = vpop.permute.xlu0 %627
        %629 = vrot.lane.b32.xlu0 %v475, 112
        %v630 = vpop.permute.xlu0 %629
        %631 = vrot.lane.b32.xlu0 %v478, 112
        %v632 = vpop.permute.xlu0 %631
        %633 = vrot.lane.b32.xlu0 %v481, 112
        %v634 = vpop.permute.xlu0 %633
        %643 = vxpose.xlu0.b32.start [1/16] %v620, 128
        %644 = vxpose.xlu0.b32.cont [2/16] %v622, 128
        %645 = vxpose.xlu0.b32.cont [3/16] 0.0, 128
        %646 = vxpose.xlu0.b32.cont [4/16] 0.0, 128
        %647 = vxpose.xlu0.b32.cont [5/16] 0.0, 128
        %648 = vxpose.xlu0.b32.cont [6/16] 0.0, 128
        %649 = vxpose.xlu0.b32.cont [7/16] 0.0, 128
        %650 = vxpose.xlu0.b32.cont [8/16] 0.0, 128
        %651 = vxpose.xlu0.b32.cont [9/16] 0.0, 128
        %652 = vxpose.xlu0.b32.cont [10/16] 0.0, 128
        %653 = vxpose.xlu0.b32.cont [11/16] 0.0, 128
        %654 = vxpose.xlu0.b32.cont [12/16] 0.0, 128
        %655 = vxpose.xlu0.b32.cont [13/16] 0.0, 128
        %656 = vxpose.xlu0.b32.cont [14/16] 0.0, 128
        %657 = vxpose.xlu0.b32.cont [15/16] 0.0, 128
        %658 = vxpose.xlu0.b32.end [16/16] 0.0, 128
        %v659 = vpop.trf.xlu0
        %v660 = vpop.trf.xlu0
        %v661 = vpop.trf.xlu0
        %v662 = vpop.trf.xlu0
        %v663 = vpop.trf.xlu0
        %v664 = vpop.trf.xlu0
        %v665 = vpop.trf.xlu0
        %v666 = vpop.trf.xlu0
        %v667 = vpop.trf.xlu0
        %v668 = vpop.trf.xlu0
        %v669 = vpop.trf.xlu0
        %v670 = vpop.trf.xlu0
        %v671 = vpop.trf.xlu0
        %v672 = vpop.trf.xlu0
        %v673 = vpop.trf.xlu0
        %v674 = vpop.trf.xlu0
        %675 = vxpose.xlu0.b32.start [1/16] %v624, 128
        %676 = vxpose.xlu0.b32.cont [2/16] %v626, 128
        %677 = vxpose.xlu0.b32.cont [3/16] 0.0, 128
        %678 = vxpose.xlu0.b32.cont [4/16] 0.0, 128
        %679 = vxpose.xlu0.b32.cont [5/16] 0.0, 128
        %680 = vxpose.xlu0.b32.cont [6/16] 0.0, 128
        %681 = vxpose.xlu0.b32.cont [7/16] 0.0, 128
        %682 = vxpose.xlu0.b32.cont [8/16] 0.0, 128
        %683 = vxpose.xlu0.b32.cont [9/16] 0.0, 128
        %684 = vxpose.xlu0.b32.cont [10/16] 0.0, 128
        %685 = vxpose.xlu0.b32.cont [11/16] 0.0, 128
        %686 = vxpose.xlu0.b32.cont [12/16] 0.0, 128
        %687 = vxpose.xlu0.b32.cont [13/16] 0.0, 128
        %688 = vxpose.xlu0.b32.cont [14/16] 0.0, 128
        %689 = vxpose.xlu0.b32.cont [15/16] 0.0, 128
        %690 = vxpose.xlu0.b32.end [16/16] 0.0, 128
        %v691 = vpop.trf.xlu0
        %v692 = vpop.trf.xlu0
        %v693 = vpop.trf.xlu0
        %v694 = vpop.trf.xlu0
        %v695 = vpop.trf.xlu0
        %v696 = vpop.trf.xlu0
        %v697 = vpop.trf.xlu0
        %v698 = vpop.trf.xlu0
        %v699 = vpop.trf.xlu0
        %v700 = vpop.trf.xlu0
        %v701 = vpop.trf.xlu0
        %v702 = vpop.trf.xlu0
        %v703 = vpop.trf.xlu0
        %v704 = vpop.trf.xlu0
        %v705 = vpop.trf.xlu0
        %v706 = vpop.trf.xlu0
        %707 = vxpose.xlu0.b32.start [1/16] %v628, 128
        %708 = vxpose.xlu0.b32.cont [2/16] %v630, 128
        %709 = vxpose.xlu0.b32.cont [3/16] 0.0, 128
        %710 = vxpose.xlu0.b32.cont [4/16] 0.0, 128
        %711 = vxpose.xlu0.b32.cont [5/16] 0.0, 128
        %712 = vxpose.xlu0.b32.cont [6/16] 0.0, 128
        %713 = vxpose.xlu0.b32.cont [7/16] 0.0, 128
        %714 = vxpose.xlu0.b32.cont [8/16] 0.0, 128
        %715 = vxpose.xlu0.b32.cont [9/16] 0.0, 128
        %716 = vxpose.xlu0.b32.cont [10/16] 0.0, 128
        %717 = vxpose.xlu0.b32.cont [11/16] 0.0, 128
        %718 = vxpose.xlu0.b32.cont [12/16] 0.0, 128
        %719 = vxpose.xlu0.b32.cont [13/16] 0.0, 128
        %720 = vxpose.xlu0.b32.cont [14/16] 0.0, 128
        %721 = vxpose.xlu0.b32.cont [15/16] 0.0, 128
        %722 = vxpose.xlu0.b32.end [16/16] 0.0, 128
        %v723 = vpop.trf.xlu0
        %v724 = vpop.trf.xlu0
        %v725 = vpop.trf.xlu0
        %v726 = vpop.trf.xlu0
        %v727 = vpop.trf.xlu0
        %v728 = vpop.trf.xlu0
        %v729 = vpop.trf.xlu0
        %v730 = vpop.trf.xlu0
        %v731 = vpop.trf.xlu0
        %v732 = vpop.trf.xlu0
        %v733 = vpop.trf.xlu0
        %v734 = vpop.trf.xlu0
        %v735 = vpop.trf.xlu0
        %v736 = vpop.trf.xlu0
        %v737 = vpop.trf.xlu0
        %v738 = vpop.trf.xlu0
        %739 = vxpose.xlu0.b32.start [1/16] %v632, 128
        %740 = vxpose.xlu0.b32.cont [2/16] %v634, 128
        %741 = vxpose.xlu0.b32.cont [3/16] 0.0, 128
        %742 = vxpose.xlu0.b32.cont [4/16] 0.0, 128
        %743 = vxpose.xlu0.b32.cont [5/16] 0.0, 128
        %744 = vxpose.xlu0.b32.cont [6/16] 0.0, 128
        %745 = vxpose.xlu0.b32.cont [7/16] 0.0, 128
        %746 = vxpose.xlu0.b32.cont [8/16] 0.0, 128
        %747 = vxpose.xlu0.b32.cont [9/16] 0.0, 128
        %748 = vxpose.xlu0.b32.cont [10/16] 0.0, 128
        %749 = vxpose.xlu0.b32.cont [11/16] 0.0, 128
        %750 = vxpose.xlu0.b32.cont [12/16] 0.0, 128
        %751 = vxpose.xlu0.b32.cont [13/16] 0.0, 128
        %752 = vxpose.xlu0.b32.cont [14/16] 0.0, 128
        %753 = vxpose.xlu0.b32.cont [15/16] 0.0, 128
        %754 = vxpose.xlu0.b32.end [16/16] 0.0, 128
        %v755 = vpop.trf.xlu0
        %v756 = vpop.trf.xlu0
        %v757 = vpop.trf.xlu0
        %v758 = vpop.trf.xlu0
        %v759 = vpop.trf.xlu0
        %v760 = vpop.trf.xlu0
        %v761 = vpop.trf.xlu0
        %v762 = vpop.trf.xlu0
        %v763 = vpop.trf.xlu0
        %v764 = vpop.trf.xlu0
        %v765 = vpop.trf.xlu0
        %v766 = vpop.trf.xlu0
        %v767 = vpop.trf.xlu0
        %v768 = vpop.trf.xlu0
        %v769 = vpop.trf.xlu0
        %v770 = vpop.trf.xlu0
        %v771 = vld [vmem:[%s382] sm:$0xff]
        %v772 = vld [vmem:[%s382 + $0x8] sm:$0xff]
        %v773 = vld [vmem:[%s382 + $0x10] sm:$0xff]
        %v774 = vld [vmem:[%s382 + $0x18] sm:$0xff]
        %vm775 = vcmask 130048
        %v777 = vsel %vm775, %v659, 0
        %v780 = vsel %vm775, %v660, 0
        %v783 = vsel %vm775, %v691, 0
        %v786 = vsel %vm775, %v692, 0
        %v789 = vsel %vm775, %v723, 0
        %v792 = vsel %vm775, %v724, 0
        %v795 = vsel %vm775, %v755, 0
        %v798 = vsel %vm775, %v756, 0
        %800 = vmatpush.msra.mxu0 0.0
        %801 = vmatpush.msra.mxu0 0.0
        %802 = vmatpush.msra.mxu0 0.0
        %803 = vmatpush.msra.mxu0 0.0
        %804 = vmatpush.msra.mxu0 0.0
        %805 = vmatpush.msra.mxu0 0.0
        %806 = vmatpush.msra.mxu0 0.0
        %807 = vmatpush.msra.mxu0 0.0
        %808 = vmatpush.msra.mxu0 0.0
        %809 = vmatpush.msra.mxu0 0.0
        %810 = vmatpush.msra.mxu0 0.0
        %811 = vmatpush.msra.mxu0 0.0
        %812 = vmatpush.msra.mxu0 0.0
        %813 = vmatpush.msra.mxu0 0.0
        %814 = vmatpush.msra.mxu0 %v774
        %815 = vmatpush.msra.mxu0 %v773
        %816 = vmatmul.f32.gmra.mxu0 %v777
        %v817 = vpop.f32.mrf.mxu0
        %v818 = vadd.f32 0.0, %v817
        %819 = vmatmul.f32.gmra.mxu0 %v780
        %v820 = vpop.f32.mrf.mxu0
        %v821 = vadd.f32 0.0, %v820
        %822 = vmatmul.f32.gmra.mxu0 %v783
        %v823 = vpop.f32.mrf.mxu0
        %v824 = vadd.f32 0.0, %v823
        %825 = vmatmul.f32.gmra.mxu0 %v786
        %v826 = vpop.f32.mrf.mxu0
        %v827 = vadd.f32 0.0, %v826
        %828 = vmatmul.f32.gmra.mxu0 %v789
        %v829 = vpop.f32.mrf.mxu0
        %v830 = vadd.f32 0.0, %v829
        %831 = vmatmul.f32.gmra.mxu0 %v792
        %v832 = vpop.f32.mrf.mxu0
        %v833 = vadd.f32 0.0, %v832
        %834 = vmatmul.f32.gmra.mxu0 %v795
        %v835 = vpop.f32.mrf.mxu0
        %v836 = vadd.f32 0.0, %v835
        %837 = vmatmul.f32.gmra.mxu0 %v798
        %v838 = vpop.f32.mrf.mxu0
        %v839 = vadd.f32 0.0, %v838
        %840 = vdwg.mxu0
        %v842 = vsel %vm775, %v499, 0
        %v845 = vsel %vm775, %v500, 0
        %v848 = vsel %vm775, %v531, 0
        %v851 = vsel %vm775, %v532, 0
        %v854 = vsel %vm775, %v563, 0
        %v857 = vsel %vm775, %v564, 0
        %v860 = vsel %vm775, %v595, 0
        %v863 = vsel %vm775, %v596, 0
        %865 = vmatpush.msra.mxu0 0.0
        %866 = vmatpush.msra.mxu0 0.0
        %867 = vmatpush.msra.mxu0 0.0
        %868 = vmatpush.msra.mxu0 0.0
        %869 = vmatpush.msra.mxu0 0.0
        %870 = vmatpush.msra.mxu0 0.0
        %871 = vmatpush.msra.mxu0 0.0
        %872 = vmatpush.msra.mxu0 0.0
        %873 = vmatpush.msra.mxu0 0.0
        %874 = vmatpush.msra.mxu0 0.0
        %875 = vmatpush.msra.mxu0 0.0
        %876 = vmatpush.msra.mxu0 0.0
        %877 = vmatpush.msra.mxu0 0.0
        %878 = vmatpush.msra.mxu0 0.0
        %879 = vmatpush.msra.mxu0 %v772
        %880 = vmatpush.msra.mxu0 %v771
        %881 = vmatmul.f32.gmra.mxu0 %v842
        %v882 = vpop.f32.mrf.mxu0
        %v883 = vadd.f32 %v818, %v882
        %884 = vmatmul.f32.gmra.mxu0 %v845
        %v885 = vpop.f32.mrf.mxu0
        %v886 = vadd.f32 %v821, %v885
        %887 = vmatmul.f32.gmra.mxu0 %v848
        %v888 = vpop.f32.mrf.mxu0
        %v889 = vadd.f32 %v824, %v888
        %890 = vmatmul.f32.gmra.mxu0 %v851
        %v891 = vpop.f32.mrf.mxu0
        %v892 = vadd.f32 %v827, %v891
        %893 = vmatmul.f32.gmra.mxu0 %v854
        %v894 = vpop.f32.mrf.mxu0
        %v895 = vadd.f32 %v830, %v894
        %896 = vmatmul.f32.gmra.mxu0 %v857
        %v897 = vpop.f32.mrf.mxu0
        %v898 = vadd.f32 %v833, %v897
        %899 = vmatmul.f32.gmra.mxu0 %v860
        %v900 = vpop.f32.mrf.mxu0
        %v901 = vadd.f32 %v836, %v900
        %902 = vmatmul.f32.gmra.mxu0 %v863
        %v903 = vpop.f32.mrf.mxu0
        %v904 = vadd.f32 %v839, %v903
        %905 = vdwg.mxu0
        %v906 = vmax.f32 %v883, 0.0
        %v907 = vmax.f32 %v886, 0.0
        %v908 = vmax.f32 %v889, 0.0
        %v909 = vmax.f32 %v892, 0.0
        %v910 = vmax.f32 %v895, 0.0
        %v911 = vmax.f32 %v898, 0.0
        %v912 = vmax.f32 %v901, 0.0
        %v913 = vmax.f32 %v904, 0.0
        %v914 = vld [vmem:[%s326] sm:$0xff]
        %v915 = vld [vmem:[%s326 + $0x8] sm:$0xff]
        %v917 = vsel %vm775, %v906, 0
        %v920 = vsel %vm775, %v907, 0
        %v923 = vsel %vm775, %v908, 0
        %v926 = vsel %vm775, %v909, 0
        %v929 = vsel %vm775, %v910, 0
        %v932 = vsel %vm775, %v911, 0
        %v935 = vsel %vm775, %v912, 0
        %v938 = vsel %vm775, %v913, 0
        %940 = vmatpush.msra.mxu0 0.0
        %941 = vmatpush.msra.mxu0 0.0
        %942 = vmatpush.msra.mxu0 0.0
        %943 = vmatpush.msra.mxu0 0.0
        %944 = vmatpush.msra.mxu0 0.0
        %945 = vmatpush.msra.mxu0 0.0
        %946 = vmatpush.msra.mxu0 0.0
        %947 = vmatpush.msra.mxu0 0.0
        %948 = vmatpush.msra.mxu0 0.0
        %949 = vmatpush.msra.mxu0 0.0
        %950 = vmatpush.msra.mxu0 0.0
        %951 = vmatpush.msra.mxu0 0.0
        %952 = vmatpush.msra.mxu0 0.0
        %953 = vmatpush.msra.mxu0 0.0
        %954 = vmatpush.msra.mxu0 %v915
        %955 = vmatpush.msra.mxu0 %v914
        %956 = vmatmul.f32.gmra.mxu0 %v917
        %v957 = vpop.f32.mrf.mxu0
        %v958 = vadd.f32 0.0, %v957
        %959 = vmatmul.f32.gmra.mxu0 %v920
        %v960 = vpop.f32.mrf.mxu0
        %v961 = vadd.f32 0.0, %v960
        %962 = vmatmul.f32.gmra.mxu0 %v923
        %v963 = vpop.f32.mrf.mxu0
        %v964 = vadd.f32 0.0, %v963
        %965 = vmatmul.f32.gmra.mxu0 %v926
        %v966 = vpop.f32.mrf.mxu0
        %v967 = vadd.f32 0.0, %v966
        %968 = vmatmul.f32.gmra.mxu0 %v929
        %v969 = vpop.f32.mrf.mxu0
        %v970 = vadd.f32 0.0, %v969
        %971 = vmatmul.f32.gmra.mxu0 %v932
        %v972 = vpop.f32.mrf.mxu0
        %v973 = vadd.f32 0.0, %v972
        %974 = vmatmul.f32.gmra.mxu0 %v935
        %v975 = vpop.f32.mrf.mxu0
        %v976 = vadd.f32 0.0, %v975
        %977 = vmatmul.f32.gmra.mxu0 %v938
        %v978 = vpop.f32.mrf.mxu0
        %v979 = vadd.f32 0.0, %v978
        %980 = vdwg.mxu0
        %981 = vxpose.xlu0.b32.start [1/16] %v958, 128
        %982 = vxpose.xlu0.b32.cont [2/16] %v961, 128
        %983 = vxpose.xlu0.b32.cont [3/16] 0.0, 128
        %984 = vxpose.xlu0.b32.cont [4/16] 0.0, 128
        %985 = vxpose.xlu0.b32.cont [5/16] 0.0, 128
        %986 = vxpose.xlu0.b32.cont [6/16] 0.0, 128
        %987 = vxpose.xlu0.b32.cont [7/16] 0.0, 128
        %988 = vxpose.xlu0.b32.cont [8/16] 0.0, 128
        %989 = vxpose.xlu0.b32.cont [9/16] 0.0, 128
        %990 = vxpose.xlu0.b32.cont [10/16] 0.0, 128
        %991 = vxpose.xlu0.b32.cont [11/16] 0.0, 128
        %992 = vxpose.xlu0.b32.cont [12/16] 0.0, 128
        %993 = vxpose.xlu0.b32.cont [13/16] 0.0, 128
        %994 = vxpose.xlu0.b32.cont [14/16] 0.0, 128
        %995 = vxpose.xlu0.b32.cont [15/16] 0.0, 128
        %996 = vxpose.xlu0.b32.end [16/16] 0.0, 128
        %v997 = vpop.trf.xlu0
        %v998 = vpop.trf.xlu0
        %v999 = vpop.trf.xlu0
        %v1000 = vpop.trf.xlu0
        %v1001 = vpop.trf.xlu0
        %v1002 = vpop.trf.xlu0
        %v1003 = vpop.trf.xlu0
        %v1004 = vpop.trf.xlu0
        %v1005 = vpop.trf.xlu0
        %v1006 = vpop.trf.xlu0
        %v1007 = vpop.trf.xlu0
        %v1008 = vpop.trf.xlu0
        %v1009 = vpop.trf.xlu0
        %v1010 = vpop.trf.xlu0
        %v1011 = vpop.trf.xlu0
        %v1012 = vpop.trf.xlu0
        %1013 = vxpose.xlu0.b32.start [1/16] %v964, 128
        %1014 = vxpose.xlu0.b32.cont [2/16] %v967, 128
        %1015 = vxpose.xlu0.b32.cont [3/16] 0.0, 128
        %1016 = vxpose.xlu0.b32.cont [4/16] 0.0, 128
        %1017 = vxpose.xlu0.b32.cont [5/16] 0.0, 128
        %1018 = vxpose.xlu0.b32.cont [6/16] 0.0, 128
        %1019 = vxpose.xlu0.b32.cont [7/16] 0.0, 128
        %1020 = vxpose.xlu0.b32.cont [8/16] 0.0, 128
        %1021 = vxpose.xlu0.b32.cont [9/16] 0.0, 128
        %1022 = vxpose.xlu0.b32.cont [10/16] 0.0, 128
        %1023 = vxpose.xlu0.b32.cont [11/16] 0.0, 128
        %1024 = vxpose.xlu0.b32.cont [12/16] 0.0, 128
        %1025 = vxpose.xlu0.b32.cont [13/16] 0.0, 128
        %1026 = vxpose.xlu0.b32.cont [14/16] 0.0, 128
        %1027 = vxpose.xlu0.b32.cont [15/16] 0.0, 128
        %1028 = vxpose.xlu0.b32.end [16/16] 0.0, 128
        %v1029 = vpop.trf.xlu0
        %v1030 = vpop.trf.xlu0
        %v1031 = vpop.trf.xlu0
        %v1032 = vpop.trf.xlu0
        %v1033 = vpop.trf.xlu0
        %v1034 = vpop.trf.xlu0
        %v1035 = vpop.trf.xlu0
        %v1036 = vpop.trf.xlu0
        %v1037 = vpop.trf.xlu0
        %v1038 = vpop.trf.xlu0
        %v1039 = vpop.trf.xlu0
        %v1040 = vpop.trf.xlu0
        %v1041 = vpop.trf.xlu0
        %v1042 = vpop.trf.xlu0
        %v1043 = vpop.trf.xlu0
        %v1044 = vpop.trf.xlu0
        %1045 = vxpose.xlu0.b32.start [1/16] %v970, 128
        %1046 = vxpose.xlu0.b32.cont [2/16] %v973, 128
        %1047 = vxpose.xlu0.b32.cont [3/16] 0.0, 128
        %1048 = vxpose.xlu0.b32.cont [4/16] 0.0, 128
        %1049 = vxpose.xlu0.b32.cont [5/16] 0.0, 128
        %1050 = vxpose.xlu0.b32.cont [6/16] 0.0, 128
        %1051 = vxpose.xlu0.b32.cont [7/16] 0.0, 128
        %1052 = vxpose.xlu0.b32.cont [8/16] 0.0, 128
        %1053 = vxpose.xlu0.b32.cont [9/16] 0.0, 128
        %1054 = vxpose.xlu0.b32.cont [10/16] 0.0, 128
        %1055 = vxpose.xlu0.b32.cont [11/16] 0.0, 128
        %1056 = vxpose.xlu0.b32.cont [12/16] 0.0, 128
        %1057 = vxpose.xlu0.b32.cont [13/16] 0.0, 128
        %1058 = vxpose.xlu0.b32.cont [14/16] 0.0, 128
        %1059 = vxpose.xlu0.b32.cont [15/16] 0.0, 128
        %1060 = vxpose.xlu0.b32.end [16/16] 0.0, 128
        %v1061 = vpop.trf.xlu0
        %v1062 = vpop.trf.xlu0
        %v1063 = vpop.trf.xlu0
        %v1064 = vpop.trf.xlu0
        %v1065 = vpop.trf.xlu0
        %v1066 = vpop.trf.xlu0
        %v1067 = vpop.trf.xlu0
        %v1068 = vpop.trf.xlu0
        %v1069 = vpop.trf.xlu0
        %v1070 = vpop.trf.xlu0
        %v1071 = vpop.trf.xlu0
        %v1072 = vpop.trf.xlu0
        %v1073 = vpop.trf.xlu0
        %v1074 = vpop.trf.xlu0
        %v1075 = vpop.trf.xlu0
        %v1076 = vpop.trf.xlu0
        %1077 = vxpose.xlu0.b32.start [1/16] %v976, 128
        %1078 = vxpose.xlu0.b32.cont [2/16] %v979, 128
        %1079 = vxpose.xlu0.b32.cont [3/16] 0.0, 128
        %1080 = vxpose.xlu0.b32.cont [4/16] 0.0, 128
        %1081 = vxpose.xlu0.b32.cont [5/16] 0.0, 128
        %1082 = vxpose.xlu0.b32.cont [6/16] 0.0, 128
        %1083 = vxpose.xlu0.b32.cont [7/16] 0.0, 128
        %1084 = vxpose.xlu0.b32.cont [8/16] 0.0, 128
        %1085 = vxpose.xlu0.b32.cont [9/16] 0.0, 128
        %1086 = vxpose.xlu0.b32.cont [10/16] 0.0, 128
        %1087 = vxpose.xlu0.b32.cont [11/16] 0.0, 128
        %1088 = vxpose.xlu0.b32.cont [12/16] 0.0, 128
        %1089 = vxpose.xlu0.b32.cont [13/16] 0.0, 128
        %1090 = vxpose.xlu0.b32.cont [14/16] 0.0, 128
        %1091 = vxpose.xlu0.b32.cont [15/16] 0.0, 128
        %1092 = vxpose.xlu0.b32.end [16/16] 0.0, 128
        %v1093 = vpop.trf.xlu0
        %v1094 = vpop.trf.xlu0
        %v1095 = vpop.trf.xlu0
        %v1096 = vpop.trf.xlu0
        %v1097 = vpop.trf.xlu0
        %v1098 = vpop.trf.xlu0
        %v1099 = vpop.trf.xlu0
        %v1100 = vpop.trf.xlu0
        %v1101 = vpop.trf.xlu0
        %v1102 = vpop.trf.xlu0
        %v1103 = vpop.trf.xlu0
        %v1104 = vpop.trf.xlu0
        %v1105 = vpop.trf.xlu0
        %v1106 = vpop.trf.xlu0
        %v1107 = vpop.trf.xlu0
        %v1108 = vpop.trf.xlu0
        %1117 = vrot.lane.b32.xlu0 %v958, 112
        %v1118 = vpop.permute.xlu0 %1117
        %1119 = vrot.lane.b32.xlu0 %v961, 112
        %v1120 = vpop.permute.xlu0 %1119
        %1121 = vrot.lane.b32.xlu0 %v964, 112
        %v1122 = vpop.permute.xlu0 %1121
        %1123 = vrot.lane.b32.xlu0 %v967, 112
        %v1124 = vpop.permute.xlu0 %1123
        %1125 = vrot.lane.b32.xlu0 %v970, 112
        %v1126 = vpop.permute.xlu0 %1125
        %1127 = vrot.lane.b32.xlu0 %v973, 112
        %v1128 = vpop.permute.xlu0 %1127
        %1129 = vrot.lane.b32.xlu0 %v976, 112
        %v1130 = vpop.permute.xlu0 %1129
        %1131 = vrot.lane.b32.xlu0 %v979, 112
        %v1132 = vpop.permute.xlu0 %1131
        %1141 = vxpose.xlu0.b32.start [1/16] %v1118, 128
        %1142 = vxpose.xlu0.b32.cont [2/16] %v1120, 128
        %1143 = vxpose.xlu0.b32.cont [3/16] 0.0, 128
        %1144 = vxpose.xlu0.b32.cont [4/16] 0.0, 128
        %1145 = vxpose.xlu0.b32.cont [5/16] 0.0, 128
        %1146 = vxpose.xlu0.b32.cont [6/16] 0.0, 128
        %1147 = vxpose.xlu0.b32.cont [7/16] 0.0, 128
        %1148 = vxpose.xlu0.b32.cont [8/16] 0.0, 128
        %1149 = vxpose.xlu0.b32.cont [9/16] 0.0, 128
        %1150 = vxpose.xlu0.b32.cont [10/16] 0.0, 128
        %1151 = vxpose.xlu0.b32.cont [11/16] 0.0, 128
        %1152 = vxpose.xlu0.b32.cont [12/16] 0.0, 128
        %1153 = vxpose.xlu0.b32.cont [13/16] 0.0, 128
        %1154 = vxpose.xlu0.b32.cont [14/16] 0.0, 128
        %1155 = vxpose.xlu0.b32.cont [15/16] 0.0, 128
        %1156 = vxpose.xlu0.b32.end [16/16] 0.0, 128
        %v1157 = vpop.trf.xlu0
        %v1158 = vpop.trf.xlu0
        %v1159 = vpop.trf.xlu0
        %v1160 = vpop.trf.xlu0
        %v1161 = vpop.trf.xlu0
        %v1162 = vpop.trf.xlu0
        %v1163 = vpop.trf.xlu0
        %v1164 = vpop.trf.xlu0
        %v1165 = vpop.trf.xlu0
        %v1166 = vpop.trf.xlu0
        %v1167 = vpop.trf.xlu0
        %v1168 = vpop.trf.xlu0
        %v1169 = vpop.trf.xlu0
        %v1170 = vpop.trf.xlu0
        %v1171 = vpop.trf.xlu0
        %v1172 = vpop.trf.xlu0
        %1173 = vxpose.xlu0.b32.start [1/16] %v1122, 128
        %1174 = vxpose.xlu0.b32.cont [2/16] %v1124, 128
        %1175 = vxpose.xlu0.b32.cont [3/16] 0.0, 128
        %1176 = vxpose.xlu0.b32.cont [4/16] 0.0, 128
        %1177 = vxpose.xlu0.b32.cont [5/16] 0.0, 128
        %1178 = vxpose.xlu0.b32.cont [6/16] 0.0, 128
        %1179 = vxpose.xlu0.b32.cont [7/16] 0.0, 128
        %1180 = vxpose.xlu0.b32.cont [8/16] 0.0, 128
        %1181 = vxpose.xlu0.b32.cont [9/16] 0.0, 128
        %1182 = vxpose.xlu0.b32.cont [10/16] 0.0, 128
        %1183 = vxpose.xlu0.b32.cont [11/16] 0.0, 128
        %1184 = vxpose.xlu0.b32.cont [12/16] 0.0, 128
        %1185 = vxpose.xlu0.b32.cont [13/16] 0.0, 128
        %1186 = vxpose.xlu0.b32.cont [14/16] 0.0, 128
        %1187 = vxpose.xlu0.b32.cont [15/16] 0.0, 128
        %1188 = vxpose.xlu0.b32.end [16/16] 0.0, 128
        %v1189 = vpop.trf.xlu0
        %v1190 = vpop.trf.xlu0
        %v1191 = vpop.trf.xlu0
        %v1192 = vpop.trf.xlu0
        %v1193 = vpop.trf.xlu0
        %v1194 = vpop.trf.xlu0
        %v1195 = vpop.trf.xlu0
        %v1196 = vpop.trf.xlu0
        %v1197 = vpop.trf.xlu0
        %v1198 = vpop.trf.xlu0
        %v1199 = vpop.trf.xlu0
        %v1200 = vpop.trf.xlu0
        %v1201 = vpop.trf.xlu0
        %v1202 = vpop.trf.xlu0
        %v1203 = vpop.trf.xlu0
        %v1204 = vpop.trf.xlu0
        %1205 = vxpose.xlu0.b32.start [1/16] %v1126, 128
        %1206 = vxpose.xlu0.b32.cont [2/16] %v1128, 128
        %1207 = vxpose.xlu0.b32.cont [3/16] 0.0, 128
        %1208 = vxpose.xlu0.b32.cont [4/16] 0.0, 128
        %1209 = vxpose.xlu0.b32.cont [5/16] 0.0, 128
        %1210 = vxpose.xlu0.b32.cont [6/16] 0.0, 128
        %1211 = vxpose.xlu0.b32.cont [7/16] 0.0, 128
        %1212 = vxpose.xlu0.b32.cont [8/16] 0.0, 128
        %1213 = vxpose.xlu0.b32.cont [9/16] 0.0, 128
        %1214 = vxpose.xlu0.b32.cont [10/16] 0.0, 128
        %1215 = vxpose.xlu0.b32.cont [11/16] 0.0, 128
        %1216 = vxpose.xlu0.b32.cont [12/16] 0.0, 128
        %1217 = vxpose.xlu0.b32.cont [13/16] 0.0, 128
        %1218 = vxpose.xlu0.b32.cont [14/16] 0.0, 128
        %1219 = vxpose.xlu0.b32.cont [15/16] 0.0, 128
        %1220 = vxpose.xlu0.b32.end [16/16] 0.0, 128
        %v1221 = vpop.trf.xlu0
        %v1222 = vpop.trf.xlu0
        %v1223 = vpop.trf.xlu0
        %v1224 = vpop.trf.xlu0
        %v1225 = vpop.trf.xlu0
        %v1226 = vpop.trf.xlu0
        %v1227 = vpop.trf.xlu0
        %v1228 = vpop.trf.xlu0
        %v1229 = vpop.trf.xlu0
        %v1230 = vpop.trf.xlu0
        %v1231 = vpop.trf.xlu0
        %v1232 = vpop.trf.xlu0
        %v1233 = vpop.trf.xlu0
        %v1234 = vpop.trf.xlu0
        %v1235 = vpop.trf.xlu0
        %v1236 = vpop.trf.xlu0
        %1237 = vxpose.xlu0.b32.start [1/16] %v1130, 128
        %1238 = vxpose.xlu0.b32.cont [2/16] %v1132, 128
        %1239 = vxpose.xlu0.b32.cont [3/16] 0.0, 128
        %1240 = vxpose.xlu0.b32.cont [4/16] 0.0, 128
        %1241 = vxpose.xlu0.b32.cont [5/16] 0.0, 128
        %1242 = vxpose.xlu0.b32.cont [6/16] 0.0, 128
        %1243 = vxpose.xlu0.b32.cont [7/16] 0.0, 128
        %1244 = vxpose.xlu0.b32.cont [8/16] 0.0, 128
        %1245 = vxpose.xlu0.b32.cont [9/16] 0.0, 128
        %1246 = vxpose.xlu0.b32.cont [10/16] 0.0, 128
        %1247 = vxpose.xlu0.b32.cont [11/16] 0.0, 128
        %1248 = vxpose.xlu0.b32.cont [12/16] 0.0, 128
        %1249 = vxpose.xlu0.b32.cont [13/16] 0.0, 128
        %1250 = vxpose.xlu0.b32.cont [14/16] 0.0, 128
        %1251 = vxpose.xlu0.b32.cont [15/16] 0.0, 128
        %1252 = vxpose.xlu0.b32.end [16/16] 0.0, 128
        %v1253 = vpop.trf.xlu0
        %v1254 = vpop.trf.xlu0
        %v1255 = vpop.trf.xlu0
        %v1256 = vpop.trf.xlu0
        %v1257 = vpop.trf.xlu0
        %v1258 = vpop.trf.xlu0
        %v1259 = vpop.trf.xlu0
        %v1260 = vpop.trf.xlu0
        %v1261 = vpop.trf.xlu0
        %v1262 = vpop.trf.xlu0
        %v1263 = vpop.trf.xlu0
        %v1264 = vpop.trf.xlu0
        %v1265 = vpop.trf.xlu0
        %v1266 = vpop.trf.xlu0
        %v1267 = vpop.trf.xlu0
        %v1268 = vpop.trf.xlu0
        %v1269 = vld [vmem:[%s390] sm:$0xff]
        %v1270 = vld [vmem:[%s390 + $0x8] sm:$0xff]
        %v1271 = vld [vmem:[%s390 + $0x10] sm:$0xff]
        %v1272 = vld [vmem:[%s390 + $0x18] sm:$0xff]
        %v1274 = vsel %vm775, %v1157, 0
        %v1277 = vsel %vm775, %v1158, 0
        %v1280 = vsel %vm775, %v1189, 0
        %v1283 = vsel %vm775, %v1190, 0
        %v1286 = vsel %vm775, %v1221, 0
        %v1289 = vsel %vm775, %v1222, 0
        %v1292 = vsel %vm775, %v1253, 0
        %v1295 = vsel %vm775, %v1254, 0
        %1297 = vmatpush.msra.mxu0 0.0
        %1298 = vmatpush.msra.mxu0 0.0
        %1299 = vmatpush.msra.mxu0 0.0
        %1300 = vmatpush.msra.mxu0 0.0
        %1301 = vmatpush.msra.mxu0 0.0
        %1302 = vmatpush.msra.mxu0 0.0
        %1303 = vmatpush.msra.mxu0 0.0
        %1304 = vmatpush.msra.mxu0 0.0
        %1305 = vmatpush.msra.mxu0 0.0
        %1306 = vmatpush.msra.mxu0 0.0
        %1307 = vmatpush.msra.mxu0 0.0
        %1308 = vmatpush.msra.mxu0 0.0
        %1309 = vmatpush.msra.mxu0 0.0
        %1310 = vmatpush.msra.mxu0 0.0
        %1311 = vmatpush.msra.mxu0 %v1272
        %1312 = vmatpush.msra.mxu0 %v1271
        %1313 = vmatmul.f32.gmra.mxu0 %v1274
        %v1314 = vpop.f32.mrf.mxu0
        %v1315 = vadd.f32 0.0, %v1314
        %1316 = vmatmul.f32.gmra.mxu0 %v1277
        %v1317 = vpop.f32.mrf.mxu0
        %v1318 = vadd.f32 0.0, %v1317
        %1319 = vmatmul.f32.gmra.mxu0 %v1280
        %v1320 = vpop.f32.mrf.mxu0
        %v1321 = vadd.f32 0.0, %v1320
        %1322 = vmatmul.f32.gmra.mxu0 %v1283
        %v1323 = vpop.f32.mrf.mxu0
        %v1324 = vadd.f32 0.0, %v1323
        %1325 = vmatmul.f32.gmra.mxu0 %v1286
        %v1326 = vpop.f32.mrf.mxu0
        %v1327 = vadd.f32 0.0, %v1326
        %1328 = vmatmul.f32.gmra.mxu0 %v1289
        %v1329 = vpop.f32.mrf.mxu0
        %v1330 = vadd.f32 0.0, %v1329
        %1331 = vmatmul.f32.gmra.mxu0 %v1292
        %v1332 = vpop.f32.mrf.mxu0
        %v1333 = vadd.f32 0.0, %v1332
        %1334 = vmatmul.f32.gmra.mxu0 %v1295
        %v1335 = vpop.f32.mrf.mxu0
        %v1336 = vadd.f32 0.0, %v1335
        %1337 = vdwg.mxu0
        %v1339 = vsel %vm775, %v997, 0
        %v1342 = vsel %vm775, %v998, 0
        %v1345 = vsel %vm775, %v1029, 0
        %v1348 = vsel %vm775, %v1030, 0
        %v1351 = vsel %vm775, %v1061, 0
        %v1354 = vsel %vm775, %v1062, 0
        %v1357 = vsel %vm775, %v1093, 0
        %v1360 = vsel %vm775, %v1094, 0
        %1362 = vmatpush.msra.mxu0 0.0
        %1363 = vmatpush.msra.mxu0 0.0
        %1364 = vmatpush.msra.mxu0 0.0
        %1365 = vmatpush.msra.mxu0 0.0
        %1366 = vmatpush.msra.mxu0 0.0
        %1367 = vmatpush.msra.mxu0 0.0
        %1368 = vmatpush.msra.mxu0 0.0
        %1369 = vmatpush.msra.mxu0 0.0
        %1370 = vmatpush.msra.mxu0 0.0
        %1371 = vmatpush.msra.mxu0 0.0
        %1372 = vmatpush.msra.mxu0 0.0
        %1373 = vmatpush.msra.mxu0 0.0
        %1374 = vmatpush.msra.mxu0 0.0
        %1375 = vmatpush.msra.mxu0 0.0
        %1376 = vmatpush.msra.mxu0 %v1270
        %1377 = vmatpush.msra.mxu0 %v1269
        %1378 = vmatmul.f32.gmra.mxu0 %v1339
        %v1379 = vpop.f32.mrf.mxu0
        %v1380 = vadd.f32 %v1315, %v1379
        %1381 = vmatmul.f32.gmra.mxu0 %v1342
        %v1382 = vpop.f32.mrf.mxu0
        %v1383 = vadd.f32 %v1318, %v1382
        %1384 = vmatmul.f32.gmra.mxu0 %v1345
        %v1385 = vpop.f32.mrf.mxu0
        %v1386 = vadd.f32 %v1321, %v1385
        %1387 = vmatmul.f32.gmra.mxu0 %v1348
        %v1388 = vpop.f32.mrf.mxu0
        %v1389 = vadd.f32 %v1324, %v1388
        %1390 = vmatmul.f32.gmra.mxu0 %v1351
        %v1391 = vpop.f32.mrf.mxu0
        %v1392 = vadd.f32 %v1327, %v1391
        %1393 = vmatmul.f32.gmra.mxu0 %v1354
        %v1394 = vpop.f32.mrf.mxu0
        %v1395 = vadd.f32 %v1330, %v1394
        %1396 = vmatmul.f32.gmra.mxu0 %v1357
        %v1397 = vpop.f32.mrf.mxu0
        %v1398 = vadd.f32 %v1333, %v1397
        %1399 = vmatmul.f32.gmra.mxu0 %v1360
        %v1400 = vpop.f32.mrf.mxu0
        %v1401 = vadd.f32 %v1336, %v1400
        %1402 = vdwg.mxu0
        %v1403 = vld [vmem:[%s390 + $0x20] sm:$0xff]
        %v1404 = vld [vmem:[%s390 + $0x28] sm:$0xff]
        %vm1405 = vcmp.ne.f32.partialorder %v1403, 0.0
        %vm1406 = vcmp.ne.f32.partialorder %v1404, 0.0
        %v1407 = vld [vmem:[%s375] sm:$0xff]
        %v1408 = vld [vmem:[%s375 + $0x8] sm:$0xff]
        %v1409 = vld [vmem:[%s375 + $0x10] sm:$0xff]
        %v1410 = vld [vmem:[%s375 + $0x18] sm:$0xff]
        %v1411 = vld [vmem:[%s375 + $0x20] sm:$0xff]
        %v1412 = vld [vmem:[%s375 + $0x28] sm:$0xff]
        %v1413 = vld [vmem:[%s375 + $0x30] sm:$0xff]
        %v1414 = vld [vmem:[%s375 + $0x38] sm:$0xff]
        %v1415 = vsel %vm1405, 1, 0
        %v1416 = vsel %vm1406, 1, 0
        %vm1417 = vcmp.eq.s32.totalorder %v1415, 1
        %vm1418 = vcmp.eq.s32.totalorder %v1416, 1
        %v1419 = vsel %vm1417, %v1380, %v1407
        %v1420 = vsel %vm1418, %v1383, %v1408
        %v1421 = vsel %vm1417, %v1386, %v1409
        %v1422 = vsel %vm1418, %v1389, %v1410
        %v1423 = vsel %vm1417, %v1392, %v1411
        %v1424 = vsel %vm1418, %v1395, %v1412
        %v1425 = vsel %vm1417, %v1398, %v1413
        %v1426 = vsel %vm1418, %v1401, %v1414
        %1427 = vst [vmem:[%s375] sm:$0xff] %v1419
        %1428 = vst [vmem:[%s375 + $0x8] sm:$0xff] %v1420
        %1429 = vst [vmem:[%s375 + $0x10] sm:$0xff] %v1421
        %1430 = vst [vmem:[%s375 + $0x18] sm:$0xff] %v1422
        %1431 = vst [vmem:[%s375 + $0x20] sm:$0xff] %v1423
        %1432 = vst [vmem:[%s375 + $0x28] sm:$0xff] %v1424
        %1433 = vst [vmem:[%s375 + $0x30] sm:$0xff] %v1425
        %1434 = vst [vmem:[%s375 + $0x38] sm:$0xff] %v1426
        %1435 = vrot.lane.b32.xlu0 %v460, 96
        %v1436 = vpop.permute.xlu0 %1435
        %1437 = vrot.lane.b32.xlu0 %v463, 96
        %v1438 = vpop.permute.xlu0 %1437
        %1439 = vrot.lane.b32.xlu0 %v466, 96
        %v1440 = vpop.permute.xlu0 %1439
        %1441 = vrot.lane.b32.xlu0 %v469, 96
        %v1442 = vpop.permute.xlu0 %1441
        %1443 = vrot.lane.b32.xlu0 %v472, 96
        %v1444 = vpop.permute.xlu0 %1443
        %1445 = vrot.lane.b32.xlu0 %v475, 96
        %v1446 = vpop.permute.xlu0 %1445
        %1447 = vrot.lane.b32.xlu0 %v478, 96
        %v1448 = vpop.permute.xlu0 %1447
        %1449 = vrot.lane.b32.xlu0 %v481, 96
        %v1450 = vpop.permute.xlu0 %1449
        %1459 = vxpose.xlu0.b32.start [1/16] %v1436, 128
        %1460 = vxpose.xlu0.b32.cont [2/16] %v1438, 128
        %1461 = vxpose.xlu0.b32.cont [3/16] 0.0, 128
        %1462 = vxpose.xlu0.b32.cont [4/16] 0.0, 128
        %1463 = vxpose.xlu0.b32.cont [5/16] 0.0, 128
        %1464 = vxpose.xlu0.b32.cont [6/16] 0.0, 128
        %1465 = vxpose.xlu0.b32.cont [7/16] 0.0, 128
        %1466 = vxpose.xlu0.b32.cont [8/16] 0.0, 128
        %1467 = vxpose.xlu0.b32.cont [9/16] 0.0, 128
        %1468 = vxpose.xlu0.b32.cont [10/16] 0.0, 128
        %1469 = vxpose.xlu0.b32.cont [11/16] 0.0, 128
        %1470 = vxpose.xlu0.b32.cont [12/16] 0.0, 128
        %1471 = vxpose.xlu0.b32.cont [13/16] 0.0, 128
        %1472 = vxpose.xlu0.b32.cont [14/16] 0.0, 128
        %1473 = vxpose.xlu0.b32.cont [15/16] 0.0, 128
        %1474 = vxpose.xlu0.b32.end [16/16] 0.0, 128
        %v1475 = vpop.trf.xlu0
        %v1476 = vpop.trf.xlu0
        %v1477 = vpop.trf.xlu0
        %v1478 = vpop.trf.xlu0
        %v1479 = vpop.trf.xlu0
        %v1480 = vpop.trf.xlu0
        %v1481 = vpop.trf.xlu0
        %v1482 = vpop.trf.xlu0
        %v1483 = vpop.trf.xlu0
        %v1484 = vpop.trf.xlu0
        %v1485 = vpop.trf.xlu0
        %v1486 = vpop.trf.xlu0
        %v1487 = vpop.trf.xlu0
        %v1488 = vpop.trf.xlu0
        %v1489 = vpop.trf.xlu0
        %v1490 = vpop.trf.xlu0
        %1491 = vxpose.xlu0.b32.start [1/16] %v1440, 128
        %1492 = vxpose.xlu0.b32.cont [2/16] %v1442, 128
        %1493 = vxpose.xlu0.b32.cont [3/16] 0.0, 128
        %1494 = vxpose.xlu0.b32.cont [4/16] 0.0, 128
        %1495 = vxpose.xlu0.b32.cont [5/16] 0.0, 128
        %1496 = vxpose.xlu0.b32.cont [6/16] 0.0, 128
        %1497 = vxpose.xlu0.b32.cont [7/16] 0.0, 128
        %1498 = vxpose.xlu0.b32.cont [8/16] 0.0, 128
        %1499 = vxpose.xlu0.b32.cont [9/16] 0.0, 128
        %1500 = vxpose.xlu0.b32.cont [10/16] 0.0, 128
        %1501 = vxpose.xlu0.b32.cont [11/16] 0.0, 128
        %1502 = vxpose.xlu0.b32.cont [12/16] 0.0, 128
        %1503 = vxpose.xlu0.b32.cont [13/16] 0.0, 128
        %1504 = vxpose.xlu0.b32.cont [14/16] 0.0, 128
        %1505 = vxpose.xlu0.b32.cont [15/16] 0.0, 128
        %1506 = vxpose.xlu0.b32.end [16/16] 0.0, 128
        %v1507 = vpop.trf.xlu0
        %v1508 = vpop.trf.xlu0
        %v1509 = vpop.trf.xlu0
        %v1510 = vpop.trf.xlu0
        %v1511 = vpop.trf.xlu0
        %v1512 = vpop.trf.xlu0
        %v1513 = vpop.trf.xlu0
        %v1514 = vpop.trf.xlu0
        %v1515 = vpop.trf.xlu0
        %v1516 = vpop.trf.xlu0
        %v1517 = vpop.trf.xlu0
        %v1518 = vpop.trf.xlu0
        %v1519 = vpop.trf.xlu0
        %v1520 = vpop.trf.xlu0
        %v1521 = vpop.trf.xlu0
        %v1522 = vpop.trf.xlu0
        %1523 = vxpose.xlu0.b32.start [1/16] %v1444, 128
        %1524 = vxpose.xlu0.b32.cont [2/16] %v1446, 128
        %1525 = vxpose.xlu0.b32.cont [3/16] 0.0, 128
        %1526 = vxpose.xlu0.b32.cont [4/16] 0.0, 128
        %1527 = vxpose.xlu0.b32.cont [5/16] 0.0, 128
        %1528 = vxpose.xlu0.b32.cont [6/16] 0.0, 128
        %1529 = vxpose.xlu0.b32.cont [7/16] 0.0, 128
        %1530 = vxpose.xlu0.b32.cont [8/16] 0.0, 128
        %1531 = vxpose.xlu0.b32.cont [9/16] 0.0, 128
        %1532 = vxpose.xlu0.b32.cont [10/16] 0.0, 128
        %1533 = vxpose.xlu0.b32.cont [11/16] 0.0, 128
        %1534 = vxpose.xlu0.b32.cont [12/16] 0.0, 128
        %1535 = vxpose.xlu0.b32.cont [13/16] 0.0, 128
        %1536 = vxpose.xlu0.b32.cont [14/16] 0.0, 128
        %1537 = vxpose.xlu0.b32.cont [15/16] 0.0, 128
        %1538 = vxpose.xlu0.b32.end [16/16] 0.0, 128
        %v1539 = vpop.trf.xlu0
        %v1540 = vpop.trf.xlu0
        %v1541 = vpop.trf.xlu0
        %v1542 = vpop.trf.xlu0
        %v1543 = vpop.trf.xlu0
        %v1544 = vpop.trf.xlu0
        %v1545 = vpop.trf.xlu0
        %v1546 = vpop.trf.xlu0
        %v1547 = vpop.trf.xlu0
        %v1548 = vpop.trf.xlu0
        %v1549 = vpop.trf.xlu0
        %v1550 = vpop.trf.xlu0
        %v1551 = vpop.trf.xlu0
        %v1552 = vpop.trf.xlu0
        %v1553 = vpop.trf.xlu0
        %v1554 = vpop.trf.xlu0
        %1555 = vxpose.xlu0.b32.start [1/16] %v1448, 128
        %1556 = vxpose.xlu0.b32.cont [2/16] %v1450, 128
        %1557 = vxpose.xlu0.b32.cont [3/16] 0.0, 128
        %1558 = vxpose.xlu0.b32.cont [4/16] 0.0, 128
        %1559 = vxpose.xlu0.b32.cont [5/16] 0.0, 128
        %1560 = vxpose.xlu0.b32.cont [6/16] 0.0, 128
        %1561 = vxpose.xlu0.b32.cont [7/16] 0.0, 128
        %1562 = vxpose.xlu0.b32.cont [8/16] 0.0, 128
        %1563 = vxpose.xlu0.b32.cont [9/16] 0.0, 128
        %1564 = vxpose.xlu0.b32.cont [10/16] 0.0, 128
        %1565 = vxpose.xlu0.b32.cont [11/16] 0.0, 128
        %1566 = vxpose.xlu0.b32.cont [12/16] 0.0, 128
        %1567 = vxpose.xlu0.b32.cont [13/16] 0.0, 128
        %1568 = vxpose.xlu0.b32.cont [14/16] 0.0, 128
        %1569 = vxpose.xlu0.b32.cont [15/16] 0.0, 128
        %1570 = vxpose.xlu0.b32.end [16/16] 0.0, 128
        %v1571 = vpop.trf.xlu0
        %v1572 = vpop.trf.xlu0
        %v1573 = vpop.trf.xlu0
        %v1574 = vpop.trf.xlu0
        %v1575 = vpop.trf.xlu0
        %v1576 = vpop.trf.xlu0
        %v1577 = vpop.trf.xlu0
        %v1578 = vpop.trf.xlu0
        %v1579 = vpop.trf.xlu0
        %v1580 = vpop.trf.xlu0
        %v1581 = vpop.trf.xlu0
        %v1582 = vpop.trf.xlu0
        %v1583 = vpop.trf.xlu0
        %v1584 = vpop.trf.xlu0
        %v1585 = vpop.trf.xlu0
        %v1586 = vpop.trf.xlu0
        %1587 = vrot.lane.b32.xlu0 %v460, 80
        %v1588 = vpop.permute.xlu0 %1587
        %1589 = vrot.lane.b32.xlu0 %v463, 80
        %v1590 = vpop.permute.xlu0 %1589
        %1591 = vrot.lane.b32.xlu0 %v466, 80
        %v1592 = vpop.permute.xlu0 %1591
        %1593 = vrot.lane.b32.xlu0 %v469, 80
        %v1594 = vpop.permute.xlu0 %1593
        %1595 = vrot.lane.b32.xlu0 %v472, 80
        %v1596 = vpop.permute.xlu0 %1595
        %1597 = vrot.lane.b32.xlu0 %v475, 80
        %v1598 = vpop.permute.xlu0 %1597
        %1599 = vrot.lane.b32.xlu0 %v478, 80
        %v1600 = vpop.permute.xlu0 %1599
        %1601 = vrot.lane.b32.xlu0 %v481, 80
        %v1602 = vpop.permute.xlu0 %1601
        %1611 = vxpose.xlu0.b32.start [1/16] %v1588, 128
        %1612 = vxpose.xlu0.b32.cont [2/16] %v1590, 128
        %1613 = vxpose.xlu0.b32.cont [3/16] 0.0, 128
        %1614 = vxpose.xlu0.b32.cont [4/16] 0.0, 128
        %1615 = vxpose.xlu0.b32.cont [5/16] 0.0, 128
        %1616 = vxpose.xlu0.b32.cont [6/16] 0.0, 128
        %1617 = vxpose.xlu0.b32.cont [7/16] 0.0, 128
        %1618 = vxpose.xlu0.b32.cont [8/16] 0.0, 128
        %1619 = vxpose.xlu0.b32.cont [9/16] 0.0, 128
        %1620 = vxpose.xlu0.b32.cont [10/16] 0.0, 128
        %1621 = vxpose.xlu0.b32.cont [11/16] 0.0, 128
        %1622 = vxpose.xlu0.b32.cont [12/16] 0.0, 128
        %1623 = vxpose.xlu0.b32.cont [13/16] 0.0, 128
        %1624 = vxpose.xlu0.b32.cont [14/16] 0.0, 128
        %1625 = vxpose.xlu0.b32.cont [15/16] 0.0, 128
        %1626 = vxpose.xlu0.b32.end [16/16] 0.0, 128
        %v1627 = vpop.trf.xlu0
        %v1628 = vpop.trf.xlu0
        %v1629 = vpop.trf.xlu0
        %v1630 = vpop.trf.xlu0
        %v1631 = vpop.trf.xlu0
        %v1632 = vpop.trf.xlu0
        %v1633 = vpop.trf.xlu0
        %v1634 = vpop.trf.xlu0
        %v1635 = vpop.trf.xlu0
        %v1636 = vpop.trf.xlu0
        %v1637 = vpop.trf.xlu0
        %v1638 = vpop.trf.xlu0
        %v1639 = vpop.trf.xlu0
        %v1640 = vpop.trf.xlu0
        %v1641 = vpop.trf.xlu0
        %v1642 = vpop.trf.xlu0
        %1643 = vxpose.xlu0.b32.start [1/16] %v1592, 128
        %1644 = vxpose.xlu0.b32.cont [2/16] %v1594, 128
        %1645 = vxpose.xlu0.b32.cont [3/16] 0.0, 128
        %1646 = vxpose.xlu0.b32.cont [4/16] 0.0, 128
        %1647 = vxpose.xlu0.b32.cont [5/16] 0.0, 128
        %1648 = vxpose.xlu0.b32.cont [6/16] 0.0, 128
        %1649 = vxpose.xlu0.b32.cont [7/16] 0.0, 128
        %1650 = vxpose.xlu0.b32.cont [8/16] 0.0, 128
        %1651 = vxpose.xlu0.b32.cont [9/16] 0.0, 128
        %1652 = vxpose.xlu0.b32.cont [10/16] 0.0, 128
        %1653 = vxpose.xlu0.b32.cont [11/16] 0.0, 128
        %1654 = vxpose.xlu0.b32.cont [12/16] 0.0, 128
        %1655 = vxpose.xlu0.b32.cont [13/16] 0.0, 128
        %1656 = vxpose.xlu0.b32.cont [14/16] 0.0, 128
        %1657 = vxpose.xlu0.b32.cont [15/16] 0.0, 128
        %1658 = vxpose.xlu0.b32.end [16/16] 0.0, 128
        %v1659 = vpop.trf.xlu0
        %v1660 = vpop.trf.xlu0
        %v1661 = vpop.trf.xlu0
        %v1662 = vpop.trf.xlu0
        %v1663 = vpop.trf.xlu0
        %v1664 = vpop.trf.xlu0
        %v1665 = vpop.trf.xlu0
        %v1666 = vpop.trf.xlu0
        %v1667 = vpop.trf.xlu0
        %v1668 = vpop.trf.xlu0
        %v1669 = vpop.trf.xlu0
        %v1670 = vpop.trf.xlu0
        %v1671 = vpop.trf.xlu0
        %v1672 = vpop.trf.xlu0
        %v1673 = vpop.trf.xlu0
        %v1674 = vpop.trf.xlu0
        %1675 = vxpose.xlu0.b32.start [1/16] %v1596, 128
        %1676 = vxpose.xlu0.b32.cont [2/16] %v1598, 128
        %1677 = vxpose.xlu0.b32.cont [3/16] 0.0, 128
        %1678 = vxpose.xlu0.b32.cont [4/16] 0.0, 128
        %1679 = vxpose.xlu0.b32.cont [5/16] 0.0, 128
        %1680 = vxpose.xlu0.b32.cont [6/16] 0.0, 128
        %1681 = vxpose.xlu0.b32.cont [7/16] 0.0, 128
        %1682 = vxpose.xlu0.b32.cont [8/16] 0.0, 128
        %1683 = vxpose.xlu0.b32.cont [9/16] 0.0, 128
        %1684 = vxpose.xlu0.b32.cont [10/16] 0.0, 128
        %1685 = vxpose.xlu0.b32.cont [11/16] 0.0, 128
        %1686 = vxpose.xlu0.b32.cont [12/16] 0.0, 128
        %1687 = vxpose.xlu0.b32.cont [13/16] 0.0, 128
        %1688 = vxpose.xlu0.b32.cont [14/16] 0.0, 128
        %1689 = vxpose.xlu0.b32.cont [15/16] 0.0, 128
        %1690 = vxpose.xlu0.b32.end [16/16] 0.0, 128
        %v1691 = vpop.trf.xlu0
        %v1692 = vpop.trf.xlu0
        %v1693 = vpop.trf.xlu0
        %v1694 = vpop.trf.xlu0
        %v1695 = vpop.trf.xlu0
        %v1696 = vpop.trf.xlu0
        %v1697 = vpop.trf.xlu0
        %v1698 = vpop.trf.xlu0
        %v1699 = vpop.trf.xlu0
        %v1700 = vpop.trf.xlu0
        %v1701 = vpop.trf.xlu0
        %v1702 = vpop.trf.xlu0
        %v1703 = vpop.trf.xlu0
        %v1704 = vpop.trf.xlu0
        %v1705 = vpop.trf.xlu0
        %v1706 = vpop.trf.xlu0
        %1707 = vxpose.xlu0.b32.start [1/16] %v1600, 128
        %1708 = vxpose.xlu0.b32.cont [2/16] %v1602, 128
        %1709 = vxpose.xlu0.b32.cont [3/16] 0.0, 128
        %1710 = vxpose.xlu0.b32.cont [4/16] 0.0, 128
        %1711 = vxpose.xlu0.b32.cont [5/16] 0.0, 128
        %1712 = vxpose.xlu0.b32.cont [6/16] 0.0, 128
        %1713 = vxpose.xlu0.b32.cont [7/16] 0.0, 128
        %1714 = vxpose.xlu0.b32.cont [8/16] 0.0, 128
        %1715 = vxpose.xlu0.b32.cont [9/16] 0.0, 128
        %1716 = vxpose.xlu0.b32.cont [10/16] 0.0, 128
        %1717 = vxpose.xlu0.b32.cont [11/16] 0.0, 128
        %1718 = vxpose.xlu0.b32.cont [12/16] 0.0, 128
        %1719 = vxpose.xlu0.b32.cont [13/16] 0.0, 128
        %1720 = vxpose.xlu0.b32.cont [14/16] 0.0, 128
        %1721 = vxpose.xlu0.b32.cont [15/16] 0.0, 128
        %1722 = vxpose.xlu0.b32.end [16/16] 0.0, 128
        %v1723 = vpop.trf.xlu0
        %v1724 = vpop.trf.xlu0
        %v1725 = vpop.trf.xlu0
        %v1726 = vpop.trf.xlu0
        %v1727 = vpop.trf.xlu0
        %v1728 = vpop.trf.xlu0
        %v1729 = vpop.trf.xlu0
        %v1730 = vpop.trf.xlu0
        %v1731 = vpop.trf.xlu0
        %v1732 = vpop.trf.xlu0
        %v1733 = vpop.trf.xlu0
        %v1734 = vpop.trf.xlu0
        %v1735 = vpop.trf.xlu0
        %v1736 = vpop.trf.xlu0
        %v1737 = vpop.trf.xlu0
        %v1738 = vpop.trf.xlu0
        %s1739 = scalar_lea.vmem %s382, 32
        %v1740 = vld [vmem:[%s1739] sm:$0xff]
        %v1741 = vld [vmem:[%s1739 + $0x8] sm:$0xff]
        %v1742 = vld [vmem:[%s1739 + $0x10] sm:$0xff]
        %v1743 = vld [vmem:[%s1739 + $0x18] sm:$0xff]
        %v1745 = vsel %vm775, %v1627, 0
        %v1748 = vsel %vm775, %v1628, 0
        %v1751 = vsel %vm775, %v1659, 0
        %v1754 = vsel %vm775, %v1660, 0
        %v1757 = vsel %vm775, %v1691, 0
        %v1760 = vsel %vm775, %v1692, 0
        %v1763 = vsel %vm775, %v1723, 0
        %v1766 = vsel %vm775, %v1724, 0
        %1768 = vmatpush.msra.mxu0 0.0
        %1769 = vmatpush.msra.mxu0 0.0
        %1770 = vmatpush.msra.mxu0 0.0
        %1771 = vmatpush.msra.mxu0 0.0
        %1772 = vmatpush.msra.mxu0 0.0
        %1773 = vmatpush.msra.mxu0 0.0
        %1774 = vmatpush.msra.mxu0 0.0
        %1775 = vmatpush.msra.mxu0 0.0
        %1776 = vmatpush.msra.mxu0 0.0
        %1777 = vmatpush.msra.mxu0 0.0
        %1778 = vmatpush.msra.mxu0 0.0
        %1779 = vmatpush.msra.mxu0 0.0
        %1780 = vmatpush.msra.mxu0 0.0
        %1781 = vmatpush.msra.mxu0 0.0
        %1782 = vmatpush.msra.mxu0 %v1743
        %1783 = vmatpush.msra.mxu0 %v1742
        %1784 = vmatmul.f32.gmra.mxu0 %v1745
        %v1785 = vpop.f32.mrf.mxu0
        %v1786 = vadd.f32 0.0, %v1785
        %1787 = vmatmul.f32.gmra.mxu0 %v1748
        %v1788 = vpop.f32.mrf.mxu0
        %v1789 = vadd.f32 0.0, %v1788
        %1790 = vmatmul.f32.gmra.mxu0 %v1751
        %v1791 = vpop.f32.mrf.mxu0
        %v1792 = vadd.f32 0.0, %v1791
        %1793 = vmatmul.f32.gmra.mxu0 %v1754
        %v1794 = vpop.f32.mrf.mxu0
        %v1795 = vadd.f32 0.0, %v1794
        %1796 = vmatmul.f32.gmra.mxu0 %v1757
        %v1797 = vpop.f32.mrf.mxu0
        %v1798 = vadd.f32 0.0, %v1797
        %1799 = vmatmul.f32.gmra.mxu0 %v1760
        %v1800 = vpop.f32.mrf.mxu0
        %v1801 = vadd.f32 0.0, %v1800
        %1802 = vmatmul.f32.gmra.mxu0 %v1763
        %v1803 = vpop.f32.mrf.mxu0
        %v1804 = vadd.f32 0.0, %v1803
        %1805 = vmatmul.f32.gmra.mxu0 %v1766
        %v1806 = vpop.f32.mrf.mxu0
        %v1807 = vadd.f32 0.0, %v1806
        %1808 = vdwg.mxu0
        %v1810 = vsel %vm775, %v1475, 0
        %v1813 = vsel %vm775, %v1476, 0
        %v1816 = vsel %vm775, %v1507, 0
        %v1819 = vsel %vm775, %v1508, 0
        %v1822 = vsel %vm775, %v1539, 0
        %v1825 = vsel %vm775, %v1540, 0
        %v1828 = vsel %vm775, %v1571, 0
        %v1831 = vsel %vm775, %v1572, 0
        %1833 = vmatpush.msra.mxu0 0.0
        %1834 = vmatpush.msra.mxu0 0.0
        %1835 = vmatpush.msra.mxu0 0.0
        %1836 = vmatpush.msra.mxu0 0.0
        %1837 = vmatpush.msra.mxu0 0.0
        %1838 = vmatpush.msra.mxu0 0.0
        %1839 = vmatpush.msra.mxu0 0.0
        %1840 = vmatpush.msra.mxu0 0.0
        %1841 = vmatpush.msra.mxu0 0.0
        %1842 = vmatpush.msra.mxu0 0.0
        %1843 = vmatpush.msra.mxu0 0.0
        %1844 = vmatpush.msra.mxu0 0.0
        %1845 = vmatpush.msra.mxu0 0.0
        %1846 = vmatpush.msra.mxu0 0.0
        %1847 = vmatpush.msra.mxu0 %v1741
        %1848 = vmatpush.msra.mxu0 %v1740
        %1849 = vmatmul.f32.gmra.mxu0 %v1810
        %v1850 = vpop.f32.mrf.mxu0
        %v1851 = vadd.f32 %v1786, %v1850
        %1852 = vmatmul.f32.gmra.mxu0 %v1813
        %v1853 = vpop.f32.mrf.mxu0
        %v1854 = vadd.f32 %v1789, %v1853
        %1855 = vmatmul.f32.gmra.mxu0 %v1816
        %v1856 = vpop.f32.mrf.mxu0
        %v1857 = vadd.f32 %v1792, %v1856
        %1858 = vmatmul.f32.gmra.mxu0 %v1819
        %v1859 = vpop.f32.mrf.mxu0
        %v1860 = vadd.f32 %v1795, %v1859
        %1861 = vmatmul.f32.gmra.mxu0 %v1822
        %v1862 = vpop.f32.mrf.mxu0
        %v1863 = vadd.f32 %v1798, %v1862
        %1864 = vmatmul.f32.gmra.mxu0 %v1825
        %v1865 = vpop.f32.mrf.mxu0
        %v1866 = vadd.f32 %v1801, %v1865
        %1867 = vmatmul.f32.gmra.mxu0 %v1828
        %v1868 = vpop.f32.mrf.mxu0
        %v1869 = vadd.f32 %v1804, %v1868
        %1870 = vmatmul.f32.gmra.mxu0 %v1831
        %v1871 = vpop.f32.mrf.mxu0
        %v1872 = vadd.f32 %v1807, %v1871
        %1873 = vdwg.mxu0
        %v1874 = vmax.f32 %v1851, 0.0
        %v1875 = vmax.f32 %v1854, 0.0
        %v1876 = vmax.f32 %v1857, 0.0
        %v1877 = vmax.f32 %v1860, 0.0
        %v1878 = vmax.f32 %v1863, 0.0
        %v1879 = vmax.f32 %v1866, 0.0
        %v1880 = vmax.f32 %v1869, 0.0
        %v1881 = vmax.f32 %v1872, 0.0
        %s1882 = scalar_lea.vmem %s326, 16 [#allocation7]
        %v1883 = vld [vmem:[%s1882] sm:$0xff]
        %v1884 = vld [vmem:[%s1882 + $0x8] sm:$0xff]
        %v1886 = vsel %vm775, %v1874, 0
        %v1889 = vsel %vm775, %v1875, 0
        %v1892 = vsel %vm775, %v1876, 0
        %v1895 = vsel %vm775, %v1877, 0
        %v1898 = vsel %vm775, %v1878, 0
        %v1901 = vsel %vm775, %v1879, 0
        %v1904 = vsel %vm775, %v1880, 0
        %v1907 = vsel %vm775, %v1881, 0
        %1909 = vmatpush.msra.mxu0 0.0
        %1910 = vmatpush.msra.mxu0 0.0
        %1911 = vmatpush.msra.mxu0 0.0
        %1912 = vmatpush.msra.mxu0 0.0
        %1913 = vmatpush.msra.mxu0 0.0
        %1914 = vmatpush.msra.mxu0 0.0
        %1915 = vmatpush.msra.mxu0 0.0
        %1916 = vmatpush.msra.mxu0 0.0
        %1917 = vmatpush.msra.mxu0 0.0
        %1918 = vmatpush.msra.mxu0 0.0
        %1919 = vmatpush.msra.mxu0 0.0
        %1920 = vmatpush.msra.mxu0 0.0
        %1921 = vmatpush.msra.mxu0 0.0
        %1922 = vmatpush.msra.mxu0 0.0
        %1923 = vmatpush.msra.mxu0 %v1884
        %1924 = vmatpush.msra.mxu0 %v1883
        %1925 = vmatmul.f32.gmra.mxu0 %v1886
        %v1926 = vpop.f32.mrf.mxu0
        %v1927 = vadd.f32 0.0, %v1926
        %1928 = vmatmul.f32.gmra.mxu0 %v1889
        %v1929 = vpop.f32.mrf.mxu0
        %v1930 = vadd.f32 0.0, %v1929
        %1931 = vmatmul.f32.gmra.mxu0 %v1892
        %v1932 = vpop.f32.mrf.mxu0
        %v1933 = vadd.f32 0.0, %v1932
        %1934 = vmatmul.f32.gmra.mxu0 %v1895
        %v1935 = vpop.f32.mrf.mxu0
        %v1936 = vadd.f32 0.0, %v1935
        %1937 = vmatmul.f32.gmra.mxu0 %v1898
        %v1938 = vpop.f32.mrf.mxu0
        %v1939 = vadd.f32 0.0, %v1938
        %1940 = vmatmul.f32.gmra.mxu0 %v1901
        %v1941 = vpop.f32.mrf.mxu0
        %v1942 = vadd.f32 0.0, %v1941
        %1943 = vmatmul.f32.gmra.mxu0 %v1904
        %v1944 = vpop.f32.mrf.mxu0
        %v1945 = vadd.f32 0.0, %v1944
        %1946 = vmatmul.f32.gmra.mxu0 %v1907
        %v1947 = vpop.f32.mrf.mxu0
        %v1948 = vadd.f32 0.0, %v1947
        %1949 = vdwg.mxu0
        %1950 = vxpose.xlu0.b32.start [1/16] %v1927, 128
        %1951 = vxpose.xlu0.b32.cont [2/16] %v1930, 128
        %1952 = vxpose.xlu0.b32.cont [3/16] 0.0, 128
        %1953 = vxpose.xlu0.b32.cont [4/16] 0.0, 128
        %1954 = vxpose.xlu0.b32.cont [5/16] 0.0, 128
        %1955 = vxpose.xlu0.b32.cont [6/16] 0.0, 128
        %1956 = vxpose.xlu0.b32.cont [7/16] 0.0, 128
        %1957 = vxpose.xlu0.b32.cont [8/16] 0.0, 128
        %1958 = vxpose.xlu0.b32.cont [9/16] 0.0, 128
        %1959 = vxpose.xlu0.b32.cont [10/16] 0.0, 128
        %1960 = vxpose.xlu0.b32.cont [11/16] 0.0, 128
        %1961 = vxpose.xlu0.b32.cont [12/16] 0.0, 128
        %1962 = vxpose.xlu0.b32.cont [13/16] 0.0, 128
        %1963 = vxpose.xlu0.b32.cont [14/16] 0.0, 128
        %1964 = vxpose.xlu0.b32.cont [15/16] 0.0, 128
        %1965 = vxpose.xlu0.b32.end [16/16] 0.0, 128
        %v1966 = vpop.trf.xlu0
        %v1967 = vpop.trf.xlu0
        %v1968 = vpop.trf.xlu0
        %v1969 = vpop.trf.xlu0
        %v1970 = vpop.trf.xlu0
        %v1971 = vpop.trf.xlu0
        %v1972 = vpop.trf.xlu0
        %v1973 = vpop.trf.xlu0
        %v1974 = vpop.trf.xlu0
        %v1975 = vpop.trf.xlu0
        %v1976 = vpop.trf.xlu0
        %v1977 = vpop.trf.xlu0
        %v1978 = vpop.trf.xlu0
        %v1979 = vpop.trf.xlu0
        %v1980 = vpop.trf.xlu0
        %v1981 = vpop.trf.xlu0
        %1982 = vxpose.xlu0.b32.start [1/16] %v1933, 128
        %1983 = vxpose.xlu0.b32.cont [2/16] %v1936, 128
        %1984 = vxpose.xlu0.b32.cont [3/16] 0.0, 128
        %1985 = vxpose.xlu0.b32.cont [4/16] 0.0, 128
        %1986 = vxpose.xlu0.b32.cont [5/16] 0.0, 128
        %1987 = vxpose.xlu0.b32.cont [6/16] 0.0, 128
        %1988 = vxpose.xlu0.b32.cont [7/16] 0.0, 128
        %1989 = vxpose.xlu0.b32.cont [8/16] 0.0, 128
        %1990 = vxpose.xlu0.b32.cont [9/16] 0.0, 128
        %1991 = vxpose.xlu0.b32.cont [10/16] 0.0, 128
        %1992 = vxpose.xlu0.b32.cont [11/16] 0.0, 128
        %1993 = vxpose.xlu0.b32.cont [12/16] 0.0, 128
        %1994 = vxpose.xlu0.b32.cont [13/16] 0.0, 128
        %1995 = vxpose.xlu0.b32.cont [14/16] 0.0, 128
        %1996 = vxpose.xlu0.b32.cont [15/16] 0.0, 128
        %1997 = vxpose.xlu0.b32.end [16/16] 0.0, 128
        %v1998 = vpop.trf.xlu0
        %v1999 = vpop.trf.xlu0
        %v2000 = vpop.trf.xlu0
        %v2001 = vpop.trf.xlu0
        %v2002 = vpop.trf.xlu0
        %v2003 = vpop.trf.xlu0
        %v2004 = vpop.trf.xlu0
        %v2005 = vpop.trf.xlu0
        %v2006 = vpop.trf.xlu0
        %v2007 = vpop.trf.xlu0
        %v2008 = vpop.trf.xlu0
        %v2009 = vpop.trf.xlu0
        %v2010 = vpop.trf.xlu0
        %v2011 = vpop.trf.xlu0
        %v2012 = vpop.trf.xlu0
        %v2013 = vpop.trf.xlu0
        %2014 = vxpose.xlu0.b32.start [1/16] %v1939, 128
        %2015 = vxpose.xlu0.b32.cont [2/16] %v1942, 128
        %2016 = vxpose.xlu0.b32.cont [3/16] 0.0, 128
        %2017 = vxpose.xlu0.b32.cont [4/16] 0.0, 128
        %2018 = vxpose.xlu0.b32.cont [5/16] 0.0, 128
        %2019 = vxpose.xlu0.b32.cont [6/16] 0.0, 128
        %2020 = vxpose.xlu0.b32.cont [7/16] 0.0, 128
        %2021 = vxpose.xlu0.b32.cont [8/16] 0.0, 128
        %2022 = vxpose.xlu0.b32.cont [9/16] 0.0, 128
        %2023 = vxpose.xlu0.b32.cont [10/16] 0.0, 128
        %2024 = vxpose.xlu0.b32.cont [11/16] 0.0, 128
        %2025 = vxpose.xlu0.b32.cont [12/16] 0.0, 128
        %2026 = vxpose.xlu0.b32.cont [13/16] 0.0, 128
        %2027 = vxpose.xlu0.b32.cont [14/16] 0.0, 128
        %2028 = vxpose.xlu0.b32.cont [15/16] 0.0, 128
        %2029 = vxpose.xlu0.b32.end [16/16] 0.0, 128
        %v2030 = vpop.trf.xlu0
        %v2031 = vpop.trf.xlu0
        %v2032 = vpop.trf.xlu0
        %v2033 = vpop.trf.xlu0
        %v2034 = vpop.trf.xlu0
        %v2035 = vpop.trf.xlu0
        %v2036 = vpop.trf.xlu0
        %v2037 = vpop.trf.xlu0
        %v2038 = vpop.trf.xlu0
        %v2039 = vpop.trf.xlu0
        %v2040 = vpop.trf.xlu0
        %v2041 = vpop.trf.xlu0
        %v2042 = vpop.trf.xlu0
        %v2043 = vpop.trf.xlu0
        %v2044 = vpop.trf.xlu0
        %v2045 = vpop.trf.xlu0
        %2046 = vxpose.xlu0.b32.start [1/16] %v1945, 128
        %2047 = vxpose.xlu0.b32.cont [2/16] %v1948, 128
        %2048 = vxpose.xlu0.b32.cont [3/16] 0.0, 128
        %2049 = vxpose.xlu0.b32.cont [4/16] 0.0, 128
        %2050 = vxpose.xlu0.b32.cont [5/16] 0.0, 128
        %2051 = vxpose.xlu0.b32.cont [6/16] 0.0, 128
        %2052 = vxpose.xlu0.b32.cont [7/16] 0.0, 128
        %2053 = vxpose.xlu0.b32.cont [8/16] 0.0, 128
        %2054 = vxpose.xlu0.b32.cont [9/16] 0.0, 128
        %2055 = vxpose.xlu0.b32.cont [10/16] 0.0, 128
        %2056 = vxpose.xlu0.b32.cont [11/16] 0.0, 128
        %2057 = vxpose.xlu0.b32.cont [12/16] 0.0, 128
        %2058 = vxpose.xlu0.b32.cont [13/16] 0.0, 128
        %2059 = vxpose.xlu0.b32.cont [14/16] 0.0, 128
        %2060 = vxpose.xlu0.b32.cont [15/16] 0.0, 128
        %2061 = vxpose.xlu0.b32.end [16/16] 0.0, 128
        %v2062 = vpop.trf.xlu0
        %v2063 = vpop.trf.xlu0
        %v2064 = vpop.trf.xlu0
        %v2065 = vpop.trf.xlu0
        %v2066 = vpop.trf.xlu0
        %v2067 = vpop.trf.xlu0
        %v2068 = vpop.trf.xlu0
        %v2069 = vpop.trf.xlu0
        %v2070 = vpop.trf.xlu0
        %v2071 = vpop.trf.xlu0
        %v2072 = vpop.trf.xlu0
        %v2073 = vpop.trf.xlu0
        %v2074 = vpop.trf.xlu0
        %v2075 = vpop.trf.xlu0
        %v2076 = vpop.trf.xlu0
        %v2077 = vpop.trf.xlu0
        %2086 = vrot.lane.b32.xlu0 %v1927, 112
        %v2087 = vpop.permute.xlu0 %2086
        %2088 = vrot.lane.b32.xlu0 %v1930, 112
        %v2089 = vpop.permute.xlu0 %2088
        %2090 = vrot.lane.b32.xlu0 %v1933, 112
        %v2091 = vpop.permute.xlu0 %2090
        %2092 = vrot.lane.b32.xlu0 %v1936, 112
        %v2093 = vpop.permute.xlu0 %2092
        %2094 = vrot.lane.b32.xlu0 %v1939, 112
        %v2095 = vpop.permute.xlu0 %2094
        %2096 = vrot.lane.b32.xlu0 %v1942, 112
        %v2097 = vpop.permute.xlu0 %2096
        %2098 = vrot.lane.b32.xlu0 %v1945, 112
        %v2099 = vpop.permute.xlu0 %2098
        %2100 = vrot.lane.b32.xlu0 %v1948, 112
        %v2101 = vpop.permute.xlu0 %2100
        %2110 = vxpose.xlu0.b32.start [1/16] %v2087, 128
        %2111 = vxpose.xlu0.b32.cont [2/16] %v2089, 128
        %2112 = vxpose.xlu0.b32.cont [3/16] 0.0, 128
        %2113 = vxpose.xlu0.b32.cont [4/16] 0.0, 128
        %2114 = vxpose.xlu0.b32.cont [5/16] 0.0, 128
        %2115 = vxpose.xlu0.b32.cont [6/16] 0.0, 128
        %2116 = vxpose.xlu0.b32.cont [7/16] 0.0, 128
        %2117 = vxpose.xlu0.b32.cont [8/16] 0.0, 128
        %2118 = vxpose.xlu0.b32.cont [9/16] 0.0, 128
        %2119 = vxpose.xlu0.b32.cont [10/16] 0.0, 128
        %2120 = vxpose.xlu0.b32.cont [11/16] 0.0, 128
        %2121 = vxpose.xlu0.b32.cont [12/16] 0.0, 128
        %2122 = vxpose.xlu0.b32.cont [13/16] 0.0, 128
        %2123 = vxpose.xlu0.b32.cont [14/16] 0.0, 128
        %2124 = vxpose.xlu0.b32.cont [15/16] 0.0, 128
        %2125 = vxpose.xlu0.b32.end [16/16] 0.0, 128
        %v2126 = vpop.trf.xlu0
        %v2127 = vpop.trf.xlu0
        %v2128 = vpop.trf.xlu0
        %v2129 = vpop.trf.xlu0
        %v2130 = vpop.trf.xlu0
        %v2131 = vpop.trf.xlu0
        %v2132 = vpop.trf.xlu0
        %v2133 = vpop.trf.xlu0
        %v2134 = vpop.trf.xlu0
        %v2135 = vpop.trf.xlu0
        %v2136 = vpop.trf.xlu0
        %v2137 = vpop.trf.xlu0
        %v2138 = vpop.trf.xlu0
        %v2139 = vpop.trf.xlu0
        %v2140 = vpop.trf.xlu0
        %v2141 = vpop.trf.xlu0
        %2142 = vxpose.xlu0.b32.start [1/16] %v2091, 128
        %2143 = vxpose.xlu0.b32.cont [2/16] %v2093, 128
        %2144 = vxpose.xlu0.b32.cont [3/16] 0.0, 128
        %2145 = vxpose.xlu0.b32.cont [4/16] 0.0, 128
        %2146 = vxpose.xlu0.b32.cont [5/16] 0.0, 128
        %2147 = vxpose.xlu0.b32.cont [6/16] 0.0, 128
        %2148 = vxpose.xlu0.b32.cont [7/16] 0.0, 128
        %2149 = vxpose.xlu0.b32.cont [8/16] 0.0, 128
        %2150 = vxpose.xlu0.b32.cont [9/16] 0.0, 128
        %2151 = vxpose.xlu0.b32.cont [10/16] 0.0, 128
        %2152 = vxpose.xlu0.b32.cont [11/16] 0.0, 128
        %2153 = vxpose.xlu0.b32.cont [12/16] 0.0, 128
        %2154 = vxpose.xlu0.b32.cont [13/16] 0.0, 128
        %2155 = vxpose.xlu0.b32.cont [14/16] 0.0, 128
        %2156 = vxpose.xlu0.b32.cont [15/16] 0.0, 128
        %2157 = vxpose.xlu0.b32.end [16/16] 0.0, 128
        %v2158 = vpop.trf.xlu0
        %v2159 = vpop.trf.xlu0
        %v2160 = vpop.trf.xlu0
        %v2161 = vpop.trf.xlu0
        %v2162 = vpop.trf.xlu0
        %v2163 = vpop.trf.xlu0
        %v2164 = vpop.trf.xlu0
        %v2165 = vpop.trf.xlu0
        %v2166 = vpop.trf.xlu0
        %v2167 = vpop.trf.xlu0
        %v2168 = vpop.trf.xlu0
        %v2169 = vpop.trf.xlu0
        %v2170 = vpop.trf.xlu0
        %v2171 = vpop.trf.xlu0
        %v2172 = vpop.trf.xlu0
        %v2173 = vpop.trf.xlu0
        %2174 = vxpose.xlu0.b32.start [1/16] %v2095, 128
        %2175 = vxpose.xlu0.b32.cont [2/16] %v2097, 128
        %2176 = vxpose.xlu0.b32.cont [3/16] 0.0, 128
        %2177 = vxpose.xlu0.b32.cont [4/16] 0.0, 128
        %2178 = vxpose.xlu0.b32.cont [5/16] 0.0, 128
        %2179 = vxpose.xlu0.b32.cont [6/16] 0.0, 128
        %2180 = vxpose.xlu0.b32.cont [7/16] 0.0, 128
        %2181 = vxpose.xlu0.b32.cont [8/16] 0.0, 128
        %2182 = vxpose.xlu0.b32.cont [9/16] 0.0, 128
        %2183 = vxpose.xlu0.b32.cont [10/16] 0.0, 128
        %2184 = vxpose.xlu0.b32.cont [11/16] 0.0, 128
        %2185 = vxpose.xlu0.b32.cont [12/16] 0.0, 128
        %2186 = vxpose.xlu0.b32.cont [13/16] 0.0, 128
        %2187 = vxpose.xlu0.b32.cont [14/16] 0.0, 128
        %2188 = vxpose.xlu0.b32.cont [15/16] 0.0, 128
        %2189 = vxpose.xlu0.b32.end [16/16] 0.0, 128
        %v2190 = vpop.trf.xlu0
        %v2191 = vpop.trf.xlu0
        %v2192 = vpop.trf.xlu0
        %v2193 = vpop.trf.xlu0
        %v2194 = vpop.trf.xlu0
        %v2195 = vpop.trf.xlu0
        %v2196 = vpop.trf.xlu0
        %v2197 = vpop.trf.xlu0
        %v2198 = vpop.trf.xlu0
        %v2199 = vpop.trf.xlu0
        %v2200 = vpop.trf.xlu0
        %v2201 = vpop.trf.xlu0
        %v2202 = vpop.trf.xlu0
        %v2203 = vpop.trf.xlu0
        %v2204 = vpop.trf.xlu0
        %v2205 = vpop.trf.xlu0
        %2206 = vxpose.xlu0.b32.start [1/16] %v2099, 128
        %2207 = vxpose.xlu0.b32.cont [2/16] %v2101, 128
        %2208 = vxpose.xlu0.b32.cont [3/16] 0.0, 128
        %2209 = vxpose.xlu0.b32.cont [4/16] 0.0, 128
        %2210 = vxpose.xlu0.b32.cont [5/16] 0.0, 128
        %2211 = vxpose.xlu0.b32.cont [6/16] 0.0, 128
        %2212 = vxpose.xlu0.b32.cont [7/16] 0.0, 128
        %2213 = vxpose.xlu0.b32.cont [8/16] 0.0, 128
        %2214 = vxpose.xlu0.b32.cont [9/16] 0.0, 128
        %2215 = vxpose.xlu0.b32.cont [10/16] 0.0, 128
        %2216 = vxpose.xlu0.b32.cont [11/16] 0.0, 128
        %2217 = vxpose.xlu0.b32.cont [12/16] 0.0, 128
        %2218 = vxpose.xlu0.b32.cont [13/16] 0.0, 128
        %2219 = vxpose.xlu0.b32.cont [14/16] 0.0, 128
        %2220 = vxpose.xlu0.b32.cont [15/16] 0.0, 128
        %2221 = vxpose.xlu0.b32.end [16/16] 0.0, 128
        %v2222 = vpop.trf.xlu0
        %v2223 = vpop.trf.xlu0
        %v2224 = vpop.trf.xlu0
        %v2225 = vpop.trf.xlu0
        %v2226 = vpop.trf.xlu0
        %v2227 = vpop.trf.xlu0
        %v2228 = vpop.trf.xlu0
        %v2229 = vpop.trf.xlu0
        %v2230 = vpop.trf.xlu0
        %v2231 = vpop.trf.xlu0
        %v2232 = vpop.trf.xlu0
        %v2233 = vpop.trf.xlu0
        %v2234 = vpop.trf.xlu0
        %v2235 = vpop.trf.xlu0
        %v2236 = vpop.trf.xlu0
        %v2237 = vpop.trf.xlu0
        %s2238 = scalar_lea.vmem %s390, 48
        %v2239 = vld [vmem:[%s2238] sm:$0xff]
        %v2240 = vld [vmem:[%s2238 + $0x8] sm:$0xff]
        %v2241 = vld [vmem:[%s2238 + $0x10] sm:$0xff]
        %v2242 = vld [vmem:[%s2238 + $0x18] sm:$0xff]
        %v2244 = vsel %vm775, %v2126, 0
        %v2247 = vsel %vm775, %v2127, 0
        %v2250 = vsel %vm775, %v2158, 0
        %v2253 = vsel %vm775, %v2159, 0
        %v2256 = vsel %vm775, %v2190, 0
        %v2259 = vsel %vm775, %v2191, 0
        %v2262 = vsel %vm775, %v2222, 0
        %v2265 = vsel %vm775, %v2223, 0
        %2267 = vmatpush.msra.mxu0 0.0
        %2268 = vmatpush.msra.mxu0 0.0
        %2269 = vmatpush.msra.mxu0 0.0
        %2270 = vmatpush.msra.mxu0 0.0
        %2271 = vmatpush.msra.mxu0 0.0
        %2272 = vmatpush.msra.mxu0 0.0
        %2273 = vmatpush.msra.mxu0 0.0
        %2274 = vmatpush.msra.mxu0 0.0
        %2275 = vmatpush.msra.mxu0 0.0
        %2276 = vmatpush.msra.mxu0 0.0
        %2277 = vmatpush.msra.mxu0 0.0
        %2278 = vmatpush.msra.mxu0 0.0
        %2279 = vmatpush.msra.mxu0 0.0
        %2280 = vmatpush.msra.mxu0 0.0
        %2281 = vmatpush.msra.mxu0 %v2242
        %2282 = vmatpush.msra.mxu0 %v2241
        %2283 = vmatmul.f32.gmra.mxu0 %v2244
        %v2284 = vpop.f32.mrf.mxu0
        %v2285 = vadd.f32 0.0, %v2284
        %2286 = vmatmul.f32.gmra.mxu0 %v2247
        %v2287 = vpop.f32.mrf.mxu0
        %v2288 = vadd.f32 0.0, %v2287
        %2289 = vmatmul.f32.gmra.mxu0 %v2250
        %v2290 = vpop.f32.mrf.mxu0
        %v2291 = vadd.f32 0.0, %v2290
        %2292 = vmatmul.f32.gmra.mxu0 %v2253
        %v2293 = vpop.f32.mrf.mxu0
        %v2294 = vadd.f32 0.0, %v2293
        %2295 = vmatmul.f32.gmra.mxu0 %v2256
        %v2296 = vpop.f32.mrf.mxu0
        %v2297 = vadd.f32 0.0, %v2296
        %2298 = vmatmul.f32.gmra.mxu0 %v2259
        %v2299 = vpop.f32.mrf.mxu0
        %v2300 = vadd.f32 0.0, %v2299
        %2301 = vmatmul.f32.gmra.mxu0 %v2262
        %v2302 = vpop.f32.mrf.mxu0
        %v2303 = vadd.f32 0.0, %v2302
        %2304 = vmatmul.f32.gmra.mxu0 %v2265
        %v2305 = vpop.f32.mrf.mxu0
        %v2306 = vadd.f32 0.0, %v2305
        %2307 = vdwg.mxu0
        %v2309 = vsel %vm775, %v1966, 0
        %v2312 = vsel %vm775, %v1967, 0
        %v2315 = vsel %vm775, %v1998, 0
        %v2318 = vsel %vm775, %v1999, 0
        %v2321 = vsel %vm775, %v2030, 0
        %v2324 = vsel %vm775, %v2031, 0
        %v2327 = vsel %vm775, %v2062, 0
        %v2330 = vsel %vm775, %v2063, 0
        %2332 = vmatpush.msra.mxu0 0.0
        %2333 = vmatpush.msra.mxu0 0.0
        %2334 = vmatpush.msra.mxu0 0.0
        %2335 = vmatpush.msra.mxu0 0.0
        %2336 = vmatpush.msra.mxu0 0.0
        %2337 = vmatpush.msra.mxu0 0.0
        %2338 = vmatpush.msra.mxu0 0.0
        %2339 = vmatpush.msra.mxu0 0.0
        %2340 = vmatpush.msra.mxu0 0.0
        %2341 = vmatpush.msra.mxu0 0.0
        %2342 = vmatpush.msra.mxu0 0.0
        %2343 = vmatpush.msra.mxu0 0.0
        %2344 = vmatpush.msra.mxu0 0.0
        %2345 = vmatpush.msra.mxu0 0.0
        %2346 = vmatpush.msra.mxu0 %v2240
        %2347 = vmatpush.msra.mxu0 %v2239
        %2348 = vmatmul.f32.gmra.mxu0 %v2309
        %v2349 = vpop.f32.mrf.mxu0
        %v2350 = vadd.f32 %v2285, %v2349
        %2351 = vmatmul.f32.gmra.mxu0 %v2312
        %v2352 = vpop.f32.mrf.mxu0
        %v2353 = vadd.f32 %v2288, %v2352
        %2354 = vmatmul.f32.gmra.mxu0 %v2315
        %v2355 = vpop.f32.mrf.mxu0
        %v2356 = vadd.f32 %v2291, %v2355
        %2357 = vmatmul.f32.gmra.mxu0 %v2318
        %v2358 = vpop.f32.mrf.mxu0
        %v2359 = vadd.f32 %v2294, %v2358
        %2360 = vmatmul.f32.gmra.mxu0 %v2321
        %v2361 = vpop.f32.mrf.mxu0
        %v2362 = vadd.f32 %v2297, %v2361
        %2363 = vmatmul.f32.gmra.mxu0 %v2324
        %v2364 = vpop.f32.mrf.mxu0
        %v2365 = vadd.f32 %v2300, %v2364
        %2366 = vmatmul.f32.gmra.mxu0 %v2327
        %v2367 = vpop.f32.mrf.mxu0
        %v2368 = vadd.f32 %v2303, %v2367
        %2369 = vmatmul.f32.gmra.mxu0 %v2330
        %v2370 = vpop.f32.mrf.mxu0
        %v2371 = vadd.f32 %v2306, %v2370
        %2372 = vdwg.mxu0
        %v2373 = vld [vmem:[%s2238 + $0x20] sm:$0xff]
        %v2374 = vld [vmem:[%s2238 + $0x28] sm:$0xff]
        %vm2375 = vcmp.ne.f32.partialorder %v2373, 0.0
        %vm2376 = vcmp.ne.f32.partialorder %v2374, 0.0
        %v2377 = vld [vmem:[%s375] sm:$0xff]
        %v2378 = vld [vmem:[%s375 + $0x8] sm:$0xff]
        %v2379 = vld [vmem:[%s375 + $0x10] sm:$0xff]
        %v2380 = vld [vmem:[%s375 + $0x18] sm:$0xff]
        %v2381 = vld [vmem:[%s375 + $0x20] sm:$0xff]
        %v2382 = vld [vmem:[%s375 + $0x28] sm:$0xff]
        %v2383 = vld [vmem:[%s375 + $0x30] sm:$0xff]
        %v2384 = vld [vmem:[%s375 + $0x38] sm:$0xff]
        %v2385 = vsel %vm2375, 1, 0
        %v2386 = vsel %vm2376, 1, 0
        %vm2387 = vcmp.eq.s32.totalorder %v2385, 1
        %vm2388 = vcmp.eq.s32.totalorder %v2386, 1
        %v2389 = vsel %vm2387, %v2350, %v2377
        %v2390 = vsel %vm2388, %v2353, %v2378
        %v2391 = vsel %vm2387, %v2356, %v2379
        %v2392 = vsel %vm2388, %v2359, %v2380
        %v2393 = vsel %vm2387, %v2362, %v2381
        %v2394 = vsel %vm2388, %v2365, %v2382
        %v2395 = vsel %vm2387, %v2368, %v2383
        %v2396 = vsel %vm2388, %v2371, %v2384
        %2397 = vst [vmem:[%s375] sm:$0xff] %v2389
        %2398 = vst [vmem:[%s375 + $0x8] sm:$0xff] %v2390
        %2399 = vst [vmem:[%s375 + $0x10] sm:$0xff] %v2391
        %2400 = vst [vmem:[%s375 + $0x18] sm:$0xff] %v2392
        %2401 = vst [vmem:[%s375 + $0x20] sm:$0xff] %v2393
        %2402 = vst [vmem:[%s375 + $0x28] sm:$0xff] %v2394
        %2403 = vst [vmem:[%s375 + $0x30] sm:$0xff] %v2395
        %2404 = vst [vmem:[%s375 + $0x38] sm:$0xff] %v2396
        %2405 = vrot.lane.b32.xlu0 %v460, 64
        %v2406 = vpop.permute.xlu0 %2405
        %2407 = vrot.lane.b32.xlu0 %v463, 64
        %v2408 = vpop.permute.xlu0 %2407
        %2409 = vrot.lane.b32.xlu0 %v466, 64
        %v2410 = vpop.permute.xlu0 %2409
        %2411 = vrot.lane.b32.xlu0 %v469, 64
        %v2412 = vpop.permute.xlu0 %2411
        %2413 = vrot.lane.b32.xlu0 %v472, 64
        %v2414 = vpop.permute.xlu0 %2413
        %2415 = vrot.lane.b32.xlu0 %v475, 64
        %v2416 = vpop.permute.xlu0 %2415
        %2417 = vrot.lane.b32.xlu0 %v478, 64
        %v2418 = vpop.permute.xlu0 %2417
        %2419 = vrot.lane.b32.xlu0 %v481, 64
        %v2420 = vpop.permute.xlu0 %2419
        %2429 = vxpose.xlu0.b32.start [1/16] %v2406, 128
        %2430 = vxpose.xlu0.b32.cont [2/16] %v2408, 128
        %2431 = vxpose.xlu0.b32.cont [3/16] 0.0, 128
        %2432 = vxpose.xlu0.b32.cont [4/16] 0.0, 128
        %2433 = vxpose.xlu0.b32.cont [5/16] 0.0, 128
        %2434 = vxpose.xlu0.b32.cont [6/16] 0.0, 128
        %2435 = vxpose.xlu0.b32.cont [7/16] 0.0, 128
        %2436 = vxpose.xlu0.b32.cont [8/16] 0.0, 128
        %2437 = vxpose.xlu0.b32.cont [9/16] 0.0, 128
        %2438 = vxpose.xlu0.b32.cont [10/16] 0.0, 128
        %2439 = vxpose.xlu0.b32.cont [11/16] 0.0, 128
        %2440 = vxpose.xlu0.b32.cont [12/16] 0.0, 128
        %2441 = vxpose.xlu0.b32.cont [13/16] 0.0, 128
        %2442 = vxpose.xlu0.b32.cont [14/16] 0.0, 128
        %2443 = vxpose.xlu0.b32.cont [15/16] 0.0, 128
        %2444 = vxpose.xlu0.b32.end [16/16] 0.0, 128
        %v2445 = vpop.trf.xlu0
        %v2446 = vpop.trf.xlu0
        %v2447 = vpop.trf.xlu0
        %v2448 = vpop.trf.xlu0
        %v2449 = vpop.trf.xlu0
        %v2450 = vpop.trf.xlu0
        %v2451 = vpop.trf.xlu0
        %v2452 = vpop.trf.xlu0
        %v2453 = vpop.trf.xlu0
        %v2454 = vpop.trf.xlu0
        %v2455 = vpop.trf.xlu0
        %v2456 = vpop.trf.xlu0
        %v2457 = vpop.trf.xlu0
        %v2458 = vpop.trf.xlu0
        %v2459 = vpop.trf.xlu0
        %v2460 = vpop.trf.xlu0
        %2461 = vxpose.xlu0.b32.start [1/16] %v2410, 128
        %2462 = vxpose.xlu0.b32.cont [2/16] %v2412, 128
        %2463 = vxpose.xlu0.b32.cont [3/16] 0.0, 128
        %2464 = vxpose.xlu0.b32.cont [4/16] 0.0, 128
        %2465 = vxpose.xlu0.b32.cont [5/16] 0.0, 128
        %2466 = vxpose.xlu0.b32.cont [6/16] 0.0, 128
        %2467 = vxpose.xlu0.b32.cont [7/16] 0.0, 128
        %2468 = vxpose.xlu0.b32.cont [8/16] 0.0, 128
        %2469 = vxpose.xlu0.b32.cont [9/16] 0.0, 128
        %2470 = vxpose.xlu0.b32.cont [10/16] 0.0, 128
        %2471 = vxpose.xlu0.b32.cont [11/16] 0.0, 128
        %2472 = vxpose.xlu0.b32.cont [12/16] 0.0, 128
        %2473 = vxpose.xlu0.b32.cont [13/16] 0.0, 128
        %2474 = vxpose.xlu0.b32.cont [14/16] 0.0, 128
        %2475 = vxpose.xlu0.b32.cont [15/16] 0.0, 128
        %2476 = vxpose.xlu0.b32.end [16/16] 0.0, 128
        %v2477 = vpop.trf.xlu0
        %v2478 = vpop.trf.xlu0
        %v2479 = vpop.trf.xlu0
        %v2480 = vpop.trf.xlu0
        %v2481 = vpop.trf.xlu0
        %v2482 = vpop.trf.xlu0
        %v2483 = vpop.trf.xlu0
        %v2484 = vpop.trf.xlu0
        %v2485 = vpop.trf.xlu0
        %v2486 = vpop.trf.xlu0
        %v2487 = vpop.trf.xlu0
        %v2488 = vpop.trf.xlu0
        %v2489 = vpop.trf.xlu0
        %v2490 = vpop.trf.xlu0
        %v2491 = vpop.trf.xlu0
        %v2492 = vpop.trf.xlu0
        %2493 = vxpose.xlu0.b32.start [1/16] %v2414, 128
        %2494 = vxpose.xlu0.b32.cont [2/16] %v2416, 128
        %2495 = vxpose.xlu0.b32.cont [3/16] 0.0, 128
        %2496 = vxpose.xlu0.b32.cont [4/16] 0.0, 128
        %2497 = vxpose.xlu0.b32.cont [5/16] 0.0, 128
        %2498 = vxpose.xlu0.b32.cont [6/16] 0.0, 128
        %2499 = vxpose.xlu0.b32.cont [7/16] 0.0, 128
        %2500 = vxpose.xlu0.b32.cont [8/16] 0.0, 128
        %2501 = vxpose.xlu0.b32.cont [9/16] 0.0, 128
        %2502 = vxpose.xlu0.b32.cont [10/16] 0.0, 128
        %2503 = vxpose.xlu0.b32.cont [11/16] 0.0, 128
        %2504 = vxpose.xlu0.b32.cont [12/16] 0.0, 128
        %2505 = vxpose.xlu0.b32.cont [13/16] 0.0, 128
        %2506 = vxpose.xlu0.b32.cont [14/16] 0.0, 128
        %2507 = vxpose.xlu0.b32.cont [15/16] 0.0, 128
        %2508 = vxpose.xlu0.b32.end [16/16] 0.0, 128
        %v2509 = vpop.trf.xlu0
        %v2510 = vpop.trf.xlu0
        %v2511 = vpop.trf.xlu0
        %v2512 = vpop.trf.xlu0
        %v2513 = vpop.trf.xlu0
        %v2514 = vpop.trf.xlu0
        %v2515 = vpop.trf.xlu0
        %v2516 = vpop.trf.xlu0
        %v2517 = vpop.trf.xlu0
        %v2518 = vpop.trf.xlu0
        %v2519 = vpop.trf.xlu0
        %v2520 = vpop.trf.xlu0
        %v2521 = vpop.trf.xlu0
        %v2522 = vpop.trf.xlu0
        %v2523 = vpop.trf.xlu0
        %v2524 = vpop.trf.xlu0
        %2525 = vxpose.xlu0.b32.start [1/16] %v2418, 128
        %2526 = vxpose.xlu0.b32.cont [2/16] %v2420, 128
        %2527 = vxpose.xlu0.b32.cont [3/16] 0.0, 128
        %2528 = vxpose.xlu0.b32.cont [4/16] 0.0, 128
        %2529 = vxpose.xlu0.b32.cont [5/16] 0.0, 128
        %2530 = vxpose.xlu0.b32.cont [6/16] 0.0, 128
        %2531 = vxpose.xlu0.b32.cont [7/16] 0.0, 128
        %2532 = vxpose.xlu0.b32.cont [8/16] 0.0, 128
        %2533 = vxpose.xlu0.b32.cont [9/16] 0.0, 128
        %2534 = vxpose.xlu0.b32.cont [10/16] 0.0, 128
        %2535 = vxpose.xlu0.b32.cont [11/16] 0.0, 128
        %2536 = vxpose.xlu0.b32.cont [12/16] 0.0, 128
        %2537 = vxpose.xlu0.b32.cont [13/16] 0.0, 128
        %2538 = vxpose.xlu0.b32.cont [14/16] 0.0, 128
        %2539 = vxpose.xlu0.b32.cont [15/16] 0.0, 128
        %2540 = vxpose.xlu0.b32.end [16/16] 0.0, 128
        %v2541 = vpop.trf.xlu0
        %v2542 = vpop.trf.xlu0
        %v2543 = vpop.trf.xlu0
        %v2544 = vpop.trf.xlu0
        %v2545 = vpop.trf.xlu0
        %v2546 = vpop.trf.xlu0
        %v2547 = vpop.trf.xlu0
        %v2548 = vpop.trf.xlu0
        %v2549 = vpop.trf.xlu0
        %v2550 = vpop.trf.xlu0
        %v2551 = vpop.trf.xlu0
        %v2552 = vpop.trf.xlu0
        %v2553 = vpop.trf.xlu0
        %v2554 = vpop.trf.xlu0
        %v2555 = vpop.trf.xlu0
        %v2556 = vpop.trf.xlu0
        %2557 = vrot.lane.b32.xlu0 %v460, 48
        %v2558 = vpop.permute.xlu0 %2557
        %2559 = vrot.lane.b32.xlu0 %v463, 48
        %v2560 = vpop.permute.xlu0 %2559
        %2561 = vrot.lane.b32.xlu0 %v466, 48
        %v2562 = vpop.permute.xlu0 %2561
        %2563 = vrot.lane.b32.xlu0 %v469, 48
        %v2564 = vpop.permute.xlu0 %2563
        %2565 = vrot.lane.b32.xlu0 %v472, 48
        %v2566 = vpop.permute.xlu0 %2565
        %2567 = vrot.lane.b32.xlu0 %v475, 48
        %v2568 = vpop.permute.xlu0 %2567
        %2569 = vrot.lane.b32.xlu0 %v478, 48
        %v2570 = vpop.permute.xlu0 %2569
        %2571 = vrot.lane.b32.xlu0 %v481, 48
        %v2572 = vpop.permute.xlu0 %2571
        %2581 = vxpose.xlu0.b32.start [1/16] %v2558, 128
        %2582 = vxpose.xlu0.b32.cont [2/16] %v2560, 128
        %2583 = vxpose.xlu0.b32.cont [3/16] 0.0, 128
        %2584 = vxpose.xlu0.b32.cont [4/16] 0.0, 128
        %2585 = vxpose.xlu0.b32.cont [5/16] 0.0, 128
        %2586 = vxpose.xlu0.b32.cont [6/16] 0.0, 128
        %2587 = vxpose.xlu0.b32.cont [7/16] 0.0, 128
        %2588 = vxpose.xlu0.b32.cont [8/16] 0.0, 128
        %2589 = vxpose.xlu0.b32.cont [9/16] 0.0, 128
        %2590 = vxpose.xlu0.b32.cont [10/16] 0.0, 128
        %2591 = vxpose.xlu0.b32.cont [11/16] 0.0, 128
        %2592 = vxpose.xlu0.b32.cont [12/16] 0.0, 128
        %2593 = vxpose.xlu0.b32.cont [13/16] 0.0, 128
        %2594 = vxpose.xlu0.b32.cont [14/16] 0.0, 128
        %2595 = vxpose.xlu0.b32.cont [15/16] 0.0, 128
        %2596 = vxpose.xlu0.b32.end [16/16] 0.0, 128
        %v2597 = vpop.trf.xlu0
        %v2598 = vpop.trf.xlu0
        %v2599 = vpop.trf.xlu0
        %v2600 = vpop.trf.xlu0
        %v2601 = vpop.trf.xlu0
        %v2602 = vpop.trf.xlu0
        %v2603 = vpop.trf.xlu0
        %v2604 = vpop.trf.xlu0
        %v2605 = vpop.trf.xlu0
        %v2606 = vpop.trf.xlu0
        %v2607 = vpop.trf.xlu0
        %v2608 = vpop.trf.xlu0
        %v2609 = vpop.trf.xlu0
        %v2610 = vpop.trf.xlu0
        %v2611 = vpop.trf.xlu0
        %v2612 = vpop.trf.xlu0
        %2613 = vxpose.xlu0.b32.start [1/16] %v2562, 128
        %2614 = vxpose.xlu0.b32.cont [2/16] %v2564, 128
        %2615 = vxpose.xlu0.b32.cont [3/16] 0.0, 128
        %2616 = vxpose.xlu0.b32.cont [4/16] 0.0, 128
        %2617 = vxpose.xlu0.b32.cont [5/16] 0.0, 128
        %2618 = vxpose.xlu0.b32.cont [6/16] 0.0, 128
        %2619 = vxpose.xlu0.b32.cont [7/16] 0.0, 128
        %2620 = vxpose.xlu0.b32.cont [8/16] 0.0, 128
        %2621 = vxpose.xlu0.b32.cont [9/16] 0.0, 128
        %2622 = vxpose.xlu0.b32.cont [10/16] 0.0, 128
        %2623 = vxpose.xlu0.b32.cont [11/16] 0.0, 128
        %2624 = vxpose.xlu0.b32.cont [12/16] 0.0, 128
        %2625 = vxpose.xlu0.b32.cont [13/16] 0.0, 128
        %2626 = vxpose.xlu0.b32.cont [14/16] 0.0, 128
        %2627 = vxpose.xlu0.b32.cont [15/16] 0.0, 128
        %2628 = vxpose.xlu0.b32.end [16/16] 0.0, 128
        %v2629 = vpop.trf.xlu0
        %v2630 = vpop.trf.xlu0
        %v2631 = vpop.trf.xlu0
        %v2632 = vpop.trf.xlu0
        %v2633 = vpop.trf.xlu0
        %v2634 = vpop.trf.xlu0
        %v2635 = vpop.trf.xlu0
        %v2636 = vpop.trf.xlu0
        %v2637 = vpop.trf.xlu0
        %v2638 = vpop.trf.xlu0
        %v2639 = vpop.trf.xlu0
        %v2640 = vpop.trf.xlu0
        %v2641 = vpop.trf.xlu0
        %v2642 = vpop.trf.xlu0
        %v2643 = vpop.trf.xlu0
        %v2644 = vpop.trf.xlu0
        %2645 = vxpose.xlu0.b32.start [1/16] %v2566, 128
        %2646 = vxpose.xlu0.b32.cont [2/16] %v2568, 128
        %2647 = vxpose.xlu0.b32.cont [3/16] 0.0, 128
        %2648 = vxpose.xlu0.b32.cont [4/16] 0.0, 128
        %2649 = vxpose.xlu0.b32.cont [5/16] 0.0, 128
        %2650 = vxpose.xlu0.b32.cont [6/16] 0.0, 128
        %2651 = vxpose.xlu0.b32.cont [7/16] 0.0, 128
        %2652 = vxpose.xlu0.b32.cont [8/16] 0.0, 128
        %2653 = vxpose.xlu0.b32.cont [9/16] 0.0, 128
        %2654 = vxpose.xlu0.b32.cont [10/16] 0.0, 128
        %2655 = vxpose.xlu0.b32.cont [11/16] 0.0, 128
        %2656 = vxpose.xlu0.b32.cont [12/16] 0.0, 128
        %2657 = vxpose.xlu0.b32.cont [13/16] 0.0, 128
        %2658 = vxpose.xlu0.b32.cont [14/16] 0.0, 128
        %2659 = vxpose.xlu0.b32.cont [15/16] 0.0, 128
        %2660 = vxpose.xlu0.b32.end [16/16] 0.0, 128
        %v2661 = vpop.trf.xlu0
        %v2662 = vpop.trf.xlu0
        %v2663 = vpop.trf.xlu0
        %v2664 = vpop.trf.xlu0
        %v2665 = vpop.trf.xlu0
        %v2666 = vpop.trf.xlu0
        %v2667 = vpop.trf.xlu0
        %v2668 = vpop.trf.xlu0
        %v2669 = vpop.trf.xlu0
        %v2670 = vpop.trf.xlu0
        %v2671 = vpop.trf.xlu0
        %v2672 = vpop.trf.xlu0
        %v2673 = vpop.trf.xlu0
        %v2674 = vpop.trf.xlu0
        %v2675 = vpop.trf.xlu0
        %v2676 = vpop.trf.xlu0
        %2677 = vxpose.xlu0.b32.start [1/16] %v2570, 128
        %2678 = vxpose.xlu0.b32.cont [2/16] %v2572, 128
        %2679 = vxpose.xlu0.b32.cont [3/16] 0.0, 128
        %2680 = vxpose.xlu0.b32.cont [4/16] 0.0, 128
        %2681 = vxpose.xlu0.b32.cont [5/16] 0.0, 128
        %2682 = vxpose.xlu0.b32.cont [6/16] 0.0, 128
        %2683 = vxpose.xlu0.b32.cont [7/16] 0.0, 128
        %2684 = vxpose.xlu0.b32.cont [8/16] 0.0, 128
        %2685 = vxpose.xlu0.b32.cont [9/16] 0.0, 128
        %2686 = vxpose.xlu0.b32.cont [10/16] 0.0, 128
        %2687 = vxpose.xlu0.b32.cont [11/16] 0.0, 128
        %2688 = vxpose.xlu0.b32.cont [12/16] 0.0, 128
        %2689 = vxpose.xlu0.b32.cont [13/16] 0.0, 128
        %2690 = vxpose.xlu0.b32.cont [14/16] 0.0, 128
        %2691 = vxpose.xlu0.b32.cont [15/16] 0.0, 128
        %2692 = vxpose.xlu0.b32.end [16/16] 0.0, 128
        %v2693 = vpop.trf.xlu0
        %v2694 = vpop.trf.xlu0
        %v2695 = vpop.trf.xlu0
        %v2696 = vpop.trf.xlu0
        %v2697 = vpop.trf.xlu0
        %v2698 = vpop.trf.xlu0
        %v2699 = vpop.trf.xlu0
        %v2700 = vpop.trf.xlu0
        %v2701 = vpop.trf.xlu0
        %v2702 = vpop.trf.xlu0
        %v2703 = vpop.trf.xlu0
        %v2704 = vpop.trf.xlu0
        %v2705 = vpop.trf.xlu0
        %v2706 = vpop.trf.xlu0
        %v2707 = vpop.trf.xlu0
        %v2708 = vpop.trf.xlu0
        %s2709 = scalar_lea.vmem %s382, 64
        %v2710 = vld [vmem:[%s2709] sm:$0xff]
        %v2711 = vld [vmem:[%s2709 + $0x8] sm:$0xff]
        %v2712 = vld [vmem:[%s2709 + $0x10] sm:$0xff]
        %v2713 = vld [vmem:[%s2709 + $0x18] sm:$0xff]
        %v2715 = vsel %vm775, %v2597, 0
        %v2718 = vsel %vm775, %v2598, 0
        %v2721 = vsel %vm775, %v2629, 0
        %v2724 = vsel %vm775, %v2630, 0
        %v2727 = vsel %vm775, %v2661, 0
        %v2730 = vsel %vm775, %v2662, 0
        %v2733 = vsel %vm775, %v2693, 0
        %v2736 = vsel %vm775, %v2694, 0
        %2738 = vmatpush.msra.mxu0 0.0
        %2739 = vmatpush.msra.mxu0 0.0
        %2740 = vmatpush.msra.mxu0 0.0
        %2741 = vmatpush.msra.mxu0 0.0
        %2742 = vmatpush.msra.mxu0 0.0
        %2743 = vmatpush.msra.mxu0 0.0
        %2744 = vmatpush.msra.mxu0 0.0
        %2745 = vmatpush.msra.mxu0 0.0
        %2746 = vmatpush.msra.mxu0 0.0
        %2747 = vmatpush.msra.mxu0 0.0
        %2748 = vmatpush.msra.mxu0 0.0
        %2749 = vmatpush.msra.mxu0 0.0
        %2750 = vmatpush.msra.mxu0 0.0
        %2751 = vmatpush.msra.mxu0 0.0
        %2752 = vmatpush.msra.mxu0 %v2713
        %2753 = vmatpush.msra.mxu0 %v2712
        %2754 = vmatmul.f32.gmra.mxu0 %v2715
        %v2755 = vpop.f32.mrf.mxu0
        %v2756 = vadd.f32 0.0, %v2755
        %2757 = vmatmul.f32.gmra.mxu0 %v2718
        %v2758 = vpop.f32.mrf.mxu0
        %v2759 = vadd.f32 0.0, %v2758
        %2760 = vmatmul.f32.gmra.mxu0 %v2721
        %v2761 = vpop.f32.mrf.mxu0
        %v2762 = vadd.f32 0.0, %v2761
        %2763 = vmatmul.f32.gmra.mxu0 %v2724
        %v2764 = vpop.f32.mrf.mxu0
        %v2765 = vadd.f32 0.0, %v2764
        %2766 = vmatmul.f32.gmra.mxu0 %v2727
        %v2767 = vpop.f32.mrf.mxu0
        %v2768 = vadd.f32 0.0, %v2767
        %2769 = vmatmul.f32.gmra.mxu0 %v2730
        %v2770 = vpop.f32.mrf.mxu0
        %v2771 = vadd.f32 0.0, %v2770
        %2772 = vmatmul.f32.gmra.mxu0 %v2733
        %v2773 = vpop.f32.mrf.mxu0
        %v2774 = vadd.f32 0.0, %v2773
        %2775 = vmatmul.f32.gmra.mxu0 %v2736
        %v2776 = vpop.f32.mrf.mxu0
        %v2777 = vadd.f32 0.0, %v2776
        %2778 = vdwg.mxu0
        %v2780 = vsel %vm775, %v2445, 0
        %v2783 = vsel %vm775, %v2446, 0
        %v2786 = vsel %vm775, %v2477, 0
        %v2789 = vsel %vm775, %v2478, 0
        %v2792 = vsel %vm775, %v2509, 0
        %v2795 = vsel %vm775, %v2510, 0
        %v2798 = vsel %vm775, %v2541, 0
        %v2801 = vsel %vm775, %v2542, 0
        %2803 = vmatpush.msra.mxu0 0.0
        %2804 = vmatpush.msra.mxu0 0.0
        %2805 = vmatpush.msra.mxu0 0.0
        %2806 = vmatpush.msra.mxu0 0.0
        %2807 = vmatpush.msra.mxu0 0.0
        %2808 = vmatpush.msra.mxu0 0.0
        %2809 = vmatpush.msra.mxu0 0.0
        %2810 = vmatpush.msra.mxu0 0.0
        %2811 = vmatpush.msra.mxu0 0.0
        %2812 = vmatpush.msra.mxu0 0.0
        %2813 = vmatpush.msra.mxu0 0.0
        %2814 = vmatpush.msra.mxu0 0.0
        %2815 = vmatpush.msra.mxu0 0.0
        %2816 = vmatpush.msra.mxu0 0.0
        %2817 = vmatpush.msra.mxu0 %v2711
        %2818 = vmatpush.msra.mxu0 %v2710
        %2819 = vmatmul.f32.gmra.mxu0 %v2780
        %v2820 = vpop.f32.mrf.mxu0
        %v2821 = vadd.f32 %v2756, %v2820
        %2822 = vmatmul.f32.gmra.mxu0 %v2783
        %v2823 = vpop.f32.mrf.mxu0
        %v2824 = vadd.f32 %v2759, %v2823
        %2825 = vmatmul.f32.gmra.mxu0 %v2786
        %v2826 = vpop.f32.mrf.mxu0
        %v2827 = vadd.f32 %v2762, %v2826
        %2828 = vmatmul.f32.gmra.mxu0 %v2789
        %v2829 = vpop.f32.mrf.mxu0
        %v2830 = vadd.f32 %v2765, %v2829
        %2831 = vmatmul.f32.gmra.mxu0 %v2792
        %v2832 = vpop.f32.mrf.mxu0
        %v2833 = vadd.f32 %v2768, %v2832
        %2834 = vmatmul.f32.gmra.mxu0 %v2795
        %v2835 = vpop.f32.mrf.mxu0
        %v2836 = vadd.f32 %v2771, %v2835
        %2837 = vmatmul.f32.gmra.mxu0 %v2798
        %v2838 = vpop.f32.mrf.mxu0
        %v2839 = vadd.f32 %v2774, %v2838
        %2840 = vmatmul.f32.gmra.mxu0 %v2801
        %v2841 = vpop.f32.mrf.mxu0
        %v2842 = vadd.f32 %v2777, %v2841
        %2843 = vdwg.mxu0
        %v2844 = vmax.f32 %v2821, 0.0
        %v2845 = vmax.f32 %v2824, 0.0
        %v2846 = vmax.f32 %v2827, 0.0
        %v2847 = vmax.f32 %v2830, 0.0
        %v2848 = vmax.f32 %v2833, 0.0
        %v2849 = vmax.f32 %v2836, 0.0
        %v2850 = vmax.f32 %v2839, 0.0
        %v2851 = vmax.f32 %v2842, 0.0
        %s2852 = scalar_lea.vmem %s326, 32 [#allocation7]
        %v2853 = vld [vmem:[%s2852] sm:$0xff]
        %v2854 = vld [vmem:[%s2852 + $0x8] sm:$0xff]
        %v2856 = vsel %vm775, %v2844, 0
        %v2859 = vsel %vm775, %v2845, 0
        %v2862 = vsel %vm775, %v2846, 0
        %v2865 = vsel %vm775, %v2847, 0
        %v2868 = vsel %vm775, %v2848, 0
        %v2871 = vsel %vm775, %v2849, 0
        %v2874 = vsel %vm775, %v2850, 0
        %v2877 = vsel %vm775, %v2851, 0
        %2879 = vmatpush.msra.mxu0 0.0
        %2880 = vmatpush.msra.mxu0 0.0
        %2881 = vmatpush.msra.mxu0 0.0
        %2882 = vmatpush.msra.mxu0 0.0
        %2883 = vmatpush.msra.mxu0 0.0
        %2884 = vmatpush.msra.mxu0 0.0
        %2885 = vmatpush.msra.mxu0 0.0
        %2886 = vmatpush.msra.mxu0 0.0
        %2887 = vmatpush.msra.mxu0 0.0
        %2888 = vmatpush.msra.mxu0 0.0
        %2889 = vmatpush.msra.mxu0 0.0
        %2890 = vmatpush.msra.mxu0 0.0
        %2891 = vmatpush.msra.mxu0 0.0
        %2892 = vmatpush.msra.mxu0 0.0
        %2893 = vmatpush.msra.mxu0 %v2854
        %2894 = vmatpush.msra.mxu0 %v2853
        %2895 = vmatmul.f32.gmra.mxu0 %v2856
        %v2896 = vpop.f32.mrf.mxu0
        %v2897 = vadd.f32 0.0, %v2896
        %2898 = vmatmul.f32.gmra.mxu0 %v2859
        %v2899 = vpop.f32.mrf.mxu0
        %v2900 = vadd.f32 0.0, %v2899
        %2901 = vmatmul.f32.gmra.mxu0 %v2862
        %v2902 = vpop.f32.mrf.mxu0
        %v2903 = vadd.f32 0.0, %v2902
        %2904 = vmatmul.f32.gmra.mxu0 %v2865
        %v2905 = vpop.f32.mrf.mxu0
        %v2906 = vadd.f32 0.0, %v2905
        %2907 = vmatmul.f32.gmra.mxu0 %v2868
        %v2908 = vpop.f32.mrf.mxu0
        %v2909 = vadd.f32 0.0, %v2908
        %2910 = vmatmul.f32.gmra.mxu0 %v2871
        %v2911 = vpop.f32.mrf.mxu0
        %v2912 = vadd.f32 0.0, %v2911
        %2913 = vmatmul.f32.gmra.mxu0 %v2874
        %v2914 = vpop.f32.mrf.mxu0
        %v2915 = vadd.f32 0.0, %v2914
        %2916 = vmatmul.f32.gmra.mxu0 %v2877
        %v2917 = vpop.f32.mrf.mxu0
        %v2918 = vadd.f32 0.0, %v2917
        %2919 = vdwg.mxu0
        %2920 = vxpose.xlu0.b32.start [1/16] %v2897, 128
        %2921 = vxpose.xlu0.b32.cont [2/16] %v2900, 128
        %2922 = vxpose.xlu0.b32.cont [3/16] 0.0, 128
        %2923 = vxpose.xlu0.b32.cont [4/16] 0.0, 128
        %2924 = vxpose.xlu0.b32.cont [5/16] 0.0, 128
        %2925 = vxpose.xlu0.b32.cont [6/16] 0.0, 128
        %2926 = vxpose.xlu0.b32.cont [7/16] 0.0, 128
        %2927 = vxpose.xlu0.b32.cont [8/16] 0.0, 128
        %2928 = vxpose.xlu0.b32.cont [9/16] 0.0, 128
        %2929 = vxpose.xlu0.b32.cont [10/16] 0.0, 128
        %2930 = vxpose.xlu0.b32.cont [11/16] 0.0, 128
        %2931 = vxpose.xlu0.b32.cont [12/16] 0.0, 128
        %2932 = vxpose.xlu0.b32.cont [13/16] 0.0, 128
        %2933 = vxpose.xlu0.b32.cont [14/16] 0.0, 128
        %2934 = vxpose.xlu0.b32.cont [15/16] 0.0, 128
        %2935 = vxpose.xlu0.b32.end [16/16] 0.0, 128
        %v2936 = vpop.trf.xlu0
        %v2937 = vpop.trf.xlu0
        %v2938 = vpop.trf.xlu0
        %v2939 = vpop.trf.xlu0
        %v2940 = vpop.trf.xlu0
        %v2941 = vpop.trf.xlu0
        %v2942 = vpop.trf.xlu0
        %v2943 = vpop.trf.xlu0
        %v2944 = vpop.trf.xlu0
        %v2945 = vpop.trf.xlu0
        %v2946 = vpop.trf.xlu0
        %v2947 = vpop.trf.xlu0
        %v2948 = vpop.trf.xlu0
        %v2949 = vpop.trf.xlu0
        %v2950 = vpop.trf.xlu0
        %v2951 = vpop.trf.xlu0
        %2952 = vxpose.xlu0.b32.start [1/16] %v2903, 128
        %2953 = vxpose.xlu0.b32.cont [2/16] %v2906, 128
        %2954 = vxpose.xlu0.b32.cont [3/16] 0.0, 128
        %2955 = vxpose.xlu0.b32.cont [4/16] 0.0, 128
        %2956 = vxpose.xlu0.b32.cont [5/16] 0.0, 128
        %2957 = vxpose.xlu0.b32.cont [6/16] 0.0, 128
        %2958 = vxpose.xlu0.b32.cont [7/16] 0.0, 128
        %2959 = vxpose.xlu0.b32.cont [8/16] 0.0, 128
        %2960 = vxpose.xlu0.b32.cont [9/16] 0.0, 128
        %2961 = vxpose.xlu0.b32.cont [10/16] 0.0, 128
        %2962 = vxpose.xlu0.b32.cont [11/16] 0.0, 128
        %2963 = vxpose.xlu0.b32.cont [12/16] 0.0, 128
        %2964 = vxpose.xlu0.b32.cont [13/16] 0.0, 128
        %2965 = vxpose.xlu0.b32.cont [14/16] 0.0, 128
        %2966 = vxpose.xlu0.b32.cont [15/16] 0.0, 128
        %2967 = vxpose.xlu0.b32.end [16/16] 0.0, 128
        %v2968 = vpop.trf.xlu0
        %v2969 = vpop.trf.xlu0
        %v2970 = vpop.trf.xlu0
        %v2971 = vpop.trf.xlu0
        %v2972 = vpop.trf.xlu0
        %v2973 = vpop.trf.xlu0
        %v2974 = vpop.trf.xlu0
        %v2975 = vpop.trf.xlu0
        %v2976 = vpop.trf.xlu0
        %v2977 = vpop.trf.xlu0
        %v2978 = vpop.trf.xlu0
        %v2979 = vpop.trf.xlu0
        %v2980 = vpop.trf.xlu0
        %v2981 = vpop.trf.xlu0
        %v2982 = vpop.trf.xlu0
        %v2983 = vpop.trf.xlu0
        %2984 = vxpose.xlu0.b32.start [1/16] %v2909, 128
        %2985 = vxpose.xlu0.b32.cont [2/16] %v2912, 128
        %2986 = vxpose.xlu0.b32.cont [3/16] 0.0, 128
        %2987 = vxpose.xlu0.b32.cont [4/16] 0.0, 128
        %2988 = vxpose.xlu0.b32.cont [5/16] 0.0, 128
        %2989 = vxpose.xlu0.b32.cont [6/16] 0.0, 128
        %2990 = vxpose.xlu0.b32.cont [7/16] 0.0, 128
        %2991 = vxpose.xlu0.b32.cont [8/16] 0.0, 128
        %2992 = vxpose.xlu0.b32.cont [9/16] 0.0, 128
        %2993 = vxpose.xlu0.b32.cont [10/16] 0.0, 128
        %2994 = vxpose.xlu0.b32.cont [11/16] 0.0, 128
        %2995 = vxpose.xlu0.b32.cont [12/16] 0.0, 128
        %2996 = vxpose.xlu0.b32.cont [13/16] 0.0, 128
        %2997 = vxpose.xlu0.b32.cont [14/16] 0.0, 128
        %2998 = vxpose.xlu0.b32.cont [15/16] 0.0, 128
        %2999 = vxpose.xlu0.b32.end [16/16] 0.0, 128
        %v3000 = vpop.trf.xlu0
        %v3001 = vpop.trf.xlu0
        %v3002 = vpop.trf.xlu0
        %v3003 = vpop.trf.xlu0
        %v3004 = vpop.trf.xlu0
        %v3005 = vpop.trf.xlu0
        %v3006 = vpop.trf.xlu0
        %v3007 = vpop.trf.xlu0
        %v3008 = vpop.trf.xlu0
        %v3009 = vpop.trf.xlu0
        %v3010 = vpop.trf.xlu0
        %v3011 = vpop.trf.xlu0
        %v3012 = vpop.trf.xlu0
        %v3013 = vpop.trf.xlu0
        %v3014 = vpop.trf.xlu0
        %v3015 = vpop.trf.xlu0
        %3016 = vxpose.xlu0.b32.start [1/16] %v2915, 128
        %3017 = vxpose.xlu0.b32.cont [2/16] %v2918, 128
        %3018 = vxpose.xlu0.b32.cont [3/16] 0.0, 128
        %3019 = vxpose.xlu0.b32.cont [4/16] 0.0, 128
        %3020 = vxpose.xlu0.b32.cont [5/16] 0.0, 128
        %3021 = vxpose.xlu0.b32.cont [6/16] 0.0, 128
        %3022 = vxpose.xlu0.b32.cont [7/16] 0.0, 128
        %3023 = vxpose.xlu0.b32.cont [8/16] 0.0, 128
        %3024 = vxpose.xlu0.b32.cont [9/16] 0.0, 128
        %3025 = vxpose.xlu0.b32.cont [10/16] 0.0, 128
        %3026 = vxpose.xlu0.b32.cont [11/16] 0.0, 128
        %3027 = vxpose.xlu0.b32.cont [12/16] 0.0, 128
        %3028 = vxpose.xlu0.b32.cont [13/16] 0.0, 128
        %3029 = vxpose.xlu0.b32.cont [14/16] 0.0, 128
        %3030 = vxpose.xlu0.b32.cont [15/16] 0.0, 128
        %3031 = vxpose.xlu0.b32.end [16/16] 0.0, 128
        %v3032 = vpop.trf.xlu0
        %v3033 = vpop.trf.xlu0
        %v3034 = vpop.trf.xlu0
        %v3035 = vpop.trf.xlu0
        %v3036 = vpop.trf.xlu0
        %v3037 = vpop.trf.xlu0
        %v3038 = vpop.trf.xlu0
        %v3039 = vpop.trf.xlu0
        %v3040 = vpop.trf.xlu0
        %v3041 = vpop.trf.xlu0
        %v3042 = vpop.trf.xlu0
        %v3043 = vpop.trf.xlu0
        %v3044 = vpop.trf.xlu0
        %v3045 = vpop.trf.xlu0
        %v3046 = vpop.trf.xlu0
        %v3047 = vpop.trf.xlu0
        %3056 = vrot.lane.b32.xlu0 %v2897, 112
        %v3057 = vpop.permute.xlu0 %3056
        %3058 = vrot.lane.b32.xlu0 %v2900, 112
        %v3059 = vpop.permute.xlu0 %3058
        %3060 = vrot.lane.b32.xlu0 %v2903, 112
        %v3061 = vpop.permute.xlu0 %3060
        %3062 = vrot.lane.b32.xlu0 %v2906, 112
        %v3063 = vpop.permute.xlu0 %3062
        %3064 = vrot.lane.b32.xlu0 %v2909, 112
        %v3065 = vpop.permute.xlu0 %3064
        %3066 = vrot.lane.b32.xlu0 %v2912, 112
        %v3067 = vpop.permute.xlu0 %3066
        %3068 = vrot.lane.b32.xlu0 %v2915, 112
        %v3069 = vpop.permute.xlu0 %3068
        %3070 = vrot.lane.b32.xlu0 %v2918, 112
        %v3071 = vpop.permute.xlu0 %3070
        %3080 = vxpose.xlu0.b32.start [1/16] %v3057, 128
        %3081 = vxpose.xlu0.b32.cont [2/16] %v3059, 128
        %3082 = vxpose.xlu0.b32.cont [3/16] 0.0, 128
        %3083 = vxpose.xlu0.b32.cont [4/16] 0.0, 128
        %3084 = vxpose.xlu0.b32.cont [5/16] 0.0, 128
        %3085 = vxpose.xlu0.b32.cont [6/16] 0.0, 128
        %3086 = vxpose.xlu0.b32.cont [7/16] 0.0, 128
        %3087 = vxpose.xlu0.b32.cont [8/16] 0.0, 128
        %3088 = vxpose.xlu0.b32.cont [9/16] 0.0, 128
        %3089 = vxpose.xlu0.b32.cont [10/16] 0.0, 128
        %3090 = vxpose.xlu0.b32.cont [11/16] 0.0, 128
        %3091 = vxpose.xlu0.b32.cont [12/16] 0.0, 128
        %3092 = vxpose.xlu0.b32.cont [13/16] 0.0, 128
        %3093 = vxpose.xlu0.b32.cont [14/16] 0.0, 128
        %3094 = vxpose.xlu0.b32.cont [15/16] 0.0, 128
        %3095 = vxpose.xlu0.b32.end [16/16] 0.0, 128
        %v3096 = vpop.trf.xlu0
        %v3097 = vpop.trf.xlu0
        %v3098 = vpop.trf.xlu0
        %v3099 = vpop.trf.xlu0
        %v3100 = vpop.trf.xlu0
        %v3101 = vpop.trf.xlu0
        %v3102 = vpop.trf.xlu0
        %v3103 = vpop.trf.xlu0
        %v3104 = vpop.trf.xlu0
        %v3105 = vpop.trf.xlu0
        %v3106 = vpop.trf.xlu0
        %v3107 = vpop.trf.xlu0
        %v3108 = vpop.trf.xlu0
        %v3109 = vpop.trf.xlu0
        %v3110 = vpop.trf.xlu0
        %v3111 = vpop.trf.xlu0
        %3112 = vxpose.xlu0.b32.start [1/16] %v3061, 128
        %3113 = vxpose.xlu0.b32.cont [2/16] %v3063, 128
        %3114 = vxpose.xlu0.b32.cont [3/16] 0.0, 128
        %3115 = vxpose.xlu0.b32.cont [4/16] 0.0, 128
        %3116 = vxpose.xlu0.b32.cont [5/16] 0.0, 128
        %3117 = vxpose.xlu0.b32.cont [6/16] 0.0, 128
        %3118 = vxpose.xlu0.b32.cont [7/16] 0.0, 128
        %3119 = vxpose.xlu0.b32.cont [8/16] 0.0, 128
        %3120 = vxpose.xlu0.b32.cont [9/16] 0.0, 128
        %3121 = vxpose.xlu0.b32.cont [10/16] 0.0, 128
        %3122 = vxpose.xlu0.b32.cont [11/16] 0.0, 128
        %3123 = vxpose.xlu0.b32.cont [12/16] 0.0, 128
        %3124 = vxpose.xlu0.b32.cont [13/16] 0.0, 128
        %3125 = vxpose.xlu0.b32.cont [14/16] 0.0, 128
        %3126 = vxpose.xlu0.b32.cont [15/16] 0.0, 128
        %3127 = vxpose.xlu0.b32.end [16/16] 0.0, 128
        %v3128 = vpop.trf.xlu0
        %v3129 = vpop.trf.xlu0
        %v3130 = vpop.trf.xlu0
        %v3131 = vpop.trf.xlu0
        %v3132 = vpop.trf.xlu0
        %v3133 = vpop.trf.xlu0
        %v3134 = vpop.trf.xlu0
        %v3135 = vpop.trf.xlu0
        %v3136 = vpop.trf.xlu0
        %v3137 = vpop.trf.xlu0
        %v3138 = vpop.trf.xlu0
        %v3139 = vpop.trf.xlu0
        %v3140 = vpop.trf.xlu0
        %v3141 = vpop.trf.xlu0
        %v3142 = vpop.trf.xlu0
        %v3143 = vpop.trf.xlu0
        %3144 = vxpose.xlu0.b32.start [1/16] %v3065, 128
        %3145 = vxpose.xlu0.b32.cont [2/16] %v3067, 128
        %3146 = vxpose.xlu0.b32.cont [3/16] 0.0, 128
        %3147 = vxpose.xlu0.b32.cont [4/16] 0.0, 128
        %3148 = vxpose.xlu0.b32.cont [5/16] 0.0, 128
        %3149 = vxpose.xlu0.b32.cont [6/16] 0.0, 128
        %3150 = vxpose.xlu0.b32.cont [7/16] 0.0, 128
        %3151 = vxpose.xlu0.b32.cont [8/16] 0.0, 128
        %3152 = vxpose.xlu0.b32.cont [9/16] 0.0, 128
        %3153 = vxpose.xlu0.b32.cont [10/16] 0.0, 128
        %3154 = vxpose.xlu0.b32.cont [11/16] 0.0, 128
        %3155 = vxpose.xlu0.b32.cont [12/16] 0.0, 128
        %3156 = vxpose.xlu0.b32.cont [13/16] 0.0, 128
        %3157 = vxpose.xlu0.b32.cont [14/16] 0.0, 128
        %3158 = vxpose.xlu0.b32.cont [15/16] 0.0, 128
        %3159 = vxpose.xlu0.b32.end [16/16] 0.0, 128
        %v3160 = vpop.trf.xlu0
        %v3161 = vpop.trf.xlu0
        %v3162 = vpop.trf.xlu0
        %v3163 = vpop.trf.xlu0
        %v3164 = vpop.trf.xlu0
        %v3165 = vpop.trf.xlu0
        %v3166 = vpop.trf.xlu0
        %v3167 = vpop.trf.xlu0
        %v3168 = vpop.trf.xlu0
        %v3169 = vpop.trf.xlu0
        %v3170 = vpop.trf.xlu0
        %v3171 = vpop.trf.xlu0
        %v3172 = vpop.trf.xlu0
        %v3173 = vpop.trf.xlu0
        %v3174 = vpop.trf.xlu0
        %v3175 = vpop.trf.xlu0
        %3176 = vxpose.xlu0.b32.start [1/16] %v3069, 128
        %3177 = vxpose.xlu0.b32.cont [2/16] %v3071, 128
        %3178 = vxpose.xlu0.b32.cont [3/16] 0.0, 128
        %3179 = vxpose.xlu0.b32.cont [4/16] 0.0, 128
        %3180 = vxpose.xlu0.b32.cont [5/16] 0.0, 128
        %3181 = vxpose.xlu0.b32.cont [6/16] 0.0, 128
        %3182 = vxpose.xlu0.b32.cont [7/16] 0.0, 128
        %3183 = vxpose.xlu0.b32.cont [8/16] 0.0, 128
        %3184 = vxpose.xlu0.b32.cont [9/16] 0.0, 128
        %3185 = vxpose.xlu0.b32.cont [10/16] 0.0, 128
        %3186 = vxpose.xlu0.b32.cont [11/16] 0.0, 128
        %3187 = vxpose.xlu0.b32.cont [12/16] 0.0, 128
        %3188 = vxpose.xlu0.b32.cont [13/16] 0.0, 128
        %3189 = vxpose.xlu0.b32.cont [14/16] 0.0, 128
        %3190 = vxpose.xlu0.b32.cont [15/16] 0.0, 128
        %3191 = vxpose.xlu0.b32.end [16/16] 0.0, 128
        %v3192 = vpop.trf.xlu0
        %v3193 = vpop.trf.xlu0
        %v3194 = vpop.trf.xlu0
        %v3195 = vpop.trf.xlu0
        %v3196 = vpop.trf.xlu0
        %v3197 = vpop.trf.xlu0
        %v3198 = vpop.trf.xlu0
        %v3199 = vpop.trf.xlu0
        %v3200 = vpop.trf.xlu0
        %v3201 = vpop.trf.xlu0
        %v3202 = vpop.trf.xlu0
        %v3203 = vpop.trf.xlu0
        %v3204 = vpop.trf.xlu0
        %v3205 = vpop.trf.xlu0
        %v3206 = vpop.trf.xlu0
        %v3207 = vpop.trf.xlu0
        %s3208 = scalar_lea.vmem %s390, 96
        %v3209 = vld [vmem:[%s3208] sm:$0xff]
        %v3210 = vld [vmem:[%s3208 + $0x8] sm:$0xff]
        %v3211 = vld [vmem:[%s3208 + $0x10] sm:$0xff]
        %v3212 = vld [vmem:[%s3208 + $0x18] sm:$0xff]
        %v3214 = vsel %vm775, %v3096, 0
        %v3217 = vsel %vm775, %v3097, 0
        %v3220 = vsel %vm775, %v3128, 0
        %v3223 = vsel %vm775, %v3129, 0
        %v3226 = vsel %vm775, %v3160, 0
        %v3229 = vsel %vm775, %v3161, 0
        %v3232 = vsel %vm775, %v3192, 0
        %v3235 = vsel %vm775, %v3193, 0
        %3237 = vmatpush.msra.mxu0 0.0
        %3238 = vmatpush.msra.mxu0 0.0
        %3239 = vmatpush.msra.mxu0 0.0
        %3240 = vmatpush.msra.mxu0 0.0
        %3241 = vmatpush.msra.mxu0 0.0
        %3242 = vmatpush.msra.mxu0 0.0
        %3243 = vmatpush.msra.mxu0 0.0
        %3244 = vmatpush.msra.mxu0 0.0
        %3245 = vmatpush.msra.mxu0 0.0
        %3246 = vmatpush.msra.mxu0 0.0
        %3247 = vmatpush.msra.mxu0 0.0
        %3248 = vmatpush.msra.mxu0 0.0
        %3249 = vmatpush.msra.mxu0 0.0
        %3250 = vmatpush.msra.mxu0 0.0
        %3251 = vmatpush.msra.mxu0 %v3212
        %3252 = vmatpush.msra.mxu0 %v3211
        %3253 = vmatmul.f32.gmra.mxu0 %v3214
        %v3254 = vpop.f32.mrf.mxu0
        %v3255 = vadd.f32 0.0, %v3254
        %3256 = vmatmul.f32.gmra.mxu0 %v3217
        %v3257 = vpop.f32.mrf.mxu0
        %v3258 = vadd.f32 0.0, %v3257
        %3259 = vmatmul.f32.gmra.mxu0 %v3220
        %v3260 = vpop.f32.mrf.mxu0
        %v3261 = vadd.f32 0.0, %v3260
        %3262 = vmatmul.f32.gmra.mxu0 %v3223
        %v3263 = vpop.f32.mrf.mxu0
        %v3264 = vadd.f32 0.0, %v3263
        %3265 = vmatmul.f32.gmra.mxu0 %v3226
        %v3266 = vpop.f32.mrf.mxu0
        %v3267 = vadd.f32 0.0, %v3266
        %3268 = vmatmul.f32.gmra.mxu0 %v3229
        %v3269 = vpop.f32.mrf.mxu0
        %v3270 = vadd.f32 0.0, %v3269
        %3271 = vmatmul.f32.gmra.mxu0 %v3232
        %v3272 = vpop.f32.mrf.mxu0
        %v3273 = vadd.f32 0.0, %v3272
        %3274 = vmatmul.f32.gmra.mxu0 %v3235
        %v3275 = vpop.f32.mrf.mxu0
        %v3276 = vadd.f32 0.0, %v3275
        %3277 = vdwg.mxu0
        %v3279 = vsel %vm775, %v2936, 0
        %v3282 = vsel %vm775, %v2937, 0
        %v3285 = vsel %vm775, %v2968, 0
        %v3288 = vsel %vm775, %v2969, 0
        %v3291 = vsel %vm775, %v3000, 0
        %v3294 = vsel %vm775, %v3001, 0
        %v3297 = vsel %vm775, %v3032, 0
        %v3300 = vsel %vm775, %v3033, 0
        %3302 = vmatpush.msra.mxu0 0.0
        %3303 = vmatpush.msra.mxu0 0.0
        %3304 = vmatpush.msra.mxu0 0.0
        %3305 = vmatpush.msra.mxu0 0.0
        %3306 = vmatpush.msra.mxu0 0.0
        %3307 = vmatpush.msra.mxu0 0.0
        %3308 = vmatpush.msra.mxu0 0.0
        %3309 = vmatpush.msra.mxu0 0.0
        %3310 = vmatpush.msra.mxu0 0.0
        %3311 = vmatpush.msra.mxu0 0.0
        %3312 = vmatpush.msra.mxu0 0.0
        %3313 = vmatpush.msra.mxu0 0.0
        %3314 = vmatpush.msra.mxu0 0.0
        %3315 = vmatpush.msra.mxu0 0.0
        %3316 = vmatpush.msra.mxu0 %v3210
        %3317 = vmatpush.msra.mxu0 %v3209
        %3318 = vmatmul.f32.gmra.mxu0 %v3279
        %v3319 = vpop.f32.mrf.mxu0
        %v3320 = vadd.f32 %v3255, %v3319
        %3321 = vmatmul.f32.gmra.mxu0 %v3282
        %v3322 = vpop.f32.mrf.mxu0
        %v3323 = vadd.f32 %v3258, %v3322
        %3324 = vmatmul.f32.gmra.mxu0 %v3285
        %v3325 = vpop.f32.mrf.mxu0
        %v3326 = vadd.f32 %v3261, %v3325
        %3327 = vmatmul.f32.gmra.mxu0 %v3288
        %v3328 = vpop.f32.mrf.mxu0
        %v3329 = vadd.f32 %v3264, %v3328
        %3330 = vmatmul.f32.gmra.mxu0 %v3291
        %v3331 = vpop.f32.mrf.mxu0
        %v3332 = vadd.f32 %v3267, %v3331
        %3333 = vmatmul.f32.gmra.mxu0 %v3294
        %v3334 = vpop.f32.mrf.mxu0
        %v3335 = vadd.f32 %v3270, %v3334
        %3336 = vmatmul.f32.gmra.mxu0 %v3297
        %v3337 = vpop.f32.mrf.mxu0
        %v3338 = vadd.f32 %v3273, %v3337
        %3339 = vmatmul.f32.gmra.mxu0 %v3300
        %v3340 = vpop.f32.mrf.mxu0
        %v3341 = vadd.f32 %v3276, %v3340
        %3342 = vdwg.mxu0
        %v3343 = vld [vmem:[%s3208 + $0x20] sm:$0xff]
        %v3344 = vld [vmem:[%s3208 + $0x28] sm:$0xff]
        %vm3345 = vcmp.ne.f32.partialorder %v3343, 0.0
        %vm3346 = vcmp.ne.f32.partialorder %v3344, 0.0
        %v3347 = vld [vmem:[%s375] sm:$0xff]
        %v3348 = vld [vmem:[%s375 + $0x8] sm:$0xff]
        %v3349 = vld [vmem:[%s375 + $0x10] sm:$0xff]
        %v3350 = vld [vmem:[%s375 + $0x18] sm:$0xff]
        %v3351 = vld [vmem:[%s375 + $0x20] sm:$0xff]
        %v3352 = vld [vmem:[%s375 + $0x28] sm:$0xff]
        %v3353 = vld [vmem:[%s375 + $0x30] sm:$0xff]
        %v3354 = vld [vmem:[%s375 + $0x38] sm:$0xff]
        %v3355 = vsel %vm3345, 1, 0
        %v3356 = vsel %vm3346, 1, 0
        %vm3357 = vcmp.eq.s32.totalorder %v3355, 1
        %vm3358 = vcmp.eq.s32.totalorder %v3356, 1
        %v3359 = vsel %vm3357, %v3320, %v3347
        %v3360 = vsel %vm3358, %v3323, %v3348
        %v3361 = vsel %vm3357, %v3326, %v3349
        %v3362 = vsel %vm3358, %v3329, %v3350
        %v3363 = vsel %vm3357, %v3332, %v3351
        %v3364 = vsel %vm3358, %v3335, %v3352
        %v3365 = vsel %vm3357, %v3338, %v3353
        %v3366 = vsel %vm3358, %v3341, %v3354
        %3367 = vst [vmem:[%s375] sm:$0xff] %v3359
        %3368 = vst [vmem:[%s375 + $0x8] sm:$0xff] %v3360
        %3369 = vst [vmem:[%s375 + $0x10] sm:$0xff] %v3361
        %3370 = vst [vmem:[%s375 + $0x18] sm:$0xff] %v3362
        %3371 = vst [vmem:[%s375 + $0x20] sm:$0xff] %v3363
        %3372 = vst [vmem:[%s375 + $0x28] sm:$0xff] %v3364
        %3373 = vst [vmem:[%s375 + $0x30] sm:$0xff] %v3365
        %3374 = vst [vmem:[%s375 + $0x38] sm:$0xff] %v3366
        %3375 = vrot.lane.b32.xlu0 %v460, 32
        %v3376 = vpop.permute.xlu0 %3375
        %3377 = vrot.lane.b32.xlu0 %v463, 32
        %v3378 = vpop.permute.xlu0 %3377
        %3379 = vrot.lane.b32.xlu0 %v466, 32
        %v3380 = vpop.permute.xlu0 %3379
        %3381 = vrot.lane.b32.xlu0 %v469, 32
        %v3382 = vpop.permute.xlu0 %3381
        %3383 = vrot.lane.b32.xlu0 %v472, 32
        %v3384 = vpop.permute.xlu0 %3383
        %3385 = vrot.lane.b32.xlu0 %v475, 32
        %v3386 = vpop.permute.xlu0 %3385
        %3387 = vrot.lane.b32.xlu0 %v478, 32
        %v3388 = vpop.permute.xlu0 %3387
        %3389 = vrot.lane.b32.xlu0 %v481, 32
        %v3390 = vpop.permute.xlu0 %3389
        %3399 = vxpose.xlu0.b32.start [1/16] %v3376, 128
        %3400 = vxpose.xlu0.b32.cont [2/16] %v3378, 128
        %3401 = vxpose.xlu0.b32.cont [3/16] 0.0, 128
        %3402 = vxpose.xlu0.b32.cont [4/16] 0.0, 128
        %3403 = vxpose.xlu0.b32.cont [5/16] 0.0, 128
        %3404 = vxpose.xlu0.b32.cont [6/16] 0.0, 128
        %3405 = vxpose.xlu0.b32.cont [7/16] 0.0, 128
        %3406 = vxpose.xlu0.b32.cont [8/16] 0.0, 128
        %3407 = vxpose.xlu0.b32.cont [9/16] 0.0, 128
        %3408 = vxpose.xlu0.b32.cont [10/16] 0.0, 128
        %3409 = vxpose.xlu0.b32.cont [11/16] 0.0, 128
        %3410 = vxpose.xlu0.b32.cont [12/16] 0.0, 128
        %3411 = vxpose.xlu0.b32.cont [13/16] 0.0, 128
        %3412 = vxpose.xlu0.b32.cont [14/16] 0.0, 128
        %3413 = vxpose.xlu0.b32.cont [15/16] 0.0, 128
        %3414 = vxpose.xlu0.b32.end [16/16] 0.0, 128
        %v3415 = vpop.trf.xlu0
        %v3416 = vpop.trf.xlu0
        %v3417 = vpop.trf.xlu0
        %v3418 = vpop.trf.xlu0
        %v3419 = vpop.trf.xlu0
        %v3420 = vpop.trf.xlu0
        %v3421 = vpop.trf.xlu0
        %v3422 = vpop.trf.xlu0
        %v3423 = vpop.trf.xlu0
        %v3424 = vpop.trf.xlu0
        %v3425 = vpop.trf.xlu0
        %v3426 = vpop.trf.xlu0
        %v3427 = vpop.trf.xlu0
        %v3428 = vpop.trf.xlu0
        %v3429 = vpop.trf.xlu0
        %v3430 = vpop.trf.xlu0
        %3431 = vxpose.xlu0.b32.start [1/16] %v3380, 128
        %3432 = vxpose.xlu0.b32.cont [2/16] %v3382, 128
        %3433 = vxpose.xlu0.b32.cont [3/16] 0.0, 128
        %3434 = vxpose.xlu0.b32.cont [4/16] 0.0, 128
        %3435 = vxpose.xlu0.b32.cont [5/16] 0.0, 128
        %3436 = vxpose.xlu0.b32.cont [6/16] 0.0, 128
        %3437 = vxpose.xlu0.b32.cont [7/16] 0.0, 128
        %3438 = vxpose.xlu0.b32.cont [8/16] 0.0, 128
        %3439 = vxpose.xlu0.b32.cont [9/16] 0.0, 128
        %3440 = vxpose.xlu0.b32.cont [10/16] 0.0, 128
        %3441 = vxpose.xlu0.b32.cont [11/16] 0.0, 128
        %3442 = vxpose.xlu0.b32.cont [12/16] 0.0, 128
        %3443 = vxpose.xlu0.b32.cont [13/16] 0.0, 128
        %3444 = vxpose.xlu0.b32.cont [14/16] 0.0, 128
        %3445 = vxpose.xlu0.b32.cont [15/16] 0.0, 128
        %3446 = vxpose.xlu0.b32.end [16/16] 0.0, 128
        %v3447 = vpop.trf.xlu0
        %v3448 = vpop.trf.xlu0
        %v3449 = vpop.trf.xlu0
        %v3450 = vpop.trf.xlu0
        %v3451 = vpop.trf.xlu0
        %v3452 = vpop.trf.xlu0
        %v3453 = vpop.trf.xlu0
        %v3454 = vpop.trf.xlu0
        %v3455 = vpop.trf.xlu0
        %v3456 = vpop.trf.xlu0
        %v3457 = vpop.trf.xlu0
        %v3458 = vpop.trf.xlu0
        %v3459 = vpop.trf.xlu0
        %v3460 = vpop.trf.xlu0
        %v3461 = vpop.trf.xlu0
        %v3462 = vpop.trf.xlu0
        %3463 = vxpose.xlu0.b32.start [1/16] %v3384, 128
        %3464 = vxpose.xlu0.b32.cont [2/16] %v3386, 128
        %3465 = vxpose.xlu0.b32.cont [3/16] 0.0, 128
        %3466 = vxpose.xlu0.b32.cont [4/16] 0.0, 128
        %3467 = vxpose.xlu0.b32.cont [5/16] 0.0, 128
        %3468 = vxpose.xlu0.b32.cont [6/16] 0.0, 128
        %3469 = vxpose.xlu0.b32.cont [7/16] 0.0, 128
        %3470 = vxpose.xlu0.b32.cont [8/16] 0.0, 128
        %3471 = vxpose.xlu0.b32.cont [9/16] 0.0, 128
        %3472 = vxpose.xlu0.b32.cont [10/16] 0.0, 128
        %3473 = vxpose.xlu0.b32.cont [11/16] 0.0, 128
        %3474 = vxpose.xlu0.b32.cont [12/16] 0.0, 128
        %3475 = vxpose.xlu0.b32.cont [13/16] 0.0, 128
        %3476 = vxpose.xlu0.b32.cont [14/16] 0.0, 128
        %3477 = vxpose.xlu0.b32.cont [15/16] 0.0, 128
        %3478 = vxpose.xlu0.b32.end [16/16] 0.0, 128
        %v3479 = vpop.trf.xlu0
        %v3480 = vpop.trf.xlu0
        %v3481 = vpop.trf.xlu0
        %v3482 = vpop.trf.xlu0
        %v3483 = vpop.trf.xlu0
        %v3484 = vpop.trf.xlu0
        %v3485 = vpop.trf.xlu0
        %v3486 = vpop.trf.xlu0
        %v3487 = vpop.trf.xlu0
        %v3488 = vpop.trf.xlu0
        %v3489 = vpop.trf.xlu0
        %v3490 = vpop.trf.xlu0
        %v3491 = vpop.trf.xlu0
        %v3492 = vpop.trf.xlu0
        %v3493 = vpop.trf.xlu0
        %v3494 = vpop.trf.xlu0
        %3495 = vxpose.xlu0.b32.start [1/16] %v3388, 128
        %3496 = vxpose.xlu0.b32.cont [2/16] %v3390, 128
        %3497 = vxpose.xlu0.b32.cont [3/16] 0.0, 128
        %3498 = vxpose.xlu0.b32.cont [4/16] 0.0, 128
        %3499 = vxpose.xlu0.b32.cont [5/16] 0.0, 128
        %3500 = vxpose.xlu0.b32.cont [6/16] 0.0, 128
        %3501 = vxpose.xlu0.b32.cont [7/16] 0.0, 128
        %3502 = vxpose.xlu0.b32.cont [8/16] 0.0, 128
        %3503 = vxpose.xlu0.b32.cont [9/16] 0.0, 128
        %3504 = vxpose.xlu0.b32.cont [10/16] 0.0, 128
        %3505 = vxpose.xlu0.b32.cont [11/16] 0.0, 128
        %3506 = vxpose.xlu0.b32.cont [12/16] 0.0, 128
        %3507 = vxpose.xlu0.b32.cont [13/16] 0.0, 128
        %3508 = vxpose.xlu0.b32.cont [14/16] 0.0, 128
        %3509 = vxpose.xlu0.b32.cont [15/16] 0.0, 128
        %3510 = vxpose.xlu0.b32.end [16/16] 0.0, 128
        %v3511 = vpop.trf.xlu0
        %v3512 = vpop.trf.xlu0
        %v3513 = vpop.trf.xlu0
        %v3514 = vpop.trf.xlu0
        %v3515 = vpop.trf.xlu0
        %v3516 = vpop.trf.xlu0
        %v3517 = vpop.trf.xlu0
        %v3518 = vpop.trf.xlu0
        %v3519 = vpop.trf.xlu0
        %v3520 = vpop.trf.xlu0
        %v3521 = vpop.trf.xlu0
        %v3522 = vpop.trf.xlu0
        %v3523 = vpop.trf.xlu0
        %v3524 = vpop.trf.xlu0
        %v3525 = vpop.trf.xlu0
        %v3526 = vpop.trf.xlu0
        %3527 = vrot.lane.b32.xlu0 %v460, 16
        %v3528 = vpop.permute.xlu0 %3527
        %3529 = vrot.lane.b32.xlu0 %v463, 16
        %v3530 = vpop.permute.xlu0 %3529
        %3531 = vrot.lane.b32.xlu0 %v466, 16
        %v3532 = vpop.permute.xlu0 %3531
        %3533 = vrot.lane.b32.xlu0 %v469, 16
        %v3534 = vpop.permute.xlu0 %3533
        %3535 = vrot.lane.b32.xlu0 %v472, 16
        %v3536 = vpop.permute.xlu0 %3535
        %3537 = vrot.lane.b32.xlu0 %v475, 16
        %v3538 = vpop.permute.xlu0 %3537
        %3539 = vrot.lane.b32.xlu0 %v478, 16
        %v3540 = vpop.permute.xlu0 %3539
        %3541 = vrot.lane.b32.xlu0 %v481, 16
        %v3542 = vpop.permute.xlu0 %3541
        %3551 = vxpose.xlu0.b32.start [1/16] %v3528, 128
        %3552 = vxpose.xlu0.b32.cont [2/16] %v3530, 128
        %3553 = vxpose.xlu0.b32.cont [3/16] 0.0, 128
        %3554 = vxpose.xlu0.b32.cont [4/16] 0.0, 128
        %3555 = vxpose.xlu0.b32.cont [5/16] 0.0, 128
        %3556 = vxpose.xlu0.b32.cont [6/16] 0.0, 128
        %3557 = vxpose.xlu0.b32.cont [7/16] 0.0, 128
        %3558 = vxpose.xlu0.b32.cont [8/16] 0.0, 128
        %3559 = vxpose.xlu0.b32.cont [9/16] 0.0, 128
        %3560 = vxpose.xlu0.b32.cont [10/16] 0.0, 128
        %3561 = vxpose.xlu0.b32.cont [11/16] 0.0, 128
        %3562 = vxpose.xlu0.b32.cont [12/16] 0.0, 128
        %3563 = vxpose.xlu0.b32.cont [13/16] 0.0, 128
        %3564 = vxpose.xlu0.b32.cont [14/16] 0.0, 128
        %3565 = vxpose.xlu0.b32.cont [15/16] 0.0, 128
        %3566 = vxpose.xlu0.b32.end [16/16] 0.0, 128
        %v3567 = vpop.trf.xlu0
        %v3568 = vpop.trf.xlu0
        %v3569 = vpop.trf.xlu0
        %v3570 = vpop.trf.xlu0
        %v3571 = vpop.trf.xlu0
        %v3572 = vpop.trf.xlu0
        %v3573 = vpop.trf.xlu0
        %v3574 = vpop.trf.xlu0
        %v3575 = vpop.trf.xlu0
        %v3576 = vpop.trf.xlu0
        %v3577 = vpop.trf.xlu0
        %v3578 = vpop.trf.xlu0
        %v3579 = vpop.trf.xlu0
        %v3580 = vpop.trf.xlu0
        %v3581 = vpop.trf.xlu0
        %v3582 = vpop.trf.xlu0
        %3583 = vxpose.xlu0.b32.start [1/16] %v3532, 128
        %3584 = vxpose.xlu0.b32.cont [2/16] %v3534, 128
        %3585 = vxpose.xlu0.b32.cont [3/16] 0.0, 128
        %3586 = vxpose.xlu0.b32.cont [4/16] 0.0, 128
        %3587 = vxpose.xlu0.b32.cont [5/16] 0.0, 128
        %3588 = vxpose.xlu0.b32.cont [6/16] 0.0, 128
        %3589 = vxpose.xlu0.b32.cont [7/16] 0.0, 128
        %3590 = vxpose.xlu0.b32.cont [8/16] 0.0, 128
        %3591 = vxpose.xlu0.b32.cont [9/16] 0.0, 128
        %3592 = vxpose.xlu0.b32.cont [10/16] 0.0, 128
        %3593 = vxpose.xlu0.b32.cont [11/16] 0.0, 128
        %3594 = vxpose.xlu0.b32.cont [12/16] 0.0, 128
        %3595 = vxpose.xlu0.b32.cont [13/16] 0.0, 128
        %3596 = vxpose.xlu0.b32.cont [14/16] 0.0, 128
        %3597 = vxpose.xlu0.b32.cont [15/16] 0.0, 128
        %3598 = vxpose.xlu0.b32.end [16/16] 0.0, 128
        %v3599 = vpop.trf.xlu0
        %v3600 = vpop.trf.xlu0
        %v3601 = vpop.trf.xlu0
        %v3602 = vpop.trf.xlu0
        %v3603 = vpop.trf.xlu0
        %v3604 = vpop.trf.xlu0
        %v3605 = vpop.trf.xlu0
        %v3606 = vpop.trf.xlu0
        %v3607 = vpop.trf.xlu0
        %v3608 = vpop.trf.xlu0
        %v3609 = vpop.trf.xlu0
        %v3610 = vpop.trf.xlu0
        %v3611 = vpop.trf.xlu0
        %v3612 = vpop.trf.xlu0
        %v3613 = vpop.trf.xlu0
        %v3614 = vpop.trf.xlu0
        %3615 = vxpose.xlu0.b32.start [1/16] %v3536, 128
        %3616 = vxpose.xlu0.b32.cont [2/16] %v3538, 128
        %3617 = vxpose.xlu0.b32.cont [3/16] 0.0, 128
        %3618 = vxpose.xlu0.b32.cont [4/16] 0.0, 128
        %3619 = vxpose.xlu0.b32.cont [5/16] 0.0, 128
        %3620 = vxpose.xlu0.b32.cont [6/16] 0.0, 128
        %3621 = vxpose.xlu0.b32.cont [7/16] 0.0, 128
        %3622 = vxpose.xlu0.b32.cont [8/16] 0.0, 128
        %3623 = vxpose.xlu0.b32.cont [9/16] 0.0, 128
        %3624 = vxpose.xlu0.b32.cont [10/16] 0.0, 128
        %3625 = vxpose.xlu0.b32.cont [11/16] 0.0, 128
        %3626 = vxpose.xlu0.b32.cont [12/16] 0.0, 128
        %3627 = vxpose.xlu0.b32.cont [13/16] 0.0, 128
        %3628 = vxpose.xlu0.b32.cont [14/16] 0.0, 128
        %3629 = vxpose.xlu0.b32.cont [15/16] 0.0, 128
        %3630 = vxpose.xlu0.b32.end [16/16] 0.0, 128
        %v3631 = vpop.trf.xlu0
        %v3632 = vpop.trf.xlu0
        %v3633 = vpop.trf.xlu0
        %v3634 = vpop.trf.xlu0
        %v3635 = vpop.trf.xlu0
        %v3636 = vpop.trf.xlu0
        %v3637 = vpop.trf.xlu0
        %v3638 = vpop.trf.xlu0
        %v3639 = vpop.trf.xlu0
        %v3640 = vpop.trf.xlu0
        %v3641 = vpop.trf.xlu0
        %v3642 = vpop.trf.xlu0
        %v3643 = vpop.trf.xlu0
        %v3644 = vpop.trf.xlu0
        %v3645 = vpop.trf.xlu0
        %v3646 = vpop.trf.xlu0
        %3647 = vxpose.xlu0.b32.start [1/16] %v3540, 128
        %3648 = vxpose.xlu0.b32.cont [2/16] %v3542, 128
        %3649 = vxpose.xlu0.b32.cont [3/16] 0.0, 128
        %3650 = vxpose.xlu0.b32.cont [4/16] 0.0, 128
        %3651 = vxpose.xlu0.b32.cont [5/16] 0.0, 128
        %3652 = vxpose.xlu0.b32.cont [6/16] 0.0, 128
        %3653 = vxpose.xlu0.b32.cont [7/16] 0.0, 128
        %3654 = vxpose.xlu0.b32.cont [8/16] 0.0, 128
        %3655 = vxpose.xlu0.b32.cont [9/16] 0.0, 128
        %3656 = vxpose.xlu0.b32.cont [10/16] 0.0, 128
        %3657 = vxpose.xlu0.b32.cont [11/16] 0.0, 128
        %3658 = vxpose.xlu0.b32.cont [12/16] 0.0, 128
        %3659 = vxpose.xlu0.b32.cont [13/16] 0.0, 128
        %3660 = vxpose.xlu0.b32.cont [14/16] 0.0, 128
        %3661 = vxpose.xlu0.b32.cont [15/16] 0.0, 128
        %3662 = vxpose.xlu0.b32.end [16/16] 0.0, 128
        %v3663 = vpop.trf.xlu0
        %v3664 = vpop.trf.xlu0
        %v3665 = vpop.trf.xlu0
        %v3666 = vpop.trf.xlu0
        %v3667 = vpop.trf.xlu0
        %v3668 = vpop.trf.xlu0
        %v3669 = vpop.trf.xlu0
        %v3670 = vpop.trf.xlu0
        %v3671 = vpop.trf.xlu0
        %v3672 = vpop.trf.xlu0
        %v3673 = vpop.trf.xlu0
        %v3674 = vpop.trf.xlu0
        %v3675 = vpop.trf.xlu0
        %v3676 = vpop.trf.xlu0
        %v3677 = vpop.trf.xlu0
        %v3678 = vpop.trf.xlu0
        %s3679 = scalar_lea.vmem %s382, 96
        %v3680 = vld [vmem:[%s3679] sm:$0xff]
        %v3681 = vld [vmem:[%s3679 + $0x8] sm:$0xff]
        %v3682 = vld [vmem:[%s3679 + $0x10] sm:$0xff]
        %v3683 = vld [vmem:[%s3679 + $0x18] sm:$0xff]
        %v3685 = vsel %vm775, %v3567, 0
        %v3688 = vsel %vm775, %v3568, 0
        %v3691 = vsel %vm775, %v3599, 0
        %v3694 = vsel %vm775, %v3600, 0
        %v3697 = vsel %vm775, %v3631, 0
        %v3700 = vsel %vm775, %v3632, 0
        %v3703 = vsel %vm775, %v3663, 0
        %v3706 = vsel %vm775, %v3664, 0
        %3708 = vmatpush.msra.mxu0 0.0
        %3709 = vmatpush.msra.mxu0 0.0
        %3710 = vmatpush.msra.mxu0 0.0
        %3711 = vmatpush.msra.mxu0 0.0
        %3712 = vmatpush.msra.mxu0 0.0
        %3713 = vmatpush.msra.mxu0 0.0
        %3714 = vmatpush.msra.mxu0 0.0
        %3715 = vmatpush.msra.mxu0 0.0
        %3716 = vmatpush.msra.mxu0 0.0
        %3717 = vmatpush.msra.mxu0 0.0
        %3718 = vmatpush.msra.mxu0 0.0
        %3719 = vmatpush.msra.mxu0 0.0
        %3720 = vmatpush.msra.mxu0 0.0
        %3721 = vmatpush.msra.mxu0 0.0
        %3722 = vmatpush.msra.mxu0 %v3683
        %3723 = vmatpush.msra.mxu0 %v3682
        %3724 = vmatmul.f32.gmra.mxu0 %v3685
        %v3725 = vpop.f32.mrf.mxu0
        %v3726 = vadd.f32 0.0, %v3725
        %3727 = vmatmul.f32.gmra.mxu0 %v3688
        %v3728 = vpop.f32.mrf.mxu0
        %v3729 = vadd.f32 0.0, %v3728
        %3730 = vmatmul.f32.gmra.mxu0 %v3691
        %v3731 = vpop.f32.mrf.mxu0
        %v3732 = vadd.f32 0.0, %v3731
        %3733 = vmatmul.f32.gmra.mxu0 %v3694
        %v3734 = vpop.f32.mrf.mxu0
        %v3735 = vadd.f32 0.0, %v3734
        %3736 = vmatmul.f32.gmra.mxu0 %v3697
        %v3737 = vpop.f32.mrf.mxu0
        %v3738 = vadd.f32 0.0, %v3737
        %3739 = vmatmul.f32.gmra.mxu0 %v3700
        %v3740 = vpop.f32.mrf.mxu0
        %v3741 = vadd.f32 0.0, %v3740
        %3742 = vmatmul.f32.gmra.mxu0 %v3703
        %v3743 = vpop.f32.mrf.mxu0
        %v3744 = vadd.f32 0.0, %v3743
        %3745 = vmatmul.f32.gmra.mxu0 %v3706
        %v3746 = vpop.f32.mrf.mxu0
        %v3747 = vadd.f32 0.0, %v3746
        %3748 = vdwg.mxu0
        %v3750 = vsel %vm775, %v3415, 0
        %v3753 = vsel %vm775, %v3416, 0
        %v3756 = vsel %vm775, %v3447, 0
        %v3759 = vsel %vm775, %v3448, 0
        %v3762 = vsel %vm775, %v3479, 0
        %v3765 = vsel %vm775, %v3480, 0
        %v3768 = vsel %vm775, %v3511, 0
        %v3771 = vsel %vm775, %v3512, 0
        %3773 = vmatpush.msra.mxu0 0.0
        %3774 = vmatpush.msra.mxu0 0.0
        %3775 = vmatpush.msra.mxu0 0.0
        %3776 = vmatpush.msra.mxu0 0.0
        %3777 = vmatpush.msra.mxu0 0.0
        %3778 = vmatpush.msra.mxu0 0.0
        %3779 = vmatpush.msra.mxu0 0.0
        %3780 = vmatpush.msra.mxu0 0.0
        %3781 = vmatpush.msra.mxu0 0.0
        %3782 = vmatpush.msra.mxu0 0.0
        %3783 = vmatpush.msra.mxu0 0.0
        %3784 = vmatpush.msra.mxu0 0.0
        %3785 = vmatpush.msra.mxu0 0.0
        %3786 = vmatpush.msra.mxu0 0.0
        %3787 = vmatpush.msra.mxu0 %v3681
        %3788 = vmatpush.msra.mxu0 %v3680
        %3789 = vmatmul.f32.gmra.mxu0 %v3750
        %v3790 = vpop.f32.mrf.mxu0
        %v3791 = vadd.f32 %v3726, %v3790
        %3792 = vmatmul.f32.gmra.mxu0 %v3753
        %v3793 = vpop.f32.mrf.mxu0
        %v3794 = vadd.f32 %v3729, %v3793
        %3795 = vmatmul.f32.gmra.mxu0 %v3756
        %v3796 = vpop.f32.mrf.mxu0
        %v3797 = vadd.f32 %v3732, %v3796
        %3798 = vmatmul.f32.gmra.mxu0 %v3759
        %v3799 = vpop.f32.mrf.mxu0
        %v3800 = vadd.f32 %v3735, %v3799
        %3801 = vmatmul.f32.gmra.mxu0 %v3762
        %v3802 = vpop.f32.mrf.mxu0
        %v3803 = vadd.f32 %v3738, %v3802
        %3804 = vmatmul.f32.gmra.mxu0 %v3765
        %v3805 = vpop.f32.mrf.mxu0
        %v3806 = vadd.f32 %v3741, %v3805
        %3807 = vmatmul.f32.gmra.mxu0 %v3768
        %v3808 = vpop.f32.mrf.mxu0
        %v3809 = vadd.f32 %v3744, %v3808
        %3810 = vmatmul.f32.gmra.mxu0 %v3771
        %v3811 = vpop.f32.mrf.mxu0
        %v3812 = vadd.f32 %v3747, %v3811
        %3813 = vdwg.mxu0
        %v3814 = vmax.f32 %v3791, 0.0
        %v3815 = vmax.f32 %v3794, 0.0
        %v3816 = vmax.f32 %v3797, 0.0
        %v3817 = vmax.f32 %v3800, 0.0
        %v3818 = vmax.f32 %v3803, 0.0
        %v3819 = vmax.f32 %v3806, 0.0
        %v3820 = vmax.f32 %v3809, 0.0
        %v3821 = vmax.f32 %v3812, 0.0
        %s3822 = scalar_lea.vmem %s326, 48 [#allocation7]
        %v3823 = vld [vmem:[%s3822] sm:$0xff]
        %v3824 = vld [vmem:[%s3822 + $0x8] sm:$0xff]
        %v3826 = vsel %vm775, %v3814, 0
        %v3829 = vsel %vm775, %v3815, 0
        %v3832 = vsel %vm775, %v3816, 0
        %v3835 = vsel %vm775, %v3817, 0
        %v3838 = vsel %vm775, %v3818, 0
        %v3841 = vsel %vm775, %v3819, 0
        %v3844 = vsel %vm775, %v3820, 0
        %v3847 = vsel %vm775, %v3821, 0
        %3849 = vmatpush.msra.mxu0 0.0
        %3850 = vmatpush.msra.mxu0 0.0
        %3851 = vmatpush.msra.mxu0 0.0
        %3852 = vmatpush.msra.mxu0 0.0
        %3853 = vmatpush.msra.mxu0 0.0
        %3854 = vmatpush.msra.mxu0 0.0
        %3855 = vmatpush.msra.mxu0 0.0
        %3856 = vmatpush.msra.mxu0 0.0
        %3857 = vmatpush.msra.mxu0 0.0
        %3858 = vmatpush.msra.mxu0 0.0
        %3859 = vmatpush.msra.mxu0 0.0
        %3860 = vmatpush.msra.mxu0 0.0
        %3861 = vmatpush.msra.mxu0 0.0
        %3862 = vmatpush.msra.mxu0 0.0
        %3863 = vmatpush.msra.mxu0 %v3824
        %3864 = vmatpush.msra.mxu0 %v3823
        %3865 = vmatmul.f32.gmra.mxu0 %v3826
        %v3866 = vpop.f32.mrf.mxu0
        %v3867 = vadd.f32 0.0, %v3866
        %3868 = vmatmul.f32.gmra.mxu0 %v3829
        %v3869 = vpop.f32.mrf.mxu0
        %v3870 = vadd.f32 0.0, %v3869
        %3871 = vmatmul.f32.gmra.mxu0 %v3832
        %v3872 = vpop.f32.mrf.mxu0
        %v3873 = vadd.f32 0.0, %v3872
        %3874 = vmatmul.f32.gmra.mxu0 %v3835
        %v3875 = vpop.f32.mrf.mxu0
        %v3876 = vadd.f32 0.0, %v3875
        %3877 = vmatmul.f32.gmra.mxu0 %v3838
        %v3878 = vpop.f32.mrf.mxu0
        %v3879 = vadd.f32 0.0, %v3878
        %3880 = vmatmul.f32.gmra.mxu0 %v3841
        %v3881 = vpop.f32.mrf.mxu0
        %v3882 = vadd.f32 0.0, %v3881
        %3883 = vmatmul.f32.gmra.mxu0 %v3844
        %v3884 = vpop.f32.mrf.mxu0
        %v3885 = vadd.f32 0.0, %v3884
        %3886 = vmatmul.f32.gmra.mxu0 %v3847
        %v3887 = vpop.f32.mrf.mxu0
        %v3888 = vadd.f32 0.0, %v3887
        %3889 = vdwg.mxu0
        %3890 = vxpose.xlu0.b32.start [1/16] %v3867, 128
        %3891 = vxpose.xlu0.b32.cont [2/16] %v3870, 128
        %3892 = vxpose.xlu0.b32.cont [3/16] 0.0, 128
        %3893 = vxpose.xlu0.b32.cont [4/16] 0.0, 128
        %3894 = vxpose.xlu0.b32.cont [5/16] 0.0, 128
        %3895 = vxpose.xlu0.b32.cont [6/16] 0.0, 128
        %3896 = vxpose.xlu0.b32.cont [7/16] 0.0, 128
        %3897 = vxpose.xlu0.b32.cont [8/16] 0.0, 128
        %3898 = vxpose.xlu0.b32.cont [9/16] 0.0, 128
        %3899 = vxpose.xlu0.b32.cont [10/16] 0.0, 128
        %3900 = vxpose.xlu0.b32.cont [11/16] 0.0, 128
        %3901 = vxpose.xlu0.b32.cont [12/16] 0.0, 128
        %3902 = vxpose.xlu0.b32.cont [13/16] 0.0, 128
        %3903 = vxpose.xlu0.b32.cont [14/16] 0.0, 128
        %3904 = vxpose.xlu0.b32.cont [15/16] 0.0, 128
        %3905 = vxpose.xlu0.b32.end [16/16] 0.0, 128
        %v3906 = vpop.trf.xlu0
        %v3907 = vpop.trf.xlu0
        %v3908 = vpop.trf.xlu0
        %v3909 = vpop.trf.xlu0
        %v3910 = vpop.trf.xlu0
        %v3911 = vpop.trf.xlu0
        %v3912 = vpop.trf.xlu0
        %v3913 = vpop.trf.xlu0
        %v3914 = vpop.trf.xlu0
        %v3915 = vpop.trf.xlu0
        %v3916 = vpop.trf.xlu0
        %v3917 = vpop.trf.xlu0
        %v3918 = vpop.trf.xlu0
        %v3919 = vpop.trf.xlu0
        %v3920 = vpop.trf.xlu0
        %v3921 = vpop.trf.xlu0
        %3922 = vxpose.xlu0.b32.start [1/16] %v3873, 128
        %3923 = vxpose.xlu0.b32.cont [2/16] %v3876, 128
        %3924 = vxpose.xlu0.b32.cont [3/16] 0.0, 128
        %3925 = vxpose.xlu0.b32.cont [4/16] 0.0, 128
        %3926 = vxpose.xlu0.b32.cont [5/16] 0.0, 128
        %3927 = vxpose.xlu0.b32.cont [6/16] 0.0, 128
        %3928 = vxpose.xlu0.b32.cont [7/16] 0.0, 128
        %3929 = vxpose.xlu0.b32.cont [8/16] 0.0, 128
        %3930 = vxpose.xlu0.b32.cont [9/16] 0.0, 128
        %3931 = vxpose.xlu0.b32.cont [10/16] 0.0, 128
        %3932 = vxpose.xlu0.b32.cont [11/16] 0.0, 128
        %3933 = vxpose.xlu0.b32.cont [12/16] 0.0, 128
        %3934 = vxpose.xlu0.b32.cont [13/16] 0.0, 128
        %3935 = vxpose.xlu0.b32.cont [14/16] 0.0, 128
        %3936 = vxpose.xlu0.b32.cont [15/16] 0.0, 128
        %3937 = vxpose.xlu0.b32.end [16/16] 0.0, 128
        %v3938 = vpop.trf.xlu0
        %v3939 = vpop.trf.xlu0
        %v3940 = vpop.trf.xlu0
        %v3941 = vpop.trf.xlu0
        %v3942 = vpop.trf.xlu0
        %v3943 = vpop.trf.xlu0
        %v3944 = vpop.trf.xlu0
        %v3945 = vpop.trf.xlu0
        %v3946 = vpop.trf.xlu0
        %v3947 = vpop.trf.xlu0
        %v3948 = vpop.trf.xlu0
        %v3949 = vpop.trf.xlu0
        %v3950 = vpop.trf.xlu0
        %v3951 = vpop.trf.xlu0
        %v3952 = vpop.trf.xlu0
        %v3953 = vpop.trf.xlu0
        %3954 = vxpose.xlu0.b32.start [1/16] %v3879, 128
        %3955 = vxpose.xlu0.b32.cont [2/16] %v3882, 128
        %3956 = vxpose.xlu0.b32.cont [3/16] 0.0, 128
        %3957 = vxpose.xlu0.b32.cont [4/16] 0.0, 128
        %3958 = vxpose.xlu0.b32.cont [5/16] 0.0, 128
        %3959 = vxpose.xlu0.b32.cont [6/16] 0.0, 128
        %3960 = vxpose.xlu0.b32.cont [7/16] 0.0, 128
        %3961 = vxpose.xlu0.b32.cont [8/16] 0.0, 128
        %3962 = vxpose.xlu0.b32.cont [9/16] 0.0, 128
        %3963 = vxpose.xlu0.b32.cont [10/16] 0.0, 128
        %3964 = vxpose.xlu0.b32.cont [11/16] 0.0, 128
        %3965 = vxpose.xlu0.b32.cont [12/16] 0.0, 128
        %3966 = vxpose.xlu0.b32.cont [13/16] 0.0, 128
        %3967 = vxpose.xlu0.b32.cont [14/16] 0.0, 128
        %3968 = vxpose.xlu0.b32.cont [15/16] 0.0, 128
        %3969 = vxpose.xlu0.b32.end [16/16] 0.0, 128
        %v3970 = vpop.trf.xlu0
        %v3971 = vpop.trf.xlu0
        %v3972 = vpop.trf.xlu0
        %v3973 = vpop.trf.xlu0
        %v3974 = vpop.trf.xlu0
        %v3975 = vpop.trf.xlu0
        %v3976 = vpop.trf.xlu0
        %v3977 = vpop.trf.xlu0
        %v3978 = vpop.trf.xlu0
        %v3979 = vpop.trf.xlu0
        %v3980 = vpop.trf.xlu0
        %v3981 = vpop.trf.xlu0
        %v3982 = vpop.trf.xlu0
        %v3983 = vpop.trf.xlu0
        %v3984 = vpop.trf.xlu0
        %v3985 = vpop.trf.xlu0
        %3986 = vxpose.xlu0.b32.start [1/16] %v3885, 128
        %3987 = vxpose.xlu0.b32.cont [2/16] %v3888, 128
        %3988 = vxpose.xlu0.b32.cont [3/16] 0.0, 128
        %3989 = vxpose.xlu0.b32.cont [4/16] 0.0, 128
        %3990 = vxpose.xlu0.b32.cont [5/16] 0.0, 128
        %3991 = vxpose.xlu0.b32.cont [6/16] 0.0, 128
        %3992 = vxpose.xlu0.b32.cont [7/16] 0.0, 128
        %3993 = vxpose.xlu0.b32.cont [8/16] 0.0, 128
        %3994 = vxpose.xlu0.b32.cont [9/16] 0.0, 128
        %3995 = vxpose.xlu0.b32.cont [10/16] 0.0, 128
        %3996 = vxpose.xlu0.b32.cont [11/16] 0.0, 128
        %3997 = vxpose.xlu0.b32.cont [12/16] 0.0, 128
        %3998 = vxpose.xlu0.b32.cont [13/16] 0.0, 128
        %3999 = vxpose.xlu0.b32.cont [14/16] 0.0, 128
        %4000 = vxpose.xlu0.b32.cont [15/16] 0.0, 128
        %4001 = vxpose.xlu0.b32.end [16/16] 0.0, 128
        %v4002 = vpop.trf.xlu0
        %v4003 = vpop.trf.xlu0
        %v4004 = vpop.trf.xlu0
        %v4005 = vpop.trf.xlu0
        %v4006 = vpop.trf.xlu0
        %v4007 = vpop.trf.xlu0
        %v4008 = vpop.trf.xlu0
        %v4009 = vpop.trf.xlu0
        %v4010 = vpop.trf.xlu0
        %v4011 = vpop.trf.xlu0
        %v4012 = vpop.trf.xlu0
        %v4013 = vpop.trf.xlu0
        %v4014 = vpop.trf.xlu0
        %v4015 = vpop.trf.xlu0
        %v4016 = vpop.trf.xlu0
        %v4017 = vpop.trf.xlu0
        %4026 = vrot.lane.b32.xlu0 %v3867, 112
        %v4027 = vpop.permute.xlu0 %4026
        %4028 = vrot.lane.b32.xlu0 %v3870, 112
        %v4029 = vpop.permute.xlu0 %4028
        %4030 = vrot.lane.b32.xlu0 %v3873, 112
        %v4031 = vpop.permute.xlu0 %4030
        %4032 = vrot.lane.b32.xlu0 %v3876, 112
        %v4033 = vpop.permute.xlu0 %4032
        %4034 = vrot.lane.b32.xlu0 %v3879, 112
        %v4035 = vpop.permute.xlu0 %4034
        %4036 = vrot.lane.b32.xlu0 %v3882, 112
        %v4037 = vpop.permute.xlu0 %4036
        %4038 = vrot.lane.b32.xlu0 %v3885, 112
        %v4039 = vpop.permute.xlu0 %4038
        %4040 = vrot.lane.b32.xlu0 %v3888, 112
        %v4041 = vpop.permute.xlu0 %4040
        %4050 = vxpose.xlu0.b32.start [1/16] %v4027, 128
        %4051 = vxpose.xlu0.b32.cont [2/16] %v4029, 128
        %4052 = vxpose.xlu0.b32.cont [3/16] 0.0, 128
        %4053 = vxpose.xlu0.b32.cont [4/16] 0.0, 128
        %4054 = vxpose.xlu0.b32.cont [5/16] 0.0, 128
        %4055 = vxpose.xlu0.b32.cont [6/16] 0.0, 128
        %4056 = vxpose.xlu0.b32.cont [7/16] 0.0, 128
        %4057 = vxpose.xlu0.b32.cont [8/16] 0.0, 128
        %4058 = vxpose.xlu0.b32.cont [9/16] 0.0, 128
        %4059 = vxpose.xlu0.b32.cont [10/16] 0.0, 128
        %4060 = vxpose.xlu0.b32.cont [11/16] 0.0, 128
        %4061 = vxpose.xlu0.b32.cont [12/16] 0.0, 128
        %4062 = vxpose.xlu0.b32.cont [13/16] 0.0, 128
        %4063 = vxpose.xlu0.b32.cont [14/16] 0.0, 128
        %4064 = vxpose.xlu0.b32.cont [15/16] 0.0, 128
        %4065 = vxpose.xlu0.b32.end [16/16] 0.0, 128
        %v4066 = vpop.trf.xlu0
        %v4067 = vpop.trf.xlu0
        %v4068 = vpop.trf.xlu0
        %v4069 = vpop.trf.xlu0
        %v4070 = vpop.trf.xlu0
        %v4071 = vpop.trf.xlu0
        %v4072 = vpop.trf.xlu0
        %v4073 = vpop.trf.xlu0
        %v4074 = vpop.trf.xlu0
        %v4075 = vpop.trf.xlu0
        %v4076 = vpop.trf.xlu0
        %v4077 = vpop.trf.xlu0
        %v4078 = vpop.trf.xlu0
        %v4079 = vpop.trf.xlu0
        %v4080 = vpop.trf.xlu0
        %v4081 = vpop.trf.xlu0
        %4082 = vxpose.xlu0.b32.start [1/16] %v4031, 128
        %4083 = vxpose.xlu0.b32.cont [2/16] %v4033, 128
        %4084 = vxpose.xlu0.b32.cont [3/16] 0.0, 128
        %4085 = vxpose.xlu0.b32.cont [4/16] 0.0, 128
        %4086 = vxpose.xlu0.b32.cont [5/16] 0.0, 128
        %4087 = vxpose.xlu0.b32.cont [6/16] 0.0, 128
        %4088 = vxpose.xlu0.b32.cont [7/16] 0.0, 128
        %4089 = vxpose.xlu0.b32.cont [8/16] 0.0, 128
        %4090 = vxpose.xlu0.b32.cont [9/16] 0.0, 128
        %4091 = vxpose.xlu0.b32.cont [10/16] 0.0, 128
        %4092 = vxpose.xlu0.b32.cont [11/16] 0.0, 128
        %4093 = vxpose.xlu0.b32.cont [12/16] 0.0, 128
        %4094 = vxpose.xlu0.b32.cont [13/16] 0.0, 128
        %4095 = vxpose.xlu0.b32.cont [14/16] 0.0, 128
        %4096 = vxpose.xlu0.b32.cont [15/16] 0.0, 128
        %4097 = vxpose.xlu0.b32.end [16/16] 0.0, 128
        %v4098 = vpop.trf.xlu0
        %v4099 = vpop.trf.xlu0
        %v4100 = vpop.trf.xlu0
        %v4101 = vpop.trf.xlu0
        %v4102 = vpop.trf.xlu0
        %v4103 = vpop.trf.xlu0
        %v4104 = vpop.trf.xlu0
        %v4105 = vpop.trf.xlu0
        %v4106 = vpop.trf.xlu0
        %v4107 = vpop.trf.xlu0
        %v4108 = vpop.trf.xlu0
        %v4109 = vpop.trf.xlu0
        %v4110 = vpop.trf.xlu0
        %v4111 = vpop.trf.xlu0
        %v4112 = vpop.trf.xlu0
        %v4113 = vpop.trf.xlu0
        %4114 = vxpose.xlu0.b32.start [1/16] %v4035, 128
        %4115 = vxpose.xlu0.b32.cont [2/16] %v4037, 128
        %4116 = vxpose.xlu0.b32.cont [3/16] 0.0, 128
        %4117 = vxpose.xlu0.b32.cont [4/16] 0.0, 128
        %4118 = vxpose.xlu0.b32.cont [5/16] 0.0, 128
        %4119 = vxpose.xlu0.b32.cont [6/16] 0.0, 128
        %4120 = vxpose.xlu0.b32.cont [7/16] 0.0, 128
        %4121 = vxpose.xlu0.b32.cont [8/16] 0.0, 128
        %4122 = vxpose.xlu0.b32.cont [9/16] 0.0, 128
        %4123 = vxpose.xlu0.b32.cont [10/16] 0.0, 128
        %4124 = vxpose.xlu0.b32.cont [11/16] 0.0, 128
        %4125 = vxpose.xlu0.b32.cont [12/16] 0.0, 128
        %4126 = vxpose.xlu0.b32.cont [13/16] 0.0, 128
        %4127 = vxpose.xlu0.b32.cont [14/16] 0.0, 128
        %4128 = vxpose.xlu0.b32.cont [15/16] 0.0, 128
        %4129 = vxpose.xlu0.b32.end [16/16] 0.0, 128
        %v4130 = vpop.trf.xlu0
        %v4131 = vpop.trf.xlu0
        %v4132 = vpop.trf.xlu0
        %v4133 = vpop.trf.xlu0
        %v4134 = vpop.trf.xlu0
        %v4135 = vpop.trf.xlu0
        %v4136 = vpop.trf.xlu0
        %v4137 = vpop.trf.xlu0
        %v4138 = vpop.trf.xlu0
        %v4139 = vpop.trf.xlu0
        %v4140 = vpop.trf.xlu0
        %v4141 = vpop.trf.xlu0
        %v4142 = vpop.trf.xlu0
        %v4143 = vpop.trf.xlu0
        %v4144 = vpop.trf.xlu0
        %v4145 = vpop.trf.xlu0
        %4146 = vxpose.xlu0.b32.start [1/16] %v4039, 128
        %4147 = vxpose.xlu0.b32.cont [2/16] %v4041, 128
        %4148 = vxpose.xlu0.b32.cont [3/16] 0.0, 128
        %4149 = vxpose.xlu0.b32.cont [4/16] 0.0, 128
        %4150 = vxpose.xlu0.b32.cont [5/16] 0.0, 128
        %4151 = vxpose.xlu0.b32.cont [6/16] 0.0, 128
        %4152 = vxpose.xlu0.b32.cont [7/16] 0.0, 128
        %4153 = vxpose.xlu0.b32.cont [8/16] 0.0, 128
        %4154 = vxpose.xlu0.b32.cont [9/16] 0.0, 128
        %4155 = vxpose.xlu0.b32.cont [10/16] 0.0, 128
        %4156 = vxpose.xlu0.b32.cont [11/16] 0.0, 128
        %4157 = vxpose.xlu0.b32.cont [12/16] 0.0, 128
        %4158 = vxpose.xlu0.b32.cont [13/16] 0.0, 128
        %4159 = vxpose.xlu0.b32.cont [14/16] 0.0, 128
        %4160 = vxpose.xlu0.b32.cont [15/16] 0.0, 128
        %4161 = vxpose.xlu0.b32.end [16/16] 0.0, 128
        %v4162 = vpop.trf.xlu0
        %v4163 = vpop.trf.xlu0
        %v4164 = vpop.trf.xlu0
        %v4165 = vpop.trf.xlu0
        %v4166 = vpop.trf.xlu0
        %v4167 = vpop.trf.xlu0
        %v4168 = vpop.trf.xlu0
        %v4169 = vpop.trf.xlu0
        %v4170 = vpop.trf.xlu0
        %v4171 = vpop.trf.xlu0
        %v4172 = vpop.trf.xlu0
        %v4173 = vpop.trf.xlu0
        %v4174 = vpop.trf.xlu0
        %v4175 = vpop.trf.xlu0
        %v4176 = vpop.trf.xlu0
        %v4177 = vpop.trf.xlu0
        %s4178 = scalar_lea.vmem %s390, 144
        %v4179 = vld [vmem:[%s4178] sm:$0xff]
        %v4180 = vld [vmem:[%s4178 + $0x8] sm:$0xff]
        %v4181 = vld [vmem:[%s4178 + $0x10] sm:$0xff]
        %v4182 = vld [vmem:[%s4178 + $0x18] sm:$0xff]
        %v4184 = vsel %vm775, %v4066, 0
        %v4187 = vsel %vm775, %v4067, 0
        %v4190 = vsel %vm775, %v4098, 0
        %v4193 = vsel %vm775, %v4099, 0
        %v4196 = vsel %vm775, %v4130, 0
        %v4199 = vsel %vm775, %v4131, 0
        %v4202 = vsel %vm775, %v4162, 0
        %v4205 = vsel %vm775, %v4163, 0
        %4207 = vmatpush.msra.mxu0 0.0
        %4208 = vmatpush.msra.mxu0 0.0
        %4209 = vmatpush.msra.mxu0 0.0
        %4210 = vmatpush.msra.mxu0 0.0
        %4211 = vmatpush.msra.mxu0 0.0
        %4212 = vmatpush.msra.mxu0 0.0
        %4213 = vmatpush.msra.mxu0 0.0
        %4214 = vmatpush.msra.mxu0 0.0
        %4215 = vmatpush.msra.mxu0 0.0
        %4216 = vmatpush.msra.mxu0 0.0
        %4217 = vmatpush.msra.mxu0 0.0
        %4218 = vmatpush.msra.mxu0 0.0
        %4219 = vmatpush.msra.mxu0 0.0
        %4220 = vmatpush.msra.mxu0 0.0
        %4221 = vmatpush.msra.mxu0 %v4182
        %4222 = vmatpush.msra.mxu0 %v4181
        %4223 = vmatmul.f32.gmra.mxu0 %v4184
        %v4224 = vpop.f32.mrf.mxu0
        %v4225 = vadd.f32 0.0, %v4224
        %4226 = vmatmul.f32.gmra.mxu0 %v4187
        %v4227 = vpop.f32.mrf.mxu0
        %v4228 = vadd.f32 0.0, %v4227
        %4229 = vmatmul.f32.gmra.mxu0 %v4190
        %v4230 = vpop.f32.mrf.mxu0
        %v4231 = vadd.f32 0.0, %v4230
        %4232 = vmatmul.f32.gmra.mxu0 %v4193
        %v4233 = vpop.f32.mrf.mxu0
        %v4234 = vadd.f32 0.0, %v4233
        %4235 = vmatmul.f32.gmra.mxu0 %v4196
        %v4236 = vpop.f32.mrf.mxu0
        %v4237 = vadd.f32 0.0, %v4236
        %4238 = vmatmul.f32.gmra.mxu0 %v4199
        %v4239 = vpop.f32.mrf.mxu0
        %v4240 = vadd.f32 0.0, %v4239
        %4241 = vmatmul.f32.gmra.mxu0 %v4202
        %v4242 = vpop.f32.mrf.mxu0
        %v4243 = vadd.f32 0.0, %v4242
        %4244 = vmatmul.f32.gmra.mxu0 %v4205
        %v4245 = vpop.f32.mrf.mxu0
        %v4246 = vadd.f32 0.0, %v4245
        %4247 = vdwg.mxu0
        %v4249 = vsel %vm775, %v3906, 0
        %v4252 = vsel %vm775, %v3907, 0
        %v4255 = vsel %vm775, %v3938, 0
        %v4258 = vsel %vm775, %v3939, 0
        %v4261 = vsel %vm775, %v3970, 0
        %v4264 = vsel %vm775, %v3971, 0
        %v4267 = vsel %vm775, %v4002, 0
        %v4270 = vsel %vm775, %v4003, 0
        %4272 = vmatpush.msra.mxu0 0.0
        %4273 = vmatpush.msra.mxu0 0.0
        %4274 = vmatpush.msra.mxu0 0.0
        %4275 = vmatpush.msra.mxu0 0.0
        %4276 = vmatpush.msra.mxu0 0.0
        %4277 = vmatpush.msra.mxu0 0.0
        %4278 = vmatpush.msra.mxu0 0.0
        %4279 = vmatpush.msra.mxu0 0.0
        %4280 = vmatpush.msra.mxu0 0.0
        %4281 = vmatpush.msra.mxu0 0.0
        %4282 = vmatpush.msra.mxu0 0.0
        %4283 = vmatpush.msra.mxu0 0.0
        %4284 = vmatpush.msra.mxu0 0.0
        %4285 = vmatpush.msra.mxu0 0.0
        %4286 = vmatpush.msra.mxu0 %v4180
        %4287 = vmatpush.msra.mxu0 %v4179
        %4288 = vmatmul.f32.gmra.mxu0 %v4249
        %v4289 = vpop.f32.mrf.mxu0
        %v4290 = vadd.f32 %v4225, %v4289
        %4291 = vmatmul.f32.gmra.mxu0 %v4252
        %v4292 = vpop.f32.mrf.mxu0
        %v4293 = vadd.f32 %v4228, %v4292
        %4294 = vmatmul.f32.gmra.mxu0 %v4255
        %v4295 = vpop.f32.mrf.mxu0
        %v4296 = vadd.f32 %v4231, %v4295
        %4297 = vmatmul.f32.gmra.mxu0 %v4258
        %v4298 = vpop.f32.mrf.mxu0
        %v4299 = vadd.f32 %v4234, %v4298
        %4300 = vmatmul.f32.gmra.mxu0 %v4261
        %v4301 = vpop.f32.mrf.mxu0
        %v4302 = vadd.f32 %v4237, %v4301
        %4303 = vmatmul.f32.gmra.mxu0 %v4264
        %v4304 = vpop.f32.mrf.mxu0
        %v4305 = vadd.f32 %v4240, %v4304
        %4306 = vmatmul.f32.gmra.mxu0 %v4267
        %v4307 = vpop.f32.mrf.mxu0
        %v4308 = vadd.f32 %v4243, %v4307
        %4309 = vmatmul.f32.gmra.mxu0 %v4270
        %v4310 = vpop.f32.mrf.mxu0
        %v4311 = vadd.f32 %v4246, %v4310
        %4312 = vdwg.mxu0
        %v4313 = vld [vmem:[%s4178 + $0x20] sm:$0xff]
        %v4314 = vld [vmem:[%s4178 + $0x28] sm:$0xff]
        %vm4315 = vcmp.ne.f32.partialorder %v4313, 0.0
        %vm4316 = vcmp.ne.f32.partialorder %v4314, 0.0
        %v4317 = vld [vmem:[%s375] sm:$0xff]
        %v4318 = vld [vmem:[%s375 + $0x8] sm:$0xff]
        %v4319 = vld [vmem:[%s375 + $0x10] sm:$0xff]
        %v4320 = vld [vmem:[%s375 + $0x18] sm:$0xff]
        %v4321 = vld [vmem:[%s375 + $0x20] sm:$0xff]
        %v4322 = vld [vmem:[%s375 + $0x28] sm:$0xff]
        %v4323 = vld [vmem:[%s375 + $0x30] sm:$0xff]
        %v4324 = vld [vmem:[%s375 + $0x38] sm:$0xff]
        %v4325 = vsel %vm4315, 1, 0
        %v4326 = vsel %vm4316, 1, 0
        %vm4327 = vcmp.eq.s32.totalorder %v4325, 1
        %vm4328 = vcmp.eq.s32.totalorder %v4326, 1
        %v4329 = vsel %vm4327, %v4290, %v4317
        %v4330 = vsel %vm4328, %v4293, %v4318
        %v4331 = vsel %vm4327, %v4296, %v4319
        %v4332 = vsel %vm4328, %v4299, %v4320
        %v4333 = vsel %vm4327, %v4302, %v4321
        %v4334 = vsel %vm4328, %v4305, %v4322
        %v4335 = vsel %vm4327, %v4308, %v4323
        %v4336 = vsel %vm4328, %v4311, %v4324
        %4337 = vst [vmem:[%s375] sm:$0xff] %v4329
        %4338 = vst [vmem:[%s375 + $0x8] sm:$0xff] %v4330
        %4339 = vst [vmem:[%s375 + $0x10] sm:$0xff] %v4331
        %4340 = vst [vmem:[%s375 + $0x18] sm:$0xff] %v4332
        %4341 = vst [vmem:[%s375 + $0x20] sm:$0xff] %v4333
        %4342 = vst [vmem:[%s375 + $0x28] sm:$0xff] %v4334
        %4343 = vst [vmem:[%s375 + $0x30] sm:$0xff] %v4335
        %4344 = vst [vmem:[%s375 + $0x38] sm:$0xff] %v4336
        %s4345 = sand.u32 %s175, 1
        %s4346 = scalar_lea.sflag [#allocation4], %s4345
        %s4347 = sand.u32 %s175, 1
        %s4348 = smul.addr %s4347, 64
        %s4349 = scalar_lea.vmem [#allocation8], %s4348
        // Predicated region
        $region57: #{tpu_custom_call.1} parent=39 // pred_check
          %p4350 = pneg %p185
        $region58: #{tpu_custom_call.1} parent=39 // pred_check_branch
          %4352 = sbr.rel (%p4350) target = $region60
        $region59: #{tpu_custom_call.1} parent=39 // pred_region
          %s4353 = smul.u32 4, %s29
          %4355 = vsyncadd %s4346, 0
          %s4356 = smul.addr %s4353, 2
          %s4357 = smul.addr %s4356, 8
          %s4358 = scalar_lea.hbm %s5, %s4357
          %s4359 = sshll.u32 %s4349, 4
          %s4360 = int_to_ptr.vmem [resolvable:$true] %s4359
          %s4361 = sshll.u32 %s4358, 4
          %s4362 = int_to_ptr.hbm [resolvable:$true] %s4361
          %4367 = dma.vmem_to_hbm [thread:$0]  %s4360, 1024, %s4362, %s4346, 128, 128, 8
        $region60: #{tpu_custom_call.1} parent=39 // pred_fallthru
          _
      $region40: #{tpu_custom_call.1} parent=5 // pred_fallthru
        _
      %p4368 = scmp.le.s32.totalorder 2, %s20
      // Predicated region
      $region61: #{tpu_custom_call.1} parent=5 // pred_check
        %p4369 = pneg %p4368
      $region62: #{tpu_custom_call.1} parent=5 // pred_check_branch
        %4371 = sbr.rel (%p4369) target = $region64
      $region63: #{tpu_custom_call.1} parent=5 // pred_region
        %s4372 = ssub.s32 %s20, 2
        // Predicated region
        $region65: #{tpu_custom_call.1} parent=63 // pred_check
          %p4373 = pneg %p191
        $region66: #{tpu_custom_call.1} parent=63 // pred_check_branch
          %4375 = sbr.rel (%p4373) target = $region68
        $region67: #{tpu_custom_call.1} parent=63 // pred_region
          %s4376 = sand.u32 %s176, 1
          %s4377 = scalar_lea.sflag [#allocation4], %s4376
          %s4378 = sand.u32 %s176, 1
          %s4379 = smul.addr %s4378, 64
          %s4380 = scalar_lea.vmem [#allocation8], %s4379
          %4382 = dma.done %s4377, 1024
        $region68: #{tpu_custom_call.1} parent=63 // pred_fallthru
          _
      $region64: #{tpu_custom_call.1} parent=5 // pred_fallthru
        _
    $region6: #{tpu_custom_call.1} parent=1 // loop_footer
      %s24 = sadd.s32 1, %s20
    $region7: #{tpu_custom_call.1} parent=1 // loop_footer_branch
      %19 = sbr.rel target = $region3
    $region8: #{tpu_custom_call.1} parent=1 // loop_exit
      _
    %4383 = vsyncpa [#allocation3], 1
    %s4384 = scalar_lea.sflag [#allocation3], 1
    %4385 = vsyncpa %s4384, 1
    %4386 = vsyncpa [#allocation6], 1
    %s4387 = scalar_lea.sflag [#allocation6], 1
    %4388 = vsyncpa %s4387, 1
    %4389 = vsyncpa [#allocation4], 1
    %s4390 = scalar_lea.sflag [#allocation4], 1
    %4391 = vsyncpa %s4390, 1

// kernel: tpu_custom_call.1
$region0: #{tpu_custom_call.1}
  #allocation0 [shape = 'u32[]', space=smem, size = 0x4, offset = 0x4, fixed_abs, tag = 'smem constant byte address 0x4 - core index']
  #allocation1 [shape = 'u32[72,128]{1,0:T(1,128)}', space=vmem, size = 0x9000, scoped, tag = 'internal scratch']
  %s0 = inlined_call_operand.hbm [shape: f32[8,16,32], index: 0, kind: input, shape index: {}]
  %s1 = inlined_call_operand.hbm [shape: f32[3,32,128], index: 1, kind: input, shape index: {}]
  %s2 = inlined_call_operand.vmem [shape: f32[12,32,16], index: 2, kind: input, shape index: {}]
  %s3 = inlined_call_operand.hbm [shape: f32[12,16,32], index: 3, kind: input, shape index: {}]
  %s4 = inlined_call_operand.vmem [shape: f32[12,48,128], index: 4, kind: input, shape index: {}]
  %s5 = inlined_call_operand.hbm [shape: f32[8,16,128], index: 5, kind: output, shape index: {}]
  %s6 = sld [smem:[#allocation0]]
  $region69: #{tpu_custom_call.1} parent=0
    _
  %s8 = ssub.s32 1, %s6
  %s9 = scalar_select 0, %s8, %s6
  $region1: #{tpu_custom_call.1} parent=0
    #allocation2 [shape = 'u8[65536]{0}', space=vmem, size = 0x10000, scoped, tag = 'input window, operand 0']
    #allocation3 [shape = 's32[2]{0}', space=sflag, size = 0x8, scoped, tag = 'scoped memory for tpu_custom_call.1']
    #allocation4 [shape = 's32[2]{0}', space=sflag, size = 0x8, scoped, tag = 'scoped memory for tpu_custom_call.1']
    #allocation5 [shape = 'u8[32768]{0}', space=vmem, size = 0x8000, scoped, tag = 'input window, operand 1']
    #allocation6 [shape = 's32[2]{0}', space=sflag, size = 0x8, scoped, tag = 'scoped memory for tpu_custom_call.1']
    #allocation7 [shape = 'u8[65536]{0}', space=vmem, size = 0x10000, scoped, tag = 'input window, operand 3']
    #allocation8 [shape = 'u8[65536]{0}', space=vmem, size = 0x10000, scoped, tag = 'output window, operand 0']
    %10 = vsyncpa [#allocation3], 0
    %s11 = scalar_lea.sflag [#allocation3], 1
    %12 = vsyncpa %s11, 0
    %13 = vsyncpa [#allocation6], 0
    %s14 = scalar_lea.sflag [#allocation6], 1
    %15 = vsyncpa %s14, 0
    %16 = vsyncpa [#allocation4], 0
    %s17 = scalar_lea.sflag [#allocation4], 1
    %18 = vsyncpa %s17, 0
    loop: start=0, step=1, limit=8
    $region2: #{tpu_custom_call.1} parent=1 // loop_pre_header
      _
    $region3: #{tpu_custom_call.1} parent=1 // loop_header
      %s20 = sphi 0, %s24
      %p21 = scmp.ge.s32.totalorder %s20, 8
      %s27 = sphi 0, %s39
      %s28 = sphi 0, %s35
      %s29 = sphi 0, %s27
      %s30 = sphi 0, %s28
      %s31 = sphi 0, %s29
      %s32 = sphi 0, %s30
      %s42 = sphi 0, %s44
      %s45 = sphi 0, %s42
      %s46 = sphi 0, %s45
      %s62 = sphi 0, %s46
      %s68 = sphi 0, %s70
      %s71 = sphi 0, %s68
      %s72 = sphi 0, %s71
      %s88 = sphi 0, %s72
      %s94 = sphi 0, %s96
      %s97 = sphi 0, %s94
      %s98 = sphi 0, %s97
      %s114 = sphi 0, %s98
      %s120 = sphi 0, %s122
      %s123 = sphi 0, %s120
      %s124 = sphi 0, %s123
      %s140 = sphi 0, %s124
      %s146 = sphi 0, %s148
      %s149 = sphi 0, %s146
      %s150 = sphi 0, %s149
      %s166 = sphi 0, %s150
      %s172 = sphi 0, %s174
      %s175 = sphi 0, %s172
      %s176 = sphi 0, %s175
      %s192 = sphi 0, %s176
    $region4: #{tpu_custom_call.1} parent=1 // loop_header_branch
      %23 = sbr.rel (%p21) target = $region8
    $region5: #{tpu_custom_call.1} parent=1 // loop_body
      %s25 = ssub.s32 %s20, 1
      %s26 = ssub.s32 %s20, 2
      %s33 = sadd.s32 1, %s28
      %p34 = scmp.ge.s32.totalorder %s33, 3
      %s35 = scalar_select %p34, 0, %s33
      %s36 = sadd.s32 1, %s27
      %s37 = scalar_select %p34, %s36, %s27
      %p38 = scmp.ge.s32.totalorder %s37, 2
      %s39 = scalar_select %p38, 0, %s37
      %s40 = ssub.s32 %s27, %s39
      %p41 = scmp.eq.s32.totalorder %s40, 0
      %s43 = sadd.s32 %s42, 1
      %s44 = scalar_select %p41, %s42, %s43
      %p47 = pneg %p41
      %p48 = scmp.eq.s32.totalorder %s20, 5
      %p49 = por %p47, %p48
      %p50 = scmp.ne.s32.totalorder %s42, %s45
      %p51 = scmp.eq.s32.totalorder %s20, 0
      %p52 = por %p50, %p51
      %p53 = scmp.ne.s32.totalorder %s42, %s45
      %p54 = scmp.eq.s32.totalorder %s25, 5
      %p55 = por %p53, %p54
      %p56 = scmp.ne.s32.totalorder %s45, %s46
      %p57 = scmp.eq.s32.totalorder %s25, 0
      %p58 = por %p56, %p57
      %p59 = scmp.ne.s32.totalorder %s45, %s46
      %p60 = scmp.eq.s32.totalorder %s26, 5
      %p61 = por %p59, %p60
      %p63 = scmp.ne.s32.totalorder %s46, %s62
      %p64 = scmp.eq.s32.totalorder %s26, 0
      %p65 = por %p63, %p64
      %s66 = ssub.s32 %s28, %s35
      %p67 = scmp.eq.s32.totalorder %s66, 0
      %s69 = sadd.s32 %s68, 1
      %s70 = scalar_select %p67, %s68, %s69
      %p73 = pneg %p67
      %p74 = scmp.eq.s32.totalorder %s20, 5
      %p75 = por %p73, %p74
      %p76 = scmp.ne.s32.totalorder %s68, %s71
      %p77 = scmp.eq.s32.totalorder %s20, 0
      %p78 = por %p76, %p77
      %p79 = scmp.ne.s32.totalorder %s68, %s71
      %p80 = scmp.eq.s32.totalorder %s25, 5
      %p81 = por %p79, %p80
      %p82 = scmp.ne.s32.totalorder %s71, %s72
      %p83 = scmp.eq.s32.totalorder %s25, 0
      %p84 = por %p82, %p83
      %p85 = scmp.ne.s32.totalorder %s71, %s72
      %p86 = scmp.eq.s32.totalorder %s26, 5
      %p87 = por %p85, %p86
      %p89 = scmp.ne.s32.totalorder %s72, %s88
      %p90 = scmp.eq.s32.totalorder %s26, 0
      %p91 = por %p89, %p90
      %s92 = ssub.s32 %s28, %s35
      %p93 = scmp.eq.s32.totalorder %s92, 0
      %s95 = sadd.s32 %s94, 1
      %s96 = scalar_select %p93, %s94, %s95
      %p99 = pneg %p93
      %p100 = scmp.eq.s32.totalorder %s20, 5
      %p101 = por %p99, %p100
      %p102 = scmp.ne.s32.totalorder %s94, %s97
      %p103 = scmp.eq.s32.totalorder %s20, 0
      %p104 = por %p102, %p103
      %p105 = scmp.ne.s32.totalorder %s94, %s97
      %p106 = scmp.eq.s32.totalorder %s25, 5
      %p107 = por %p105, %p106
      %p108 = scmp.ne.s32.totalorder %s97, %s98
      %p109 = scmp.eq.s32.totalorder %s25, 0
      %p110 = por %p108, %p109
      %p111 = scmp.ne.s32.totalorder %s97, %s98
      %p112 = scmp.eq.s32.totalorder %s26, 5
      %p113 = por %p111, %p112
      %p115 = scmp.ne.s32.totalorder %s98, %s114
      %p116 = scmp.eq.s32.totalorder %s26, 0
      %p117 = por %p115, %p116
      %s118 = ssub.s32 %s28, %s35
      %p119 = scmp.eq.s32.totalorder %s118, 0
      %s121 = sadd.s32 %s120, 1
      %s122 = scalar_select %p119, %s120, %s121
      %p125 = pneg %p119
      %p126 = scmp.eq.s32.totalorder %s20, 5
      %p127 = por %p125, %p126
      %p128 = scmp.ne.s32.totalorder %s120, %s123
      %p129 = scmp.eq.s32.totalorder %s20, 0
      %p130 = por %p128, %p129
      %p131 = scmp.ne.s32.totalorder %s120, %s123
      %p132 = scmp.eq.s32.totalorder %s25, 5
      %p133 = por %p131, %p132
      %p134 = scmp.ne.s32.totalorder %s123, %s124
      %p135 = scmp.eq.s32.totalorder %s25, 0
      %p136 = por %p134, %p135
      %p137 = scmp.ne.s32.totalorder %s123, %s124
      %p138 = scmp.eq.s32.totalorder %s26, 5
      %p139 = por %p137, %p138
      %p141 = scmp.ne.s32.totalorder %s124, %s140
      %p142 = scmp.eq.s32.totalorder %s26, 0
      %p143 = por %p141, %p142
      %s144 = ssub.s32 %s28, %s35
      %p145 = scmp.eq.s32.totalorder %s144, 0
      %s147 = sadd.s32 %s146, 1
      %s148 = scalar_select %p145, %s146, %s147
      %p151 = pneg %p145
      %p152 = scmp.eq.s32.totalorder %s20, 5
      %p153 = por %p151, %p152
      %p154 = scmp.ne.s32.totalorder %s146, %s149
      %p155 = scmp.eq.s32.totalorder %s20, 0
      %p156 = por %p154, %p155
      %p157 = scmp.ne.s32.totalorder %s146, %s149
      %p158 = scmp.eq.s32.totalorder %s25, 5
      %p159 = por %p157, %p158
      %p160 = scmp.ne.s32.totalorder %s149, %s150
      %p161 = scmp.eq.s32.totalorder %s25, 0
      %p162 = por %p160, %p161
      %p163 = scmp.ne.s32.totalorder %s149, %s150
      %p164 = scmp.eq.s32.totalorder %s26, 5
      %p165 = por %p163, %p164
      %p167 = scmp.ne.s32.totalorder %s150, %s166
      %p168 = scmp.eq.s32.totalorder %s26, 0
      %p169 = por %p167, %p168
      %s170 = ssub.s32 %s27, %s39
      %p171 = scmp.eq.s32.totalorder %s170, 0
      %s173 = sadd.s32 %s172, 1
      %s174 = scalar_select %p171, %s172, %s173
      %p177 = pneg %p171
      %p178 = scmp.eq.s32.totalorder %s20, 5
      %p179 = por %p177, %p178
      %p180 = scmp.ne.s32.totalorder %s172, %s175
      %p181 = scmp.eq.s32.totalorder %s20, 0
      %p182 = por %p180, %p181
      %p183 = scmp.ne.s32.totalorder %s172, %s175
      %p184 = scmp.eq.s32.totalorder %s25, 5
      %p185 = por %p183, %p184
      %p186 = scmp.ne.s32.totalorder %s175, %s176
      %p187 = scmp.eq.s32.totalorder %s25, 0
      %p188 = por %p186, %p187
      %p189 = scmp.ne.s32.totalorder %s175, %s176
      %p190 = scmp.eq.s32.totalorder %s26, 5
      %p191 = por %p189, %p190
      %p193 = scmp.ne.s32.totalorder %s176, %s192
      %p194 = scmp.eq.s32.totalorder %s26, 0
      %p195 = por %p193, %p194
      %p196 = scmp.le.s32.totalorder 1, %s20
      %p197 = scmp.lt.s32.totalorder %s20, 7
      %p198 = pnand %p196, %p197
      %p199 = pneg %p198
      // Predicated region
      $region9: #{tpu_custom_call.1} parent=5 // pred_check
        _
      $region10: #{tpu_custom_call.1} parent=5 // pred_check_branch
        %201 = sbr.rel (%p198) target = $region12
      $region11: #{tpu_custom_call.1} parent=5 // pred_region
        %s202 = ssub.s32 %s20, 1
      $region12: #{tpu_custom_call.1} parent=5 // pred_fallthru
        _
      %p203 = scmp.lt.s32.totalorder %s20, 6
      // Predicated region
      $region13: #{tpu_custom_call.1} parent=5 // pred_check
        %p204 = pneg %p203
      $region14: #{tpu_custom_call.1} parent=5 // pred_check_branch
        %206 = sbr.rel (%p204) target = $region16
      $region15: #{tpu_custom_call.1} parent=5 // pred_region
        // Predicated region
        $region17: #{tpu_custom_call.1} parent=15 // pred_check
          %p207 = pneg %p52
        $region18: #{tpu_custom_call.1} parent=15 // pred_check_branch
          %209 = sbr.rel (%p207) target = $region20
        $region19: #{tpu_custom_call.1} parent=15 // pred_region
          %s210 = sand.u32 %s42, 1
          %s211 = scalar_lea.sflag [#allocation3], %s210
          %s212 = sand.u32 %s42, 1
          %s213 = smul.addr %s212, 64
          %s214 = scalar_lea.vmem [#allocation2], %s213
          %s215 = smul.u32 4, %s27
          %217 = vsyncadd %s211, 0
          %s218 = smul.addr %s215, 2
          %s219 = smul.addr %s218, 8
          %s220 = scalar_lea.hbm %s0, %s219
          %s221 = sshll.u32 %s220, 4
          %s222 = int_to_ptr.hbm [resolvable:$true] %s221
          %s223 = sshll.u32 %s214, 4
          %s224 = int_to_ptr.vmem [resolvable:$true] %s223
          %229 = dma.hbm_to_vmem [thread:$0]  %s222, 1024, %s224, %s211, 128, 128, 8
        $region20: #{tpu_custom_call.1} parent=15 // pred_fallthru
          _
        // Predicated region
        $region21: #{tpu_custom_call.1} parent=15 // pred_check
          %p230 = pneg %p78
        $region22: #{tpu_custom_call.1} parent=15 // pred_check_branch
          %232 = sbr.rel (%p230) target = $region24
        $region23: #{tpu_custom_call.1} parent=15 // pred_region
          %s233 = sand.u32 %s20, 1
          %s234 = scalar_lea.sflag [#allocation6], %s233
          %s235 = sand.u32 %s68, 1
          %s236 = smul.addr %s235, 32
          %s237 = scalar_lea.vmem [#allocation5], %s236
          %239 = vsyncadd %s234, 0
          %s240 = smul.addr %s28, 4
          %s241 = smul.addr %s240, 8
          %s242 = scalar_lea.hbm %s1, %s241
          %s243 = sshll.u32 %s242, 4
          %s244 = int_to_ptr.hbm [resolvable:$true] %s243
          %s245 = sshll.u32 %s237, 4
          %s246 = int_to_ptr.vmem [resolvable:$true] %s245
          %251 = dma.hbm_to_vmem [thread:$0]  %s244, 512, %s246, %s234, 128, 128, 8
        $region24: #{tpu_custom_call.1} parent=15 // pred_fallthru
          _
        // Predicated region
        $region25: #{tpu_custom_call.1} parent=15 // pred_check
          %p252 = pneg %p104
        $region26: #{tpu_custom_call.1} parent=15 // pred_check_branch
          %254 = sbr.rel (%p252) target = $region28
        $region27: #{tpu_custom_call.1} parent=15 // pred_region
          %s255 = smul.u32 4, %s28
          %p256 = scmp.lt.s32.totalorder %s255, 11
          %s257 = scalar_select %p256, %s255, 11
          %s258 = smul.addr %s257, 4
          %s259 = smul.addr %s258, 8
          %s260 = scalar_lea.vmem %s2, %s259
          %s261 = smul.u32 4, %s28
        $region28: #{tpu_custom_call.1} parent=15 // pred_fallthru
          _
        // Predicated region
        $region29: #{tpu_custom_call.1} parent=15 // pred_check
          %p262 = pneg %p130
        $region30: #{tpu_custom_call.1} parent=15 // pred_check_branch
          %264 = sbr.rel (%p262) target = $region32
        $region31: #{tpu_custom_call.1} parent=15 // pred_region
          %s265 = sand.u32 %s20, 1
          %s266 = scalar_lea.sflag [#allocation6], %s265
          %s267 = sand.u32 %s120, 1
          %s268 = smul.addr %s267, 64
          %s269 = scalar_lea.vmem [#allocation7], %s268
          %s270 = smul.u32 4, %s28
          %272 = vsyncadd %s266, 0
          %s273 = smul.addr %s270, 2
          %s274 = smul.addr %s273, 8
          %s275 = scalar_lea.hbm %s3, %s274
          %s276 = sshll.u32 %s275, 4
          %s277 = int_to_ptr.hbm [resolvable:$true] %s276
          %s278 = sshll.u32 %s269, 4
          %s279 = int_to_ptr.vmem [resolvable:$true] %s278
          %284 = dma.hbm_to_vmem [thread:$0]  %s277, 1024, %s279, %s266, 128, 128, 8
        $region32: #{tpu_custom_call.1} parent=15 // pred_fallthru
          _
        // Predicated region
        $region33: #{tpu_custom_call.1} parent=15 // pred_check
          %p285 = pneg %p156
        $region34: #{tpu_custom_call.1} parent=15 // pred_check_branch
          %287 = sbr.rel (%p285) target = $region36
        $region35: #{tpu_custom_call.1} parent=15 // pred_region
          %s288 = smul.u32 4, %s28
          %p289 = scmp.lt.s32.totalorder %s288, 11
          %s290 = scalar_select %p289, %s288, 11
          %s291 = smul.addr %s290, 6
          %s292 = smul.addr %s291, 8
          %s293 = scalar_lea.vmem %s4, %s292
          %s294 = smul.u32 4, %s28
        $region36: #{tpu_custom_call.1} parent=15 // pred_fallthru
          _
      $region16: #{tpu_custom_call.1} parent=5 // pred_fallthru
        _
      %p295 = scmp.le.s32.totalorder 1, %s20
      %p296 = scmp.lt.s32.totalorder %s20, 7
      %p297 = pnand %p295, %p296
      %p298 = pneg %p297
      // Predicated region
      $region37: #{tpu_custom_call.1} parent=5 // pred_check
        _
      $region38: #{tpu_custom_call.1} parent=5 // pred_check_branch
        %300 = sbr.rel (%p297) target = $region40
      $region39: #{tpu_custom_call.1} parent=5 // pred_region
        %s301 = ssub.s32 %s20, 1
        %s302 = sand.u32 %s45, 1
        %s303 = scalar_lea.sflag [#allocation3], %s302
        %s304 = sand.u32 %s45, 1
        %s305 = smul.addr %s304, 64
        %s306 = scalar_lea.vmem [#allocation2], %s305
        // Predicated region
        $region41: #{tpu_custom_call.1} parent=39 // pred_check
          %p307 = pneg %p58
        $region42: #{tpu_custom_call.1} parent=39 // pred_check_branch
          %309 = sbr.rel (%p307) target = $region44
        $region43: #{tpu_custom_call.1} parent=39 // pred_region
          %311 = dma.done %s303, 1024
        $region44: #{tpu_custom_call.1} parent=39 // pred_fallthru
          _
        %s312 = sand.u32 %s25, 1
        %s313 = scalar_lea.sflag [#allocation6], %s312
        %s314 = sand.u32 %s71, 1
        %s315 = smul.addr %s314, 32
        %s316 = scalar_lea.vmem [#allocation5], %s315
        // Predicated region
        $region45: #{tpu_custom_call.1} parent=39 // pred_check
          %p317 = pneg %p84
        $region46: #{tpu_custom_call.1} parent=39 // pred_check_branch
          %319 = sbr.rel (%p317) target = $region48
        $region47: #{tpu_custom_call.1} parent=39 // pred_region
          %321 = dma.done %s313, 512
        $region48: #{tpu_custom_call.1} parent=39 // pred_fallthru
          _
        %s322 = sand.u32 %s25, 1
        %s323 = scalar_lea.sflag [#allocation6], %s322
        %s324 = sand.u32 %s123, 1
        %s325 = smul.addr %s324, 64
        %s326 = scalar_lea.vmem [#allocation7], %s325
        // Predicated region
        $region49: #{tpu_custom_call.1} parent=39 // pred_check
          %p327 = pneg %p136
        $region50: #{tpu_custom_call.1} parent=39 // pred_check_branch
          %329 = sbr.rel (%p327) target = $region52
        $region51: #{tpu_custom_call.1} parent=39 // pred_region
          %331 = dma.done %s323, 1024
        $region52: #{tpu_custom_call.1} parent=39 // pred_fallthru
          _
        %s332 = sand.u32 %s45, 1
        %s333 = scalar_lea.sflag [#allocation3], %s332
        %s334 = sand.u32 %s45, 1
        %s335 = smul.addr %s334, 64
        %s336 = scalar_lea.vmem [#allocation2], %s335
        %p337 = pneg %p58
        %p338 = pneg %p55
        %s339 = sand.u32 %s25, 1
        %s340 = scalar_lea.sflag [#allocation6], %s339
        %s341 = sand.u32 %s71, 1
        %s342 = smul.addr %s341, 32
        %s343 = scalar_lea.vmem [#allocation5], %s342
        %p344 = pneg %p84
        %p345 = pneg %p81
        %s346 = smul.u32 4, %s30
        %p347 = scmp.lt.s32.totalorder %s346, 11
        %s348 = scalar_select %p347, %s346, 11
        %s349 = smul.addr %s348, 4
        %s350 = smul.addr %s349, 8
        %s351 = scalar_lea.vmem %s2, %s350
        %p352 = pneg %p110
        %p353 = pneg %p107
        %s354 = sand.u32 %s25, 1
        %s355 = scalar_lea.sflag [#allocation6], %s354
        %s356 = sand.u32 %s123, 1
        %s357 = smul.addr %s356, 64
        %s358 = scalar_lea.vmem [#allocation7], %s357
        %p359 = pneg %p136
        %p360 = pneg %p133
        %s361 = smul.u32 4, %s30
        %p362 = scmp.lt.s32.totalorder %s361, 11
        %s363 = scalar_select %p362, %s361, 11
        %s364 = smul.addr %s363, 6
        %s365 = smul.addr %s364, 8
        %s366 = scalar_lea.vmem %s4, %s365
        %p367 = pneg %p162
        %p368 = pneg %p159
        %p369 = pneg %p188
        %p370 = pneg %p185
        %s371 = sand.u32 %s175, 1
        %s372 = scalar_lea.sflag [#allocation4], %s371
        %s373 = sand.u32 %s175, 1
        %s374 = smul.addr %s373, 64
        %s375 = scalar_lea.vmem [#allocation8], %s374
        %s376 = smul.u32 4, %s29
        %s377 = smul.u32 4, %s30
        %p378 = scmp.lt.s32.totalorder %s377, 11
        %s379 = scalar_select %p378, %s377, 11
        %s380 = smul.addr %s379, 4
        %s381 = smul.addr %s380, 8
        %s382 = scalar_lea.vmem %s2, %s381
        %s383 = smul.u32 4, %s30
        %s384 = smul.u32 4, %s30
        %s385 = smul.u32 4, %s30
        %p386 = scmp.lt.s32.totalorder %s385, 11
        %s387 = scalar_select %p386, %s385, 11
        %s388 = smul.addr %s387, 6
        %s389 = smul.addr %s388, 8
        %s390 = scalar_lea.vmem %s4, %s389
        %s391 = smul.u32 4, %s30
        %s392 = smul.u32 4, %s29
        %p393 = scmp.eq.s32.totalorder %s30, 0
        // Predicated region
        $region53: #{tpu_custom_call.1} parent=39 // pred_check
          %p394 = pneg %p393
        $region54: #{tpu_custom_call.1} parent=39 // pred_check_branch
          %396 = sbr.rel (%p394) target = $region56
        $region55: #{tpu_custom_call.1} parent=39 // pred_region
          %397 = vst [vmem:[%s375] sm:$0xff] 0.0
          %398 = vst [vmem:[%s375 + $0x8] sm:$0xff] 0.0
          %399 = vst [vmem:[%s375 + $0x10] sm:$0xff] 0.0
          %400 = vst [vmem:[%s375 + $0x18] sm:$0xff] 0.0
          %401 = vst [vmem:[%s375 + $0x20] sm:$0xff] 0.0
          %402 = vst [vmem:[%s375 + $0x28] sm:$0xff] 0.0
          %403 = vst [vmem:[%s375 + $0x30] sm:$0xff] 0.0
          %404 = vst [vmem:[%s375 + $0x38] sm:$0xff] 0.0
        $region56: #{tpu_custom_call.1} parent=39 // pred_fallthru
          _
        %v405 = vld [vmem:[%s306] sm:$0xff]
        %v406 = vld [vmem:[%s306 + $0x8] sm:$0xff]
        %v407 = vld [vmem:[%s306 + $0x10] sm:$0xff]
        %v408 = vld [vmem:[%s306 + $0x18] sm:$0xff]
        %v409 = vld [vmem:[%s306 + $0x20] sm:$0xff]
        %v410 = vld [vmem:[%s306 + $0x28] sm:$0xff]
        %v411 = vld [vmem:[%s306 + $0x30] sm:$0xff]
        %v412 = vld [vmem:[%s306 + $0x38] sm:$0xff]
        %v413 = vld [vmem:[%s316] sm:$0xff]
        %v414 = vld [vmem:[%s316 + $0x8] sm:$0xff]
        %v415 = vld [vmem:[%s316 + $0x10] sm:$0xff]
        %v416 = vld [vmem:[%s316 + $0x18] sm:$0xff]
        %vm417 = vcmask 261120
        %v419 = vsel %vm417, %v405, 0
        %v422 = vsel %vm417, %v406, 0
        %v425 = vsel %vm417, %v407, 0
        %v428 = vsel %vm417, %v408, 0
        %v431 = vsel %vm417, %v409, 0
        %v434 = vsel %vm417, %v410, 0
        %v437 = vsel %vm417, %v411, 0
        %v440 = vsel %vm417, %v412, 0
        %442 = vmatpush.msra.mxu0 0.0
        %443 = vmatpush.msra.mxu0 0.0
        %444 = vmatpush.msra.mxu0 0.0
        %445 = vmatpush.msra.mxu0 0.0
        %446 = vmatpush.msra.mxu0 0.0
        %447 = vmatpush.msra.mxu0 0.0
        %448 = vmatpush.msra.mxu0 0.0
        %449 = vmatpush.msra.mxu0 0.0
        %450 = vmatpush.msra.mxu0 0.0
        %451 = vmatpush.msra.mxu0 0.0
        %452 = vmatpush.msra.mxu0 0.0
        %453 = vmatpush.msra.mxu0 0.0
        %454 = vmatpush.msra.mxu0 %v416
        %455 = vmatpush.msra.mxu0 %v415
        %456 = vmatpush.msra.mxu0 %v414
        %457 = vmatpush.msra.mxu0 %v413
        %458 = vmatmul.f32.gmra.mxu0 %v419
        %v459 = vpop.f32.mrf.mxu0
        %v460 = vadd.f32 0.0, %v459
        %461 = vmatmul.f32.gmra.mxu0 %v422
        %v462 = vpop.f32.mrf.mxu0
        %v463 = vadd.f32 0.0, %v462
        %464 = vmatmul.f32.gmra.mxu0 %v425
        %v465 = vpop.f32.mrf.mxu0
        %v466 = vadd.f32 0.0, %v465
        %467 = vmatmul.f32.gmra.mxu0 %v428
        %v468 = vpop.f32.mrf.mxu0
        %v469 = vadd.f32 0.0, %v468
        %470 = vmatmul.f32.gmra.mxu0 %v431
        %v471 = vpop.f32.mrf.mxu0
        %v472 = vadd.f32 0.0, %v471
        %473 = vmatmul.f32.gmra.mxu0 %v434
        %v474 = vpop.f32.mrf.mxu0
        %v475 = vadd.f32 0.0, %v474
        %476 = vmatmul.f32.gmra.mxu0 %v437
        %v477 = vpop.f32.mrf.mxu0
        %v478 = vadd.f32 0.0, %v477
        %479 = vmatmul.f32.gmra.mxu0 %v440
        %v480 = vpop.f32.mrf.mxu0
        %v481 = vadd.f32 0.0, %v480
        %482 = vdwg.mxu0
        %483 = vxpose.xlu0.b32.start [1/16] %v460, 128
        %484 = vxpose.xlu0.b32.cont [2/16] %v463, 128
        %485 = vxpose.xlu0.b32.cont [3/16] 0.0, 128
        %486 = vxpose.xlu0.b32.cont [4/16] 0.0, 128
        %487 = vxpose.xlu0.b32.cont [5/16] 0.0, 128
        %488 = vxpose.xlu0.b32.cont [6/16] 0.0, 128
        %489 = vxpose.xlu0.b32.cont [7/16] 0.0, 128
        %490 = vxpose.xlu0.b32.cont [8/16] 0.0, 128
        %491 = vxpose.xlu0.b32.cont [9/16] 0.0, 128
        %492 = vxpose.xlu0.b32.cont [10/16] 0.0, 128
        %493 = vxpose.xlu0.b32.cont [11/16] 0.0, 128
        %494 = vxpose.xlu0.b32.cont [12/16] 0.0, 128
        %495 = vxpose.xlu0.b32.cont [13/16] 0.0, 128
        %496 = vxpose.xlu0.b32.cont [14/16] 0.0, 128
        %497 = vxpose.xlu0.b32.cont [15/16] 0.0, 128
        %498 = vxpose.xlu0.b32.end [16/16] 0.0, 128
        %v499 = vpop.trf.xlu0
        %v500 = vpop.trf.xlu0
        %v501 = vpop.trf.xlu0
        %v502 = vpop.trf.xlu0
        %v503 = vpop.trf.xlu0
        %v504 = vpop.trf.xlu0
        %v505 = vpop.trf.xlu0
        %v506 = vpop.trf.xlu0
        %v507 = vpop.trf.xlu0
        %v508 = vpop.trf.xlu0
        %v509 = vpop.trf.xlu0
        %v510 = vpop.trf.xlu0
        %v511 = vpop.trf.xlu0
        %v512 = vpop.trf.xlu0
        %v513 = vpop.trf.xlu0
        %v514 = vpop.trf.xlu0
        %515 = vxpose.xlu0.b32.start [1/16] %v466, 128
        %516 = vxpose.xlu0.b32.cont [2/16] %v469, 128
        %517 = vxpose.xlu0.b32.cont [3/16] 0.0, 128
        %518 = vxpose.xlu0.b32.cont [4/16] 0.0, 128
        %519 = vxpose.xlu0.b32.cont [5/16] 0.0, 128
        %520 = vxpose.xlu0.b32.cont [6/16] 0.0, 128
        %521 = vxpose.xlu0.b32.cont [7/16] 0.0, 128
        %522 = vxpose.xlu0.b32.cont [8/16] 0.0, 128
        %523 = vxpose.xlu0.b32.cont [9/16] 0.0, 128
        %524 = vxpose.xlu0.b32.cont [10/16] 0.0, 128
        %525 = vxpose.xlu0.b32.cont [11/16] 0.0, 128
        %526 = vxpose.xlu0.b32.cont [12/16] 0.0, 128
        %527 = vxpose.xlu0.b32.cont [13/16] 0.0, 128
        %528 = vxpose.xlu0.b32.cont [14/16] 0.0, 128
        %529 = vxpose.xlu0.b32.cont [15/16] 0.0, 128
        %530 = vxpose.xlu0.b32.end [16/16] 0.0, 128
        %v531 = vpop.trf.xlu0
        %v532 = vpop.trf.xlu0
        %v533 = vpop.trf.xlu0
        %v534 = vpop.trf.xlu0
        %v535 = vpop.trf.xlu0
        %v536 = vpop.trf.xlu0
        %v537 = vpop.trf.xlu0
        %v538 = vpop.trf.xlu0
        %v539 = vpop.trf.xlu0
        %v540 = vpop.trf.xlu0
        %v541 = vpop.trf.xlu0
        %v542 = vpop.trf.xlu0
        %v543 = vpop.trf.xlu0
        %v544 = vpop.trf.xlu0
        %v545 = vpop.trf.xlu0
        %v546 = vpop.trf.xlu0
        %547 = vxpose.xlu0.b32.start [1/16] %v472, 128
        %548 = vxpose.xlu0.b32.cont [2/16] %v475, 128
        %549 = vxpose.xlu0.b32.cont [3/16] 0.0, 128
        %550 = vxpose.xlu0.b32.cont [4/16] 0.0, 128
        %551 = vxpose.xlu0.b32.cont [5/16] 0.0, 128
        %552 = vxpose.xlu0.b32.cont [6/16] 0.0, 128
        %553 = vxpose.xlu0.b32.cont [7/16] 0.0, 128
        %554 = vxpose.xlu0.b32.cont [8/16] 0.0, 128
        %555 = vxpose.xlu0.b32.cont [9/16] 0.0, 128
        %556 = vxpose.xlu0.b32.cont [10/16] 0.0, 128
        %557 = vxpose.xlu0.b32.cont [11/16] 0.0, 128
        %558 = vxpose.xlu0.b32.cont [12/16] 0.0, 128
        %559 = vxpose.xlu0.b32.cont [13/16] 0.0, 128
        %560 = vxpose.xlu0.b32.cont [14/16] 0.0, 128
        %561 = vxpose.xlu0.b32.cont [15/16] 0.0, 128
        %562 = vxpose.xlu0.b32.end [16/16] 0.0, 128
        %v563 = vpop.trf.xlu0
        %v564 = vpop.trf.xlu0
        %v565 = vpop.trf.xlu0
        %v566 = vpop.trf.xlu0
        %v567 = vpop.trf.xlu0
        %v568 = vpop.trf.xlu0
        %v569 = vpop.trf.xlu0
        %v570 = vpop.trf.xlu0
        %v571 = vpop.trf.xlu0
        %v572 = vpop.trf.xlu0
        %v573 = vpop.trf.xlu0
        %v574 = vpop.trf.xlu0
        %v575 = vpop.trf.xlu0
        %v576 = vpop.trf.xlu0
        %v577 = vpop.trf.xlu0
        %v578 = vpop.trf.xlu0
        %579 = vxpose.xlu0.b32.start [1/16] %v478, 128
        %580 = vxpose.xlu0.b32.cont [2/16] %v481, 128
        %581 = vxpose.xlu0.b32.cont [3/16] 0.0, 128
        %582 = vxpose.xlu0.b32.cont [4/16] 0.0, 128
        %583 = vxpose.xlu0.b32.cont [5/16] 0.0, 128
        %584 = vxpose.xlu0.b32.cont [6/16] 0.0, 128
        %585 = vxpose.xlu0.b32.cont [7/16] 0.0, 128
        %586 = vxpose.xlu0.b32.cont [8/16] 0.0, 128
        %587 = vxpose.xlu0.b32.cont [9/16] 0.0, 128
        %588 = vxpose.xlu0.b32.cont [10/16] 0.0, 128
        %589 = vxpose.xlu0.b32.cont [11/16] 0.0, 128
        %590 = vxpose.xlu0.b32.cont [12/16] 0.0, 128
        %591 = vxpose.xlu0.b32.cont [13/16] 0.0, 128
        %592 = vxpose.xlu0.b32.cont [14/16] 0.0, 128
        %593 = vxpose.xlu0.b32.cont [15/16] 0.0, 128
        %594 = vxpose.xlu0.b32.end [16/16] 0.0, 128
        %v595 = vpop.trf.xlu0
        %v596 = vpop.trf.xlu0
        %v597 = vpop.trf.xlu0
        %v598 = vpop.trf.xlu0
        %v599 = vpop.trf.xlu0
        %v600 = vpop.trf.xlu0
        %v601 = vpop.trf.xlu0
        %v602 = vpop.trf.xlu0
        %v603 = vpop.trf.xlu0
        %v604 = vpop.trf.xlu0
        %v605 = vpop.trf.xlu0
        %v606 = vpop.trf.xlu0
        %v607 = vpop.trf.xlu0
        %v608 = vpop.trf.xlu0
        %v609 = vpop.trf.xlu0
        %v610 = vpop.trf.xlu0
        %613 = vrot.lane.b32.xlu0 %v460, 112
        %v614 = vpop.permute.xlu0 %613
        %615 = vrot.lane.b32.xlu0 %v463, 112
        %v616 = vpop.permute.xlu0 %615
        %619 = vxpose.xlu0.b32.start [1/16] %v614, 128
        %620 = vxpose.xlu0.b32.cont [2/16] %v616, 128
        %621 = vxpose.xlu0.b32.cont [3/16] 0.0, 128
        %622 = vxpose.xlu0.b32.cont [4/16] 0.0, 128
        %623 = vxpose.xlu0.b32.cont [5/16] 0.0, 128
        %624 = vxpose.xlu0.b32.cont [6/16] 0.0, 128
        %625 = vxpose.xlu0.b32.cont [7/16] 0.0, 128
        %626 = vxpose.xlu0.b32.cont [8/16] 0.0, 128
        %627 = vxpose.xlu0.b32.cont [9/16] 0.0, 128
        %628 = vxpose.xlu0.b32.cont [10/16] 0.0, 128
        %629 = vxpose.xlu0.b32.cont [11/16] 0.0, 128
        %630 = vxpose.xlu0.b32.cont [12/16] 0.0, 128
        %631 = vxpose.xlu0.b32.cont [13/16] 0.0, 128
        %632 = vxpose.xlu0.b32.cont [14/16] 0.0, 128
        %633 = vxpose.xlu0.b32.cont [15/16] 0.0, 128
        %634 = vxpose.xlu0.b32.end [16/16] 0.0, 128
        %v635 = vpop.trf.xlu0
        %v636 = vpop.trf.xlu0
        %v637 = vpop.trf.xlu0
        %v638 = vpop.trf.xlu0
        %v639 = vpop.trf.xlu0
        %v640 = vpop.trf.xlu0
        %v641 = vpop.trf.xlu0
        %v642 = vpop.trf.xlu0
        %v643 = vpop.trf.xlu0
        %v644 = vpop.trf.xlu0
        %v645 = vpop.trf.xlu0
        %v646 = vpop.trf.xlu0
        %v647 = vpop.trf.xlu0
        %v648 = vpop.trf.xlu0
        %v649 = vpop.trf.xlu0
        %v650 = vpop.trf.xlu0
        %653 = vrot.lane.b32.xlu0 %v466, 112
        %v654 = vpop.permute.xlu0 %653
        %655 = vrot.lane.b32.xlu0 %v469, 112
        %v656 = vpop.permute.xlu0 %655
        %659 = vxpose.xlu0.b32.start [1/16] %v654, 128
        %660 = vxpose.xlu0.b32.cont [2/16] %v656, 128
        %661 = vxpose.xlu0.b32.cont [3/16] 0.0, 128
        %662 = vxpose.xlu0.b32.cont [4/16] 0.0, 128
        %663 = vxpose.xlu0.b32.cont [5/16] 0.0, 128
        %664 = vxpose.xlu0.b32.cont [6/16] 0.0, 128
        %665 = vxpose.xlu0.b32.cont [7/16] 0.0, 128
        %666 = vxpose.xlu0.b32.cont [8/16] 0.0, 128
        %667 = vxpose.xlu0.b32.cont [9/16] 0.0, 128
        %668 = vxpose.xlu0.b32.cont [10/16] 0.0, 128
        %669 = vxpose.xlu0.b32.cont [11/16] 0.0, 128
        %670 = vxpose.xlu0.b32.cont [12/16] 0.0, 128
        %671 = vxpose.xlu0.b32.cont [13/16] 0.0, 128
        %672 = vxpose.xlu0.b32.cont [14/16] 0.0, 128
        %673 = vxpose.xlu0.b32.cont [15/16] 0.0, 128
        %674 = vxpose.xlu0.b32.end [16/16] 0.0, 128
        %v675 = vpop.trf.xlu0
        %v676 = vpop.trf.xlu0
        %v677 = vpop.trf.xlu0
        %v678 = vpop.trf.xlu0
        %v679 = vpop.trf.xlu0
        %v680 = vpop.trf.xlu0
        %v681 = vpop.trf.xlu0
        %v682 = vpop.trf.xlu0
        %v683 = vpop.trf.xlu0
        %v684 = vpop.trf.xlu0
        %v685 = vpop.trf.xlu0
        %v686 = vpop.trf.xlu0
        %v687 = vpop.trf.xlu0
        %v688 = vpop.trf.xlu0
        %v689 = vpop.trf.xlu0
        %v690 = vpop.trf.xlu0
        %693 = vrot.lane.b32.xlu0 %v472, 112
        %v694 = vpop.permute.xlu0 %693
        %695 = vrot.lane.b32.xlu0 %v475, 112
        %v696 = vpop.permute.xlu0 %695
        %699 = vxpose.xlu0.b32.start [1/16] %v694, 128
        %700 = vxpose.xlu0.b32.cont [2/16] %v696, 128
        %701 = vxpose.xlu0.b32.cont [3/16] 0.0, 128
        %702 = vxpose.xlu0.b32.cont [4/16] 0.0, 128
        %703 = vxpose.xlu0.b32.cont [5/16] 0.0, 128
        %704 = vxpose.xlu0.b32.cont [6/16] 0.0, 128
        %705 = vxpose.xlu0.b32.cont [7/16] 0.0, 128
        %706 = vxpose.xlu0.b32.cont [8/16] 0.0, 128
        %707 = vxpose.xlu0.b32.cont [9/16] 0.0, 128
        %708 = vxpose.xlu0.b32.cont [10/16] 0.0, 128
        %709 = vxpose.xlu0.b32.cont [11/16] 0.0, 128
        %710 = vxpose.xlu0.b32.cont [12/16] 0.0, 128
        %711 = vxpose.xlu0.b32.cont [13/16] 0.0, 128
        %712 = vxpose.xlu0.b32.cont [14/16] 0.0, 128
        %713 = vxpose.xlu0.b32.cont [15/16] 0.0, 128
        %714 = vxpose.xlu0.b32.end [16/16] 0.0, 128
        %v715 = vpop.trf.xlu0
        %v716 = vpop.trf.xlu0
        %v717 = vpop.trf.xlu0
        %v718 = vpop.trf.xlu0
        %v719 = vpop.trf.xlu0
        %v720 = vpop.trf.xlu0
        %v721 = vpop.trf.xlu0
        %v722 = vpop.trf.xlu0
        %v723 = vpop.trf.xlu0
        %v724 = vpop.trf.xlu0
        %v725 = vpop.trf.xlu0
        %v726 = vpop.trf.xlu0
        %v727 = vpop.trf.xlu0
        %v728 = vpop.trf.xlu0
        %v729 = vpop.trf.xlu0
        %v730 = vpop.trf.xlu0
        %733 = vrot.lane.b32.xlu0 %v478, 112
        %v734 = vpop.permute.xlu0 %733
        %735 = vrot.lane.b32.xlu0 %v481, 112
        %v736 = vpop.permute.xlu0 %735
        %739 = vxpose.xlu0.b32.start [1/16] %v734, 128
        %740 = vxpose.xlu0.b32.cont [2/16] %v736, 128
        %741 = vxpose.xlu0.b32.cont [3/16] 0.0, 128
        %742 = vxpose.xlu0.b32.cont [4/16] 0.0, 128
        %743 = vxpose.xlu0.b32.cont [5/16] 0.0, 128
        %744 = vxpose.xlu0.b32.cont [6/16] 0.0, 128
        %745 = vxpose.xlu0.b32.cont [7/16] 0.0, 128
        %746 = vxpose.xlu0.b32.cont [8/16] 0.0, 128
        %747 = vxpose.xlu0.b32.cont [9/16] 0.0, 128
        %748 = vxpose.xlu0.b32.cont [10/16] 0.0, 128
        %749 = vxpose.xlu0.b32.cont [11/16] 0.0, 128
        %750 = vxpose.xlu0.b32.cont [12/16] 0.0, 128
        %751 = vxpose.xlu0.b32.cont [13/16] 0.0, 128
        %752 = vxpose.xlu0.b32.cont [14/16] 0.0, 128
        %753 = vxpose.xlu0.b32.cont [15/16] 0.0, 128
        %754 = vxpose.xlu0.b32.end [16/16] 0.0, 128
        %v755 = vpop.trf.xlu0
        %v756 = vpop.trf.xlu0
        %v757 = vpop.trf.xlu0
        %v758 = vpop.trf.xlu0
        %v759 = vpop.trf.xlu0
        %v760 = vpop.trf.xlu0
        %v761 = vpop.trf.xlu0
        %v762 = vpop.trf.xlu0
        %v763 = vpop.trf.xlu0
        %v764 = vpop.trf.xlu0
        %v765 = vpop.trf.xlu0
        %v766 = vpop.trf.xlu0
        %v767 = vpop.trf.xlu0
        %v768 = vpop.trf.xlu0
        %v769 = vpop.trf.xlu0
        %v770 = vpop.trf.xlu0
        %v771 = vld [vmem:[%s382] sm:$0xff]
        %v772 = vld [vmem:[%s382 + $0x8] sm:$0xff]
        %v773 = vld [vmem:[%s382 + $0x10] sm:$0xff]
        %v774 = vld [vmem:[%s382 + $0x18] sm:$0xff]
        %vm775 = vcmask 130048
        %v777 = vsel %vm775, %v635, 0
        %v780 = vsel %vm775, %v636, 0
        %v783 = vsel %vm775, %v675, 0
        %v786 = vsel %vm775, %v676, 0
        %v789 = vsel %vm775, %v715, 0
        %v792 = vsel %vm775, %v716, 0
        %v795 = vsel %vm775, %v755, 0
        %v798 = vsel %vm775, %v756, 0
        %800 = vmatpush.msra.mxu0 0.0
        %801 = vmatpush.msra.mxu0 0.0
        %802 = vmatpush.msra.mxu0 0.0
        %803 = vmatpush.msra.mxu0 0.0
        %804 = vmatpush.msra.mxu0 0.0
        %805 = vmatpush.msra.mxu0 0.0
        %806 = vmatpush.msra.mxu0 0.0
        %807 = vmatpush.msra.mxu0 0.0
        %808 = vmatpush.msra.mxu0 0.0
        %809 = vmatpush.msra.mxu0 0.0
        %810 = vmatpush.msra.mxu0 0.0
        %811 = vmatpush.msra.mxu0 0.0
        %812 = vmatpush.msra.mxu0 0.0
        %813 = vmatpush.msra.mxu0 0.0
        %814 = vmatpush.msra.mxu0 %v774
        %815 = vmatpush.msra.mxu0 %v773
        %816 = vmatmul.f32.gmra.mxu0 %v777
        %v817 = vpop.f32.mrf.mxu0
        %v818 = vadd.f32 0.0, %v817
        %819 = vmatmul.f32.gmra.mxu0 %v780
        %v820 = vpop.f32.mrf.mxu0
        %v821 = vadd.f32 0.0, %v820
        %822 = vmatmul.f32.gmra.mxu0 %v783
        %v823 = vpop.f32.mrf.mxu0
        %v824 = vadd.f32 0.0, %v823
        %825 = vmatmul.f32.gmra.mxu0 %v786
        %v826 = vpop.f32.mrf.mxu0
        %v827 = vadd.f32 0.0, %v826
        %828 = vmatmul.f32.gmra.mxu0 %v789
        %v829 = vpop.f32.mrf.mxu0
        %v830 = vadd.f32 0.0, %v829
        %831 = vmatmul.f32.gmra.mxu0 %v792
        %v832 = vpop.f32.mrf.mxu0
        %v833 = vadd.f32 0.0, %v832
        %834 = vmatmul.f32.gmra.mxu0 %v795
        %v835 = vpop.f32.mrf.mxu0
        %v836 = vadd.f32 0.0, %v835
        %837 = vmatmul.f32.gmra.mxu0 %v798
        %v838 = vpop.f32.mrf.mxu0
        %v839 = vadd.f32 0.0, %v838
        %840 = vdwg.mxu0
        %v842 = vsel %vm775, %v499, 0
        %v845 = vsel %vm775, %v500, 0
        %v848 = vsel %vm775, %v531, 0
        %v851 = vsel %vm775, %v532, 0
        %v854 = vsel %vm775, %v563, 0
        %v857 = vsel %vm775, %v564, 0
        %v860 = vsel %vm775, %v595, 0
        %v863 = vsel %vm775, %v596, 0
        %865 = vmatpush.msra.mxu0 0.0
        %866 = vmatpush.msra.mxu0 0.0
        %867 = vmatpush.msra.mxu0 0.0
        %868 = vmatpush.msra.mxu0 0.0
        %869 = vmatpush.msra.mxu0 0.0
        %870 = vmatpush.msra.mxu0 0.0
        %871 = vmatpush.msra.mxu0 0.0
        %872 = vmatpush.msra.mxu0 0.0
        %873 = vmatpush.msra.mxu0 0.0
        %874 = vmatpush.msra.mxu0 0.0
        %875 = vmatpush.msra.mxu0 0.0
        %876 = vmatpush.msra.mxu0 0.0
        %877 = vmatpush.msra.mxu0 0.0
        %878 = vmatpush.msra.mxu0 0.0
        %879 = vmatpush.msra.mxu0 %v772
        %880 = vmatpush.msra.mxu0 %v771
        %881 = vmatmul.f32.gmra.mxu0 %v842
        %v882 = vpop.f32.mrf.mxu0
        %v883 = vadd.f32 %v818, %v882
        %884 = vmatmul.f32.gmra.mxu0 %v845
        %v885 = vpop.f32.mrf.mxu0
        %v886 = vadd.f32 %v821, %v885
        %887 = vmatmul.f32.gmra.mxu0 %v848
        %v888 = vpop.f32.mrf.mxu0
        %v889 = vadd.f32 %v824, %v888
        %890 = vmatmul.f32.gmra.mxu0 %v851
        %v891 = vpop.f32.mrf.mxu0
        %v892 = vadd.f32 %v827, %v891
        %893 = vmatmul.f32.gmra.mxu0 %v854
        %v894 = vpop.f32.mrf.mxu0
        %v895 = vadd.f32 %v830, %v894
        %896 = vmatmul.f32.gmra.mxu0 %v857
        %v897 = vpop.f32.mrf.mxu0
        %v898 = vadd.f32 %v833, %v897
        %899 = vmatmul.f32.gmra.mxu0 %v860
        %v900 = vpop.f32.mrf.mxu0
        %v901 = vadd.f32 %v836, %v900
        %902 = vmatmul.f32.gmra.mxu0 %v863
        %v903 = vpop.f32.mrf.mxu0
        %v904 = vadd.f32 %v839, %v903
        %905 = vdwg.mxu0
        %v906 = vmax.f32 %v883, 0.0
        %v907 = vmax.f32 %v886, 0.0
        %v908 = vmax.f32 %v889, 0.0
        %v909 = vmax.f32 %v892, 0.0
        %v910 = vmax.f32 %v895, 0.0
        %v911 = vmax.f32 %v898, 0.0
        %v912 = vmax.f32 %v901, 0.0
        %v913 = vmax.f32 %v904, 0.0
        %v914 = vld [vmem:[%s326] sm:$0xff]
        %v915 = vld [vmem:[%s326 + $0x8] sm:$0xff]
        %v917 = vsel %vm775, %v906, 0
        %v920 = vsel %vm775, %v907, 0
        %v923 = vsel %vm775, %v908, 0
        %v926 = vsel %vm775, %v909, 0
        %v929 = vsel %vm775, %v910, 0
        %v932 = vsel %vm775, %v911, 0
        %v935 = vsel %vm775, %v912, 0
        %v938 = vsel %vm775, %v913, 0
        %940 = vmatpush.msra.mxu0 0.0
        %941 = vmatpush.msra.mxu0 0.0
        %942 = vmatpush.msra.mxu0 0.0
        %943 = vmatpush.msra.mxu0 0.0
        %944 = vmatpush.msra.mxu0 0.0
        %945 = vmatpush.msra.mxu0 0.0
        %946 = vmatpush.msra.mxu0 0.0
        %947 = vmatpush.msra.mxu0 0.0
        %948 = vmatpush.msra.mxu0 0.0
        %949 = vmatpush.msra.mxu0 0.0
        %950 = vmatpush.msra.mxu0 0.0
        %951 = vmatpush.msra.mxu0 0.0
        %952 = vmatpush.msra.mxu0 0.0
        %953 = vmatpush.msra.mxu0 0.0
        %954 = vmatpush.msra.mxu0 %v915
        %955 = vmatpush.msra.mxu0 %v914
        %956 = vmatmul.f32.gmra.mxu0 %v917
        %v957 = vpop.f32.mrf.mxu0
        %v958 = vadd.f32 0.0, %v957
        %959 = vmatmul.f32.gmra.mxu0 %v920
        %v960 = vpop.f32.mrf.mxu0
        %v961 = vadd.f32 0.0, %v960
        %962 = vmatmul.f32.gmra.mxu0 %v923
        %v963 = vpop.f32.mrf.mxu0
        %v964 = vadd.f32 0.0, %v963
        %965 = vmatmul.f32.gmra.mxu0 %v926
        %v966 = vpop.f32.mrf.mxu0
        %v967 = vadd.f32 0.0, %v966
        %968 = vmatmul.f32.gmra.mxu0 %v929
        %v969 = vpop.f32.mrf.mxu0
        %v970 = vadd.f32 0.0, %v969
        %971 = vmatmul.f32.gmra.mxu0 %v932
        %v972 = vpop.f32.mrf.mxu0
        %v973 = vadd.f32 0.0, %v972
        %974 = vmatmul.f32.gmra.mxu0 %v935
        %v975 = vpop.f32.mrf.mxu0
        %v976 = vadd.f32 0.0, %v975
        %977 = vmatmul.f32.gmra.mxu0 %v938
        %v978 = vpop.f32.mrf.mxu0
        %v979 = vadd.f32 0.0, %v978
        %980 = vdwg.mxu0
        %981 = vxpose.xlu0.b32.start [1/16] %v958, 128
        %982 = vxpose.xlu0.b32.cont [2/16] %v961, 128
        %983 = vxpose.xlu0.b32.cont [3/16] 0.0, 128
        %984 = vxpose.xlu0.b32.cont [4/16] 0.0, 128
        %985 = vxpose.xlu0.b32.cont [5/16] 0.0, 128
        %986 = vxpose.xlu0.b32.cont [6/16] 0.0, 128
        %987 = vxpose.xlu0.b32.cont [7/16] 0.0, 128
        %988 = vxpose.xlu0.b32.cont [8/16] 0.0, 128
        %989 = vxpose.xlu0.b32.cont [9/16] 0.0, 128
        %990 = vxpose.xlu0.b32.cont [10/16] 0.0, 128
        %991 = vxpose.xlu0.b32.cont [11/16] 0.0, 128
        %992 = vxpose.xlu0.b32.cont [12/16] 0.0, 128
        %993 = vxpose.xlu0.b32.cont [13/16] 0.0, 128
        %994 = vxpose.xlu0.b32.cont [14/16] 0.0, 128
        %995 = vxpose.xlu0.b32.cont [15/16] 0.0, 128
        %996 = vxpose.xlu0.b32.end [16/16] 0.0, 128
        %v997 = vpop.trf.xlu0
        %v998 = vpop.trf.xlu0
        %v999 = vpop.trf.xlu0
        %v1000 = vpop.trf.xlu0
        %v1001 = vpop.trf.xlu0
        %v1002 = vpop.trf.xlu0
        %v1003 = vpop.trf.xlu0
        %v1004 = vpop.trf.xlu0
        %v1005 = vpop.trf.xlu0
        %v1006 = vpop.trf.xlu0
        %v1007 = vpop.trf.xlu0
        %v1008 = vpop.trf.xlu0
        %v1009 = vpop.trf.xlu0
        %v1010 = vpop.trf.xlu0
        %v1011 = vpop.trf.xlu0
        %v1012 = vpop.trf.xlu0
        %1013 = vxpose.xlu0.b32.start [1/16] %v964, 128
        %1014 = vxpose.xlu0.b32.cont [2/16] %v967, 128
        %1015 = vxpose.xlu0.b32.cont [3/16] 0.0, 128
        %1016 = vxpose.xlu0.b32.cont [4/16] 0.0, 128
        %1017 = vxpose.xlu0.b32.cont [5/16] 0.0, 128
        %1018 = vxpose.xlu0.b32.cont [6/16] 0.0, 128
        %1019 = vxpose.xlu0.b32.cont [7/16] 0.0, 128
        %1020 = vxpose.xlu0.b32.cont [8/16] 0.0, 128
        %1021 = vxpose.xlu0.b32.cont [9/16] 0.0, 128
        %1022 = vxpose.xlu0.b32.cont [10/16] 0.0, 128
        %1023 = vxpose.xlu0.b32.cont [11/16] 0.0, 128
        %1024 = vxpose.xlu0.b32.cont [12/16] 0.0, 128
        %1025 = vxpose.xlu0.b32.cont [13/16] 0.0, 128
        %1026 = vxpose.xlu0.b32.cont [14/16] 0.0, 128
        %1027 = vxpose.xlu0.b32.cont [15/16] 0.0, 128
        %1028 = vxpose.xlu0.b32.end [16/16] 0.0, 128
        %v1029 = vpop.trf.xlu0
        %v1030 = vpop.trf.xlu0
        %v1031 = vpop.trf.xlu0
        %v1032 = vpop.trf.xlu0
        %v1033 = vpop.trf.xlu0
        %v1034 = vpop.trf.xlu0
        %v1035 = vpop.trf.xlu0
        %v1036 = vpop.trf.xlu0
        %v1037 = vpop.trf.xlu0
        %v1038 = vpop.trf.xlu0
        %v1039 = vpop.trf.xlu0
        %v1040 = vpop.trf.xlu0
        %v1041 = vpop.trf.xlu0
        %v1042 = vpop.trf.xlu0
        %v1043 = vpop.trf.xlu0
        %v1044 = vpop.trf.xlu0
        %1045 = vxpose.xlu0.b32.start [1/16] %v970, 128
        %1046 = vxpose.xlu0.b32.cont [2/16] %v973, 128
        %1047 = vxpose.xlu0.b32.cont [3/16] 0.0, 128
        %1048 = vxpose.xlu0.b32.cont [4/16] 0.0, 128
        %1049 = vxpose.xlu0.b32.cont [5/16] 0.0, 128
        %1050 = vxpose.xlu0.b32.cont [6/16] 0.0, 128
        %1051 = vxpose.xlu0.b32.cont [7/16] 0.0, 128
        %1052 = vxpose.xlu0.b32.cont [8/16] 0.0, 128
        %1053 = vxpose.xlu0.b32.cont [9/16] 0.0, 128
        %1054 = vxpose.xlu0.b32.cont [10/16] 0.0, 128
        %1055 = vxpose.xlu0.b32.cont [11/16] 0.0, 128
        %1056 = vxpose.xlu0.b32.cont [12/16] 0.0, 128
        %1057 = vxpose.xlu0.b32.cont [13/16] 0.0, 128
        %1058 = vxpose.xlu0.b32.cont [14/16] 0.0, 128
        %1059 = vxpose.xlu0.b32.cont [15/16] 0.0, 128
        %1060 = vxpose.xlu0.b32.end [16/16] 0.0, 128
        %v1061 = vpop.trf.xlu0
        %v1062 = vpop.trf.xlu0
        %v1063 = vpop.trf.xlu0
        %v1064 = vpop.trf.xlu0
        %v1065 = vpop.trf.xlu0
        %v1066 = vpop.trf.xlu0
        %v1067 = vpop.trf.xlu0
        %v1068 = vpop.trf.xlu0
        %v1069 = vpop.trf.xlu0
        %v1070 = vpop.trf.xlu0
        %v1071 = vpop.trf.xlu0
        %v1072 = vpop.trf.xlu0
        %v1073 = vpop.trf.xlu0
        %v1074 = vpop.trf.xlu0
        %v1075 = vpop.trf.xlu0
        %v1076 = vpop.trf.xlu0
        %1077 = vxpose.xlu0.b32.start [1/16] %v976, 128
        %1078 = vxpose.xlu0.b32.cont [2/16] %v979, 128
        %1079 = vxpose.xlu0.b32.cont [3/16] 0.0, 128
        %1080 = vxpose.xlu0.b32.cont [4/16] 0.0, 128
        %1081 = vxpose.xlu0.b32.cont [5/16] 0.0, 128
        %1082 = vxpose.xlu0.b32.cont [6/16] 0.0, 128
        %1083 = vxpose.xlu0.b32.cont [7/16] 0.0, 128
        %1084 = vxpose.xlu0.b32.cont [8/16] 0.0, 128
        %1085 = vxpose.xlu0.b32.cont [9/16] 0.0, 128
        %1086 = vxpose.xlu0.b32.cont [10/16] 0.0, 128
        %1087 = vxpose.xlu0.b32.cont [11/16] 0.0, 128
        %1088 = vxpose.xlu0.b32.cont [12/16] 0.0, 128
        %1089 = vxpose.xlu0.b32.cont [13/16] 0.0, 128
        %1090 = vxpose.xlu0.b32.cont [14/16] 0.0, 128
        %1091 = vxpose.xlu0.b32.cont [15/16] 0.0, 128
        %1092 = vxpose.xlu0.b32.end [16/16] 0.0, 128
        %v1093 = vpop.trf.xlu0
        %v1094 = vpop.trf.xlu0
        %v1095 = vpop.trf.xlu0
        %v1096 = vpop.trf.xlu0
        %v1097 = vpop.trf.xlu0
        %v1098 = vpop.trf.xlu0
        %v1099 = vpop.trf.xlu0
        %v1100 = vpop.trf.xlu0
        %v1101 = vpop.trf.xlu0
        %v1102 = vpop.trf.xlu0
        %v1103 = vpop.trf.xlu0
        %v1104 = vpop.trf.xlu0
        %v1105 = vpop.trf.xlu0
        %v1106 = vpop.trf.xlu0
        %v1107 = vpop.trf.xlu0
        %v1108 = vpop.trf.xlu0
        %1111 = vrot.lane.b32.xlu0 %v958, 112
        %v1112 = vpop.permute.xlu0 %1111
        %1113 = vrot.lane.b32.xlu0 %v961, 112
        %v1114 = vpop.permute.xlu0 %1113
        %1117 = vxpose.xlu0.b32.start [1/16] %v1112, 128
        %1118 = vxpose.xlu0.b32.cont [2/16] %v1114, 128
        %1119 = vxpose.xlu0.b32.cont [3/16] 0.0, 128
        %1120 = vxpose.xlu0.b32.cont [4/16] 0.0, 128
        %1121 = vxpose.xlu0.b32.cont [5/16] 0.0, 128
        %1122 = vxpose.xlu0.b32.cont [6/16] 0.0, 128
        %1123 = vxpose.xlu0.b32.cont [7/16] 0.0, 128
        %1124 = vxpose.xlu0.b32.cont [8/16] 0.0, 128
        %1125 = vxpose.xlu0.b32.cont [9/16] 0.0, 128
        %1126 = vxpose.xlu0.b32.cont [10/16] 0.0, 128
        %1127 = vxpose.xlu0.b32.cont [11/16] 0.0, 128
        %1128 = vxpose.xlu0.b32.cont [12/16] 0.0, 128
        %1129 = vxpose.xlu0.b32.cont [13/16] 0.0, 128
        %1130 = vxpose.xlu0.b32.cont [14/16] 0.0, 128
        %1131 = vxpose.xlu0.b32.cont [15/16] 0.0, 128
        %1132 = vxpose.xlu0.b32.end [16/16] 0.0, 128
        %v1133 = vpop.trf.xlu0
        %v1134 = vpop.trf.xlu0
        %v1135 = vpop.trf.xlu0
        %v1136 = vpop.trf.xlu0
        %v1137 = vpop.trf.xlu0
        %v1138 = vpop.trf.xlu0
        %v1139 = vpop.trf.xlu0
        %v1140 = vpop.trf.xlu0
        %v1141 = vpop.trf.xlu0
        %v1142 = vpop.trf.xlu0
        %v1143 = vpop.trf.xlu0
        %v1144 = vpop.trf.xlu0
        %v1145 = vpop.trf.xlu0
        %v1146 = vpop.trf.xlu0
        %v1147 = vpop.trf.xlu0
        %v1148 = vpop.trf.xlu0
        %1151 = vrot.lane.b32.xlu0 %v964, 112
        %v1152 = vpop.permute.xlu0 %1151
        %1153 = vrot.lane.b32.xlu0 %v967, 112
        %v1154 = vpop.permute.xlu0 %1153
        %1157 = vxpose.xlu0.b32.start [1/16] %v1152, 128
        %1158 = vxpose.xlu0.b32.cont [2/16] %v1154, 128
        %1159 = vxpose.xlu0.b32.cont [3/16] 0.0, 128
        %1160 = vxpose.xlu0.b32.cont [4/16] 0.0, 128
        %1161 = vxpose.xlu0.b32.cont [5/16] 0.0, 128
        %1162 = vxpose.xlu0.b32.cont [6/16] 0.0, 128
        %1163 = vxpose.xlu0.b32.cont [7/16] 0.0, 128
        %1164 = vxpose.xlu0.b32.cont [8/16] 0.0, 128
        %1165 = vxpose.xlu0.b32.cont [9/16] 0.0, 128
        %1166 = vxpose.xlu0.b32.cont [10/16] 0.0, 128
        %1167 = vxpose.xlu0.b32.cont [11/16] 0.0, 128
        %1168 = vxpose.xlu0.b32.cont [12/16] 0.0, 128
        %1169 = vxpose.xlu0.b32.cont [13/16] 0.0, 128
        %1170 = vxpose.xlu0.b32.cont [14/16] 0.0, 128
        %1171 = vxpose.xlu0.b32.cont [15/16] 0.0, 128
        %1172 = vxpose.xlu0.b32.end [16/16] 0.0, 128
        %v1173 = vpop.trf.xlu0
        %v1174 = vpop.trf.xlu0
        %v1175 = vpop.trf.xlu0
        %v1176 = vpop.trf.xlu0
        %v1177 = vpop.trf.xlu0
        %v1178 = vpop.trf.xlu0
        %v1179 = vpop.trf.xlu0
        %v1180 = vpop.trf.xlu0
        %v1181 = vpop.trf.xlu0
        %v1182 = vpop.trf.xlu0
        %v1183 = vpop.trf.xlu0
        %v1184 = vpop.trf.xlu0
        %v1185 = vpop.trf.xlu0
        %v1186 = vpop.trf.xlu0
        %v1187 = vpop.trf.xlu0
        %v1188 = vpop.trf.xlu0
        %1191 = vrot.lane.b32.xlu0 %v970, 112
        %v1192 = vpop.permute.xlu0 %1191
        %1193 = vrot.lane.b32.xlu0 %v973, 112
        %v1194 = vpop.permute.xlu0 %1193
        %1197 = vxpose.xlu0.b32.start [1/16] %v1192, 128
        %1198 = vxpose.xlu0.b32.cont [2/16] %v1194, 128
        %1199 = vxpose.xlu0.b32.cont [3/16] 0.0, 128
        %1200 = vxpose.xlu0.b32.cont [4/16] 0.0, 128
        %1201 = vxpose.xlu0.b32.cont [5/16] 0.0, 128
        %1202 = vxpose.xlu0.b32.cont [6/16] 0.0, 128
        %1203 = vxpose.xlu0.b32.cont [7/16] 0.0, 128
        %1204 = vxpose.xlu0.b32.cont [8/16] 0.0, 128
        %1205 = vxpose.xlu0.b32.cont [9/16] 0.0, 128
        %1206 = vxpose.xlu0.b32.cont [10/16] 0.0, 128
        %1207 = vxpose.xlu0.b32.cont [11/16] 0.0, 128
        %1208 = vxpose.xlu0.b32.cont [12/16] 0.0, 128
        %1209 = vxpose.xlu0.b32.cont [13/16] 0.0, 128
        %1210 = vxpose.xlu0.b32.cont [14/16] 0.0, 128
        %1211 = vxpose.xlu0.b32.cont [15/16] 0.0, 128
        %1212 = vxpose.xlu0.b32.end [16/16] 0.0, 128
        %v1213 = vpop.trf.xlu0
        %v1214 = vpop.trf.xlu0
        %v1215 = vpop.trf.xlu0
        %v1216 = vpop.trf.xlu0
        %v1217 = vpop.trf.xlu0
        %v1218 = vpop.trf.xlu0
        %v1219 = vpop.trf.xlu0
        %v1220 = vpop.trf.xlu0
        %v1221 = vpop.trf.xlu0
        %v1222 = vpop.trf.xlu0
        %v1223 = vpop.trf.xlu0
        %v1224 = vpop.trf.xlu0
        %v1225 = vpop.trf.xlu0
        %v1226 = vpop.trf.xlu0
        %v1227 = vpop.trf.xlu0
        %v1228 = vpop.trf.xlu0
        %1231 = vrot.lane.b32.xlu0 %v976, 112
        %v1232 = vpop.permute.xlu0 %1231
        %1233 = vrot.lane.b32.xlu0 %v979, 112
        %v1234 = vpop.permute.xlu0 %1233
        %1237 = vxpose.xlu0.b32.start [1/16] %v1232, 128
        %1238 = vxpose.xlu0.b32.cont [2/16] %v1234, 128
        %1239 = vxpose.xlu0.b32.cont [3/16] 0.0, 128
        %1240 = vxpose.xlu0.b32.cont [4/16] 0.0, 128
        %1241 = vxpose.xlu0.b32.cont [5/16] 0.0, 128
        %1242 = vxpose.xlu0.b32.cont [6/16] 0.0, 128
        %1243 = vxpose.xlu0.b32.cont [7/16] 0.0, 128
        %1244 = vxpose.xlu0.b32.cont [8/16] 0.0, 128
        %1245 = vxpose.xlu0.b32.cont [9/16] 0.0, 128
        %1246 = vxpose.xlu0.b32.cont [10/16] 0.0, 128
        %1247 = vxpose.xlu0.b32.cont [11/16] 0.0, 128
        %1248 = vxpose.xlu0.b32.cont [12/16] 0.0, 128
        %1249 = vxpose.xlu0.b32.cont [13/16] 0.0, 128
        %1250 = vxpose.xlu0.b32.cont [14/16] 0.0, 128
        %1251 = vxpose.xlu0.b32.cont [15/16] 0.0, 128
        %1252 = vxpose.xlu0.b32.end [16/16] 0.0, 128
        %v1253 = vpop.trf.xlu0
        %v1254 = vpop.trf.xlu0
        %v1255 = vpop.trf.xlu0
        %v1256 = vpop.trf.xlu0
        %v1257 = vpop.trf.xlu0
        %v1258 = vpop.trf.xlu0
        %v1259 = vpop.trf.xlu0
        %v1260 = vpop.trf.xlu0
        %v1261 = vpop.trf.xlu0
        %v1262 = vpop.trf.xlu0
        %v1263 = vpop.trf.xlu0
        %v1264 = vpop.trf.xlu0
        %v1265 = vpop.trf.xlu0
        %v1266 = vpop.trf.xlu0
        %v1267 = vpop.trf.xlu0
        %v1268 = vpop.trf.xlu0
        %v1269 = vld [vmem:[%s390] sm:$0xff]
        %v1270 = vld [vmem:[%s390 + $0x8] sm:$0xff]
        %v1271 = vld [vmem:[%s390 + $0x10] sm:$0xff]
        %v1272 = vld [vmem:[%s390 + $0x18] sm:$0xff]
        %v1274 = vsel %vm775, %v1133, 0
        %v1277 = vsel %vm775, %v1134, 0
        %v1280 = vsel %vm775, %v1173, 0
        %v1283 = vsel %vm775, %v1174, 0
        %v1286 = vsel %vm775, %v1213, 0
        %v1289 = vsel %vm775, %v1214, 0
        %v1292 = vsel %vm775, %v1253, 0
        %v1295 = vsel %vm775, %v1254, 0
        %1297 = vmatpush.msra.mxu0 0.0
        %1298 = vmatpush.msra.mxu0 0.0
        %1299 = vmatpush.msra.mxu0 0.0
        %1300 = vmatpush.msra.mxu0 0.0
        %1301 = vmatpush.msra.mxu0 0.0
        %1302 = vmatpush.msra.mxu0 0.0
        %1303 = vmatpush.msra.mxu0 0.0
        %1304 = vmatpush.msra.mxu0 0.0
        %1305 = vmatpush.msra.mxu0 0.0
        %1306 = vmatpush.msra.mxu0 0.0
        %1307 = vmatpush.msra.mxu0 0.0
        %1308 = vmatpush.msra.mxu0 0.0
        %1309 = vmatpush.msra.mxu0 0.0
        %1310 = vmatpush.msra.mxu0 0.0
        %1311 = vmatpush.msra.mxu0 %v1272
        %1312 = vmatpush.msra.mxu0 %v1271
        %1313 = vmatmul.f32.gmra.mxu0 %v1274
        %v1314 = vpop.f32.mrf.mxu0
        %v1315 = vadd.f32 0.0, %v1314
        %1316 = vmatmul.f32.gmra.mxu0 %v1277
        %v1317 = vpop.f32.mrf.mxu0
        %v1318 = vadd.f32 0.0, %v1317
        %1319 = vmatmul.f32.gmra.mxu0 %v1280
        %v1320 = vpop.f32.mrf.mxu0
        %v1321 = vadd.f32 0.0, %v1320
        %1322 = vmatmul.f32.gmra.mxu0 %v1283
        %v1323 = vpop.f32.mrf.mxu0
        %v1324 = vadd.f32 0.0, %v1323
        %1325 = vmatmul.f32.gmra.mxu0 %v1286
        %v1326 = vpop.f32.mrf.mxu0
        %v1327 = vadd.f32 0.0, %v1326
        %1328 = vmatmul.f32.gmra.mxu0 %v1289
        %v1329 = vpop.f32.mrf.mxu0
        %v1330 = vadd.f32 0.0, %v1329
        %1331 = vmatmul.f32.gmra.mxu0 %v1292
        %v1332 = vpop.f32.mrf.mxu0
        %v1333 = vadd.f32 0.0, %v1332
        %1334 = vmatmul.f32.gmra.mxu0 %v1295
        %v1335 = vpop.f32.mrf.mxu0
        %v1336 = vadd.f32 0.0, %v1335
        %1337 = vdwg.mxu0
        %v1339 = vsel %vm775, %v997, 0
        %v1342 = vsel %vm775, %v998, 0
        %v1345 = vsel %vm775, %v1029, 0
        %v1348 = vsel %vm775, %v1030, 0
        %v1351 = vsel %vm775, %v1061, 0
        %v1354 = vsel %vm775, %v1062, 0
        %v1357 = vsel %vm775, %v1093, 0
        %v1360 = vsel %vm775, %v1094, 0
        %1362 = vmatpush.msra.mxu0 0.0
        %1363 = vmatpush.msra.mxu0 0.0
        %1364 = vmatpush.msra.mxu0 0.0
        %1365 = vmatpush.msra.mxu0 0.0
        %1366 = vmatpush.msra.mxu0 0.0
        %1367 = vmatpush.msra.mxu0 0.0
        %1368 = vmatpush.msra.mxu0 0.0
        %1369 = vmatpush.msra.mxu0 0.0
        %1370 = vmatpush.msra.mxu0 0.0
        %1371 = vmatpush.msra.mxu0 0.0
        %1372 = vmatpush.msra.mxu0 0.0
        %1373 = vmatpush.msra.mxu0 0.0
        %1374 = vmatpush.msra.mxu0 0.0
        %1375 = vmatpush.msra.mxu0 0.0
        %1376 = vmatpush.msra.mxu0 %v1270
        %1377 = vmatpush.msra.mxu0 %v1269
        %1378 = vmatmul.f32.gmra.mxu0 %v1339
        %v1379 = vpop.f32.mrf.mxu0
        %v1380 = vadd.f32 %v1315, %v1379
        %1381 = vmatmul.f32.gmra.mxu0 %v1342
        %v1382 = vpop.f32.mrf.mxu0
        %v1383 = vadd.f32 %v1318, %v1382
        %1384 = vmatmul.f32.gmra.mxu0 %v1345
        %v1385 = vpop.f32.mrf.mxu0
        %v1386 = vadd.f32 %v1321, %v1385
        %1387 = vmatmul.f32.gmra.mxu0 %v1348
        %v1388 = vpop.f32.mrf.mxu0
        %v1389 = vadd.f32 %v1324, %v1388
        %1390 = vmatmul.f32.gmra.mxu0 %v1351
        %v1391 = vpop.f32.mrf.mxu0
        %v1392 = vadd.f32 %v1327, %v1391
        %1393 = vmatmul.f32.gmra.mxu0 %v1354
        %v1394 = vpop.f32.mrf.mxu0
        %v1395 = vadd.f32 %v1330, %v1394
        %1396 = vmatmul.f32.gmra.mxu0 %v1357
        %v1397 = vpop.f32.mrf.mxu0
        %v1398 = vadd.f32 %v1333, %v1397
        %1399 = vmatmul.f32.gmra.mxu0 %v1360
        %v1400 = vpop.f32.mrf.mxu0
        %v1401 = vadd.f32 %v1336, %v1400
        %1402 = vdwg.mxu0
        %v1403 = vld [vmem:[%s390 + $0x20] sm:$0xff]
        %v1404 = vld [vmem:[%s390 + $0x28] sm:$0xff]
        %vm1405 = vcmp.ne.f32.partialorder %v1403, 0.0
        %vm1406 = vcmp.ne.f32.partialorder %v1404, 0.0
        %v1407 = vld [vmem:[%s375] sm:$0xff]
        %v1408 = vld [vmem:[%s375 + $0x8] sm:$0xff]
        %v1409 = vld [vmem:[%s375 + $0x10] sm:$0xff]
        %v1410 = vld [vmem:[%s375 + $0x18] sm:$0xff]
        %v1411 = vld [vmem:[%s375 + $0x20] sm:$0xff]
        %v1412 = vld [vmem:[%s375 + $0x28] sm:$0xff]
        %v1413 = vld [vmem:[%s375 + $0x30] sm:$0xff]
        %v1414 = vld [vmem:[%s375 + $0x38] sm:$0xff]
        %v1415 = vsel %vm1405, 1, 0
        %v1416 = vsel %vm1406, 1, 0
        %vm1417 = vcmp.eq.s32.totalorder %v1415, 1
        %vm1418 = vcmp.eq.s32.totalorder %v1416, 1
        %v1419 = vsel %vm1417, %v1380, %v1407
        %v1420 = vsel %vm1418, %v1383, %v1408
        %v1421 = vsel %vm1417, %v1386, %v1409
        %v1422 = vsel %vm1418, %v1389, %v1410
        %v1423 = vsel %vm1417, %v1392, %v1411
        %v1424 = vsel %vm1418, %v1395, %v1412
        %v1425 = vsel %vm1417, %v1398, %v1413
        %v1426 = vsel %vm1418, %v1401, %v1414
        %1427 = vst [vmem:[%s375] sm:$0xff] %v1419
        %1428 = vst [vmem:[%s375 + $0x8] sm:$0xff] %v1420
        %1429 = vst [vmem:[%s375 + $0x10] sm:$0xff] %v1421
        %1430 = vst [vmem:[%s375 + $0x18] sm:$0xff] %v1422
        %1431 = vst [vmem:[%s375 + $0x20] sm:$0xff] %v1423
        %1432 = vst [vmem:[%s375 + $0x28] sm:$0xff] %v1424
        %1433 = vst [vmem:[%s375 + $0x30] sm:$0xff] %v1425
        %1434 = vst [vmem:[%s375 + $0x38] sm:$0xff] %v1426
        %1435 = vrot.lane.b32.xlu0 %v460, 96
        %v1436 = vpop.permute.xlu0 %1435
        %1437 = vrot.lane.b32.xlu0 %v463, 96
        %v1438 = vpop.permute.xlu0 %1437
        %1441 = vxpose.xlu0.b32.start [1/16] %v1436, 128
        %1442 = vxpose.xlu0.b32.cont [2/16] %v1438, 128
        %1443 = vxpose.xlu0.b32.cont [3/16] 0.0, 128
        %1444 = vxpose.xlu0.b32.cont [4/16] 0.0, 128
        %1445 = vxpose.xlu0.b32.cont [5/16] 0.0, 128
        %1446 = vxpose.xlu0.b32.cont [6/16] 0.0, 128
        %1447 = vxpose.xlu0.b32.cont [7/16] 0.0, 128
        %1448 = vxpose.xlu0.b32.cont [8/16] 0.0, 128
        %1449 = vxpose.xlu0.b32.cont [9/16] 0.0, 128
        %1450 = vxpose.xlu0.b32.cont [10/16] 0.0, 128
        %1451 = vxpose.xlu0.b32.cont [11/16] 0.0, 128
        %1452 = vxpose.xlu0.b32.cont [12/16] 0.0, 128
        %1453 = vxpose.xlu0.b32.cont [13/16] 0.0, 128
        %1454 = vxpose.xlu0.b32.cont [14/16] 0.0, 128
        %1455 = vxpose.xlu0.b32.cont [15/16] 0.0, 128
        %1456 = vxpose.xlu0.b32.end [16/16] 0.0, 128
        %v1457 = vpop.trf.xlu0
        %v1458 = vpop.trf.xlu0
        %v1459 = vpop.trf.xlu0
        %v1460 = vpop.trf.xlu0
        %v1461 = vpop.trf.xlu0
        %v1462 = vpop.trf.xlu0
        %v1463 = vpop.trf.xlu0
        %v1464 = vpop.trf.xlu0
        %v1465 = vpop.trf.xlu0
        %v1466 = vpop.trf.xlu0
        %v1467 = vpop.trf.xlu0
        %v1468 = vpop.trf.xlu0
        %v1469 = vpop.trf.xlu0
        %v1470 = vpop.trf.xlu0
        %v1471 = vpop.trf.xlu0
        %v1472 = vpop.trf.xlu0
        %1473 = vrot.lane.b32.xlu0 %v466, 96
        %v1474 = vpop.permute.xlu0 %1473
        %1475 = vrot.lane.b32.xlu0 %v469, 96
        %v1476 = vpop.permute.xlu0 %1475
        %1479 = vxpose.xlu0.b32.start [1/16] %v1474, 128
        %1480 = vxpose.xlu0.b32.cont [2/16] %v1476, 128
        %1481 = vxpose.xlu0.b32.cont [3/16] 0.0, 128
        %1482 = vxpose.xlu0.b32.cont [4/16] 0.0, 128
        %1483 = vxpose.xlu0.b32.cont [5/16] 0.0, 128
        %1484 = vxpose.xlu0.b32.cont [6/16] 0.0, 128
        %1485 = vxpose.xlu0.b32.cont [7/16] 0.0, 128
        %1486 = vxpose.xlu0.b32.cont [8/16] 0.0, 128
        %1487 = vxpose.xlu0.b32.cont [9/16] 0.0, 128
        %1488 = vxpose.xlu0.b32.cont [10/16] 0.0, 128
        %1489 = vxpose.xlu0.b32.cont [11/16] 0.0, 128
        %1490 = vxpose.xlu0.b32.cont [12/16] 0.0, 128
        %1491 = vxpose.xlu0.b32.cont [13/16] 0.0, 128
        %1492 = vxpose.xlu0.b32.cont [14/16] 0.0, 128
        %1493 = vxpose.xlu0.b32.cont [15/16] 0.0, 128
        %1494 = vxpose.xlu0.b32.end [16/16] 0.0, 128
        %v1495 = vpop.trf.xlu0
        %v1496 = vpop.trf.xlu0
        %v1497 = vpop.trf.xlu0
        %v1498 = vpop.trf.xlu0
        %v1499 = vpop.trf.xlu0
        %v1500 = vpop.trf.xlu0
        %v1501 = vpop.trf.xlu0
        %v1502 = vpop.trf.xlu0
        %v1503 = vpop.trf.xlu0
        %v1504 = vpop.trf.xlu0
        %v1505 = vpop.trf.xlu0
        %v1506 = vpop.trf.xlu0
        %v1507 = vpop.trf.xlu0
        %v1508 = vpop.trf.xlu0
        %v1509 = vpop.trf.xlu0
        %v1510 = vpop.trf.xlu0
        %1511 = vrot.lane.b32.xlu0 %v472, 96
        %v1512 = vpop.permute.xlu0 %1511
        %1513 = vrot.lane.b32.xlu0 %v475, 96
        %v1514 = vpop.permute.xlu0 %1513
        %1517 = vxpose.xlu0.b32.start [1/16] %v1512, 128
        %1518 = vxpose.xlu0.b32.cont [2/16] %v1514, 128
        %1519 = vxpose.xlu0.b32.cont [3/16] 0.0, 128
        %1520 = vxpose.xlu0.b32.cont [4/16] 0.0, 128
        %1521 = vxpose.xlu0.b32.cont [5/16] 0.0, 128
        %1522 = vxpose.xlu0.b32.cont [6/16] 0.0, 128
        %1523 = vxpose.xlu0.b32.cont [7/16] 0.0, 128
        %1524 = vxpose.xlu0.b32.cont [8/16] 0.0, 128
        %1525 = vxpose.xlu0.b32.cont [9/16] 0.0, 128
        %1526 = vxpose.xlu0.b32.cont [10/16] 0.0, 128
        %1527 = vxpose.xlu0.b32.cont [11/16] 0.0, 128
        %1528 = vxpose.xlu0.b32.cont [12/16] 0.0, 128
        %1529 = vxpose.xlu0.b32.cont [13/16] 0.0, 128
        %1530 = vxpose.xlu0.b32.cont [14/16] 0.0, 128
        %1531 = vxpose.xlu0.b32.cont [15/16] 0.0, 128
        %1532 = vxpose.xlu0.b32.end [16/16] 0.0, 128
        %v1533 = vpop.trf.xlu0
        %v1534 = vpop.trf.xlu0
        %v1535 = vpop.trf.xlu0
        %v1536 = vpop.trf.xlu0
        %v1537 = vpop.trf.xlu0
        %v1538 = vpop.trf.xlu0
        %v1539 = vpop.trf.xlu0
        %v1540 = vpop.trf.xlu0
        %v1541 = vpop.trf.xlu0
        %v1542 = vpop.trf.xlu0
        %v1543 = vpop.trf.xlu0
        %v1544 = vpop.trf.xlu0
        %v1545 = vpop.trf.xlu0
        %v1546 = vpop.trf.xlu0
        %v1547 = vpop.trf.xlu0
        %v1548 = vpop.trf.xlu0
        %1549 = vrot.lane.b32.xlu0 %v478, 96
        %v1550 = vpop.permute.xlu0 %1549
        %1551 = vrot.lane.b32.xlu0 %v481, 96
        %v1552 = vpop.permute.xlu0 %1551
        %1555 = vxpose.xlu0.b32.start [1/16] %v1550, 128
        %1556 = vxpose.xlu0.b32.cont [2/16] %v1552, 128
        %1557 = vxpose.xlu0.b32.cont [3/16] 0.0, 128
        %1558 = vxpose.xlu0.b32.cont [4/16] 0.0, 128
        %1559 = vxpose.xlu0.b32.cont [5/16] 0.0, 128
        %1560 = vxpose.xlu0.b32.cont [6/16] 0.0, 128
        %1561 = vxpose.xlu0.b32.cont [7/16] 0.0, 128
        %1562 = vxpose.xlu0.b32.cont [8/16] 0.0, 128
        %1563 = vxpose.xlu0.b32.cont [9/16] 0.0, 128
        %1564 = vxpose.xlu0.b32.cont [10/16] 0.0, 128
        %1565 = vxpose.xlu0.b32.cont [11/16] 0.0, 128
        %1566 = vxpose.xlu0.b32.cont [12/16] 0.0, 128
        %1567 = vxpose.xlu0.b32.cont [13/16] 0.0, 128
        %1568 = vxpose.xlu0.b32.cont [14/16] 0.0, 128
        %1569 = vxpose.xlu0.b32.cont [15/16] 0.0, 128
        %1570 = vxpose.xlu0.b32.end [16/16] 0.0, 128
        %v1571 = vpop.trf.xlu0
        %v1572 = vpop.trf.xlu0
        %v1573 = vpop.trf.xlu0
        %v1574 = vpop.trf.xlu0
        %v1575 = vpop.trf.xlu0
        %v1576 = vpop.trf.xlu0
        %v1577 = vpop.trf.xlu0
        %v1578 = vpop.trf.xlu0
        %v1579 = vpop.trf.xlu0
        %v1580 = vpop.trf.xlu0
        %v1581 = vpop.trf.xlu0
        %v1582 = vpop.trf.xlu0
        %v1583 = vpop.trf.xlu0
        %v1584 = vpop.trf.xlu0
        %v1585 = vpop.trf.xlu0
        %v1586 = vpop.trf.xlu0
        %1587 = vrot.lane.b32.xlu0 %v460, 80
        %v1588 = vpop.permute.xlu0 %1587
        %1589 = vrot.lane.b32.xlu0 %v463, 80
        %v1590 = vpop.permute.xlu0 %1589
        %1593 = vxpose.xlu0.b32.start [1/16] %v1588, 128
        %1594 = vxpose.xlu0.b32.cont [2/16] %v1590, 128
        %1595 = vxpose.xlu0.b32.cont [3/16] 0.0, 128
        %1596 = vxpose.xlu0.b32.cont [4/16] 0.0, 128
        %1597 = vxpose.xlu0.b32.cont [5/16] 0.0, 128
        %1598 = vxpose.xlu0.b32.cont [6/16] 0.0, 128
        %1599 = vxpose.xlu0.b32.cont [7/16] 0.0, 128
        %1600 = vxpose.xlu0.b32.cont [8/16] 0.0, 128
        %1601 = vxpose.xlu0.b32.cont [9/16] 0.0, 128
        %1602 = vxpose.xlu0.b32.cont [10/16] 0.0, 128
        %1603 = vxpose.xlu0.b32.cont [11/16] 0.0, 128
        %1604 = vxpose.xlu0.b32.cont [12/16] 0.0, 128
        %1605 = vxpose.xlu0.b32.cont [13/16] 0.0, 128
        %1606 = vxpose.xlu0.b32.cont [14/16] 0.0, 128
        %1607 = vxpose.xlu0.b32.cont [15/16] 0.0, 128
        %1608 = vxpose.xlu0.b32.end [16/16] 0.0, 128
        %v1609 = vpop.trf.xlu0
        %v1610 = vpop.trf.xlu0
        %v1611 = vpop.trf.xlu0
        %v1612 = vpop.trf.xlu0
        %v1613 = vpop.trf.xlu0
        %v1614 = vpop.trf.xlu0
        %v1615 = vpop.trf.xlu0
        %v1616 = vpop.trf.xlu0
        %v1617 = vpop.trf.xlu0
        %v1618 = vpop.trf.xlu0
        %v1619 = vpop.trf.xlu0
        %v1620 = vpop.trf.xlu0
        %v1621 = vpop.trf.xlu0
        %v1622 = vpop.trf.xlu0
        %v1623 = vpop.trf.xlu0
        %v1624 = vpop.trf.xlu0
        %1625 = vrot.lane.b32.xlu0 %v466, 80
        %v1626 = vpop.permute.xlu0 %1625
        %1627 = vrot.lane.b32.xlu0 %v469, 80
        %v1628 = vpop.permute.xlu0 %1627
        %1631 = vxpose.xlu0.b32.start [1/16] %v1626, 128
        %1632 = vxpose.xlu0.b32.cont [2/16] %v1628, 128
        %1633 = vxpose.xlu0.b32.cont [3/16] 0.0, 128
        %1634 = vxpose.xlu0.b32.cont [4/16] 0.0, 128
        %1635 = vxpose.xlu0.b32.cont [5/16] 0.0, 128
        %1636 = vxpose.xlu0.b32.cont [6/16] 0.0, 128
        %1637 = vxpose.xlu0.b32.cont [7/16] 0.0, 128
        %1638 = vxpose.xlu0.b32.cont [8/16] 0.0, 128
        %1639 = vxpose.xlu0.b32.cont [9/16] 0.0, 128
        %1640 = vxpose.xlu0.b32.cont [10/16] 0.0, 128
        %1641 = vxpose.xlu0.b32.cont [11/16] 0.0, 128
        %1642 = vxpose.xlu0.b32.cont [12/16] 0.0, 128
        %1643 = vxpose.xlu0.b32.cont [13/16] 0.0, 128
        %1644 = vxpose.xlu0.b32.cont [14/16] 0.0, 128
        %1645 = vxpose.xlu0.b32.cont [15/16] 0.0, 128
        %1646 = vxpose.xlu0.b32.end [16/16] 0.0, 128
        %v1647 = vpop.trf.xlu0
        %v1648 = vpop.trf.xlu0
        %v1649 = vpop.trf.xlu0
        %v1650 = vpop.trf.xlu0
        %v1651 = vpop.trf.xlu0
        %v1652 = vpop.trf.xlu0
        %v1653 = vpop.trf.xlu0
        %v1654 = vpop.trf.xlu0
        %v1655 = vpop.trf.xlu0
        %v1656 = vpop.trf.xlu0
        %v1657 = vpop.trf.xlu0
        %v1658 = vpop.trf.xlu0
        %v1659 = vpop.trf.xlu0
        %v1660 = vpop.trf.xlu0
        %v1661 = vpop.trf.xlu0
        %v1662 = vpop.trf.xlu0
        %1663 = vrot.lane.b32.xlu0 %v472, 80
        %v1664 = vpop.permute.xlu0 %1663
        %1665 = vrot.lane.b32.xlu0 %v475, 80
        %v1666 = vpop.permute.xlu0 %1665
        %1669 = vxpose.xlu0.b32.start [1/16] %v1664, 128
        %1670 = vxpose.xlu0.b32.cont [2/16] %v1666, 128
        %1671 = vxpose.xlu0.b32.cont [3/16] 0.0, 128
        %1672 = vxpose.xlu0.b32.cont [4/16] 0.0, 128
        %1673 = vxpose.xlu0.b32.cont [5/16] 0.0, 128
        %1674 = vxpose.xlu0.b32.cont [6/16] 0.0, 128
        %1675 = vxpose.xlu0.b32.cont [7/16] 0.0, 128
        %1676 = vxpose.xlu0.b32.cont [8/16] 0.0, 128
        %1677 = vxpose.xlu0.b32.cont [9/16] 0.0, 128
        %1678 = vxpose.xlu0.b32.cont [10/16] 0.0, 128
        %1679 = vxpose.xlu0.b32.cont [11/16] 0.0, 128
        %1680 = vxpose.xlu0.b32.cont [12/16] 0.0, 128
        %1681 = vxpose.xlu0.b32.cont [13/16] 0.0, 128
        %1682 = vxpose.xlu0.b32.cont [14/16] 0.0, 128
        %1683 = vxpose.xlu0.b32.cont [15/16] 0.0, 128
        %1684 = vxpose.xlu0.b32.end [16/16] 0.0, 128
        %v1685 = vpop.trf.xlu0
        %v1686 = vpop.trf.xlu0
        %v1687 = vpop.trf.xlu0
        %v1688 = vpop.trf.xlu0
        %v1689 = vpop.trf.xlu0
        %v1690 = vpop.trf.xlu0
        %v1691 = vpop.trf.xlu0
        %v1692 = vpop.trf.xlu0
        %v1693 = vpop.trf.xlu0
        %v1694 = vpop.trf.xlu0
        %v1695 = vpop.trf.xlu0
        %v1696 = vpop.trf.xlu0
        %v1697 = vpop.trf.xlu0
        %v1698 = vpop.trf.xlu0
        %v1699 = vpop.trf.xlu0
        %v1700 = vpop.trf.xlu0
        %1701 = vrot.lane.b32.xlu0 %v478, 80
        %v1702 = vpop.permute.xlu0 %1701
        %1703 = vrot.lane.b32.xlu0 %v481, 80
        %v1704 = vpop.permute.xlu0 %1703
        %1707 = vxpose.xlu0.b32.start [1/16] %v1702, 128
        %1708 = vxpose.xlu0.b32.cont [2/16] %v1704, 128
        %1709 = vxpose.xlu0.b32.cont [3/16] 0.0, 128
        %1710 = vxpose.xlu0.b32.cont [4/16] 0.0, 128
        %1711 = vxpose.xlu0.b32.cont [5/16] 0.0, 128
        %1712 = vxpose.xlu0.b32.cont [6/16] 0.0, 128
        %1713 = vxpose.xlu0.b32.cont [7/16] 0.0, 128
        %1714 = vxpose.xlu0.b32.cont [8/16] 0.0, 128
        %1715 = vxpose.xlu0.b32.cont [9/16] 0.0, 128
        %1716 = vxpose.xlu0.b32.cont [10/16] 0.0, 128
        %1717 = vxpose.xlu0.b32.cont [11/16] 0.0, 128
        %1718 = vxpose.xlu0.b32.cont [12/16] 0.0, 128
        %1719 = vxpose.xlu0.b32.cont [13/16] 0.0, 128
        %1720 = vxpose.xlu0.b32.cont [14/16] 0.0, 128
        %1721 = vxpose.xlu0.b32.cont [15/16] 0.0, 128
        %1722 = vxpose.xlu0.b32.end [16/16] 0.0, 128
        %v1723 = vpop.trf.xlu0
        %v1724 = vpop.trf.xlu0
        %v1725 = vpop.trf.xlu0
        %v1726 = vpop.trf.xlu0
        %v1727 = vpop.trf.xlu0
        %v1728 = vpop.trf.xlu0
        %v1729 = vpop.trf.xlu0
        %v1730 = vpop.trf.xlu0
        %v1731 = vpop.trf.xlu0
        %v1732 = vpop.trf.xlu0
        %v1733 = vpop.trf.xlu0
        %v1734 = vpop.trf.xlu0
        %v1735 = vpop.trf.xlu0
        %v1736 = vpop.trf.xlu0
        %v1737 = vpop.trf.xlu0
        %v1738 = vpop.trf.xlu0
        %s1739 = scalar_lea.vmem %s382, 32
        %v1740 = vld [vmem:[%s1739] sm:$0xff]
        %v1741 = vld [vmem:[%s1739 + $0x8] sm:$0xff]
        %v1742 = vld [vmem:[%s1739 + $0x10] sm:$0xff]
        %v1743 = vld [vmem:[%s1739 + $0x18] sm:$0xff]
        %v1745 = vsel %vm775, %v1609, 0
        %v1748 = vsel %vm775, %v1610, 0
        %v1751 = vsel %vm775, %v1647, 0
        %v1754 = vsel %vm775, %v1648, 0
        %v1757 = vsel %vm775, %v1685, 0
        %v1760 = vsel %vm775, %v1686, 0
        %v1763 = vsel %vm775, %v1723, 0
        %v1766 = vsel %vm775, %v1724, 0
        %1768 = vmatpush.msra.mxu0 0.0
        %1769 = vmatpush.msra.mxu0 0.0
        %1770 = vmatpush.msra.mxu0 0.0
        %1771 = vmatpush.msra.mxu0 0.0
        %1772 = vmatpush.msra.mxu0 0.0
        %1773 = vmatpush.msra.mxu0 0.0
        %1774 = vmatpush.msra.mxu0 0.0
        %1775 = vmatpush.msra.mxu0 0.0
        %1776 = vmatpush.msra.mxu0 0.0
        %1777 = vmatpush.msra.mxu0 0.0
        %1778 = vmatpush.msra.mxu0 0.0
        %1779 = vmatpush.msra.mxu0 0.0
        %1780 = vmatpush.msra.mxu0 0.0
        %1781 = vmatpush.msra.mxu0 0.0
        %1782 = vmatpush.msra.mxu0 %v1743
        %1783 = vmatpush.msra.mxu0 %v1742
        %1784 = vmatmul.f32.gmra.mxu0 %v1745
        %v1785 = vpop.f32.mrf.mxu0
        %v1786 = vadd.f32 0.0, %v1785
        %1787 = vmatmul.f32.gmra.mxu0 %v1748
        %v1788 = vpop.f32.mrf.mxu0
        %v1789 = vadd.f32 0.0, %v1788
        %1790 = vmatmul.f32.gmra.mxu0 %v1751
        %v1791 = vpop.f32.mrf.mxu0
        %v1792 = vadd.f32 0.0, %v1791
        %1793 = vmatmul.f32.gmra.mxu0 %v1754
        %v1794 = vpop.f32.mrf.mxu0
        %v1795 = vadd.f32 0.0, %v1794
        %1796 = vmatmul.f32.gmra.mxu0 %v1757
        %v1797 = vpop.f32.mrf.mxu0
        %v1798 = vadd.f32 0.0, %v1797
        %1799 = vmatmul.f32.gmra.mxu0 %v1760
        %v1800 = vpop.f32.mrf.mxu0
        %v1801 = vadd.f32 0.0, %v1800
        %1802 = vmatmul.f32.gmra.mxu0 %v1763
        %v1803 = vpop.f32.mrf.mxu0
        %v1804 = vadd.f32 0.0, %v1803
        %1805 = vmatmul.f32.gmra.mxu0 %v1766
        %v1806 = vpop.f32.mrf.mxu0
        %v1807 = vadd.f32 0.0, %v1806
        %1808 = vdwg.mxu0
        %v1810 = vsel %vm775, %v1457, 0
        %v1813 = vsel %vm775, %v1458, 0
        %v1816 = vsel %vm775, %v1495, 0
        %v1819 = vsel %vm775, %v1496, 0
        %v1822 = vsel %vm775, %v1533, 0
        %v1825 = vsel %vm775, %v1534, 0
        %v1828 = vsel %vm775, %v1571, 0
        %v1831 = vsel %vm775, %v1572, 0
        %1833 = vmatpush.msra.mxu0 0.0
        %1834 = vmatpush.msra.mxu0 0.0
        %1835 = vmatpush.msra.mxu0 0.0
        %1836 = vmatpush.msra.mxu0 0.0
        %1837 = vmatpush.msra.mxu0 0.0
        %1838 = vmatpush.msra.mxu0 0.0
        %1839 = vmatpush.msra.mxu0 0.0
        %1840 = vmatpush.msra.mxu0 0.0
        %1841 = vmatpush.msra.mxu0 0.0
        %1842 = vmatpush.msra.mxu0 0.0
        %1843 = vmatpush.msra.mxu0 0.0
        %1844 = vmatpush.msra.mxu0 0.0
        %1845 = vmatpush.msra.mxu0 0.0
        %1846 = vmatpush.msra.mxu0 0.0
        %1847 = vmatpush.msra.mxu0 %v1741
        %1848 = vmatpush.msra.mxu0 %v1740
        %1849 = vmatmul.f32.gmra.mxu0 %v1810
        %v1850 = vpop.f32.mrf.mxu0
        %v1851 = vadd.f32 %v1786, %v1850
        %1852 = vmatmul.f32.gmra.mxu0 %v1813
        %v1853 = vpop.f32.mrf.mxu0
        %v1854 = vadd.f32 %v1789, %v1853
        %1855 = vmatmul.f32.gmra.mxu0 %v1816
        %v1856 = vpop.f32.mrf.mxu0
        %v1857 = vadd.f32 %v1792, %v1856
        %1858 = vmatmul.f32.gmra.mxu0 %v1819
        %v1859 = vpop.f32.mrf.mxu0
        %v1860 = vadd.f32 %v1795, %v1859
        %1861 = vmatmul.f32.gmra.mxu0 %v1822
        %v1862 = vpop.f32.mrf.mxu0
        %v1863 = vadd.f32 %v1798, %v1862
        %1864 = vmatmul.f32.gmra.mxu0 %v1825
        %v1865 = vpop.f32.mrf.mxu0
        %v1866 = vadd.f32 %v1801, %v1865
        %1867 = vmatmul.f32.gmra.mxu0 %v1828
        %v1868 = vpop.f32.mrf.mxu0
        %v1869 = vadd.f32 %v1804, %v1868
        %1870 = vmatmul.f32.gmra.mxu0 %v1831
        %v1871 = vpop.f32.mrf.mxu0
        %v1872 = vadd.f32 %v1807, %v1871
        %1873 = vdwg.mxu0
        %v1874 = vmax.f32 %v1851, 0.0
        %v1875 = vmax.f32 %v1854, 0.0
        %v1876 = vmax.f32 %v1857, 0.0
        %v1877 = vmax.f32 %v1860, 0.0
        %v1878 = vmax.f32 %v1863, 0.0
        %v1879 = vmax.f32 %v1866, 0.0
        %v1880 = vmax.f32 %v1869, 0.0
        %v1881 = vmax.f32 %v1872, 0.0
        %s1882 = scalar_lea.vmem %s326, 16 [#allocation7]
        %v1883 = vld [vmem:[%s1882] sm:$0xff]
        %v1884 = vld [vmem:[%s1882 + $0x8] sm:$0xff]
        %v1886 = vsel %vm775, %v1874, 0
        %v1889 = vsel %vm775, %v1875, 0
        %v1892 = vsel %vm775, %v1876, 0
        %v1895 = vsel %vm775, %v1877, 0
        %v1898 = vsel %vm775, %v1878, 0
        %v1901 = vsel %vm775, %v1879, 0
        %v1904 = vsel %vm775, %v1880, 0
        %v1907 = vsel %vm775, %v1881, 0
        %1909 = vmatpush.msra.mxu0 0.0
        %1910 = vmatpush.msra.mxu0 0.0
        %1911 = vmatpush.msra.mxu0 0.0
        %1912 = vmatpush.msra.mxu0 0.0
        %1913 = vmatpush.msra.mxu0 0.0
        %1914 = vmatpush.msra.mxu0 0.0
        %1915 = vmatpush.msra.mxu0 0.0
        %1916 = vmatpush.msra.mxu0 0.0
        %1917 = vmatpush.msra.mxu0 0.0
        %1918 = vmatpush.msra.mxu0 0.0
        %1919 = vmatpush.msra.mxu0 0.0
        %1920 = vmatpush.msra.mxu0 0.0
        %1921 = vmatpush.msra.mxu0 0.0
        %1922 = vmatpush.msra.mxu0 0.0
        %1923 = vmatpush.msra.mxu0 %v1884
        %1924 = vmatpush.msra.mxu0 %v1883
        %1925 = vmatmul.f32.gmra.mxu0 %v1886
        %v1926 = vpop.f32.mrf.mxu0
        %v1927 = vadd.f32 0.0, %v1926
        %1928 = vmatmul.f32.gmra.mxu0 %v1889
        %v1929 = vpop.f32.mrf.mxu0
        %v1930 = vadd.f32 0.0, %v1929
        %1931 = vmatmul.f32.gmra.mxu0 %v1892
        %v1932 = vpop.f32.mrf.mxu0
        %v1933 = vadd.f32 0.0, %v1932
        %1934 = vmatmul.f32.gmra.mxu0 %v1895
        %v1935 = vpop.f32.mrf.mxu0
        %v1936 = vadd.f32 0.0, %v1935
        %1937 = vmatmul.f32.gmra.mxu0 %v1898
        %v1938 = vpop.f32.mrf.mxu0
        %v1939 = vadd.f32 0.0, %v1938
        %1940 = vmatmul.f32.gmra.mxu0 %v1901
        %v1941 = vpop.f32.mrf.mxu0
        %v1942 = vadd.f32 0.0, %v1941
        %1943 = vmatmul.f32.gmra.mxu0 %v1904
        %v1944 = vpop.f32.mrf.mxu0
        %v1945 = vadd.f32 0.0, %v1944
        %1946 = vmatmul.f32.gmra.mxu0 %v1907
        %v1947 = vpop.f32.mrf.mxu0
        %v1948 = vadd.f32 0.0, %v1947
        %1949 = vdwg.mxu0
        %1950 = vxpose.xlu0.b32.start [1/16] %v1927, 128
        %1951 = vxpose.xlu0.b32.cont [2/16] %v1930, 128
        %1952 = vxpose.xlu0.b32.cont [3/16] 0.0, 128
        %1953 = vxpose.xlu0.b32.cont [4/16] 0.0, 128
        %1954 = vxpose.xlu0.b32.cont [5/16] 0.0, 128
        %1955 = vxpose.xlu0.b32.cont [6/16] 0.0, 128
        %1956 = vxpose.xlu0.b32.cont [7/16] 0.0, 128
        %1957 = vxpose.xlu0.b32.cont [8/16] 0.0, 128
        %1958 = vxpose.xlu0.b32.cont [9/16] 0.0, 128
        %1959 = vxpose.xlu0.b32.cont [10/16] 0.0, 128
        %1960 = vxpose.xlu0.b32.cont [11/16] 0.0, 128
        %1961 = vxpose.xlu0.b32.cont [12/16] 0.0, 128
        %1962 = vxpose.xlu0.b32.cont [13/16] 0.0, 128
        %1963 = vxpose.xlu0.b32.cont [14/16] 0.0, 128
        %1964 = vxpose.xlu0.b32.cont [15/16] 0.0, 128
        %1965 = vxpose.xlu0.b32.end [16/16] 0.0, 128
        %v1966 = vpop.trf.xlu0
        %v1967 = vpop.trf.xlu0
        %v1968 = vpop.trf.xlu0
        %v1969 = vpop.trf.xlu0
        %v1970 = vpop.trf.xlu0
        %v1971 = vpop.trf.xlu0
        %v1972 = vpop.trf.xlu0
        %v1973 = vpop.trf.xlu0
        %v1974 = vpop.trf.xlu0
        %v1975 = vpop.trf.xlu0
        %v1976 = vpop.trf.xlu0
        %v1977 = vpop.trf.xlu0
        %v1978 = vpop.trf.xlu0
        %v1979 = vpop.trf.xlu0
        %v1980 = vpop.trf.xlu0
        %v1981 = vpop.trf.xlu0
        %1982 = vxpose.xlu0.b32.start [1/16] %v1933, 128
        %1983 = vxpose.xlu0.b32.cont [2/16] %v1936, 128
        %1984 = vxpose.xlu0.b32.cont [3/16] 0.0, 128
        %1985 = vxpose.xlu0.b32.cont [4/16] 0.0, 128
        %1986 = vxpose.xlu0.b32.cont [5/16] 0.0, 128
        %1987 = vxpose.xlu0.b32.cont [6/16] 0.0, 128
        %1988 = vxpose.xlu0.b32.cont [7/16] 0.0, 128
        %1989 = vxpose.xlu0.b32.cont [8/16] 0.0, 128
        %1990 = vxpose.xlu0.b32.cont [9/16] 0.0, 128
        %1991 = vxpose.xlu0.b32.cont [10/16] 0.0, 128
        %1992 = vxpose.xlu0.b32.cont [11/16] 0.0, 128
        %1993 = vxpose.xlu0.b32.cont [12/16] 0.0, 128
        %1994 = vxpose.xlu0.b32.cont [13/16] 0.0, 128
        %1995 = vxpose.xlu0.b32.cont [14/16] 0.0, 128
        %1996 = vxpose.xlu0.b32.cont [15/16] 0.0, 128
        %1997 = vxpose.xlu0.b32.end [16/16] 0.0, 128
        %v1998 = vpop.trf.xlu0
        %v1999 = vpop.trf.xlu0
        %v2000 = vpop.trf.xlu0
        %v2001 = vpop.trf.xlu0
        %v2002 = vpop.trf.xlu0
        %v2003 = vpop.trf.xlu0
        %v2004 = vpop.trf.xlu0
        %v2005 = vpop.trf.xlu0
        %v2006 = vpop.trf.xlu0
        %v2007 = vpop.trf.xlu0
        %v2008 = vpop.trf.xlu0
        %v2009 = vpop.trf.xlu0
        %v2010 = vpop.trf.xlu0
        %v2011 = vpop.trf.xlu0
        %v2012 = vpop.trf.xlu0
        %v2013 = vpop.trf.xlu0
        %2014 = vxpose.xlu0.b32.start [1/16] %v1939, 128
        %2015 = vxpose.xlu0.b32.cont [2/16] %v1942, 128
        %2016 = vxpose.xlu0.b32.cont [3/16] 0.0, 128
        %2017 = vxpose.xlu0.b32.cont [4/16] 0.0, 128
        %2018 = vxpose.xlu0.b32.cont [5/16] 0.0, 128
        %2019 = vxpose.xlu0.b32.cont [6/16] 0.0, 128
        %2020 = vxpose.xlu0.b32.cont [7/16] 0.0, 128
        %2021 = vxpose.xlu0.b32.cont [8/16] 0.0, 128
        %2022 = vxpose.xlu0.b32.cont [9/16] 0.0, 128
        %2023 = vxpose.xlu0.b32.cont [10/16] 0.0, 128
        %2024 = vxpose.xlu0.b32.cont [11/16] 0.0, 128
        %2025 = vxpose.xlu0.b32.cont [12/16] 0.0, 128
        %2026 = vxpose.xlu0.b32.cont [13/16] 0.0, 128
        %2027 = vxpose.xlu0.b32.cont [14/16] 0.0, 128
        %2028 = vxpose.xlu0.b32.cont [15/16] 0.0, 128
        %2029 = vxpose.xlu0.b32.end [16/16] 0.0, 128
        %v2030 = vpop.trf.xlu0
        %v2031 = vpop.trf.xlu0
        %v2032 = vpop.trf.xlu0
        %v2033 = vpop.trf.xlu0
        %v2034 = vpop.trf.xlu0
        %v2035 = vpop.trf.xlu0
        %v2036 = vpop.trf.xlu0
        %v2037 = vpop.trf.xlu0
        %v2038 = vpop.trf.xlu0
        %v2039 = vpop.trf.xlu0
        %v2040 = vpop.trf.xlu0
        %v2041 = vpop.trf.xlu0
        %v2042 = vpop.trf.xlu0
        %v2043 = vpop.trf.xlu0
        %v2044 = vpop.trf.xlu0
        %v2045 = vpop.trf.xlu0
        %2046 = vxpose.xlu0.b32.start [1/16] %v1945, 128
        %2047 = vxpose.xlu0.b32.cont [2/16] %v1948, 128
        %2048 = vxpose.xlu0.b32.cont [3/16] 0.0, 128
        %2049 = vxpose.xlu0.b32.cont [4/16] 0.0, 128
        %2050 = vxpose.xlu0.b32.cont [5/16] 0.0, 128
        %2051 = vxpose.xlu0.b32.cont [6/16] 0.0, 128
        %2052 = vxpose.xlu0.b32.cont [7/16] 0.0, 128
        %2053 = vxpose.xlu0.b32.cont [8/16] 0.0, 128
        %2054 = vxpose.xlu0.b32.cont [9/16] 0.0, 128
        %2055 = vxpose.xlu0.b32.cont [10/16] 0.0, 128
        %2056 = vxpose.xlu0.b32.cont [11/16] 0.0, 128
        %2057 = vxpose.xlu0.b32.cont [12/16] 0.0, 128
        %2058 = vxpose.xlu0.b32.cont [13/16] 0.0, 128
        %2059 = vxpose.xlu0.b32.cont [14/16] 0.0, 128
        %2060 = vxpose.xlu0.b32.cont [15/16] 0.0, 128
        %2061 = vxpose.xlu0.b32.end [16/16] 0.0, 128
        %v2062 = vpop.trf.xlu0
        %v2063 = vpop.trf.xlu0
        %v2064 = vpop.trf.xlu0
        %v2065 = vpop.trf.xlu0
        %v2066 = vpop.trf.xlu0
        %v2067 = vpop.trf.xlu0
        %v2068 = vpop.trf.xlu0
        %v2069 = vpop.trf.xlu0
        %v2070 = vpop.trf.xlu0
        %v2071 = vpop.trf.xlu0
        %v2072 = vpop.trf.xlu0
        %v2073 = vpop.trf.xlu0
        %v2074 = vpop.trf.xlu0
        %v2075 = vpop.trf.xlu0
        %v2076 = vpop.trf.xlu0
        %v2077 = vpop.trf.xlu0
        %2080 = vrot.lane.b32.xlu0 %v1927, 112
        %v2081 = vpop.permute.xlu0 %2080
        %2082 = vrot.lane.b32.xlu0 %v1930, 112
        %v2083 = vpop.permute.xlu0 %2082
        %2086 = vxpose.xlu0.b32.start [1/16] %v2081, 128
        %2087 = vxpose.xlu0.b32.cont [2/16] %v2083, 128
        %2088 = vxpose.xlu0.b32.cont [3/16] 0.0, 128
        %2089 = vxpose.xlu0.b32.cont [4/16] 0.0, 128
        %2090 = vxpose.xlu0.b32.cont [5/16] 0.0, 128
        %2091 = vxpose.xlu0.b32.cont [6/16] 0.0, 128
        %2092 = vxpose.xlu0.b32.cont [7/16] 0.0, 128
        %2093 = vxpose.xlu0.b32.cont [8/16] 0.0, 128
        %2094 = vxpose.xlu0.b32.cont [9/16] 0.0, 128
        %2095 = vxpose.xlu0.b32.cont [10/16] 0.0, 128
        %2096 = vxpose.xlu0.b32.cont [11/16] 0.0, 128
        %2097 = vxpose.xlu0.b32.cont [12/16] 0.0, 128
        %2098 = vxpose.xlu0.b32.cont [13/16] 0.0, 128
        %2099 = vxpose.xlu0.b32.cont [14/16] 0.0, 128
        %2100 = vxpose.xlu0.b32.cont [15/16] 0.0, 128
        %2101 = vxpose.xlu0.b32.end [16/16] 0.0, 128
        %v2102 = vpop.trf.xlu0
        %v2103 = vpop.trf.xlu0
        %v2104 = vpop.trf.xlu0
        %v2105 = vpop.trf.xlu0
        %v2106 = vpop.trf.xlu0
        %v2107 = vpop.trf.xlu0
        %v2108 = vpop.trf.xlu0
        %v2109 = vpop.trf.xlu0
        %v2110 = vpop.trf.xlu0
        %v2111 = vpop.trf.xlu0
        %v2112 = vpop.trf.xlu0
        %v2113 = vpop.trf.xlu0
        %v2114 = vpop.trf.xlu0
        %v2115 = vpop.trf.xlu0
        %v2116 = vpop.trf.xlu0
        %v2117 = vpop.trf.xlu0
        %2120 = vrot.lane.b32.xlu0 %v1933, 112
        %v2121 = vpop.permute.xlu0 %2120
        %2122 = vrot.lane.b32.xlu0 %v1936, 112
        %v2123 = vpop.permute.xlu0 %2122
        %2126 = vxpose.xlu0.b32.start [1/16] %v2121, 128
        %2127 = vxpose.xlu0.b32.cont [2/16] %v2123, 128
        %2128 = vxpose.xlu0.b32.cont [3/16] 0.0, 128
        %2129 = vxpose.xlu0.b32.cont [4/16] 0.0, 128
        %2130 = vxpose.xlu0.b32.cont [5/16] 0.0, 128
        %2131 = vxpose.xlu0.b32.cont [6/16] 0.0, 128
        %2132 = vxpose.xlu0.b32.cont [7/16] 0.0, 128
        %2133 = vxpose.xlu0.b32.cont [8/16] 0.0, 128
        %2134 = vxpose.xlu0.b32.cont [9/16] 0.0, 128
        %2135 = vxpose.xlu0.b32.cont [10/16] 0.0, 128
        %2136 = vxpose.xlu0.b32.cont [11/16] 0.0, 128
        %2137 = vxpose.xlu0.b32.cont [12/16] 0.0, 128
        %2138 = vxpose.xlu0.b32.cont [13/16] 0.0, 128
        %2139 = vxpose.xlu0.b32.cont [14/16] 0.0, 128
        %2140 = vxpose.xlu0.b32.cont [15/16] 0.0, 128
        %2141 = vxpose.xlu0.b32.end [16/16] 0.0, 128
        %v2142 = vpop.trf.xlu0
        %v2143 = vpop.trf.xlu0
        %v2144 = vpop.trf.xlu0
        %v2145 = vpop.trf.xlu0
        %v2146 = vpop.trf.xlu0
        %v2147 = vpop.trf.xlu0
        %v2148 = vpop.trf.xlu0
        %v2149 = vpop.trf.xlu0
        %v2150 = vpop.trf.xlu0
        %v2151 = vpop.trf.xlu0
        %v2152 = vpop.trf.xlu0
        %v2153 = vpop.trf.xlu0
        %v2154 = vpop.trf.xlu0
        %v2155 = vpop.trf.xlu0
        %v2156 = vpop.trf.xlu0
        %v2157 = vpop.trf.xlu0
        %2160 = vrot.lane.b32.xlu0 %v1939, 112
        %v2161 = vpop.permute.xlu0 %2160
        %2162 = vrot.lane.b32.xlu0 %v1942, 112
        %v2163 = vpop.permute.xlu0 %2162
        %2166 = vxpose.xlu0.b32.start [1/16] %v2161, 128
        %2167 = vxpose.xlu0.b32.cont [2/16] %v2163, 128
        %2168 = vxpose.xlu0.b32.cont [3/16] 0.0, 128
        %2169 = vxpose.xlu0.b32.cont [4/16] 0.0, 128
        %2170 = vxpose.xlu0.b32.cont [5/16] 0.0, 128
        %2171 = vxpose.xlu0.b32.cont [6/16] 0.0, 128
        %2172 = vxpose.xlu0.b32.cont [7/16] 0.0, 128
        %2173 = vxpose.xlu0.b32.cont [8/16] 0.0, 128
        %2174 = vxpose.xlu0.b32.cont [9/16] 0.0, 128
        %2175 = vxpose.xlu0.b32.cont [10/16] 0.0, 128
        %2176 = vxpose.xlu0.b32.cont [11/16] 0.0, 128
        %2177 = vxpose.xlu0.b32.cont [12/16] 0.0, 128
        %2178 = vxpose.xlu0.b32.cont [13/16] 0.0, 128
        %2179 = vxpose.xlu0.b32.cont [14/16] 0.0, 128
        %2180 = vxpose.xlu0.b32.cont [15/16] 0.0, 128
        %2181 = vxpose.xlu0.b32.end [16/16] 0.0, 128
        %v2182 = vpop.trf.xlu0
        %v2183 = vpop.trf.xlu0
        %v2184 = vpop.trf.xlu0
        %v2185 = vpop.trf.xlu0
        %v2186 = vpop.trf.xlu0
        %v2187 = vpop.trf.xlu0
        %v2188 = vpop.trf.xlu0
        %v2189 = vpop.trf.xlu0
        %v2190 = vpop.trf.xlu0
        %v2191 = vpop.trf.xlu0
        %v2192 = vpop.trf.xlu0
        %v2193 = vpop.trf.xlu0
        %v2194 = vpop.trf.xlu0
        %v2195 = vpop.trf.xlu0
        %v2196 = vpop.trf.xlu0
        %v2197 = vpop.trf.xlu0
        %2200 = vrot.lane.b32.xlu0 %v1945, 112
        %v2201 = vpop.permute.xlu0 %2200
        %2202 = vrot.lane.b32.xlu0 %v1948, 112
        %v2203 = vpop.permute.xlu0 %2202
        %2206 = vxpose.xlu0.b32.start [1/16] %v2201, 128
        %2207 = vxpose.xlu0.b32.cont [2/16] %v2203, 128
        %2208 = vxpose.xlu0.b32.cont [3/16] 0.0, 128
        %2209 = vxpose.xlu0.b32.cont [4/16] 0.0, 128
        %2210 = vxpose.xlu0.b32.cont [5/16] 0.0, 128
        %2211 = vxpose.xlu0.b32.cont [6/16] 0.0, 128
        %2212 = vxpose.xlu0.b32.cont [7/16] 0.0, 128
        %2213 = vxpose.xlu0.b32.cont [8/16] 0.0, 128
        %2214 = vxpose.xlu0.b32.cont [9/16] 0.0, 128
        %2215 = vxpose.xlu0.b32.cont [10/16] 0.0, 128
        %2216 = vxpose.xlu0.b32.cont [11/16] 0.0, 128
        %2217 = vxpose.xlu0.b32.cont [12/16] 0.0, 128
        %2218 = vxpose.xlu0.b32.cont [13/16] 0.0, 128
        %2219 = vxpose.xlu0.b32.cont [14/16] 0.0, 128
        %2220 = vxpose.xlu0.b32.cont [15/16] 0.0, 128
        %2221 = vxpose.xlu0.b32.end [16/16] 0.0, 128
        %v2222 = vpop.trf.xlu0
        %v2223 = vpop.trf.xlu0
        %v2224 = vpop.trf.xlu0
        %v2225 = vpop.trf.xlu0
        %v2226 = vpop.trf.xlu0
        %v2227 = vpop.trf.xlu0
        %v2228 = vpop.trf.xlu0
        %v2229 = vpop.trf.xlu0
        %v2230 = vpop.trf.xlu0
        %v2231 = vpop.trf.xlu0
        %v2232 = vpop.trf.xlu0
        %v2233 = vpop.trf.xlu0
        %v2234 = vpop.trf.xlu0
        %v2235 = vpop.trf.xlu0
        %v2236 = vpop.trf.xlu0
        %v2237 = vpop.trf.xlu0
        %s2238 = scalar_lea.vmem %s390, 48
        %v2239 = vld [vmem:[%s2238] sm:$0xff]
        %v2240 = vld [vmem:[%s2238 + $0x8] sm:$0xff]
        %v2241 = vld [vmem:[%s2238 + $0x10] sm:$0xff]
        %v2242 = vld [vmem:[%s2238 + $0x18] sm:$0xff]
        %v2244 = vsel %vm775, %v2102, 0
        %v2247 = vsel %vm775, %v2103, 0
        %v2250 = vsel %vm775, %v2142, 0
        %v2253 = vsel %vm775, %v2143, 0
        %v2256 = vsel %vm775, %v2182, 0
        %v2259 = vsel %vm775, %v2183, 0
        %v2262 = vsel %vm775, %v2222, 0
        %v2265 = vsel %vm775, %v2223, 0
        %2267 = vmatpush.msra.mxu0 0.0
        %2268 = vmatpush.msra.mxu0 0.0
        %2269 = vmatpush.msra.mxu0 0.0
        %2270 = vmatpush.msra.mxu0 0.0
        %2271 = vmatpush.msra.mxu0 0.0
        %2272 = vmatpush.msra.mxu0 0.0
        %2273 = vmatpush.msra.mxu0 0.0
        %2274 = vmatpush.msra.mxu0 0.0
        %2275 = vmatpush.msra.mxu0 0.0
        %2276 = vmatpush.msra.mxu0 0.0
        %2277 = vmatpush.msra.mxu0 0.0
        %2278 = vmatpush.msra.mxu0 0.0
        %2279 = vmatpush.msra.mxu0 0.0
        %2280 = vmatpush.msra.mxu0 0.0
        %2281 = vmatpush.msra.mxu0 %v2242
        %2282 = vmatpush.msra.mxu0 %v2241
        %2283 = vmatmul.f32.gmra.mxu0 %v2244
        %v2284 = vpop.f32.mrf.mxu0
        %v2285 = vadd.f32 0.0, %v2284
        %2286 = vmatmul.f32.gmra.mxu0 %v2247
        %v2287 = vpop.f32.mrf.mxu0
        %v2288 = vadd.f32 0.0, %v2287
        %2289 = vmatmul.f32.gmra.mxu0 %v2250
        %v2290 = vpop.f32.mrf.mxu0
        %v2291 = vadd.f32 0.0, %v2290
        %2292 = vmatmul.f32.gmra.mxu0 %v2253
        %v2293 = vpop.f32.mrf.mxu0
        %v2294 = vadd.f32 0.0, %v2293
        %2295 = vmatmul.f32.gmra.mxu0 %v2256
        %v2296 = vpop.f32.mrf.mxu0
        %v2297 = vadd.f32 0.0, %v2296
        %2298 = vmatmul.f32.gmra.mxu0 %v2259
        %v2299 = vpop.f32.mrf.mxu0
        %v2300 = vadd.f32 0.0, %v2299
        %2301 = vmatmul.f32.gmra.mxu0 %v2262
        %v2302 = vpop.f32.mrf.mxu0
        %v2303 = vadd.f32 0.0, %v2302
        %2304 = vmatmul.f32.gmra.mxu0 %v2265
        %v2305 = vpop.f32.mrf.mxu0
        %v2306 = vadd.f32 0.0, %v2305
        %2307 = vdwg.mxu0
        %v2309 = vsel %vm775, %v1966, 0
        %v2312 = vsel %vm775, %v1967, 0
        %v2315 = vsel %vm775, %v1998, 0
        %v2318 = vsel %vm775, %v1999, 0
        %v2321 = vsel %vm775, %v2030, 0
        %v2324 = vsel %vm775, %v2031, 0
        %v2327 = vsel %vm775, %v2062, 0
        %v2330 = vsel %vm775, %v2063, 0
        %2332 = vmatpush.msra.mxu0 0.0
        %2333 = vmatpush.msra.mxu0 0.0
        %2334 = vmatpush.msra.mxu0 0.0
        %2335 = vmatpush.msra.mxu0 0.0
        %2336 = vmatpush.msra.mxu0 0.0
        %2337 = vmatpush.msra.mxu0 0.0
        %2338 = vmatpush.msra.mxu0 0.0
        %2339 = vmatpush.msra.mxu0 0.0
        %2340 = vmatpush.msra.mxu0 0.0
        %2341 = vmatpush.msra.mxu0 0.0
        %2342 = vmatpush.msra.mxu0 0.0
        %2343 = vmatpush.msra.mxu0 0.0
        %2344 = vmatpush.msra.mxu0 0.0
        %2345 = vmatpush.msra.mxu0 0.0
        %2346 = vmatpush.msra.mxu0 %v2240
        %2347 = vmatpush.msra.mxu0 %v2239
        %2348 = vmatmul.f32.gmra.mxu0 %v2309
        %v2349 = vpop.f32.mrf.mxu0
        %v2350 = vadd.f32 %v2285, %v2349
        %2351 = vmatmul.f32.gmra.mxu0 %v2312
        %v2352 = vpop.f32.mrf.mxu0
        %v2353 = vadd.f32 %v2288, %v2352
        %2354 = vmatmul.f32.gmra.mxu0 %v2315
        %v2355 = vpop.f32.mrf.mxu0
        %v2356 = vadd.f32 %v2291, %v2355
        %2357 = vmatmul.f32.gmra.mxu0 %v2318
        %v2358 = vpop.f32.mrf.mxu0
        %v2359 = vadd.f32 %v2294, %v2358
        %2360 = vmatmul.f32.gmra.mxu0 %v2321
        %v2361 = vpop.f32.mrf.mxu0
        %v2362 = vadd.f32 %v2297, %v2361
        %2363 = vmatmul.f32.gmra.mxu0 %v2324
        %v2364 = vpop.f32.mrf.mxu0
        %v2365 = vadd.f32 %v2300, %v2364
        %2366 = vmatmul.f32.gmra.mxu0 %v2327
        %v2367 = vpop.f32.mrf.mxu0
        %v2368 = vadd.f32 %v2303, %v2367
        %2369 = vmatmul.f32.gmra.mxu0 %v2330
        %v2370 = vpop.f32.mrf.mxu0
        %v2371 = vadd.f32 %v2306, %v2370
        %2372 = vdwg.mxu0
        %v2373 = vld [vmem:[%s2238 + $0x20] sm:$0xff]
        %v2374 = vld [vmem:[%s2238 + $0x28] sm:$0xff]
        %vm2375 = vcmp.ne.f32.partialorder %v2373, 0.0
        %vm2376 = vcmp.ne.f32.partialorder %v2374, 0.0
        %v2377 = vld [vmem:[%s375] sm:$0xff]
        %v2378 = vld [vmem:[%s375 + $0x8] sm:$0xff]
        %v2379 = vld [vmem:[%s375 + $0x10] sm:$0xff]
        %v2380 = vld [vmem:[%s375 + $0x18] sm:$0xff]
        %v2381 = vld [vmem:[%s375 + $0x20] sm:$0xff]
        %v2382 = vld [vmem:[%s375 + $0x28] sm:$0xff]
        %v2383 = vld [vmem:[%s375 + $0x30] sm:$0xff]
        %v2384 = vld [vmem:[%s375 + $0x38] sm:$0xff]
        %v2385 = vsel %vm2375, 1, 0
        %v2386 = vsel %vm2376, 1, 0
        %vm2387 = vcmp.eq.s32.totalorder %v2385, 1
        %vm2388 = vcmp.eq.s32.totalorder %v2386, 1
        %v2389 = vsel %vm2387, %v2350, %v2377
        %v2390 = vsel %vm2388, %v2353, %v2378
        %v2391 = vsel %vm2387, %v2356, %v2379
        %v2392 = vsel %vm2388, %v2359, %v2380
        %v2393 = vsel %vm2387, %v2362, %v2381
        %v2394 = vsel %vm2388, %v2365, %v2382
        %v2395 = vsel %vm2387, %v2368, %v2383
        %v2396 = vsel %vm2388, %v2371, %v2384
        %2397 = vst [vmem:[%s375] sm:$0xff] %v2389
        %2398 = vst [vmem:[%s375 + $0x8] sm:$0xff] %v2390
        %2399 = vst [vmem:[%s375 + $0x10] sm:$0xff] %v2391
        %2400 = vst [vmem:[%s375 + $0x18] sm:$0xff] %v2392
        %2401 = vst [vmem:[%s375 + $0x20] sm:$0xff] %v2393
        %2402 = vst [vmem:[%s375 + $0x28] sm:$0xff] %v2394
        %2403 = vst [vmem:[%s375 + $0x30] sm:$0xff] %v2395
        %2404 = vst [vmem:[%s375 + $0x38] sm:$0xff] %v2396
        %2405 = vrot.lane.b32.xlu0 %v460, 64
        %v2406 = vpop.permute.xlu0 %2405
        %2407 = vrot.lane.b32.xlu0 %v463, 64
        %v2408 = vpop.permute.xlu0 %2407
        %2411 = vxpose.xlu0.b32.start [1/16] %v2406, 128
        %2412 = vxpose.xlu0.b32.cont [2/16] %v2408, 128
        %2413 = vxpose.xlu0.b32.cont [3/16] 0.0, 128
        %2414 = vxpose.xlu0.b32.cont [4/16] 0.0, 128
        %2415 = vxpose.xlu0.b32.cont [5/16] 0.0, 128
        %2416 = vxpose.xlu0.b32.cont [6/16] 0.0, 128
        %2417 = vxpose.xlu0.b32.cont [7/16] 0.0, 128
        %2418 = vxpose.xlu0.b32.cont [8/16] 0.0, 128
        %2419 = vxpose.xlu0.b32.cont [9/16] 0.0, 128
        %2420 = vxpose.xlu0.b32.cont [10/16] 0.0, 128
        %2421 = vxpose.xlu0.b32.cont [11/16] 0.0, 128
        %2422 = vxpose.xlu0.b32.cont [12/16] 0.0, 128
        %2423 = vxpose.xlu0.b32.cont [13/16] 0.0, 128
        %2424 = vxpose.xlu0.b32.cont [14/16] 0.0, 128
        %2425 = vxpose.xlu0.b32.cont [15/16] 0.0, 128
        %2426 = vxpose.xlu0.b32.end [16/16] 0.0, 128
        %v2427 = vpop.trf.xlu0
        %v2428 = vpop.trf.xlu0
        %v2429 = vpop.trf.xlu0
        %v2430 = vpop.trf.xlu0
        %v2431 = vpop.trf.xlu0
        %v2432 = vpop.trf.xlu0
        %v2433 = vpop.trf.xlu0
        %v2434 = vpop.trf.xlu0
        %v2435 = vpop.trf.xlu0
        %v2436 = vpop.trf.xlu0
        %v2437 = vpop.trf.xlu0
        %v2438 = vpop.trf.xlu0
        %v2439 = vpop.trf.xlu0
        %v2440 = vpop.trf.xlu0
        %v2441 = vpop.trf.xlu0
        %v2442 = vpop.trf.xlu0
        %2443 = vrot.lane.b32.xlu0 %v466, 64
        %v2444 = vpop.permute.xlu0 %2443
        %2445 = vrot.lane.b32.xlu0 %v469, 64
        %v2446 = vpop.permute.xlu0 %2445
        %2449 = vxpose.xlu0.b32.start [1/16] %v2444, 128
        %2450 = vxpose.xlu0.b32.cont [2/16] %v2446, 128
        %2451 = vxpose.xlu0.b32.cont [3/16] 0.0, 128
        %2452 = vxpose.xlu0.b32.cont [4/16] 0.0, 128
        %2453 = vxpose.xlu0.b32.cont [5/16] 0.0, 128
        %2454 = vxpose.xlu0.b32.cont [6/16] 0.0, 128
        %2455 = vxpose.xlu0.b32.cont [7/16] 0.0, 128
        %2456 = vxpose.xlu0.b32.cont [8/16] 0.0, 128
        %2457 = vxpose.xlu0.b32.cont [9/16] 0.0, 128
        %2458 = vxpose.xlu0.b32.cont [10/16] 0.0, 128
        %2459 = vxpose.xlu0.b32.cont [11/16] 0.0, 128
        %2460 = vxpose.xlu0.b32.cont [12/16] 0.0, 128
        %2461 = vxpose.xlu0.b32.cont [13/16] 0.0, 128
        %2462 = vxpose.xlu0.b32.cont [14/16] 0.0, 128
        %2463 = vxpose.xlu0.b32.cont [15/16] 0.0, 128
        %2464 = vxpose.xlu0.b32.end [16/16] 0.0, 128
        %v2465 = vpop.trf.xlu0
        %v2466 = vpop.trf.xlu0
        %v2467 = vpop.trf.xlu0
        %v2468 = vpop.trf.xlu0
        %v2469 = vpop.trf.xlu0
        %v2470 = vpop.trf.xlu0
        %v2471 = vpop.trf.xlu0
        %v2472 = vpop.trf.xlu0
        %v2473 = vpop.trf.xlu0
        %v2474 = vpop.trf.xlu0
        %v2475 = vpop.trf.xlu0
        %v2476 = vpop.trf.xlu0
        %v2477 = vpop.trf.xlu0
        %v2478 = vpop.trf.xlu0
        %v2479 = vpop.trf.xlu0
        %v2480 = vpop.trf.xlu0
        %2481 = vrot.lane.b32.xlu0 %v472, 64
        %v2482 = vpop.permute.xlu0 %2481
        %2483 = vrot.lane.b32.xlu0 %v475, 64
        %v2484 = vpop.permute.xlu0 %2483
        %2487 = vxpose.xlu0.b32.start [1/16] %v2482, 128
        %2488 = vxpose.xlu0.b32.cont [2/16] %v2484, 128
        %2489 = vxpose.xlu0.b32.cont [3/16] 0.0, 128
        %2490 = vxpose.xlu0.b32.cont [4/16] 0.0, 128
        %2491 = vxpose.xlu0.b32.cont [5/16] 0.0, 128
        %2492 = vxpose.xlu0.b32.cont [6/16] 0.0, 128
        %2493 = vxpose.xlu0.b32.cont [7/16] 0.0, 128
        %2494 = vxpose.xlu0.b32.cont [8/16] 0.0, 128
        %2495 = vxpose.xlu0.b32.cont [9/16] 0.0, 128
        %2496 = vxpose.xlu0.b32.cont [10/16] 0.0, 128
        %2497 = vxpose.xlu0.b32.cont [11/16] 0.0, 128
        %2498 = vxpose.xlu0.b32.cont [12/16] 0.0, 128
        %2499 = vxpose.xlu0.b32.cont [13/16] 0.0, 128
        %2500 = vxpose.xlu0.b32.cont [14/16] 0.0, 128
        %2501 = vxpose.xlu0.b32.cont [15/16] 0.0, 128
        %2502 = vxpose.xlu0.b32.end [16/16] 0.0, 128
        %v2503 = vpop.trf.xlu0
        %v2504 = vpop.trf.xlu0
        %v2505 = vpop.trf.xlu0
        %v2506 = vpop.trf.xlu0
        %v2507 = vpop.trf.xlu0
        %v2508 = vpop.trf.xlu0
        %v2509 = vpop.trf.xlu0
        %v2510 = vpop.trf.xlu0
        %v2511 = vpop.trf.xlu0
        %v2512 = vpop.trf.xlu0
        %v2513 = vpop.trf.xlu0
        %v2514 = vpop.trf.xlu0
        %v2515 = vpop.trf.xlu0
        %v2516 = vpop.trf.xlu0
        %v2517 = vpop.trf.xlu0
        %v2518 = vpop.trf.xlu0
        %2519 = vrot.lane.b32.xlu0 %v478, 64
        %v2520 = vpop.permute.xlu0 %2519
        %2521 = vrot.lane.b32.xlu0 %v481, 64
        %v2522 = vpop.permute.xlu0 %2521
        %2525 = vxpose.xlu0.b32.start [1/16] %v2520, 128
        %2526 = vxpose.xlu0.b32.cont [2/16] %v2522, 128
        %2527 = vxpose.xlu0.b32.cont [3/16] 0.0, 128
        %2528 = vxpose.xlu0.b32.cont [4/16] 0.0, 128
        %2529 = vxpose.xlu0.b32.cont [5/16] 0.0, 128
        %2530 = vxpose.xlu0.b32.cont [6/16] 0.0, 128
        %2531 = vxpose.xlu0.b32.cont [7/16] 0.0, 128
        %2532 = vxpose.xlu0.b32.cont [8/16] 0.0, 128
        %2533 = vxpose.xlu0.b32.cont [9/16] 0.0, 128
        %2534 = vxpose.xlu0.b32.cont [10/16] 0.0, 128
        %2535 = vxpose.xlu0.b32.cont [11/16] 0.0, 128
        %2536 = vxpose.xlu0.b32.cont [12/16] 0.0, 128
        %2537 = vxpose.xlu0.b32.cont [13/16] 0.0, 128
        %2538 = vxpose.xlu0.b32.cont [14/16] 0.0, 128
        %2539 = vxpose.xlu0.b32.cont [15/16] 0.0, 128
        %2540 = vxpose.xlu0.b32.end [16/16] 0.0, 128
        %v2541 = vpop.trf.xlu0
        %v2542 = vpop.trf.xlu0
        %v2543 = vpop.trf.xlu0
        %v2544 = vpop.trf.xlu0
        %v2545 = vpop.trf.xlu0
        %v2546 = vpop.trf.xlu0
        %v2547 = vpop.trf.xlu0
        %v2548 = vpop.trf.xlu0
        %v2549 = vpop.trf.xlu0
        %v2550 = vpop.trf.xlu0
        %v2551 = vpop.trf.xlu0
        %v2552 = vpop.trf.xlu0
        %v2553 = vpop.trf.xlu0
        %v2554 = vpop.trf.xlu0
        %v2555 = vpop.trf.xlu0
        %v2556 = vpop.trf.xlu0
        %2557 = vrot.lane.b32.xlu0 %v460, 48
        %v2558 = vpop.permute.xlu0 %2557
        %2559 = vrot.lane.b32.xlu0 %v463, 48
        %v2560 = vpop.permute.xlu0 %2559
        %2563 = vxpose.xlu0.b32.start [1/16] %v2558, 128
        %2564 = vxpose.xlu0.b32.cont [2/16] %v2560, 128
        %2565 = vxpose.xlu0.b32.cont [3/16] 0.0, 128
        %2566 = vxpose.xlu0.b32.cont [4/16] 0.0, 128
        %2567 = vxpose.xlu0.b32.cont [5/16] 0.0, 128
        %2568 = vxpose.xlu0.b32.cont [6/16] 0.0, 128
        %2569 = vxpose.xlu0.b32.cont [7/16] 0.0, 128
        %2570 = vxpose.xlu0.b32.cont [8/16] 0.0, 128
        %2571 = vxpose.xlu0.b32.cont [9/16] 0.0, 128
        %2572 = vxpose.xlu0.b32.cont [10/16] 0.0, 128
        %2573 = vxpose.xlu0.b32.cont [11/16] 0.0, 128
        %2574 = vxpose.xlu0.b32.cont [12/16] 0.0, 128
        %2575 = vxpose.xlu0.b32.cont [13/16] 0.0, 128
        %2576 = vxpose.xlu0.b32.cont [14/16] 0.0, 128
        %2577 = vxpose.xlu0.b32.cont [15/16] 0.0, 128
        %2578 = vxpose.xlu0.b32.end [16/16] 0.0, 128
        %v2579 = vpop.trf.xlu0
        %v2580 = vpop.trf.xlu0
        %v2581 = vpop.trf.xlu0
        %v2582 = vpop.trf.xlu0
        %v2583 = vpop.trf.xlu0
        %v2584 = vpop.trf.xlu0
        %v2585 = vpop.trf.xlu0
        %v2586 = vpop.trf.xlu0
        %v2587 = vpop.trf.xlu0
        %v2588 = vpop.trf.xlu0
        %v2589 = vpop.trf.xlu0
        %v2590 = vpop.trf.xlu0
        %v2591 = vpop.trf.xlu0
        %v2592 = vpop.trf.xlu0
        %v2593 = vpop.trf.xlu0
        %v2594 = vpop.trf.xlu0
        %2595 = vrot.lane.b32.xlu0 %v466, 48
        %v2596 = vpop.permute.xlu0 %2595
        %2597 = vrot.lane.b32.xlu0 %v469, 48
        %v2598 = vpop.permute.xlu0 %2597
        %2601 = vxpose.xlu0.b32.start [1/16] %v2596, 128
        %2602 = vxpose.xlu0.b32.cont [2/16] %v2598, 128
        %2603 = vxpose.xlu0.b32.cont [3/16] 0.0, 128
        %2604 = vxpose.xlu0.b32.cont [4/16] 0.0, 128
        %2605 = vxpose.xlu0.b32.cont [5/16] 0.0, 128
        %2606 = vxpose.xlu0.b32.cont [6/16] 0.0, 128
        %2607 = vxpose.xlu0.b32.cont [7/16] 0.0, 128
        %2608 = vxpose.xlu0.b32.cont [8/16] 0.0, 128
        %2609 = vxpose.xlu0.b32.cont [9/16] 0.0, 128
        %2610 = vxpose.xlu0.b32.cont [10/16] 0.0, 128
        %2611 = vxpose.xlu0.b32.cont [11/16] 0.0, 128
        %2612 = vxpose.xlu0.b32.cont [12/16] 0.0, 128
        %2613 = vxpose.xlu0.b32.cont [13/16] 0.0, 128
        %2614 = vxpose.xlu0.b32.cont [14/16] 0.0, 128
        %2615 = vxpose.xlu0.b32.cont [15/16] 0.0, 128
        %2616 = vxpose.xlu0.b32.end [16/16] 0.0, 128
        %v2617 = vpop.trf.xlu0
        %v2618 = vpop.trf.xlu0
        %v2619 = vpop.trf.xlu0
        %v2620 = vpop.trf.xlu0
        %v2621 = vpop.trf.xlu0
        %v2622 = vpop.trf.xlu0
        %v2623 = vpop.trf.xlu0
        %v2624 = vpop.trf.xlu0
        %v2625 = vpop.trf.xlu0
        %v2626 = vpop.trf.xlu0
        %v2627 = vpop.trf.xlu0
        %v2628 = vpop.trf.xlu0
        %v2629 = vpop.trf.xlu0
        %v2630 = vpop.trf.xlu0
        %v2631 = vpop.trf.xlu0
        %v2632 = vpop.trf.xlu0
        %2633 = vrot.lane.b32.xlu0 %v472, 48
        %v2634 = vpop.permute.xlu0 %2633
        %2635 = vrot.lane.b32.xlu0 %v475, 48
        %v2636 = vpop.permute.xlu0 %2635
        %2639 = vxpose.xlu0.b32.start [1/16] %v2634, 128
        %2640 = vxpose.xlu0.b32.cont [2/16] %v2636, 128
        %2641 = vxpose.xlu0.b32.cont [3/16] 0.0, 128
        %2642 = vxpose.xlu0.b32.cont [4/16] 0.0, 128
        %2643 = vxpose.xlu0.b32.cont [5/16] 0.0, 128
        %2644 = vxpose.xlu0.b32.cont [6/16] 0.0, 128
        %2645 = vxpose.xlu0.b32.cont [7/16] 0.0, 128
        %2646 = vxpose.xlu0.b32.cont [8/16] 0.0, 128
        %2647 = vxpose.xlu0.b32.cont [9/16] 0.0, 128
        %2648 = vxpose.xlu0.b32.cont [10/16] 0.0, 128
        %2649 = vxpose.xlu0.b32.cont [11/16] 0.0, 128
        %2650 = vxpose.xlu0.b32.cont [12/16] 0.0, 128
        %2651 = vxpose.xlu0.b32.cont [13/16] 0.0, 128
        %2652 = vxpose.xlu0.b32.cont [14/16] 0.0, 128
        %2653 = vxpose.xlu0.b32.cont [15/16] 0.0, 128
        %2654 = vxpose.xlu0.b32.end [16/16] 0.0, 128
        %v2655 = vpop.trf.xlu0
        %v2656 = vpop.trf.xlu0
        %v2657 = vpop.trf.xlu0
        %v2658 = vpop.trf.xlu0
        %v2659 = vpop.trf.xlu0
        %v2660 = vpop.trf.xlu0
        %v2661 = vpop.trf.xlu0
        %v2662 = vpop.trf.xlu0
        %v2663 = vpop.trf.xlu0
        %v2664 = vpop.trf.xlu0
        %v2665 = vpop.trf.xlu0
        %v2666 = vpop.trf.xlu0
        %v2667 = vpop.trf.xlu0
        %v2668 = vpop.trf.xlu0
        %v2669 = vpop.trf.xlu0
        %v2670 = vpop.trf.xlu0
        %2671 = vrot.lane.b32.xlu0 %v478, 48
        %v2672 = vpop.permute.xlu0 %2671
        %2673 = vrot.lane.b32.xlu0 %v481, 48
        %v2674 = vpop.permute.xlu0 %2673
        %2677 = vxpose.xlu0.b32.start [1/16] %v2672, 128
        %2678 = vxpose.xlu0.b32.cont [2/16] %v2674, 128
        %2679 = vxpose.xlu0.b32.cont [3/16] 0.0, 128
        %2680 = vxpose.xlu0.b32.cont [4/16] 0.0, 128
        %2681 = vxpose.xlu0.b32.cont [5/16] 0.0, 128
        %2682 = vxpose.xlu0.b32.cont [6/16] 0.0, 128
        %2683 = vxpose.xlu0.b32.cont [7/16] 0.0, 128
        %2684 = vxpose.xlu0.b32.cont [8/16] 0.0, 128
        %2685 = vxpose.xlu0.b32.cont [9/16] 0.0, 128
        %2686 = vxpose.xlu0.b32.cont [10/16] 0.0, 128
        %2687 = vxpose.xlu0.b32.cont [11/16] 0.0, 128
        %2688 = vxpose.xlu0.b32.cont [12/16] 0.0, 128
        %2689 = vxpose.xlu0.b32.cont [13/16] 0.0, 128
        %2690 = vxpose.xlu0.b32.cont [14/16] 0.0, 128
        %2691 = vxpose.xlu0.b32.cont [15/16] 0.0, 128
        %2692 = vxpose.xlu0.b32.end [16/16] 0.0, 128
        %v2693 = vpop.trf.xlu0
        %v2694 = vpop.trf.xlu0
        %v2695 = vpop.trf.xlu0
        %v2696 = vpop.trf.xlu0
        %v2697 = vpop.trf.xlu0
        %v2698 = vpop.trf.xlu0
        %v2699 = vpop.trf.xlu0
        %v2700 = vpop.trf.xlu0
        %v2701 = vpop.trf.xlu0
        %v2702 = vpop.trf.xlu0
        %v2703 = vpop.trf.xlu0
        %v2704 = vpop.trf.xlu0
        %v2705 = vpop.trf.xlu0
        %v2706 = vpop.trf.xlu0
        %v2707 = vpop.trf.xlu0
        %v2708 = vpop.trf.xlu0
        %s2709 = scalar_lea.vmem %s382, 64
        %v2710 = vld [vmem:[%s2709] sm:$0xff]
        %v2711 = vld [vmem:[%s2709 + $0x8] sm:$0xff]
        %v2712 = vld [vmem:[%s2709 + $0x10] sm:$0xff]
        %v2713 = vld [vmem:[%s2709 + $0x18] sm:$0xff]
        %v2715 = vsel %vm775, %v2579, 0
        %v2718 = vsel %vm775, %v2580, 0
        %v2721 = vsel %vm775, %v2617, 0
        %v2724 = vsel %vm775, %v2618, 0
        %v2727 = vsel %vm775, %v2655, 0
        %v2730 = vsel %vm775, %v2656, 0
        %v2733 = vsel %vm775, %v2693, 0
        %v2736 = vsel %vm775, %v2694, 0
        %2738 = vmatpush.msra.mxu0 0.0
        %2739 = vmatpush.msra.mxu0 0.0
        %2740 = vmatpush.msra.mxu0 0.0
        %2741 = vmatpush.msra.mxu0 0.0
        %2742 = vmatpush.msra.mxu0 0.0
        %2743 = vmatpush.msra.mxu0 0.0
        %2744 = vmatpush.msra.mxu0 0.0
        %2745 = vmatpush.msra.mxu0 0.0
        %2746 = vmatpush.msra.mxu0 0.0
        %2747 = vmatpush.msra.mxu0 0.0
        %2748 = vmatpush.msra.mxu0 0.0
        %2749 = vmatpush.msra.mxu0 0.0
        %2750 = vmatpush.msra.mxu0 0.0
        %2751 = vmatpush.msra.mxu0 0.0
        %2752 = vmatpush.msra.mxu0 %v2713
        %2753 = vmatpush.msra.mxu0 %v2712
        %2754 = vmatmul.f32.gmra.mxu0 %v2715
        %v2755 = vpop.f32.mrf.mxu0
        %v2756 = vadd.f32 0.0, %v2755
        %2757 = vmatmul.f32.gmra.mxu0 %v2718
        %v2758 = vpop.f32.mrf.mxu0
        %v2759 = vadd.f32 0.0, %v2758
        %2760 = vmatmul.f32.gmra.mxu0 %v2721
        %v2761 = vpop.f32.mrf.mxu0
        %v2762 = vadd.f32 0.0, %v2761
        %2763 = vmatmul.f32.gmra.mxu0 %v2724
        %v2764 = vpop.f32.mrf.mxu0
        %v2765 = vadd.f32 0.0, %v2764
        %2766 = vmatmul.f32.gmra.mxu0 %v2727
        %v2767 = vpop.f32.mrf.mxu0
        %v2768 = vadd.f32 0.0, %v2767
        %2769 = vmatmul.f32.gmra.mxu0 %v2730
        %v2770 = vpop.f32.mrf.mxu0
        %v2771 = vadd.f32 0.0, %v2770
        %2772 = vmatmul.f32.gmra.mxu0 %v2733
        %v2773 = vpop.f32.mrf.mxu0
        %v2774 = vadd.f32 0.0, %v2773
        %2775 = vmatmul.f32.gmra.mxu0 %v2736
        %v2776 = vpop.f32.mrf.mxu0
        %v2777 = vadd.f32 0.0, %v2776
        %2778 = vdwg.mxu0
        %v2780 = vsel %vm775, %v2427, 0
        %v2783 = vsel %vm775, %v2428, 0
        %v2786 = vsel %vm775, %v2465, 0
        %v2789 = vsel %vm775, %v2466, 0
        %v2792 = vsel %vm775, %v2503, 0
        %v2795 = vsel %vm775, %v2504, 0
        %v2798 = vsel %vm775, %v2541, 0
        %v2801 = vsel %vm775, %v2542, 0
        %2803 = vmatpush.msra.mxu0 0.0
        %2804 = vmatpush.msra.mxu0 0.0
        %2805 = vmatpush.msra.mxu0 0.0
        %2806 = vmatpush.msra.mxu0 0.0
        %2807 = vmatpush.msra.mxu0 0.0
        %2808 = vmatpush.msra.mxu0 0.0
        %2809 = vmatpush.msra.mxu0 0.0
        %2810 = vmatpush.msra.mxu0 0.0
        %2811 = vmatpush.msra.mxu0 0.0
        %2812 = vmatpush.msra.mxu0 0.0
        %2813 = vmatpush.msra.mxu0 0.0
        %2814 = vmatpush.msra.mxu0 0.0
        %2815 = vmatpush.msra.mxu0 0.0
        %2816 = vmatpush.msra.mxu0 0.0
        %2817 = vmatpush.msra.mxu0 %v2711
        %2818 = vmatpush.msra.mxu0 %v2710
        %2819 = vmatmul.f32.gmra.mxu0 %v2780
        %v2820 = vpop.f32.mrf.mxu0
        %v2821 = vadd.f32 %v2756, %v2820
        %2822 = vmatmul.f32.gmra.mxu0 %v2783
        %v2823 = vpop.f32.mrf.mxu0
        %v2824 = vadd.f32 %v2759, %v2823
        %2825 = vmatmul.f32.gmra.mxu0 %v2786
        %v2826 = vpop.f32.mrf.mxu0
        %v2827 = vadd.f32 %v2762, %v2826
        %2828 = vmatmul.f32.gmra.mxu0 %v2789
        %v2829 = vpop.f32.mrf.mxu0
        %v2830 = vadd.f32 %v2765, %v2829
        %2831 = vmatmul.f32.gmra.mxu0 %v2792
        %v2832 = vpop.f32.mrf.mxu0
        %v2833 = vadd.f32 %v2768, %v2832
        %2834 = vmatmul.f32.gmra.mxu0 %v2795
        %v2835 = vpop.f32.mrf.mxu0
        %v2836 = vadd.f32 %v2771, %v2835
        %2837 = vmatmul.f32.gmra.mxu0 %v2798
        %v2838 = vpop.f32.mrf.mxu0
        %v2839 = vadd.f32 %v2774, %v2838
        %2840 = vmatmul.f32.gmra.mxu0 %v2801
        %v2841 = vpop.f32.mrf.mxu0
        %v2842 = vadd.f32 %v2777, %v2841
        %2843 = vdwg.mxu0
        %v2844 = vmax.f32 %v2821, 0.0
        %v2845 = vmax.f32 %v2824, 0.0
        %v2846 = vmax.f32 %v2827, 0.0
        %v2847 = vmax.f32 %v2830, 0.0
        %v2848 = vmax.f32 %v2833, 0.0
        %v2849 = vmax.f32 %v2836, 0.0
        %v2850 = vmax.f32 %v2839, 0.0
        %v2851 = vmax.f32 %v2842, 0.0
        %s2852 = scalar_lea.vmem %s326, 32 [#allocation7]
        %v2853 = vld [vmem:[%s2852] sm:$0xff]
        %v2854 = vld [vmem:[%s2852 + $0x8] sm:$0xff]
        %v2856 = vsel %vm775, %v2844, 0
        %v2859 = vsel %vm775, %v2845, 0
        %v2862 = vsel %vm775, %v2846, 0
        %v2865 = vsel %vm775, %v2847, 0
        %v2868 = vsel %vm775, %v2848, 0
        %v2871 = vsel %vm775, %v2849, 0
        %v2874 = vsel %vm775, %v2850, 0
        %v2877 = vsel %vm775, %v2851, 0
        %2879 = vmatpush.msra.mxu0 0.0
        %2880 = vmatpush.msra.mxu0 0.0
        %2881 = vmatpush.msra.mxu0 0.0
        %2882 = vmatpush.msra.mxu0 0.0
        %2883 = vmatpush.msra.mxu0 0.0
        %2884 = vmatpush.msra.mxu0 0.0
        %2885 = vmatpush.msra.mxu0 0.0
        %2886 = vmatpush.msra.mxu0 0.0
        %2887 = vmatpush.msra.mxu0 0.0
        %2888 = vmatpush.msra.mxu0 0.0
        %2889 = vmatpush.msra.mxu0 0.0
        %2890 = vmatpush.msra.mxu0 0.0
        %2891 = vmatpush.msra.mxu0 0.0
        %2892 = vmatpush.msra.mxu0 0.0
        %2893 = vmatpush.msra.mxu0 %v2854
        %2894 = vmatpush.msra.mxu0 %v2853
        %2895 = vmatmul.f32.gmra.mxu0 %v2856
        %v2896 = vpop.f32.mrf.mxu0
        %v2897 = vadd.f32 0.0, %v2896
        %2898 = vmatmul.f32.gmra.mxu0 %v2859
        %v2899 = vpop.f32.mrf.mxu0
        %v2900 = vadd.f32 0.0, %v2899
        %2901 = vmatmul.f32.gmra.mxu0 %v2862
        %v2902 = vpop.f32.mrf.mxu0
        %v2903 = vadd.f32 0.0, %v2902
        %2904 = vmatmul.f32.gmra.mxu0 %v2865
        %v2905 = vpop.f32.mrf.mxu0
        %v2906 = vadd.f32 0.0, %v2905
        %2907 = vmatmul.f32.gmra.mxu0 %v2868
        %v2908 = vpop.f32.mrf.mxu0
        %v2909 = vadd.f32 0.0, %v2908
        %2910 = vmatmul.f32.gmra.mxu0 %v2871
        %v2911 = vpop.f32.mrf.mxu0
        %v2912 = vadd.f32 0.0, %v2911
        %2913 = vmatmul.f32.gmra.mxu0 %v2874
        %v2914 = vpop.f32.mrf.mxu0
        %v2915 = vadd.f32 0.0, %v2914
        %2916 = vmatmul.f32.gmra.mxu0 %v2877
        %v2917 = vpop.f32.mrf.mxu0
        %v2918 = vadd.f32 0.0, %v2917
        %2919 = vdwg.mxu0
        %2920 = vxpose.xlu0.b32.start [1/16] %v2897, 128
        %2921 = vxpose.xlu0.b32.cont [2/16] %v2900, 128
        %2922 = vxpose.xlu0.b32.cont [3/16] 0.0, 128
        %2923 = vxpose.xlu0.b32.cont [4/16] 0.0, 128
        %2924 = vxpose.xlu0.b32.cont [5/16] 0.0, 128
        %2925 = vxpose.xlu0.b32.cont [6/16] 0.0, 128
        %2926 = vxpose.xlu0.b32.cont [7/16] 0.0, 128
        %2927 = vxpose.xlu0.b32.cont [8/16] 0.0, 128
        %2928 = vxpose.xlu0.b32.cont [9/16] 0.0, 128
        %2929 = vxpose.xlu0.b32.cont [10/16] 0.0, 128
        %2930 = vxpose.xlu0.b32.cont [11/16] 0.0, 128
        %2931 = vxpose.xlu0.b32.cont [12/16] 0.0, 128
        %2932 = vxpose.xlu0.b32.cont [13/16] 0.0, 128
        %2933 = vxpose.xlu0.b32.cont [14/16] 0.0, 128
        %2934 = vxpose.xlu0.b32.cont [15/16] 0.0, 128
        %2935 = vxpose.xlu0.b32.end [16/16] 0.0, 128
        %v2936 = vpop.trf.xlu0
        %v2937 = vpop.trf.xlu0
        %v2938 = vpop.trf.xlu0
        %v2939 = vpop.trf.xlu0
        %v2940 = vpop.trf.xlu0
        %v2941 = vpop.trf.xlu0
        %v2942 = vpop.trf.xlu0
        %v2943 = vpop.trf.xlu0
        %v2944 = vpop.trf.xlu0
        %v2945 = vpop.trf.xlu0
        %v2946 = vpop.trf.xlu0
        %v2947 = vpop.trf.xlu0
        %v2948 = vpop.trf.xlu0
        %v2949 = vpop.trf.xlu0
        %v2950 = vpop.trf.xlu0
        %v2951 = vpop.trf.xlu0
        %2952 = vxpose.xlu0.b32.start [1/16] %v2903, 128
        %2953 = vxpose.xlu0.b32.cont [2/16] %v2906, 128
        %2954 = vxpose.xlu0.b32.cont [3/16] 0.0, 128
        %2955 = vxpose.xlu0.b32.cont [4/16] 0.0, 128
        %2956 = vxpose.xlu0.b32.cont [5/16] 0.0, 128
        %2957 = vxpose.xlu0.b32.cont [6/16] 0.0, 128
        %2958 = vxpose.xlu0.b32.cont [7/16] 0.0, 128
        %2959 = vxpose.xlu0.b32.cont [8/16] 0.0, 128
        %2960 = vxpose.xlu0.b32.cont [9/16] 0.0, 128
        %2961 = vxpose.xlu0.b32.cont [10/16] 0.0, 128
        %2962 = vxpose.xlu0.b32.cont [11/16] 0.0, 128
        %2963 = vxpose.xlu0.b32.cont [12/16] 0.0, 128
        %2964 = vxpose.xlu0.b32.cont [13/16] 0.0, 128
        %2965 = vxpose.xlu0.b32.cont [14/16] 0.0, 128
        %2966 = vxpose.xlu0.b32.cont [15/16] 0.0, 128
        %2967 = vxpose.xlu0.b32.end [16/16] 0.0, 128
        %v2968 = vpop.trf.xlu0
        %v2969 = vpop.trf.xlu0
        %v2970 = vpop.trf.xlu0
        %v2971 = vpop.trf.xlu0
        %v2972 = vpop.trf.xlu0
        %v2973 = vpop.trf.xlu0
        %v2974 = vpop.trf.xlu0
        %v2975 = vpop.trf.xlu0
        %v2976 = vpop.trf.xlu0
        %v2977 = vpop.trf.xlu0
        %v2978 = vpop.trf.xlu0
        %v2979 = vpop.trf.xlu0
        %v2980 = vpop.trf.xlu0
        %v2981 = vpop.trf.xlu0
        %v2982 = vpop.trf.xlu0
        %v2983 = vpop.trf.xlu0
        %2984 = vxpose.xlu0.b32.start [1/16] %v2909, 128
        %2985 = vxpose.xlu0.b32.cont [2/16] %v2912, 128
        %2986 = vxpose.xlu0.b32.cont [3/16] 0.0, 128
        %2987 = vxpose.xlu0.b32.cont [4/16] 0.0, 128
        %2988 = vxpose.xlu0.b32.cont [5/16] 0.0, 128
        %2989 = vxpose.xlu0.b32.cont [6/16] 0.0, 128
        %2990 = vxpose.xlu0.b32.cont [7/16] 0.0, 128
        %2991 = vxpose.xlu0.b32.cont [8/16] 0.0, 128
        %2992 = vxpose.xlu0.b32.cont [9/16] 0.0, 128
        %2993 = vxpose.xlu0.b32.cont [10/16] 0.0, 128
        %2994 = vxpose.xlu0.b32.cont [11/16] 0.0, 128
        %2995 = vxpose.xlu0.b32.cont [12/16] 0.0, 128
        %2996 = vxpose.xlu0.b32.cont [13/16] 0.0, 128
        %2997 = vxpose.xlu0.b32.cont [14/16] 0.0, 128
        %2998 = vxpose.xlu0.b32.cont [15/16] 0.0, 128
        %2999 = vxpose.xlu0.b32.end [16/16] 0.0, 128
        %v3000 = vpop.trf.xlu0
        %v3001 = vpop.trf.xlu0
        %v3002 = vpop.trf.xlu0
        %v3003 = vpop.trf.xlu0
        %v3004 = vpop.trf.xlu0
        %v3005 = vpop.trf.xlu0
        %v3006 = vpop.trf.xlu0
        %v3007 = vpop.trf.xlu0
        %v3008 = vpop.trf.xlu0
        %v3009 = vpop.trf.xlu0
        %v3010 = vpop.trf.xlu0
        %v3011 = vpop.trf.xlu0
        %v3012 = vpop.trf.xlu0
        %v3013 = vpop.trf.xlu0
        %v3014 = vpop.trf.xlu0
        %v3015 = vpop.trf.xlu0
        %3016 = vxpose.xlu0.b32.start [1/16] %v2915, 128
        %3017 = vxpose.xlu0.b32.cont [2/16] %v2918, 128
        %3018 = vxpose.xlu0.b32.cont [3/16] 0.0, 128
        %3019 = vxpose.xlu0.b32.cont [4/16] 0.0, 128
        %3020 = vxpose.xlu0.b32.cont [5/16] 0.0, 128
        %3021 = vxpose.xlu0.b32.cont [6/16] 0.0, 128
        %3022 = vxpose.xlu0.b32.cont [7/16] 0.0, 128
        %3023 = vxpose.xlu0.b32.cont [8/16] 0.0, 128
        %3024 = vxpose.xlu0.b32.cont [9/16] 0.0, 128
        %3025 = vxpose.xlu0.b32.cont [10/16] 0.0, 128
        %3026 = vxpose.xlu0.b32.cont [11/16] 0.0, 128
        %3027 = vxpose.xlu0.b32.cont [12/16] 0.0, 128
        %3028 = vxpose.xlu0.b32.cont [13/16] 0.0, 128
        %3029 = vxpose.xlu0.b32.cont [14/16] 0.0, 128
        %3030 = vxpose.xlu0.b32.cont [15/16] 0.0, 128
        %3031 = vxpose.xlu0.b32.end [16/16] 0.0, 128
        %v3032 = vpop.trf.xlu0
        %v3033 = vpop.trf.xlu0
        %v3034 = vpop.trf.xlu0
        %v3035 = vpop.trf.xlu0
        %v3036 = vpop.trf.xlu0
        %v3037 = vpop.trf.xlu0
        %v3038 = vpop.trf.xlu0
        %v3039 = vpop.trf.xlu0
        %v3040 = vpop.trf.xlu0
        %v3041 = vpop.trf.xlu0
        %v3042 = vpop.trf.xlu0
        %v3043 = vpop.trf.xlu0
        %v3044 = vpop.trf.xlu0
        %v3045 = vpop.trf.xlu0
        %v3046 = vpop.trf.xlu0
        %v3047 = vpop.trf.xlu0
        %3050 = vrot.lane.b32.xlu0 %v2897, 112
        %v3051 = vpop.permute.xlu0 %3050
        %3052 = vrot.lane.b32.xlu0 %v2900, 112
        %v3053 = vpop.permute.xlu0 %3052
        %3056 = vxpose.xlu0.b32.start [1/16] %v3051, 128
        %3057 = vxpose.xlu0.b32.cont [2/16] %v3053, 128
        %3058 = vxpose.xlu0.b32.cont [3/16] 0.0, 128
        %3059 = vxpose.xlu0.b32.cont [4/16] 0.0, 128
        %3060 = vxpose.xlu0.b32.cont [5/16] 0.0, 128
        %3061 = vxpose.xlu0.b32.cont [6/16] 0.0, 128
        %3062 = vxpose.xlu0.b32.cont [7/16] 0.0, 128
        %3063 = vxpose.xlu0.b32.cont [8/16] 0.0, 128
        %3064 = vxpose.xlu0.b32.cont [9/16] 0.0, 128
        %3065 = vxpose.xlu0.b32.cont [10/16] 0.0, 128
        %3066 = vxpose.xlu0.b32.cont [11/16] 0.0, 128
        %3067 = vxpose.xlu0.b32.cont [12/16] 0.0, 128
        %3068 = vxpose.xlu0.b32.cont [13/16] 0.0, 128
        %3069 = vxpose.xlu0.b32.cont [14/16] 0.0, 128
        %3070 = vxpose.xlu0.b32.cont [15/16] 0.0, 128
        %3071 = vxpose.xlu0.b32.end [16/16] 0.0, 128
        %v3072 = vpop.trf.xlu0
        %v3073 = vpop.trf.xlu0
        %v3074 = vpop.trf.xlu0
        %v3075 = vpop.trf.xlu0
        %v3076 = vpop.trf.xlu0
        %v3077 = vpop.trf.xlu0
        %v3078 = vpop.trf.xlu0
        %v3079 = vpop.trf.xlu0
        %v3080 = vpop.trf.xlu0
        %v3081 = vpop.trf.xlu0
        %v3082 = vpop.trf.xlu0
        %v3083 = vpop.trf.xlu0
        %v3084 = vpop.trf.xlu0
        %v3085 = vpop.trf.xlu0
        %v3086 = vpop.trf.xlu0
        %v3087 = vpop.trf.xlu0
        %3090 = vrot.lane.b32.xlu0 %v2903, 112
        %v3091 = vpop.permute.xlu0 %3090
        %3092 = vrot.lane.b32.xlu0 %v2906, 112
        %v3093 = vpop.permute.xlu0 %3092
        %3096 = vxpose.xlu0.b32.start [1/16] %v3091, 128
        %3097 = vxpose.xlu0.b32.cont [2/16] %v3093, 128
        %3098 = vxpose.xlu0.b32.cont [3/16] 0.0, 128
        %3099 = vxpose.xlu0.b32.cont [4/16] 0.0, 128
        %3100 = vxpose.xlu0.b32.cont [5/16] 0.0, 128
        %3101 = vxpose.xlu0.b32.cont [6/16] 0.0, 128
        %3102 = vxpose.xlu0.b32.cont [7/16] 0.0, 128
        %3103 = vxpose.xlu0.b32.cont [8/16] 0.0, 128
        %3104 = vxpose.xlu0.b32.cont [9/16] 0.0, 128
        %3105 = vxpose.xlu0.b32.cont [10/16] 0.0, 128
        %3106 = vxpose.xlu0.b32.cont [11/16] 0.0, 128
        %3107 = vxpose.xlu0.b32.cont [12/16] 0.0, 128
        %3108 = vxpose.xlu0.b32.cont [13/16] 0.0, 128
        %3109 = vxpose.xlu0.b32.cont [14/16] 0.0, 128
        %3110 = vxpose.xlu0.b32.cont [15/16] 0.0, 128
        %3111 = vxpose.xlu0.b32.end [16/16] 0.0, 128
        %v3112 = vpop.trf.xlu0
        %v3113 = vpop.trf.xlu0
        %v3114 = vpop.trf.xlu0
        %v3115 = vpop.trf.xlu0
        %v3116 = vpop.trf.xlu0
        %v3117 = vpop.trf.xlu0
        %v3118 = vpop.trf.xlu0
        %v3119 = vpop.trf.xlu0
        %v3120 = vpop.trf.xlu0
        %v3121 = vpop.trf.xlu0
        %v3122 = vpop.trf.xlu0
        %v3123 = vpop.trf.xlu0
        %v3124 = vpop.trf.xlu0
        %v3125 = vpop.trf.xlu0
        %v3126 = vpop.trf.xlu0
        %v3127 = vpop.trf.xlu0
        %3130 = vrot.lane.b32.xlu0 %v2909, 112
        %v3131 = vpop.permute.xlu0 %3130
        %3132 = vrot.lane.b32.xlu0 %v2912, 112
        %v3133 = vpop.permute.xlu0 %3132
        %3136 = vxpose.xlu0.b32.start [1/16] %v3131, 128
        %3137 = vxpose.xlu0.b32.cont [2/16] %v3133, 128
        %3138 = vxpose.xlu0.b32.cont [3/16] 0.0, 128
        %3139 = vxpose.xlu0.b32.cont [4/16] 0.0, 128
        %3140 = vxpose.xlu0.b32.cont [5/16] 0.0, 128
        %3141 = vxpose.xlu0.b32.cont [6/16] 0.0, 128
        %3142 = vxpose.xlu0.b32.cont [7/16] 0.0, 128
        %3143 = vxpose.xlu0.b32.cont [8/16] 0.0, 128
        %3144 = vxpose.xlu0.b32.cont [9/16] 0.0, 128
        %3145 = vxpose.xlu0.b32.cont [10/16] 0.0, 128
        %3146 = vxpose.xlu0.b32.cont [11/16] 0.0, 128
        %3147 = vxpose.xlu0.b32.cont [12/16] 0.0, 128
        %3148 = vxpose.xlu0.b32.cont [13/16] 0.0, 128
        %3149 = vxpose.xlu0.b32.cont [14/16] 0.0, 128
        %3150 = vxpose.xlu0.b32.cont [15/16] 0.0, 128
        %3151 = vxpose.xlu0.b32.end [16/16] 0.0, 128
        %v3152 = vpop.trf.xlu0
        %v3153 = vpop.trf.xlu0
        %v3154 = vpop.trf.xlu0
        %v3155 = vpop.trf.xlu0
        %v3156 = vpop.trf.xlu0
        %v3157 = vpop.trf.xlu0
        %v3158 = vpop.trf.xlu0
        %v3159 = vpop.trf.xlu0
        %v3160 = vpop.trf.xlu0
        %v3161 = vpop.trf.xlu0
        %v3162 = vpop.trf.xlu0
        %v3163 = vpop.trf.xlu0
        %v3164 = vpop.trf.xlu0
        %v3165 = vpop.trf.xlu0
        %v3166 = vpop.trf.xlu0
        %v3167 = vpop.trf.xlu0
        %3170 = vrot.lane.b32.xlu0 %v2915, 112
        %v3171 = vpop.permute.xlu0 %3170
        %3172 = vrot.lane.b32.xlu0 %v2918, 112
        %v3173 = vpop.permute.xlu0 %3172
        %3176 = vxpose.xlu0.b32.start [1/16] %v3171, 128
        %3177 = vxpose.xlu0.b32.cont [2/16] %v3173, 128
        %3178 = vxpose.xlu0.b32.cont [3/16] 0.0, 128
        %3179 = vxpose.xlu0.b32.cont [4/16] 0.0, 128
        %3180 = vxpose.xlu0.b32.cont [5/16] 0.0, 128
        %3181 = vxpose.xlu0.b32.cont [6/16] 0.0, 128
        %3182 = vxpose.xlu0.b32.cont [7/16] 0.0, 128
        %3183 = vxpose.xlu0.b32.cont [8/16] 0.0, 128
        %3184 = vxpose.xlu0.b32.cont [9/16] 0.0, 128
        %3185 = vxpose.xlu0.b32.cont [10/16] 0.0, 128
        %3186 = vxpose.xlu0.b32.cont [11/16] 0.0, 128
        %3187 = vxpose.xlu0.b32.cont [12/16] 0.0, 128
        %3188 = vxpose.xlu0.b32.cont [13/16] 0.0, 128
        %3189 = vxpose.xlu0.b32.cont [14/16] 0.0, 128
        %3190 = vxpose.xlu0.b32.cont [15/16] 0.0, 128
        %3191 = vxpose.xlu0.b32.end [16/16] 0.0, 128
        %v3192 = vpop.trf.xlu0
        %v3193 = vpop.trf.xlu0
        %v3194 = vpop.trf.xlu0
        %v3195 = vpop.trf.xlu0
        %v3196 = vpop.trf.xlu0
        %v3197 = vpop.trf.xlu0
        %v3198 = vpop.trf.xlu0
        %v3199 = vpop.trf.xlu0
        %v3200 = vpop.trf.xlu0
        %v3201 = vpop.trf.xlu0
        %v3202 = vpop.trf.xlu0
        %v3203 = vpop.trf.xlu0
        %v3204 = vpop.trf.xlu0
        %v3205 = vpop.trf.xlu0
        %v3206 = vpop.trf.xlu0
        %v3207 = vpop.trf.xlu0
        %s3208 = scalar_lea.vmem %s390, 96
        %v3209 = vld [vmem:[%s3208] sm:$0xff]
        %v3210 = vld [vmem:[%s3208 + $0x8] sm:$0xff]
        %v3211 = vld [vmem:[%s3208 + $0x10] sm:$0xff]
        %v3212 = vld [vmem:[%s3208 + $0x18] sm:$0xff]
        %v3214 = vsel %vm775, %v3072, 0
        %v3217 = vsel %vm775, %v3073, 0
        %v3220 = vsel %vm775, %v3112, 0
        %v3223 = vsel %vm775, %v3113, 0
        %v3226 = vsel %vm775, %v3152, 0
        %v3229 = vsel %vm775, %v3153, 0
        %v3232 = vsel %vm775, %v3192, 0
        %v3235 = vsel %vm775, %v3193, 0
        %3237 = vmatpush.msra.mxu0 0.0
        %3238 = vmatpush.msra.mxu0 0.0
        %3239 = vmatpush.msra.mxu0 0.0
        %3240 = vmatpush.msra.mxu0 0.0
        %3241 = vmatpush.msra.mxu0 0.0
        %3242 = vmatpush.msra.mxu0 0.0
        %3243 = vmatpush.msra.mxu0 0.0
        %3244 = vmatpush.msra.mxu0 0.0
        %3245 = vmatpush.msra.mxu0 0.0
        %3246 = vmatpush.msra.mxu0 0.0
        %3247 = vmatpush.msra.mxu0 0.0
        %3248 = vmatpush.msra.mxu0 0.0
        %3249 = vmatpush.msra.mxu0 0.0
        %3250 = vmatpush.msra.mxu0 0.0
        %3251 = vmatpush.msra.mxu0 %v3212
        %3252 = vmatpush.msra.mxu0 %v3211
        %3253 = vmatmul.f32.gmra.mxu0 %v3214
        %v3254 = vpop.f32.mrf.mxu0
        %v3255 = vadd.f32 0.0, %v3254
        %3256 = vmatmul.f32.gmra.mxu0 %v3217
        %v3257 = vpop.f32.mrf.mxu0
        %v3258 = vadd.f32 0.0, %v3257
        %3259 = vmatmul.f32.gmra.mxu0 %v3220
        %v3260 = vpop.f32.mrf.mxu0
        %v3261 = vadd.f32 0.0, %v3260
        %3262 = vmatmul.f32.gmra.mxu0 %v3223
        %v3263 = vpop.f32.mrf.mxu0
        %v3264 = vadd.f32 0.0, %v3263
        %3265 = vmatmul.f32.gmra.mxu0 %v3226
        %v3266 = vpop.f32.mrf.mxu0
        %v3267 = vadd.f32 0.0, %v3266
        %3268 = vmatmul.f32.gmra.mxu0 %v3229
        %v3269 = vpop.f32.mrf.mxu0
        %v3270 = vadd.f32 0.0, %v3269
        %3271 = vmatmul.f32.gmra.mxu0 %v3232
        %v3272 = vpop.f32.mrf.mxu0
        %v3273 = vadd.f32 0.0, %v3272
        %3274 = vmatmul.f32.gmra.mxu0 %v3235
        %v3275 = vpop.f32.mrf.mxu0
        %v3276 = vadd.f32 0.0, %v3275
        %3277 = vdwg.mxu0
        %v3279 = vsel %vm775, %v2936, 0
        %v3282 = vsel %vm775, %v2937, 0
        %v3285 = vsel %vm775, %v2968, 0
        %v3288 = vsel %vm775, %v2969, 0
        %v3291 = vsel %vm775, %v3000, 0
        %v3294 = vsel %vm775, %v3001, 0
        %v3297 = vsel %vm775, %v3032, 0
        %v3300 = vsel %vm775, %v3033, 0
        %3302 = vmatpush.msra.mxu0 0.0
        %3303 = vmatpush.msra.mxu0 0.0
        %3304 = vmatpush.msra.mxu0 0.0
        %3305 = vmatpush.msra.mxu0 0.0
        %3306 = vmatpush.msra.mxu0 0.0
        %3307 = vmatpush.msra.mxu0 0.0
        %3308 = vmatpush.msra.mxu0 0.0
        %3309 = vmatpush.msra.mxu0 0.0
        %3310 = vmatpush.msra.mxu0 0.0
        %3311 = vmatpush.msra.mxu0 0.0
        %3312 = vmatpush.msra.mxu0 0.0
        %3313 = vmatpush.msra.mxu0 0.0
        %3314 = vmatpush.msra.mxu0 0.0
        %3315 = vmatpush.msra.mxu0 0.0
        %3316 = vmatpush.msra.mxu0 %v3210
        %3317 = vmatpush.msra.mxu0 %v3209
        %3318 = vmatmul.f32.gmra.mxu0 %v3279
        %v3319 = vpop.f32.mrf.mxu0
        %v3320 = vadd.f32 %v3255, %v3319
        %3321 = vmatmul.f32.gmra.mxu0 %v3282
        %v3322 = vpop.f32.mrf.mxu0
        %v3323 = vadd.f32 %v3258, %v3322
        %3324 = vmatmul.f32.gmra.mxu0 %v3285
        %v3325 = vpop.f32.mrf.mxu0
        %v3326 = vadd.f32 %v3261, %v3325
        %3327 = vmatmul.f32.gmra.mxu0 %v3288
        %v3328 = vpop.f32.mrf.mxu0
        %v3329 = vadd.f32 %v3264, %v3328
        %3330 = vmatmul.f32.gmra.mxu0 %v3291
        %v3331 = vpop.f32.mrf.mxu0
        %v3332 = vadd.f32 %v3267, %v3331
        %3333 = vmatmul.f32.gmra.mxu0 %v3294
        %v3334 = vpop.f32.mrf.mxu0
        %v3335 = vadd.f32 %v3270, %v3334
        %3336 = vmatmul.f32.gmra.mxu0 %v3297
        %v3337 = vpop.f32.mrf.mxu0
        %v3338 = vadd.f32 %v3273, %v3337
        %3339 = vmatmul.f32.gmra.mxu0 %v3300
        %v3340 = vpop.f32.mrf.mxu0
        %v3341 = vadd.f32 %v3276, %v3340
        %3342 = vdwg.mxu0
        %v3343 = vld [vmem:[%s3208 + $0x20] sm:$0xff]
        %v3344 = vld [vmem:[%s3208 + $0x28] sm:$0xff]
        %vm3345 = vcmp.ne.f32.partialorder %v3343, 0.0
        %vm3346 = vcmp.ne.f32.partialorder %v3344, 0.0
        %v3347 = vld [vmem:[%s375] sm:$0xff]
        %v3348 = vld [vmem:[%s375 + $0x8] sm:$0xff]
        %v3349 = vld [vmem:[%s375 + $0x10] sm:$0xff]
        %v3350 = vld [vmem:[%s375 + $0x18] sm:$0xff]
        %v3351 = vld [vmem:[%s375 + $0x20] sm:$0xff]
        %v3352 = vld [vmem:[%s375 + $0x28] sm:$0xff]
        %v3353 = vld [vmem:[%s375 + $0x30] sm:$0xff]
        %v3354 = vld [vmem:[%s375 + $0x38] sm:$0xff]
        %v3355 = vsel %vm3345, 1, 0
        %v3356 = vsel %vm3346, 1, 0
        %vm3357 = vcmp.eq.s32.totalorder %v3355, 1
        %vm3358 = vcmp.eq.s32.totalorder %v3356, 1
        %v3359 = vsel %vm3357, %v3320, %v3347
        %v3360 = vsel %vm3358, %v3323, %v3348
        %v3361 = vsel %vm3357, %v3326, %v3349
        %v3362 = vsel %vm3358, %v3329, %v3350
        %v3363 = vsel %vm3357, %v3332, %v3351
        %v3364 = vsel %vm3358, %v3335, %v3352
        %v3365 = vsel %vm3357, %v3338, %v3353
        %v3366 = vsel %vm3358, %v3341, %v3354
        %3367 = vst [vmem:[%s375] sm:$0xff] %v3359
        %3368 = vst [vmem:[%s375 + $0x8] sm:$0xff] %v3360
        %3369 = vst [vmem:[%s375 + $0x10] sm:$0xff] %v3361
        %3370 = vst [vmem:[%s375 + $0x18] sm:$0xff] %v3362
        %3371 = vst [vmem:[%s375 + $0x20] sm:$0xff] %v3363
        %3372 = vst [vmem:[%s375 + $0x28] sm:$0xff] %v3364
        %3373 = vst [vmem:[%s375 + $0x30] sm:$0xff] %v3365
        %3374 = vst [vmem:[%s375 + $0x38] sm:$0xff] %v3366
        %3375 = vrot.lane.b32.xlu0 %v460, 32
        %v3376 = vpop.permute.xlu0 %3375
        %3377 = vrot.lane.b32.xlu0 %v463, 32
        %v3378 = vpop.permute.xlu0 %3377
        %3381 = vxpose.xlu0.b32.start [1/16] %v3376, 128
        %3382 = vxpose.xlu0.b32.cont [2/16] %v3378, 128
        %3383 = vxpose.xlu0.b32.cont [3/16] 0.0, 128
        %3384 = vxpose.xlu0.b32.cont [4/16] 0.0, 128
        %3385 = vxpose.xlu0.b32.cont [5/16] 0.0, 128
        %3386 = vxpose.xlu0.b32.cont [6/16] 0.0, 128
        %3387 = vxpose.xlu0.b32.cont [7/16] 0.0, 128
        %3388 = vxpose.xlu0.b32.cont [8/16] 0.0, 128
        %3389 = vxpose.xlu0.b32.cont [9/16] 0.0, 128
        %3390 = vxpose.xlu0.b32.cont [10/16] 0.0, 128
        %3391 = vxpose.xlu0.b32.cont [11/16] 0.0, 128
        %3392 = vxpose.xlu0.b32.cont [12/16] 0.0, 128
        %3393 = vxpose.xlu0.b32.cont [13/16] 0.0, 128
        %3394 = vxpose.xlu0.b32.cont [14/16] 0.0, 128
        %3395 = vxpose.xlu0.b32.cont [15/16] 0.0, 128
        %3396 = vxpose.xlu0.b32.end [16/16] 0.0, 128
        %v3397 = vpop.trf.xlu0
        %v3398 = vpop.trf.xlu0
        %v3399 = vpop.trf.xlu0
        %v3400 = vpop.trf.xlu0
        %v3401 = vpop.trf.xlu0
        %v3402 = vpop.trf.xlu0
        %v3403 = vpop.trf.xlu0
        %v3404 = vpop.trf.xlu0
        %v3405 = vpop.trf.xlu0
        %v3406 = vpop.trf.xlu0
        %v3407 = vpop.trf.xlu0
        %v3408 = vpop.trf.xlu0
        %v3409 = vpop.trf.xlu0
        %v3410 = vpop.trf.xlu0
        %v3411 = vpop.trf.xlu0
        %v3412 = vpop.trf.xlu0
        %3413 = vrot.lane.b32.xlu0 %v466, 32
        %v3414 = vpop.permute.xlu0 %3413
        %3415 = vrot.lane.b32.xlu0 %v469, 32
        %v3416 = vpop.permute.xlu0 %3415
        %3419 = vxpose.xlu0.b32.start [1/16] %v3414, 128
        %3420 = vxpose.xlu0.b32.cont [2/16] %v3416, 128
        %3421 = vxpose.xlu0.b32.cont [3/16] 0.0, 128
        %3422 = vxpose.xlu0.b32.cont [4/16] 0.0, 128
        %3423 = vxpose.xlu0.b32.cont [5/16] 0.0, 128
        %3424 = vxpose.xlu0.b32.cont [6/16] 0.0, 128
        %3425 = vxpose.xlu0.b32.cont [7/16] 0.0, 128
        %3426 = vxpose.xlu0.b32.cont [8/16] 0.0, 128
        %3427 = vxpose.xlu0.b32.cont [9/16] 0.0, 128
        %3428 = vxpose.xlu0.b32.cont [10/16] 0.0, 128
        %3429 = vxpose.xlu0.b32.cont [11/16] 0.0, 128
        %3430 = vxpose.xlu0.b32.cont [12/16] 0.0, 128
        %3431 = vxpose.xlu0.b32.cont [13/16] 0.0, 128
        %3432 = vxpose.xlu0.b32.cont [14/16] 0.0, 128
        %3433 = vxpose.xlu0.b32.cont [15/16] 0.0, 128
        %3434 = vxpose.xlu0.b32.end [16/16] 0.0, 128
        %v3435 = vpop.trf.xlu0
        %v3436 = vpop.trf.xlu0
        %v3437 = vpop.trf.xlu0
        %v3438 = vpop.trf.xlu0
        %v3439 = vpop.trf.xlu0
        %v3440 = vpop.trf.xlu0
        %v3441 = vpop.trf.xlu0
        %v3442 = vpop.trf.xlu0
        %v3443 = vpop.trf.xlu0
        %v3444 = vpop.trf.xlu0
        %v3445 = vpop.trf.xlu0
        %v3446 = vpop.trf.xlu0
        %v3447 = vpop.trf.xlu0
        %v3448 = vpop.trf.xlu0
        %v3449 = vpop.trf.xlu0
        %v3450 = vpop.trf.xlu0
        %3451 = vrot.lane.b32.xlu0 %v472, 32
        %v3452 = vpop.permute.xlu0 %3451
        %3453 = vrot.lane.b32.xlu0 %v475, 32
        %v3454 = vpop.permute.xlu0 %3453
        %3457 = vxpose.xlu0.b32.start [1/16] %v3452, 128
        %3458 = vxpose.xlu0.b32.cont [2/16] %v3454, 128
        %3459 = vxpose.xlu0.b32.cont [3/16] 0.0, 128
        %3460 = vxpose.xlu0.b32.cont [4/16] 0.0, 128
        %3461 = vxpose.xlu0.b32.cont [5/16] 0.0, 128
        %3462 = vxpose.xlu0.b32.cont [6/16] 0.0, 128
        %3463 = vxpose.xlu0.b32.cont [7/16] 0.0, 128
        %3464 = vxpose.xlu0.b32.cont [8/16] 0.0, 128
        %3465 = vxpose.xlu0.b32.cont [9/16] 0.0, 128
        %3466 = vxpose.xlu0.b32.cont [10/16] 0.0, 128
        %3467 = vxpose.xlu0.b32.cont [11/16] 0.0, 128
        %3468 = vxpose.xlu0.b32.cont [12/16] 0.0, 128
        %3469 = vxpose.xlu0.b32.cont [13/16] 0.0, 128
        %3470 = vxpose.xlu0.b32.cont [14/16] 0.0, 128
        %3471 = vxpose.xlu0.b32.cont [15/16] 0.0, 128
        %3472 = vxpose.xlu0.b32.end [16/16] 0.0, 128
        %v3473 = vpop.trf.xlu0
        %v3474 = vpop.trf.xlu0
        %v3475 = vpop.trf.xlu0
        %v3476 = vpop.trf.xlu0
        %v3477 = vpop.trf.xlu0
        %v3478 = vpop.trf.xlu0
        %v3479 = vpop.trf.xlu0
        %v3480 = vpop.trf.xlu0
        %v3481 = vpop.trf.xlu0
        %v3482 = vpop.trf.xlu0
        %v3483 = vpop.trf.xlu0
        %v3484 = vpop.trf.xlu0
        %v3485 = vpop.trf.xlu0
        %v3486 = vpop.trf.xlu0
        %v3487 = vpop.trf.xlu0
        %v3488 = vpop.trf.xlu0
        %3489 = vrot.lane.b32.xlu0 %v478, 32
        %v3490 = vpop.permute.xlu0 %3489
        %3491 = vrot.lane.b32.xlu0 %v481, 32
        %v3492 = vpop.permute.xlu0 %3491
        %3495 = vxpose.xlu0.b32.start [1/16] %v3490, 128
        %3496 = vxpose.xlu0.b32.cont [2/16] %v3492, 128
        %3497 = vxpose.xlu0.b32.cont [3/16] 0.0, 128
        %3498 = vxpose.xlu0.b32.cont [4/16] 0.0, 128
        %3499 = vxpose.xlu0.b32.cont [5/16] 0.0, 128
        %3500 = vxpose.xlu0.b32.cont [6/16] 0.0, 128
        %3501 = vxpose.xlu0.b32.cont [7/16] 0.0, 128
        %3502 = vxpose.xlu0.b32.cont [8/16] 0.0, 128
        %3503 = vxpose.xlu0.b32.cont [9/16] 0.0, 128
        %3504 = vxpose.xlu0.b32.cont [10/16] 0.0, 128
        %3505 = vxpose.xlu0.b32.cont [11/16] 0.0, 128
        %3506 = vxpose.xlu0.b32.cont [12/16] 0.0, 128
        %3507 = vxpose.xlu0.b32.cont [13/16] 0.0, 128
        %3508 = vxpose.xlu0.b32.cont [14/16] 0.0, 128
        %3509 = vxpose.xlu0.b32.cont [15/16] 0.0, 128
        %3510 = vxpose.xlu0.b32.end [16/16] 0.0, 128
        %v3511 = vpop.trf.xlu0
        %v3512 = vpop.trf.xlu0
        %v3513 = vpop.trf.xlu0
        %v3514 = vpop.trf.xlu0
        %v3515 = vpop.trf.xlu0
        %v3516 = vpop.trf.xlu0
        %v3517 = vpop.trf.xlu0
        %v3518 = vpop.trf.xlu0
        %v3519 = vpop.trf.xlu0
        %v3520 = vpop.trf.xlu0
        %v3521 = vpop.trf.xlu0
        %v3522 = vpop.trf.xlu0
        %v3523 = vpop.trf.xlu0
        %v3524 = vpop.trf.xlu0
        %v3525 = vpop.trf.xlu0
        %v3526 = vpop.trf.xlu0
        %3527 = vrot.lane.b32.xlu0 %v460, 16
        %v3528 = vpop.permute.xlu0 %3527
        %3529 = vrot.lane.b32.xlu0 %v463, 16
        %v3530 = vpop.permute.xlu0 %3529
        %3533 = vxpose.xlu0.b32.start [1/16] %v3528, 128
        %3534 = vxpose.xlu0.b32.cont [2/16] %v3530, 128
        %3535 = vxpose.xlu0.b32.cont [3/16] 0.0, 128
        %3536 = vxpose.xlu0.b32.cont [4/16] 0.0, 128
        %3537 = vxpose.xlu0.b32.cont [5/16] 0.0, 128
        %3538 = vxpose.xlu0.b32.cont [6/16] 0.0, 128
        %3539 = vxpose.xlu0.b32.cont [7/16] 0.0, 128
        %3540 = vxpose.xlu0.b32.cont [8/16] 0.0, 128
        %3541 = vxpose.xlu0.b32.cont [9/16] 0.0, 128
        %3542 = vxpose.xlu0.b32.cont [10/16] 0.0, 128
        %3543 = vxpose.xlu0.b32.cont [11/16] 0.0, 128
        %3544 = vxpose.xlu0.b32.cont [12/16] 0.0, 128
        %3545 = vxpose.xlu0.b32.cont [13/16] 0.0, 128
        %3546 = vxpose.xlu0.b32.cont [14/16] 0.0, 128
        %3547 = vxpose.xlu0.b32.cont [15/16] 0.0, 128
        %3548 = vxpose.xlu0.b32.end [16/16] 0.0, 128
        %v3549 = vpop.trf.xlu0
        %v3550 = vpop.trf.xlu0
        %v3551 = vpop.trf.xlu0
        %v3552 = vpop.trf.xlu0
        %v3553 = vpop.trf.xlu0
        %v3554 = vpop.trf.xlu0
        %v3555 = vpop.trf.xlu0
        %v3556 = vpop.trf.xlu0
        %v3557 = vpop.trf.xlu0
        %v3558 = vpop.trf.xlu0
        %v3559 = vpop.trf.xlu0
        %v3560 = vpop.trf.xlu0
        %v3561 = vpop.trf.xlu0
        %v3562 = vpop.trf.xlu0
        %v3563 = vpop.trf.xlu0
        %v3564 = vpop.trf.xlu0
        %3565 = vrot.lane.b32.xlu0 %v466, 16
        %v3566 = vpop.permute.xlu0 %3565
        %3567 = vrot.lane.b32.xlu0 %v469, 16
        %v3568 = vpop.permute.xlu0 %3567
        %3571 = vxpose.xlu0.b32.start [1/16] %v3566, 128
        %3572 = vxpose.xlu0.b32.cont [2/16] %v3568, 128
        %3573 = vxpose.xlu0.b32.cont [3/16] 0.0, 128
        %3574 = vxpose.xlu0.b32.cont [4/16] 0.0, 128
        %3575 = vxpose.xlu0.b32.cont [5/16] 0.0, 128
        %3576 = vxpose.xlu0.b32.cont [6/16] 0.0, 128
        %3577 = vxpose.xlu0.b32.cont [7/16] 0.0, 128
        %3578 = vxpose.xlu0.b32.cont [8/16] 0.0, 128
        %3579 = vxpose.xlu0.b32.cont [9/16] 0.0, 128
        %3580 = vxpose.xlu0.b32.cont [10/16] 0.0, 128
        %3581 = vxpose.xlu0.b32.cont [11/16] 0.0, 128
        %3582 = vxpose.xlu0.b32.cont [12/16] 0.0, 128
        %3583 = vxpose.xlu0.b32.cont [13/16] 0.0, 128
        %3584 = vxpose.xlu0.b32.cont [14/16] 0.0, 128
        %3585 = vxpose.xlu0.b32.cont [15/16] 0.0, 128
        %3586 = vxpose.xlu0.b32.end [16/16] 0.0, 128
        %v3587 = vpop.trf.xlu0
        %v3588 = vpop.trf.xlu0
        %v3589 = vpop.trf.xlu0
        %v3590 = vpop.trf.xlu0
        %v3591 = vpop.trf.xlu0
        %v3592 = vpop.trf.xlu0
        %v3593 = vpop.trf.xlu0
        %v3594 = vpop.trf.xlu0
        %v3595 = vpop.trf.xlu0
        %v3596 = vpop.trf.xlu0
        %v3597 = vpop.trf.xlu0
        %v3598 = vpop.trf.xlu0
        %v3599 = vpop.trf.xlu0
        %v3600 = vpop.trf.xlu0
        %v3601 = vpop.trf.xlu0
        %v3602 = vpop.trf.xlu0
        %3603 = vrot.lane.b32.xlu0 %v472, 16
        %v3604 = vpop.permute.xlu0 %3603
        %3605 = vrot.lane.b32.xlu0 %v475, 16
        %v3606 = vpop.permute.xlu0 %3605
        %3609 = vxpose.xlu0.b32.start [1/16] %v3604, 128
        %3610 = vxpose.xlu0.b32.cont [2/16] %v3606, 128
        %3611 = vxpose.xlu0.b32.cont [3/16] 0.0, 128
        %3612 = vxpose.xlu0.b32.cont [4/16] 0.0, 128
        %3613 = vxpose.xlu0.b32.cont [5/16] 0.0, 128
        %3614 = vxpose.xlu0.b32.cont [6/16] 0.0, 128
        %3615 = vxpose.xlu0.b32.cont [7/16] 0.0, 128
        %3616 = vxpose.xlu0.b32.cont [8/16] 0.0, 128
        %3617 = vxpose.xlu0.b32.cont [9/16] 0.0, 128
        %3618 = vxpose.xlu0.b32.cont [10/16] 0.0, 128
        %3619 = vxpose.xlu0.b32.cont [11/16] 0.0, 128
        %3620 = vxpose.xlu0.b32.cont [12/16] 0.0, 128
        %3621 = vxpose.xlu0.b32.cont [13/16] 0.0, 128
        %3622 = vxpose.xlu0.b32.cont [14/16] 0.0, 128
        %3623 = vxpose.xlu0.b32.cont [15/16] 0.0, 128
        %3624 = vxpose.xlu0.b32.end [16/16] 0.0, 128
        %v3625 = vpop.trf.xlu0
        %v3626 = vpop.trf.xlu0
        %v3627 = vpop.trf.xlu0
        %v3628 = vpop.trf.xlu0
        %v3629 = vpop.trf.xlu0
        %v3630 = vpop.trf.xlu0
        %v3631 = vpop.trf.xlu0
        %v3632 = vpop.trf.xlu0
        %v3633 = vpop.trf.xlu0
        %v3634 = vpop.trf.xlu0
        %v3635 = vpop.trf.xlu0
        %v3636 = vpop.trf.xlu0
        %v3637 = vpop.trf.xlu0
        %v3638 = vpop.trf.xlu0
        %v3639 = vpop.trf.xlu0
        %v3640 = vpop.trf.xlu0
        %3641 = vrot.lane.b32.xlu0 %v478, 16
        %v3642 = vpop.permute.xlu0 %3641
        %3643 = vrot.lane.b32.xlu0 %v481, 16
        %v3644 = vpop.permute.xlu0 %3643
        %3647 = vxpose.xlu0.b32.start [1/16] %v3642, 128
        %3648 = vxpose.xlu0.b32.cont [2/16] %v3644, 128
        %3649 = vxpose.xlu0.b32.cont [3/16] 0.0, 128
        %3650 = vxpose.xlu0.b32.cont [4/16] 0.0, 128
        %3651 = vxpose.xlu0.b32.cont [5/16] 0.0, 128
        %3652 = vxpose.xlu0.b32.cont [6/16] 0.0, 128
        %3653 = vxpose.xlu0.b32.cont [7/16] 0.0, 128
        %3654 = vxpose.xlu0.b32.cont [8/16] 0.0, 128
        %3655 = vxpose.xlu0.b32.cont [9/16] 0.0, 128
        %3656 = vxpose.xlu0.b32.cont [10/16] 0.0, 128
        %3657 = vxpose.xlu0.b32.cont [11/16] 0.0, 128
        %3658 = vxpose.xlu0.b32.cont [12/16] 0.0, 128
        %3659 = vxpose.xlu0.b32.cont [13/16] 0.0, 128
        %3660 = vxpose.xlu0.b32.cont [14/16] 0.0, 128
        %3661 = vxpose.xlu0.b32.cont [15/16] 0.0, 128
        %3662 = vxpose.xlu0.b32.end [16/16] 0.0, 128
        %v3663 = vpop.trf.xlu0
        %v3664 = vpop.trf.xlu0
        %v3665 = vpop.trf.xlu0
        %v3666 = vpop.trf.xlu0
        %v3667 = vpop.trf.xlu0
        %v3668 = vpop.trf.xlu0
        %v3669 = vpop.trf.xlu0
        %v3670 = vpop.trf.xlu0
        %v3671 = vpop.trf.xlu0
        %v3672 = vpop.trf.xlu0
        %v3673 = vpop.trf.xlu0
        %v3674 = vpop.trf.xlu0
        %v3675 = vpop.trf.xlu0
        %v3676 = vpop.trf.xlu0
        %v3677 = vpop.trf.xlu0
        %v3678 = vpop.trf.xlu0
        %s3679 = scalar_lea.vmem %s382, 96
        %v3680 = vld [vmem:[%s3679] sm:$0xff]
        %v3681 = vld [vmem:[%s3679 + $0x8] sm:$0xff]
        %v3682 = vld [vmem:[%s3679 + $0x10] sm:$0xff]
        %v3683 = vld [vmem:[%s3679 + $0x18] sm:$0xff]
        %v3685 = vsel %vm775, %v3549, 0
        %v3688 = vsel %vm775, %v3550, 0
        %v3691 = vsel %vm775, %v3587, 0
        %v3694 = vsel %vm775, %v3588, 0
        %v3697 = vsel %vm775, %v3625, 0
        %v3700 = vsel %vm775, %v3626, 0
        %v3703 = vsel %vm775, %v3663, 0
        %v3706 = vsel %vm775, %v3664, 0
        %3708 = vmatpush.msra.mxu0 0.0
        %3709 = vmatpush.msra.mxu0 0.0
        %3710 = vmatpush.msra.mxu0 0.0
        %3711 = vmatpush.msra.mxu0 0.0
        %3712 = vmatpush.msra.mxu0 0.0
        %3713 = vmatpush.msra.mxu0 0.0
        %3714 = vmatpush.msra.mxu0 0.0
        %3715 = vmatpush.msra.mxu0 0.0
        %3716 = vmatpush.msra.mxu0 0.0
        %3717 = vmatpush.msra.mxu0 0.0
        %3718 = vmatpush.msra.mxu0 0.0
        %3719 = vmatpush.msra.mxu0 0.0
        %3720 = vmatpush.msra.mxu0 0.0
        %3721 = vmatpush.msra.mxu0 0.0
        %3722 = vmatpush.msra.mxu0 %v3683
        %3723 = vmatpush.msra.mxu0 %v3682
        %3724 = vmatmul.f32.gmra.mxu0 %v3685
        %v3725 = vpop.f32.mrf.mxu0
        %v3726 = vadd.f32 0.0, %v3725
        %3727 = vmatmul.f32.gmra.mxu0 %v3688
        %v3728 = vpop.f32.mrf.mxu0
        %v3729 = vadd.f32 0.0, %v3728
        %3730 = vmatmul.f32.gmra.mxu0 %v3691
        %v3731 = vpop.f32.mrf.mxu0
        %v3732 = vadd.f32 0.0, %v3731
        %3733 = vmatmul.f32.gmra.mxu0 %v3694
        %v3734 = vpop.f32.mrf.mxu0
        %v3735 = vadd.f32 0.0, %v3734
        %3736 = vmatmul.f32.gmra.mxu0 %v3697
        %v3737 = vpop.f32.mrf.mxu0
        %v3738 = vadd.f32 0.0, %v3737
        %3739 = vmatmul.f32.gmra.mxu0 %v3700
        %v3740 = vpop.f32.mrf.mxu0
        %v3741 = vadd.f32 0.0, %v3740
        %3742 = vmatmul.f32.gmra.mxu0 %v3703
        %v3743 = vpop.f32.mrf.mxu0
        %v3744 = vadd.f32 0.0, %v3743
        %3745 = vmatmul.f32.gmra.mxu0 %v3706
        %v3746 = vpop.f32.mrf.mxu0
        %v3747 = vadd.f32 0.0, %v3746
        %3748 = vdwg.mxu0
        %v3750 = vsel %vm775, %v3397, 0
        %v3753 = vsel %vm775, %v3398, 0
        %v3756 = vsel %vm775, %v3435, 0
        %v3759 = vsel %vm775, %v3436, 0
        %v3762 = vsel %vm775, %v3473, 0
        %v3765 = vsel %vm775, %v3474, 0
        %v3768 = vsel %vm775, %v3511, 0
        %v3771 = vsel %vm775, %v3512, 0
        %3773 = vmatpush.msra.mxu0 0.0
        %3774 = vmatpush.msra.mxu0 0.0
        %3775 = vmatpush.msra.mxu0 0.0
        %3776 = vmatpush.msra.mxu0 0.0
        %3777 = vmatpush.msra.mxu0 0.0
        %3778 = vmatpush.msra.mxu0 0.0
        %3779 = vmatpush.msra.mxu0 0.0
        %3780 = vmatpush.msra.mxu0 0.0
        %3781 = vmatpush.msra.mxu0 0.0
        %3782 = vmatpush.msra.mxu0 0.0
        %3783 = vmatpush.msra.mxu0 0.0
        %3784 = vmatpush.msra.mxu0 0.0
        %3785 = vmatpush.msra.mxu0 0.0
        %3786 = vmatpush.msra.mxu0 0.0
        %3787 = vmatpush.msra.mxu0 %v3681
        %3788 = vmatpush.msra.mxu0 %v3680
        %3789 = vmatmul.f32.gmra.mxu0 %v3750
        %v3790 = vpop.f32.mrf.mxu0
        %v3791 = vadd.f32 %v3726, %v3790
        %3792 = vmatmul.f32.gmra.mxu0 %v3753
        %v3793 = vpop.f32.mrf.mxu0
        %v3794 = vadd.f32 %v3729, %v3793
        %3795 = vmatmul.f32.gmra.mxu0 %v3756
        %v3796 = vpop.f32.mrf.mxu0
        %v3797 = vadd.f32 %v3732, %v3796
        %3798 = vmatmul.f32.gmra.mxu0 %v3759
        %v3799 = vpop.f32.mrf.mxu0
        %v3800 = vadd.f32 %v3735, %v3799
        %3801 = vmatmul.f32.gmra.mxu0 %v3762
        %v3802 = vpop.f32.mrf.mxu0
        %v3803 = vadd.f32 %v3738, %v3802
        %3804 = vmatmul.f32.gmra.mxu0 %v3765
        %v3805 = vpop.f32.mrf.mxu0
        %v3806 = vadd.f32 %v3741, %v3805
        %3807 = vmatmul.f32.gmra.mxu0 %v3768
        %v3808 = vpop.f32.mrf.mxu0
        %v3809 = vadd.f32 %v3744, %v3808
        %3810 = vmatmul.f32.gmra.mxu0 %v3771
        %v3811 = vpop.f32.mrf.mxu0
        %v3812 = vadd.f32 %v3747, %v3811
        %3813 = vdwg.mxu0
        %v3814 = vmax.f32 %v3791, 0.0
        %v3815 = vmax.f32 %v3794, 0.0
        %v3816 = vmax.f32 %v3797, 0.0
        %v3817 = vmax.f32 %v3800, 0.0
        %v3818 = vmax.f32 %v3803, 0.0
        %v3819 = vmax.f32 %v3806, 0.0
        %v3820 = vmax.f32 %v3809, 0.0
        %v3821 = vmax.f32 %v3812, 0.0
        %s3822 = scalar_lea.vmem %s326, 48 [#allocation7]
        %v3823 = vld [vmem:[%s3822] sm:$0xff]
        %v3824 = vld [vmem:[%s3822 + $0x8] sm:$0xff]
        %v3826 = vsel %vm775, %v3814, 0
        %v3829 = vsel %vm775, %v3815, 0
        %v3832 = vsel %vm775, %v3816, 0
        %v3835 = vsel %vm775, %v3817, 0
        %v3838 = vsel %vm775, %v3818, 0
        %v3841 = vsel %vm775, %v3819, 0
        %v3844 = vsel %vm775, %v3820, 0
        %v3847 = vsel %vm775, %v3821, 0
        %3849 = vmatpush.msra.mxu0 0.0
        %3850 = vmatpush.msra.mxu0 0.0
        %3851 = vmatpush.msra.mxu0 0.0
        %3852 = vmatpush.msra.mxu0 0.0
        %3853 = vmatpush.msra.mxu0 0.0
        %3854 = vmatpush.msra.mxu0 0.0
        %3855 = vmatpush.msra.mxu0 0.0
        %3856 = vmatpush.msra.mxu0 0.0
        %3857 = vmatpush.msra.mxu0 0.0
        %3858 = vmatpush.msra.mxu0 0.0
        %3859 = vmatpush.msra.mxu0 0.0
        %3860 = vmatpush.msra.mxu0 0.0
        %3861 = vmatpush.msra.mxu0 0.0
        %3862 = vmatpush.msra.mxu0 0.0
        %3863 = vmatpush.msra.mxu0 %v3824
        %3864 = vmatpush.msra.mxu0 %v3823
        %3865 = vmatmul.f32.gmra.mxu0 %v3826
        %v3866 = vpop.f32.mrf.mxu0
        %v3867 = vadd.f32 0.0, %v3866
        %3868 = vmatmul.f32.gmra.mxu0 %v3829
        %v3869 = vpop.f32.mrf.mxu0
        %v3870 = vadd.f32 0.0, %v3869
        %3871 = vmatmul.f32.gmra.mxu0 %v3832
        %v3872 = vpop.f32.mrf.mxu0
        %v3873 = vadd.f32 0.0, %v3872
        %3874 = vmatmul.f32.gmra.mxu0 %v3835
        %v3875 = vpop.f32.mrf.mxu0
        %v3876 = vadd.f32 0.0, %v3875
        %3877 = vmatmul.f32.gmra.mxu0 %v3838
        %v3878 = vpop.f32.mrf.mxu0
        %v3879 = vadd.f32 0.0, %v3878
        %3880 = vmatmul.f32.gmra.mxu0 %v3841
        %v3881 = vpop.f32.mrf.mxu0
        %v3882 = vadd.f32 0.0, %v3881
        %3883 = vmatmul.f32.gmra.mxu0 %v3844
        %v3884 = vpop.f32.mrf.mxu0
        %v3885 = vadd.f32 0.0, %v3884
        %3886 = vmatmul.f32.gmra.mxu0 %v3847
        %v3887 = vpop.f32.mrf.mxu0
        %v3888 = vadd.f32 0.0, %v3887
        %3889 = vdwg.mxu0
        %3890 = vxpose.xlu0.b32.start [1/16] %v3867, 128
        %3891 = vxpose.xlu0.b32.cont [2/16] %v3870, 128
        %3892 = vxpose.xlu0.b32.cont [3/16] 0.0, 128
        %3893 = vxpose.xlu0.b32.cont [4/16] 0.0, 128
        %3894 = vxpose.xlu0.b32.cont [5/16] 0.0, 128
        %3895 = vxpose.xlu0.b32.cont [6/16] 0.0, 128
        %3896 = vxpose.xlu0.b32.cont [7/16] 0.0, 128
        %3897 = vxpose.xlu0.b32.cont [8/16] 0.0, 128
        %3898 = vxpose.xlu0.b32.cont [9/16] 0.0, 128
        %3899 = vxpose.xlu0.b32.cont [10/16] 0.0, 128
        %3900 = vxpose.xlu0.b32.cont [11/16] 0.0, 128
        %3901 = vxpose.xlu0.b32.cont [12/16] 0.0, 128
        %3902 = vxpose.xlu0.b32.cont [13/16] 0.0, 128
        %3903 = vxpose.xlu0.b32.cont [14/16] 0.0, 128
        %3904 = vxpose.xlu0.b32.cont [15/16] 0.0, 128
        %3905 = vxpose.xlu0.b32.end [16/16] 0.0, 128
        %v3906 = vpop.trf.xlu0
        %v3907 = vpop.trf.xlu0
        %v3908 = vpop.trf.xlu0
        %v3909 = vpop.trf.xlu0
        %v3910 = vpop.trf.xlu0
        %v3911 = vpop.trf.xlu0
        %v3912 = vpop.trf.xlu0
        %v3913 = vpop.trf.xlu0
        %v3914 = vpop.trf.xlu0
        %v3915 = vpop.trf.xlu0
        %v3916 = vpop.trf.xlu0
        %v3917 = vpop.trf.xlu0
        %v3918 = vpop.trf.xlu0
        %v3919 = vpop.trf.xlu0
        %v3920 = vpop.trf.xlu0
        %v3921 = vpop.trf.xlu0
        %3922 = vxpose.xlu0.b32.start [1/16] %v3873, 128
        %3923 = vxpose.xlu0.b32.cont [2/16] %v3876, 128
        %3924 = vxpose.xlu0.b32.cont [3/16] 0.0, 128
        %3925 = vxpose.xlu0.b32.cont [4/16] 0.0, 128
        %3926 = vxpose.xlu0.b32.cont [5/16] 0.0, 128
        %3927 = vxpose.xlu0.b32.cont [6/16] 0.0, 128
        %3928 = vxpose.xlu0.b32.cont [7/16] 0.0, 128
        %3929 = vxpose.xlu0.b32.cont [8/16] 0.0, 128
        %3930 = vxpose.xlu0.b32.cont [9/16] 0.0, 128
        %3931 = vxpose.xlu0.b32.cont [10/16] 0.0, 128
        %3932 = vxpose.xlu0.b32.cont [11/16] 0.0, 128
        %3933 = vxpose.xlu0.b32.cont [12/16] 0.0, 128
        %3934 = vxpose.xlu0.b32.cont [13/16] 0.0, 128
        %3935 = vxpose.xlu0.b32.cont [14/16] 0.0, 128
        %3936 = vxpose.xlu0.b32.cont [15/16] 0.0, 128
        %3937 = vxpose.xlu0.b32.end [16/16] 0.0, 128
        %v3938 = vpop.trf.xlu0
        %v3939 = vpop.trf.xlu0
        %v3940 = vpop.trf.xlu0
        %v3941 = vpop.trf.xlu0
        %v3942 = vpop.trf.xlu0
        %v3943 = vpop.trf.xlu0
        %v3944 = vpop.trf.xlu0
        %v3945 = vpop.trf.xlu0
        %v3946 = vpop.trf.xlu0
        %v3947 = vpop.trf.xlu0
        %v3948 = vpop.trf.xlu0
        %v3949 = vpop.trf.xlu0
        %v3950 = vpop.trf.xlu0
        %v3951 = vpop.trf.xlu0
        %v3952 = vpop.trf.xlu0
        %v3953 = vpop.trf.xlu0
        %3954 = vxpose.xlu0.b32.start [1/16] %v3879, 128
        %3955 = vxpose.xlu0.b32.cont [2/16] %v3882, 128
        %3956 = vxpose.xlu0.b32.cont [3/16] 0.0, 128
        %3957 = vxpose.xlu0.b32.cont [4/16] 0.0, 128
        %3958 = vxpose.xlu0.b32.cont [5/16] 0.0, 128
        %3959 = vxpose.xlu0.b32.cont [6/16] 0.0, 128
        %3960 = vxpose.xlu0.b32.cont [7/16] 0.0, 128
        %3961 = vxpose.xlu0.b32.cont [8/16] 0.0, 128
        %3962 = vxpose.xlu0.b32.cont [9/16] 0.0, 128
        %3963 = vxpose.xlu0.b32.cont [10/16] 0.0, 128
        %3964 = vxpose.xlu0.b32.cont [11/16] 0.0, 128
        %3965 = vxpose.xlu0.b32.cont [12/16] 0.0, 128
        %3966 = vxpose.xlu0.b32.cont [13/16] 0.0, 128
        %3967 = vxpose.xlu0.b32.cont [14/16] 0.0, 128
        %3968 = vxpose.xlu0.b32.cont [15/16] 0.0, 128
        %3969 = vxpose.xlu0.b32.end [16/16] 0.0, 128
        %v3970 = vpop.trf.xlu0
        %v3971 = vpop.trf.xlu0
        %v3972 = vpop.trf.xlu0
        %v3973 = vpop.trf.xlu0
        %v3974 = vpop.trf.xlu0
        %v3975 = vpop.trf.xlu0
        %v3976 = vpop.trf.xlu0
        %v3977 = vpop.trf.xlu0
        %v3978 = vpop.trf.xlu0
        %v3979 = vpop.trf.xlu0
        %v3980 = vpop.trf.xlu0
        %v3981 = vpop.trf.xlu0
        %v3982 = vpop.trf.xlu0
        %v3983 = vpop.trf.xlu0
        %v3984 = vpop.trf.xlu0
        %v3985 = vpop.trf.xlu0
        %3986 = vxpose.xlu0.b32.start [1/16] %v3885, 128
        %3987 = vxpose.xlu0.b32.cont [2/16] %v3888, 128
        %3988 = vxpose.xlu0.b32.cont [3/16] 0.0, 128
        %3989 = vxpose.xlu0.b32.cont [4/16] 0.0, 128
        %3990 = vxpose.xlu0.b32.cont [5/16] 0.0, 128
        %3991 = vxpose.xlu0.b32.cont [6/16] 0.0, 128
        %3992 = vxpose.xlu0.b32.cont [7/16] 0.0, 128
        %3993 = vxpose.xlu0.b32.cont [8/16] 0.0, 128
        %3994 = vxpose.xlu0.b32.cont [9/16] 0.0, 128
        %3995 = vxpose.xlu0.b32.cont [10/16] 0.0, 128
        %3996 = vxpose.xlu0.b32.cont [11/16] 0.0, 128
        %3997 = vxpose.xlu0.b32.cont [12/16] 0.0, 128
        %3998 = vxpose.xlu0.b32.cont [13/16] 0.0, 128
        %3999 = vxpose.xlu0.b32.cont [14/16] 0.0, 128
        %4000 = vxpose.xlu0.b32.cont [15/16] 0.0, 128
        %4001 = vxpose.xlu0.b32.end [16/16] 0.0, 128
        %v4002 = vpop.trf.xlu0
        %v4003 = vpop.trf.xlu0
        %v4004 = vpop.trf.xlu0
        %v4005 = vpop.trf.xlu0
        %v4006 = vpop.trf.xlu0
        %v4007 = vpop.trf.xlu0
        %v4008 = vpop.trf.xlu0
        %v4009 = vpop.trf.xlu0
        %v4010 = vpop.trf.xlu0
        %v4011 = vpop.trf.xlu0
        %v4012 = vpop.trf.xlu0
        %v4013 = vpop.trf.xlu0
        %v4014 = vpop.trf.xlu0
        %v4015 = vpop.trf.xlu0
        %v4016 = vpop.trf.xlu0
        %v4017 = vpop.trf.xlu0
        %4020 = vrot.lane.b32.xlu0 %v3867, 112
        %v4021 = vpop.permute.xlu0 %4020
        %4022 = vrot.lane.b32.xlu0 %v3870, 112
        %v4023 = vpop.permute.xlu0 %4022
        %4026 = vxpose.xlu0.b32.start [1/16] %v4021, 128
        %4027 = vxpose.xlu0.b32.cont [2/16] %v4023, 128
        %4028 = vxpose.xlu0.b32.cont [3/16] 0.0, 128
        %4029 = vxpose.xlu0.b32.cont [4/16] 0.0, 128
        %4030 = vxpose.xlu0.b32.cont [5/16] 0.0, 128
        %4031 = vxpose.xlu0.b32.cont [6/16] 0.0, 128
        %4032 = vxpose.xlu0.b32.cont [7/16] 0.0, 128
        %4033 = vxpose.xlu0.b32.cont [8/16] 0.0, 128
        %4034 = vxpose.xlu0.b32.cont [9/16] 0.0, 128
        %4035 = vxpose.xlu0.b32.cont [10/16] 0.0, 128
        %4036 = vxpose.xlu0.b32.cont [11/16] 0.0, 128
        %4037 = vxpose.xlu0.b32.cont [12/16] 0.0, 128
        %4038 = vxpose.xlu0.b32.cont [13/16] 0.0, 128
        %4039 = vxpose.xlu0.b32.cont [14/16] 0.0, 128
        %4040 = vxpose.xlu0.b32.cont [15/16] 0.0, 128
        %4041 = vxpose.xlu0.b32.end [16/16] 0.0, 128
        %v4042 = vpop.trf.xlu0
        %v4043 = vpop.trf.xlu0
        %v4044 = vpop.trf.xlu0
        %v4045 = vpop.trf.xlu0
        %v4046 = vpop.trf.xlu0
        %v4047 = vpop.trf.xlu0
        %v4048 = vpop.trf.xlu0
        %v4049 = vpop.trf.xlu0
        %v4050 = vpop.trf.xlu0
        %v4051 = vpop.trf.xlu0
        %v4052 = vpop.trf.xlu0
        %v4053 = vpop.trf.xlu0
        %v4054 = vpop.trf.xlu0
        %v4055 = vpop.trf.xlu0
        %v4056 = vpop.trf.xlu0
        %v4057 = vpop.trf.xlu0
        %4060 = vrot.lane.b32.xlu0 %v3873, 112
        %v4061 = vpop.permute.xlu0 %4060
        %4062 = vrot.lane.b32.xlu0 %v3876, 112
        %v4063 = vpop.permute.xlu0 %4062
        %4066 = vxpose.xlu0.b32.start [1/16] %v4061, 128
        %4067 = vxpose.xlu0.b32.cont [2/16] %v4063, 128
        %4068 = vxpose.xlu0.b32.cont [3/16] 0.0, 128
        %4069 = vxpose.xlu0.b32.cont [4/16] 0.0, 128
        %4070 = vxpose.xlu0.b32.cont [5/16] 0.0, 128
        %4071 = vxpose.xlu0.b32.cont [6/16] 0.0, 128
        %4072 = vxpose.xlu0.b32.cont [7/16] 0.0, 128
        %4073 = vxpose.xlu0.b32.cont [8/16] 0.0, 128
        %4074 = vxpose.xlu0.b32.cont [9/16] 0.0, 128
        %4075 = vxpose.xlu0.b32.cont [10/16] 0.0, 128
        %4076 = vxpose.xlu0.b32.cont [11/16] 0.0, 128
        %4077 = vxpose.xlu0.b32.cont [12/16] 0.0, 128
        %4078 = vxpose.xlu0.b32.cont [13/16] 0.0, 128
        %4079 = vxpose.xlu0.b32.cont [14/16] 0.0, 128
        %4080 = vxpose.xlu0.b32.cont [15/16] 0.0, 128
        %4081 = vxpose.xlu0.b32.end [16/16] 0.0, 128
        %v4082 = vpop.trf.xlu0
        %v4083 = vpop.trf.xlu0
        %v4084 = vpop.trf.xlu0
        %v4085 = vpop.trf.xlu0
        %v4086 = vpop.trf.xlu0
        %v4087 = vpop.trf.xlu0
        %v4088 = vpop.trf.xlu0
        %v4089 = vpop.trf.xlu0
        %v4090 = vpop.trf.xlu0
        %v4091 = vpop.trf.xlu0
        %v4092 = vpop.trf.xlu0
        %v4093 = vpop.trf.xlu0
        %v4094 = vpop.trf.xlu0
        %v4095 = vpop.trf.xlu0
        %v4096 = vpop.trf.xlu0
        %v4097 = vpop.trf.xlu0
        %4100 = vrot.lane.b32.xlu0 %v3879, 112
        %v4101 = vpop.permute.xlu0 %4100
        %4102 = vrot.lane.b32.xlu0 %v3882, 112
        %v4103 = vpop.permute.xlu0 %4102
        %4106 = vxpose.xlu0.b32.start [1/16] %v4101, 128
        %4107 = vxpose.xlu0.b32.cont [2/16] %v4103, 128
        %4108 = vxpose.xlu0.b32.cont [3/16] 0.0, 128
        %4109 = vxpose.xlu0.b32.cont [4/16] 0.0, 128
        %4110 = vxpose.xlu0.b32.cont [5/16] 0.0, 128
        %4111 = vxpose.xlu0.b32.cont [6/16] 0.0, 128
        %4112 = vxpose.xlu0.b32.cont [7/16] 0.0, 128
        %4113 = vxpose.xlu0.b32.cont [8/16] 0.0, 128
        %4114 = vxpose.xlu0.b32.cont [9/16] 0.0, 128
        %4115 = vxpose.xlu0.b32.cont [10/16] 0.0, 128
        %4116 = vxpose.xlu0.b32.cont [11/16] 0.0, 128
        %4117 = vxpose.xlu0.b32.cont [12/16] 0.0, 128
        %4118 = vxpose.xlu0.b32.cont [13/16] 0.0, 128
        %4119 = vxpose.xlu0.b32.cont [14/16] 0.0, 128
        %4120 = vxpose.xlu0.b32.cont [15/16] 0.0, 128
        %4121 = vxpose.xlu0.b32.end [16/16] 0.0, 128
        %v4122 = vpop.trf.xlu0
        %v4123 = vpop.trf.xlu0
        %v4124 = vpop.trf.xlu0
        %v4125 = vpop.trf.xlu0
        %v4126 = vpop.trf.xlu0
        %v4127 = vpop.trf.xlu0
        %v4128 = vpop.trf.xlu0
        %v4129 = vpop.trf.xlu0
        %v4130 = vpop.trf.xlu0
        %v4131 = vpop.trf.xlu0
        %v4132 = vpop.trf.xlu0
        %v4133 = vpop.trf.xlu0
        %v4134 = vpop.trf.xlu0
        %v4135 = vpop.trf.xlu0
        %v4136 = vpop.trf.xlu0
        %v4137 = vpop.trf.xlu0
        %4140 = vrot.lane.b32.xlu0 %v3885, 112
        %v4141 = vpop.permute.xlu0 %4140
        %4142 = vrot.lane.b32.xlu0 %v3888, 112
        %v4143 = vpop.permute.xlu0 %4142
        %4146 = vxpose.xlu0.b32.start [1/16] %v4141, 128
        %4147 = vxpose.xlu0.b32.cont [2/16] %v4143, 128
        %4148 = vxpose.xlu0.b32.cont [3/16] 0.0, 128
        %4149 = vxpose.xlu0.b32.cont [4/16] 0.0, 128
        %4150 = vxpose.xlu0.b32.cont [5/16] 0.0, 128
        %4151 = vxpose.xlu0.b32.cont [6/16] 0.0, 128
        %4152 = vxpose.xlu0.b32.cont [7/16] 0.0, 128
        %4153 = vxpose.xlu0.b32.cont [8/16] 0.0, 128
        %4154 = vxpose.xlu0.b32.cont [9/16] 0.0, 128
        %4155 = vxpose.xlu0.b32.cont [10/16] 0.0, 128
        %4156 = vxpose.xlu0.b32.cont [11/16] 0.0, 128
        %4157 = vxpose.xlu0.b32.cont [12/16] 0.0, 128
        %4158 = vxpose.xlu0.b32.cont [13/16] 0.0, 128
        %4159 = vxpose.xlu0.b32.cont [14/16] 0.0, 128
        %4160 = vxpose.xlu0.b32.cont [15/16] 0.0, 128
        %4161 = vxpose.xlu0.b32.end [16/16] 0.0, 128
        %v4162 = vpop.trf.xlu0
        %v4163 = vpop.trf.xlu0
        %v4164 = vpop.trf.xlu0
        %v4165 = vpop.trf.xlu0
        %v4166 = vpop.trf.xlu0
        %v4167 = vpop.trf.xlu0
        %v4168 = vpop.trf.xlu0
        %v4169 = vpop.trf.xlu0
        %v4170 = vpop.trf.xlu0
        %v4171 = vpop.trf.xlu0
        %v4172 = vpop.trf.xlu0
        %v4173 = vpop.trf.xlu0
        %v4174 = vpop.trf.xlu0
        %v4175 = vpop.trf.xlu0
        %v4176 = vpop.trf.xlu0
        %v4177 = vpop.trf.xlu0
        %s4178 = scalar_lea.vmem %s390, 144
        %v4179 = vld [vmem:[%s4178] sm:$0xff]
        %v4180 = vld [vmem:[%s4178 + $0x8] sm:$0xff]
        %v4181 = vld [vmem:[%s4178 + $0x10] sm:$0xff]
        %v4182 = vld [vmem:[%s4178 + $0x18] sm:$0xff]
        %v4184 = vsel %vm775, %v4042, 0
        %v4187 = vsel %vm775, %v4043, 0
        %v4190 = vsel %vm775, %v4082, 0
        %v4193 = vsel %vm775, %v4083, 0
        %v4196 = vsel %vm775, %v4122, 0
        %v4199 = vsel %vm775, %v4123, 0
        %v4202 = vsel %vm775, %v4162, 0
        %v4205 = vsel %vm775, %v4163, 0
        %4207 = vmatpush.msra.mxu0 0.0
        %4208 = vmatpush.msra.mxu0 0.0
        %4209 = vmatpush.msra.mxu0 0.0
        %4210 = vmatpush.msra.mxu0 0.0
        %4211 = vmatpush.msra.mxu0 0.0
        %4212 = vmatpush.msra.mxu0 0.0
        %4213 = vmatpush.msra.mxu0 0.0
        %4214 = vmatpush.msra.mxu0 0.0
        %4215 = vmatpush.msra.mxu0 0.0
        %4216 = vmatpush.msra.mxu0 0.0
        %4217 = vmatpush.msra.mxu0 0.0
        %4218 = vmatpush.msra.mxu0 0.0
        %4219 = vmatpush.msra.mxu0 0.0
        %4220 = vmatpush.msra.mxu0 0.0
        %4221 = vmatpush.msra.mxu0 %v4182
        %4222 = vmatpush.msra.mxu0 %v4181
        %4223 = vmatmul.f32.gmra.mxu0 %v4184
        %v4224 = vpop.f32.mrf.mxu0
        %v4225 = vadd.f32 0.0, %v4224
        %4226 = vmatmul.f32.gmra.mxu0 %v4187
        %v4227 = vpop.f32.mrf.mxu0
        %v4228 = vadd.f32 0.0, %v4227
        %4229 = vmatmul.f32.gmra.mxu0 %v4190
        %v4230 = vpop.f32.mrf.mxu0
        %v4231 = vadd.f32 0.0, %v4230
        %4232 = vmatmul.f32.gmra.mxu0 %v4193
        %v4233 = vpop.f32.mrf.mxu0
        %v4234 = vadd.f32 0.0, %v4233
        %4235 = vmatmul.f32.gmra.mxu0 %v4196
        %v4236 = vpop.f32.mrf.mxu0
        %v4237 = vadd.f32 0.0, %v4236
        %4238 = vmatmul.f32.gmra.mxu0 %v4199
        %v4239 = vpop.f32.mrf.mxu0
        %v4240 = vadd.f32 0.0, %v4239
        %4241 = vmatmul.f32.gmra.mxu0 %v4202
        %v4242 = vpop.f32.mrf.mxu0
        %v4243 = vadd.f32 0.0, %v4242
        %4244 = vmatmul.f32.gmra.mxu0 %v4205
        %v4245 = vpop.f32.mrf.mxu0
        %v4246 = vadd.f32 0.0, %v4245
        %4247 = vdwg.mxu0
        %v4249 = vsel %vm775, %v3906, 0
        %v4252 = vsel %vm775, %v3907, 0
        %v4255 = vsel %vm775, %v3938, 0
        %v4258 = vsel %vm775, %v3939, 0
        %v4261 = vsel %vm775, %v3970, 0
        %v4264 = vsel %vm775, %v3971, 0
        %v4267 = vsel %vm775, %v4002, 0
        %v4270 = vsel %vm775, %v4003, 0
        %4272 = vmatpush.msra.mxu0 0.0
        %4273 = vmatpush.msra.mxu0 0.0
        %4274 = vmatpush.msra.mxu0 0.0
        %4275 = vmatpush.msra.mxu0 0.0
        %4276 = vmatpush.msra.mxu0 0.0
        %4277 = vmatpush.msra.mxu0 0.0
        %4278 = vmatpush.msra.mxu0 0.0
        %4279 = vmatpush.msra.mxu0 0.0
        %4280 = vmatpush.msra.mxu0 0.0
        %4281 = vmatpush.msra.mxu0 0.0
        %4282 = vmatpush.msra.mxu0 0.0
        %4283 = vmatpush.msra.mxu0 0.0
        %4284 = vmatpush.msra.mxu0 0.0
        %4285 = vmatpush.msra.mxu0 0.0
        %4286 = vmatpush.msra.mxu0 %v4180
        %4287 = vmatpush.msra.mxu0 %v4179
        %4288 = vmatmul.f32.gmra.mxu0 %v4249
        %v4289 = vpop.f32.mrf.mxu0
        %v4290 = vadd.f32 %v4225, %v4289
        %4291 = vmatmul.f32.gmra.mxu0 %v4252
        %v4292 = vpop.f32.mrf.mxu0
        %v4293 = vadd.f32 %v4228, %v4292
        %4294 = vmatmul.f32.gmra.mxu0 %v4255
        %v4295 = vpop.f32.mrf.mxu0
        %v4296 = vadd.f32 %v4231, %v4295
        %4297 = vmatmul.f32.gmra.mxu0 %v4258
        %v4298 = vpop.f32.mrf.mxu0
        %v4299 = vadd.f32 %v4234, %v4298
        %4300 = vmatmul.f32.gmra.mxu0 %v4261
        %v4301 = vpop.f32.mrf.mxu0
        %v4302 = vadd.f32 %v4237, %v4301
        %4303 = vmatmul.f32.gmra.mxu0 %v4264
        %v4304 = vpop.f32.mrf.mxu0
        %v4305 = vadd.f32 %v4240, %v4304
        %4306 = vmatmul.f32.gmra.mxu0 %v4267
        %v4307 = vpop.f32.mrf.mxu0
        %v4308 = vadd.f32 %v4243, %v4307
        %4309 = vmatmul.f32.gmra.mxu0 %v4270
        %v4310 = vpop.f32.mrf.mxu0
        %v4311 = vadd.f32 %v4246, %v4310
        %4312 = vdwg.mxu0
        %v4313 = vld [vmem:[%s4178 + $0x20] sm:$0xff]
        %v4314 = vld [vmem:[%s4178 + $0x28] sm:$0xff]
        %vm4315 = vcmp.ne.f32.partialorder %v4313, 0.0
        %vm4316 = vcmp.ne.f32.partialorder %v4314, 0.0
        %v4317 = vld [vmem:[%s375] sm:$0xff]
        %v4318 = vld [vmem:[%s375 + $0x8] sm:$0xff]
        %v4319 = vld [vmem:[%s375 + $0x10] sm:$0xff]
        %v4320 = vld [vmem:[%s375 + $0x18] sm:$0xff]
        %v4321 = vld [vmem:[%s375 + $0x20] sm:$0xff]
        %v4322 = vld [vmem:[%s375 + $0x28] sm:$0xff]
        %v4323 = vld [vmem:[%s375 + $0x30] sm:$0xff]
        %v4324 = vld [vmem:[%s375 + $0x38] sm:$0xff]
        %v4325 = vsel %vm4315, 1, 0
        %v4326 = vsel %vm4316, 1, 0
        %vm4327 = vcmp.eq.s32.totalorder %v4325, 1
        %vm4328 = vcmp.eq.s32.totalorder %v4326, 1
        %v4329 = vsel %vm4327, %v4290, %v4317
        %v4330 = vsel %vm4328, %v4293, %v4318
        %v4331 = vsel %vm4327, %v4296, %v4319
        %v4332 = vsel %vm4328, %v4299, %v4320
        %v4333 = vsel %vm4327, %v4302, %v4321
        %v4334 = vsel %vm4328, %v4305, %v4322
        %v4335 = vsel %vm4327, %v4308, %v4323
        %v4336 = vsel %vm4328, %v4311, %v4324
        %4337 = vst [vmem:[%s375] sm:$0xff] %v4329
        %4338 = vst [vmem:[%s375 + $0x8] sm:$0xff] %v4330
        %4339 = vst [vmem:[%s375 + $0x10] sm:$0xff] %v4331
        %4340 = vst [vmem:[%s375 + $0x18] sm:$0xff] %v4332
        %4341 = vst [vmem:[%s375 + $0x20] sm:$0xff] %v4333
        %4342 = vst [vmem:[%s375 + $0x28] sm:$0xff] %v4334
        %4343 = vst [vmem:[%s375 + $0x30] sm:$0xff] %v4335
        %4344 = vst [vmem:[%s375 + $0x38] sm:$0xff] %v4336
        %s4345 = sand.u32 %s175, 1
        %s4346 = scalar_lea.sflag [#allocation4], %s4345
        %s4347 = sand.u32 %s175, 1
        %s4348 = smul.addr %s4347, 64
        %s4349 = scalar_lea.vmem [#allocation8], %s4348
        // Predicated region
        $region57: #{tpu_custom_call.1} parent=39 // pred_check
          %p4350 = pneg %p185
        $region58: #{tpu_custom_call.1} parent=39 // pred_check_branch
          %4352 = sbr.rel (%p4350) target = $region60
        $region59: #{tpu_custom_call.1} parent=39 // pred_region
          %s4353 = smul.u32 4, %s29
          %4355 = vsyncadd %s4346, 0
          %s4356 = smul.addr %s4353, 2
          %s4357 = smul.addr %s4356, 8
          %s4358 = scalar_lea.hbm %s5, %s4357
          %s4359 = sshll.u32 %s4349, 4
          %s4360 = int_to_ptr.vmem [resolvable:$true] %s4359
          %s4361 = sshll.u32 %s4358, 4
          %s4362 = int_to_ptr.hbm [resolvable:$true] %s4361
          %4367 = dma.vmem_to_hbm [thread:$0]  %s4360, 1024, %s4362, %s4346, 128, 128, 8
        $region60: #{tpu_custom_call.1} parent=39 // pred_fallthru
          _
      $region40: #{tpu_custom_call.1} parent=5 // pred_fallthru
        _
      %p4368 = scmp.le.s32.totalorder 2, %s20
      // Predicated region
      $region61: #{tpu_custom_call.1} parent=5 // pred_check
        %p4369 = pneg %p4368
      $region62: #{tpu_custom_call.1} parent=5 // pred_check_branch
        %4371 = sbr.rel (%p4369) target = $region64
      $region63: #{tpu_custom_call.1} parent=5 // pred_region
        %s4372 = ssub.s32 %s20, 2
        // Predicated region
        $region65: #{tpu_custom_call.1} parent=63 // pred_check
          %p4373 = pneg %p191
        $region66: #{tpu_custom_call.1} parent=63 // pred_check_branch
          %4375 = sbr.rel (%p4373) target = $region68
        $region67: #{tpu_custom_call.1} parent=63 // pred_region
          %s4376 = sand.u32 %s176, 1
          %s4377 = scalar_lea.sflag [#allocation4], %s4376
          %s4378 = sand.u32 %s176, 1
          %s4379 = smul.addr %s4378, 64
          %s4380 = scalar_lea.vmem [#allocation8], %s4379
          %4382 = dma.done %s4377, 1024
        $region68: #{tpu_custom_call.1} parent=63 // pred_fallthru
          _
      $region64: #{tpu_custom_call.1} parent=5 // pred_fallthru
        _
    $region6: #{tpu_custom_call.1} parent=1 // loop_footer
      %s24 = sadd.s32 1, %s20
    $region7: #{tpu_custom_call.1} parent=1 // loop_footer_branch
      %19 = sbr.rel target = $region3
    $region8: #{tpu_custom_call.1} parent=1 // loop_exit
      _
    %4383 = vsyncpa [#allocation3], 1
    %s4384 = scalar_lea.sflag [#allocation3], 1
    %4385 = vsyncpa %s4384, 1
    %4386 = vsyncpa [#allocation6], 1
    %s4387 = scalar_lea.sflag [#allocation6], 1
    %4388 = vsyncpa %s4387, 1
    %4389 = vsyncpa [#allocation4], 1
    %s4390 = scalar_lea.sflag [#allocation4], 1
    %4391 = vsyncpa %s4390, 1

</llo_original>
